<compile_context>
chip_gen: v7x
topology: tpu7x:2x2x1
jax: 0.10.0
libtpu: 0.0.40
codegen_flags: <defaults>
</compile_context>

<pallas_src>
import math
import jax
import jax.numpy as jnp
from jax import lax
from jax.experimental import pallas as pl
from jax.experimental.pallas import tpu as pltpu

_LANE = 128


def _round_up(x, m):
    return (x + m - 1) // m * m


# ------------------ fused Conv3x3 + bias + ReLU (+ MaxPool 2x2) -------------- #
def _make_conv3x3_kernel(pool):
    def kernel(x_ref, h_ref, w_ref, b_ref, o_ref, *scratch):
        # x_ref : (1, TH, W, Cp)  TH-row tile of the channel-padded input
        # h_ref : (1, 2, W, Cp)   [row above tile, row below tile] (zeros at edges)
        # w_ref : (3, 3*Cp, Cop)  per-dy weight matrices, rows ordered (dx, cin)
        # b_ref : (1, Cop)        f32 bias
        # o_ref : (1, THo, Wo, Cop)
        # scratch: (row_ref,) VMEM (TH//2, W, Cop) f32, only when pool=True
        _, TH, W, Cp = x_ref.shape
        Cop = o_ref.shape[-1]
        cdt = x_ref.dtype

        x = x_ref[0]            # (TH, W, Cp)
        top = h_ref[0, 0:1]     # (1, W, Cp)
        bot = h_ref[0, 1:2]     # (1, W, Cp)

        # dy-shifted row slabs (1-row halo); contiguous, full-width views only.
        if TH > 1:
            slab0 = jnp.concatenate([top, x[:TH - 1]], axis=0)   # rows -1 .. TH-2
            slab2 = jnp.concatenate([x[1:], bot], axis=0)        # rows  1 .. TH
        else:
            slab0, slab2 = top, bot
        slabs = (slab0, x, slab2)

        # 3 accumulating per-dy matmuls with K = 3*Cp (no 9x im2col buffer).
        # The dx in {-1,0,+1} shifts come from a 1-column zero pad + lane-axis
        # concat; accumulation stays in f32 (MXU preferred_element_type).
        zcol = jnp.zeros((TH, 1, Cp), cdt)
        acc = None
        for dy in range(3):
            sp = jnp.concatenate([zcol, slabs[dy], zcol], axis=1)      # (TH, W+2, Cp)
            pdy = jnp.concatenate([sp[:, dx:dx + W, :] for dx in range(3)],
                                  axis=-1).reshape(TH * W, 3 * Cp)
            d = jnp.dot(pdy, w_ref[dy], preferred_element_type=jnp.float32)
            acc = d if acc is None else acc + d
        acc = jnp.maximum(acc + b_ref[...], 0.0)                       # bias + ReLU

        if pool:                                      # fused MaxPool2d(2, 2)
            row_ref, = scratch
            Ho, Wo = TH // 2, W // 2
            r = acc.reshape(Ho, 2, W, Cop)
            row_ref[...] = jnp.maximum(r[:, 0], r[:, 1])               # row pairs
            o_ref[0] = jnp.maximum(row_ref[:, pl.ds(0, Wo, 2), :],     # col pairs
                                   row_ref[:, pl.ds(1, Wo, 2), :]).astype(o_ref.dtype)
        else:
            o_ref[0] = acc.reshape(TH, W, Cop).astype(o_ref.dtype)

    return kernel


def _row_tile(H, W, Cp, Cop, bpe, pool, max_rows=None, vmem_budget=24 << 20):
    """Pick a row-tile TH that divides H and keeps per-step VMEM bounded."""
    if max_rows is None:
        per_row = W * (8 * Cp * bpe + Cop * (bpe + 6))   # x/halo/patch/acc/out, rough
        max_rows = max(int(vmem_budget // max(per_row, 1)), 2)
    step = 2 if pool else 1
    th = int(min(H, max_rows))
    th -= th % step
    th = max(th, step)
    while th > step and H % th != 0:
        th -= step
    if H % th != 0:
        th = H
    return th


def _build_row_halos(x, th):
    """(N, nt*2, W, Cp): the rows just above / below each TH-row tile (zeros at
    the image border). Costs only 2/TH of the input in extra HBM reads."""
    N, H, W, Cp = x.shape
    nt = H // th
    zero = jnp.zeros((N, 1, W, Cp), x.dtype)
    if nt == 1:
        top, bot = zero, zero
    else:
        top = jnp.concatenate([zero, x[:, th - 1:H - 1:th]], axis=1)   # row t*th - 1
        bot = jnp.concatenate([x[:, th:H:th], zero], axis=1)           # row t*th + th
    return jnp.stack([top, bot], axis=2).reshape(N, nt * 2, W, Cp)


def _conv_vmem_limit(th, W, Cp, Cop, bpe, pool):
    """Per-step VMEM estimate (+margin), capped at v7x's 64 MiB physical VMEM."""
    x_blk = th * W * Cp * bpe
    halo = 2 * W * Cp * bpe
    w_blk = 9 * Cp * Cop * bpe
    out_blk = (th // 2 if pool else th) * (W // 2 if pool else W) * Cop * bpe
    patches = 3 * th * W * Cp * bpe            # per-dy temp (peak)
    acc = th * W * Cop * 4
    row = (th // 2) * W * Cop * 4 if pool else 0
    need = 2 * (x_blk + halo + out_blk) + 2 * (w_blk + Cop * 4) + patches + acc + row
    return int(min(max(need * 3 // 2 + (4 << 20), 32 << 20), 64 << 20))


def conv3x3_relu_pool(x, wf, bf, *, pool, max_tile_rows=None):
    """x: (N, H, W, Cp) channel-padded NHWC; wf: (3, 3*Cp, Cop); bf: (1, Cop)."""
    N, H, W, Cp = x.shape
    _, KC, Cop = wf.shape
    assert KC == 3 * Cp
    if pool:
        assert H % 2 == 0 and W % 2 == 0
    bpe = x.dtype.itemsize
    th = _row_tile(H, W, Cp, Cop, bpe, pool, max_tile_rows)
    nt = H // th
    halos = _build_row_halos(x, th)
    tho, wo = (th // 2, W // 2) if pool else (th, W)
    scratch = [pltpu.VMEM((th // 2, W, Cop), jnp.float32)] if pool else []
    cost = pl.CostEstimate(
        flops=2 * N * H * W * 9 * Cp * Cop,
        transcendentals=0,
        bytes_accessed=(x.size + halos.size + N * nt * tho * wo * Cop) * bpe
        + wf.size * wf.dtype.itemsize + bf.size * 4)
    # TODO(synk): single-buffer the weight/bias operands (pipeline_mode=
    # pl.Buffered(1)) once verified on the target jax version - they use a
    # constant index_map and never change across the grid.
    return pl.pallas_call(
        _make_conv3x3_kernel(pool),
        out_shape=jax.ShapeDtypeStruct((N, nt * tho, wo, Cop), x.dtype),
        grid=(N, nt),
        in_specs=[
            pl.BlockSpec((1, th, W, Cp), lambda n, t: (n, t, 0, 0)),
            pl.BlockSpec((1, 2, W, Cp), lambda n, t: (n, t, 0, 0)),
            pl.BlockSpec((3, 3 * Cp, Cop), lambda n, t: (0, 0, 0)),   # resident
            pl.BlockSpec((1, Cop), lambda n, t: (0, 0)),              # resident
        ],
        out_specs=pl.BlockSpec((1, tho, wo, Cop), lambda n, t: (n, t, 0, 0)),
        scratch_shapes=scratch,
        compiler_params=pltpu.CompilerParams(
            dimension_semantics=("parallel", "parallel"),
            vmem_limit_bytes=_conv_vmem_limit(th, W, Cp, Cop, bpe, pool)),
        cost_estimate=cost,
    )(x, halos, wf, bf)


# ----------------- standalone MaxPool 2x2 (unfused fallback) ----------------- #
def _maxpool2x2_kernel(x_ref, o_ref, row_ref):
    _, H, W, C = x_ref.shape
    Ho, Wo = H // 2, W // 2
    r = x_ref[0, :2 * Ho].reshape(Ho, 2, W, C)
    row_ref[...] = jnp.maximum(r[:, 0], r[:, 1])
    o_ref[0] = jnp.maximum(row_ref[:, pl.ds(0, Wo, 2), :],
                           row_ref[:, pl.ds(1, Wo, 2), :]).astype(o_ref.dtype)


def maxpool2x2(x):
    """Only used for an 'M' with no preceding conv (not hit by standard VGG cfgs)."""
    N, H, W, C = x.shape
    Ho, Wo = H // 2, W // 2
    return pl.pallas_call(
        _maxpool2x2_kernel,
        out_shape=jax.ShapeDtypeStruct((N, Ho, Wo, C), x.dtype),
        grid=(N,),
        in_specs=[pl.BlockSpec((1, H, W, C), lambda n: (n, 0, 0, 0))],
        out_specs=pl.BlockSpec((1, Ho, Wo, C), lambda n: (n, 0, 0, 0)),
        scratch_shapes=[pltpu.VMEM((Ho, W, C), x.dtype)],
        compiler_params=pltpu.CompilerParams(dimension_semantics=("parallel",)),
    )(x)


# -------------------------------- VGG module --------------------------------- #
def init_vgg_params(cfg, in_channels, key):
    """Matches VGG._initialize_weights for Conv2d: N(0, sqrt(2/(kh*kw*cout))), b=0."""
    params = []
    c = in_channels
    for v in cfg:
        if v == 'M':
            continue
        key, k1 = jax.random.split(key)
        n = 3 * 3 * v
        w = jax.random.normal(k1, (3, 3, c, v), jnp.float32) * math.sqrt(2.0 / n)
        b = jnp.zeros((v,), jnp.float32)
        params.append((w, b))
        c = v
    return params


def prepare_vgg_params(params, compute_dtype=jnp.bfloat16):
    """One-time: pad channels to multiples of 128 (lane-dense), cast weights to
    the compute dtype and regroup the 3x3 taps per-dy into (3, 3*Cp, Cop)."""
    # TODO(synk): for the 3-channel RGB layer, pack taps before lane-padding
    # (K = round_up(9*Cin, 128) instead of 9*128) and space-to-depth the 64-ch
    # layers so channel padding stops inflating MXU work / weight DMA.
    prepped = []
    for w, b in params:
        _, _, cin, cout = w.shape
        cp, cop = _round_up(cin, _LANE), _round_up(cout, _LANE)
        wp = jnp.zeros((3, 3, cp, cop), jnp.float32)
        wp = wp.at[:, :, :cin, :cout].set(w)
        wf = wp.astype(compute_dtype).reshape(3, 3 * cp, cop)
        bf = jnp.zeros((1, cop), jnp.float32).at[0, :cout].set(b)
        prepped.append((wf, bf))
    return prepped


def vgg_forward(x_nchw, cfg, prepped, compute_dtype=jnp.bfloat16, max_tile_rows=None):
    """VGG.forward(x) = features(x). Input/output NCHW (PyTorch layout)."""
    x = jnp.transpose(x_nchw, (0, 2, 3, 1)).astype(compute_dtype)   # -> NHWC
    c = x.shape[-1]
    x = jnp.pad(x, ((0, 0), (0, 0), (0, 0), (0, _round_up(c, _LANE) - c)))
    out_c = c
    pi, i = 0, 0
    # TODO(synk): fuse back-to-back convs (conv->conv) for the memory-bound
    # 64/128-channel layers on v5e/v6e to remove an HBM round-trip per pair.
    while i < len(cfg):
        v = cfg[i]
        if v == 'M':
            x = maxpool2x2(x)                 # fallback: 'M' with no preceding conv
            i += 1
        else:
            wf, bf = prepped[pi]
            pi += 1
            fuse_pool = i + 1 < len(cfg) and cfg[i + 1] == 'M'
            x = conv3x3_relu_pool(x, wf, bf, pool=fuse_pool,
                                  max_tile_rows=max_tile_rows)
            out_c = v
            i += 2 if fuse_pool else 1
    x = x[..., :out_c]                        # drop lane-padding channels
    return jnp.transpose(x, (0, 3, 1, 2)).astype(jnp.float32)       # -> NCHW


# ----------------------------- pure-JAX reference ----------------------------- #
def vgg_forward_ref(x_nchw, cfg, params, compute_dtype=jnp.float32):
    x = jnp.transpose(x_nchw, (0, 2, 3, 1)).astype(compute_dtype)
    pi = 0
    for v in cfg:
        if v == 'M':
            N, H, W, C = x.shape
            Ho, Wo = H // 2, W // 2
            x = x[:, :2 * Ho, :2 * Wo, :].reshape(N, Ho, 2, Wo, 2, C).max(axis=(2, 4))
        else:
            w, b = params[pi]
            pi += 1
            y = lax.conv_general_dilated(
                x, w.astype(compute_dtype), window_strides=(1, 1), padding='SAME',
                dimension_numbers=('NHWC', 'HWIO', 'NHWC'),
                preferred_element_type=jnp.float32)
            x = jnp.maximum(y + b, 0.0).astype(compute_dtype)
    return jnp.transpose(x, (0, 3, 1, 2)).astype(jnp.float32)


if __name__ == "__main__":
    key = jax.random.PRNGKey(0)
    kx, kp = jax.random.split(key)

    # Scaled-down VGG-style feature config (same layer types as cfg 'D').
    cfg = [8, 8, 'M', 16, 16, 'M']
    in_channels = 4

    x = jax.random.normal(kx, (2, in_channels, 16, 16), jnp.float32)  # NCHW
    params = init_vgg_params(cfg, in_channels, kp)
    prepped = prepare_vgg_params(params, compute_dtype=jnp.bfloat16)

    # max_tile_rows=8 so the 16-row layers run as 2 row tiles (exercises halos).
    fwd = jax.jit(lambda inp: vgg_forward(inp, cfg, prepped,
                                          compute_dtype=jnp.bfloat16,
                                          max_tile_rows=8))
    out = jax.block_until_ready(fwd(x))

    ref_bf16 = jax.block_until_ready(
        vgg_forward_ref(x, cfg, params, compute_dtype=jnp.bfloat16))
    ref_f32 = jax.block_until_ready(
        vgg_forward_ref(x, cfg, params, compute_dtype=jnp.float32))

    assert out.shape == (2, 16, 4, 4), out.shape
    assert out.dtype == jnp.float32
    # Tight check vs a reference run with the same compute dtype (bf16 in / f32 acc).
    assert jnp.allclose(out, ref_bf16, atol=2e-2, rtol=2e-2), \
        float(jnp.max(jnp.abs(out - ref_bf16)))
    # Loose sanity check vs the full-f32 reference (bf16 rounding only).
    assert jnp.allclose(out, ref_f32, atol=2.5e-1, rtol=1e-1), \
        float(jnp.max(jnp.abs(out - ref_f32)))
    print("KERNEL_OK")
</pallas_src>

<mosaic_0001>
module attributes {stable_mosaic.version = 11 : i64} {
  func.func @kernel(%arg0: i32, %arg1: i32, %arg2: memref<1x8x16x128xbf16, #tpu.memory_space<vmem>>, %arg3: memref<1x2x16x128xbf16, #tpu.memory_space<vmem>>, %arg4: memref<3x384x128xbf16, #tpu.memory_space<vmem>>, %arg5: memref<1x128xf32, #tpu.memory_space<vmem>>, %arg6: memref<1x8x16x128xbf16, #tpu.memory_space<vmem>>) attributes {dimension_semantics = [#tpu.dimension_semantics<parallel>, #tpu.dimension_semantics<parallel>], iteration_bounds = array<i64: 2, 2>, scalar_prefetch = 0 : i64, scratch_operands = 0 : i64, tpu.core_type = #tpu.core_type<tc>, window_params = [{transform_indices = @transform_0, window_bounds = array<i64: 1, 8, 16, 128>}, {transform_indices = @transform_1, window_bounds = array<i64: 1, 2, 16, 128>}, {pipeline_mode = #tpu.pipeline_mode<synchronous>, transform_indices = @transform_2, window_bounds = array<i64: 3, 384, 128>}, {pipeline_mode = #tpu.pipeline_mode<synchronous>, transform_indices = @transform_3, window_bounds = array<i64: 1, 128>}, {transform_indices = @transform_4, window_bounds = array<i64: 1, 8, 16, 128>}]} {
    %c0 = arith.constant 0 : index
    %c0_0 = arith.constant 0 : index
    %c0_1 = arith.constant 0 : index
    %c0_2 = arith.constant 0 : index
    %0 = vector.load %arg2[%c0, %c0_0, %c0_1, %c0_2] : memref<1x8x16x128xbf16, #tpu.memory_space<vmem>>, vector<1x8x16x128xbf16>
    %1 = vector.shape_cast %0 : vector<1x8x16x128xbf16> to vector<8x16x128xbf16>
    %c0_3 = arith.constant 0 : index
    %c0_4 = arith.constant 0 : index
    %c0_5 = arith.constant 0 : index
    %c0_6 = arith.constant 0 : index
    %2 = vector.load %arg3[%c0_3, %c0_4, %c0_5, %c0_6] : memref<1x2x16x128xbf16, #tpu.memory_space<vmem>>, vector<1x1x16x128xbf16>
    %3 = vector.shape_cast %2 : vector<1x1x16x128xbf16> to vector<1x16x128xbf16>
    %c0_7 = arith.constant 0 : index
    %c1 = arith.constant 1 : index
    %c0_8 = arith.constant 0 : index
    %c0_9 = arith.constant 0 : index
    %4 = vector.load %arg3[%c0_7, %c1, %c0_8, %c0_9] : memref<1x2x16x128xbf16, #tpu.memory_space<vmem>>, vector<1x1x16x128xbf16>
    %5 = vector.shape_cast %4 : vector<1x1x16x128xbf16> to vector<1x16x128xbf16>
    %6 = vector.extract_strided_slice %1 {offsets = [0, 0, 0], sizes = [7, 16, 128], strides = [1, 1, 1]} : vector<8x16x128xbf16> to vector<7x16x128xbf16>
    %7 = tpu.concatenate %3, %6 in 0 : vector<1x16x128xbf16>, vector<7x16x128xbf16> -> vector<8x16x128xbf16>
    %8 = vector.extract_strided_slice %1 {offsets = [1, 0, 0], sizes = [7, 16, 128], strides = [1, 1, 1]} : vector<8x16x128xbf16> to vector<7x16x128xbf16>
    %9 = tpu.concatenate %8, %5 in 0 : vector<7x16x128xbf16>, vector<1x16x128xbf16> -> vector<8x16x128xbf16>
    %cst = arith.constant 0.000000e+00 : bf16
    %10 = vector.broadcast %cst : bf16 to vector<8x1x128xbf16>
    %11 = tpu.concatenate %10, %7, %10 in 1 : vector<8x1x128xbf16>, vector<8x16x128xbf16>, vector<8x1x128xbf16> -> vector<8x18x128xbf16>
    %12 = vector.extract_strided_slice %11 {offsets = [0, 0, 0], sizes = [8, 16, 128], strides = [1, 1, 1]} : vector<8x18x128xbf16> to vector<8x16x128xbf16>
    %13 = vector.extract_strided_slice %11 {offsets = [0, 1, 0], sizes = [8, 16, 128], strides = [1, 1, 1]} : vector<8x18x128xbf16> to vector<8x16x128xbf16>
    %14 = vector.extract_strided_slice %11 {offsets = [0, 2, 0], sizes = [8, 16, 128], strides = [1, 1, 1]} : vector<8x18x128xbf16> to vector<8x16x128xbf16>
    %15 = tpu.concatenate %12, %13, %14 in 2 : vector<8x16x128xbf16>, vector<8x16x128xbf16>, vector<8x16x128xbf16> -> vector<8x16x384xbf16>
    %16 = vector.shape_cast %15 : vector<8x16x384xbf16> to vector<128x384xbf16>
    %c0_10 = arith.constant 0 : index
    %c0_11 = arith.constant 0 : index
    %c0_12 = arith.constant 0 : index
    %17 = vector.load %arg4[%c0_10, %c0_11, %c0_12] : memref<3x384x128xbf16, #tpu.memory_space<vmem>>, vector<1x384x128xbf16>
    %18 = vector.shape_cast %17 : vector<1x384x128xbf16> to vector<384x128xbf16>
    %cst_13 = arith.constant dense<0.000000e+00> : vector<128x128xf32>
    %19 = tpu.matmul %16, %18, %cst_13 {dimension_numbers = #tpu.dot_dimension_numbers<[1], [0], [0], [1], [0, 0, 1, 1], [], []>} : vector<128x384xbf16>, vector<384x128xbf16>, vector<128x128xf32> -> vector<128x128xf32>
    %20 = tpu.concatenate %10, %1, %10 in 1 : vector<8x1x128xbf16>, vector<8x16x128xbf16>, vector<8x1x128xbf16> -> vector<8x18x128xbf16>
    %21 = vector.extract_strided_slice %20 {offsets = [0, 0, 0], sizes = [8, 16, 128], strides = [1, 1, 1]} : vector<8x18x128xbf16> to vector<8x16x128xbf16>
    %22 = vector.extract_strided_slice %20 {offsets = [0, 1, 0], sizes = [8, 16, 128], strides = [1, 1, 1]} : vector<8x18x128xbf16> to vector<8x16x128xbf16>
    %23 = vector.extract_strided_slice %20 {offsets = [0, 2, 0], sizes = [8, 16, 128], strides = [1, 1, 1]} : vector<8x18x128xbf16> to vector<8x16x128xbf16>
    %24 = tpu.concatenate %21, %22, %23 in 2 : vector<8x16x128xbf16>, vector<8x16x128xbf16>, vector<8x16x128xbf16> -> vector<8x16x384xbf16>
    %25 = vector.shape_cast %24 : vector<8x16x384xbf16> to vector<128x384xbf16>
    %c1_14 = arith.constant 1 : index
    %c0_15 = arith.constant 0 : index
    %c0_16 = arith.constant 0 : index
    %26 = vector.load %arg4[%c1_14, %c0_15, %c0_16] : memref<3x384x128xbf16, #tpu.memory_space<vmem>>, vector<1x384x128xbf16>
    %27 = vector.shape_cast %26 : vector<1x384x128xbf16> to vector<384x128xbf16>
    %cst_17 = arith.constant dense<0.000000e+00> : vector<128x128xf32>
    %28 = tpu.matmul %25, %27, %cst_17 {dimension_numbers = #tpu.dot_dimension_numbers<[1], [0], [0], [1], [0, 0, 1, 1], [], []>} : vector<128x384xbf16>, vector<384x128xbf16>, vector<128x128xf32> -> vector<128x128xf32>
    %29 = arith.addf %19, %28 : vector<128x128xf32>
    %30 = tpu.concatenate %10, %9, %10 in 1 : vector<8x1x128xbf16>, vector<8x16x128xbf16>, vector<8x1x128xbf16> -> vector<8x18x128xbf16>
    %31 = vector.extract_strided_slice %30 {offsets = [0, 0, 0], sizes = [8, 16, 128], strides = [1, 1, 1]} : vector<8x18x128xbf16> to vector<8x16x128xbf16>
    %32 = vector.extract_strided_slice %30 {offsets = [0, 1, 0], sizes = [8, 16, 128], strides = [1, 1, 1]} : vector<8x18x128xbf16> to vector<8x16x128xbf16>
    %33 = vector.extract_strided_slice %30 {offsets = [0, 2, 0], sizes = [8, 16, 128], strides = [1, 1, 1]} : vector<8x18x128xbf16> to vector<8x16x128xbf16>
    %34 = tpu.concatenate %31, %32, %33 in 2 : vector<8x16x128xbf16>, vector<8x16x128xbf16>, vector<8x16x128xbf16> -> vector<8x16x384xbf16>
    %35 = vector.shape_cast %34 : vector<8x16x384xbf16> to vector<128x384xbf16>
    %c2 = arith.constant 2 : index
    %c0_18 = arith.constant 0 : index
    %c0_19 = arith.constant 0 : index
    %36 = vector.load %arg4[%c2, %c0_18, %c0_19] : memref<3x384x128xbf16, #tpu.memory_space<vmem>>, vector<1x384x128xbf16>
    %37 = vector.shape_cast %36 : vector<1x384x128xbf16> to vector<384x128xbf16>
    %cst_20 = arith.constant dense<0.000000e+00> : vector<128x128xf32>
    %38 = tpu.matmul %35, %37, %cst_20 {dimension_numbers = #tpu.dot_dimension_numbers<[1], [0], [0], [1], [0, 0, 1, 1], [], []>} : vector<128x384xbf16>, vector<384x128xbf16>, vector<128x128xf32> -> vector<128x128xf32>
    %39 = arith.addf %29, %38 : vector<128x128xf32>
    %c0_21 = arith.constant 0 : index
    %c0_22 = arith.constant 0 : index
    %40 = vector.load %arg5[%c0_21, %c0_22] : memref<1x128xf32, #tpu.memory_space<vmem>>, vector<1x128xf32>
    %41 = vector.broadcast %40 : vector<1x128xf32> to vector<128x128xf32>
    %42 = arith.addf %39, %41 : vector<128x128xf32>
    %cst_23 = arith.constant 0.000000e+00 : f32
    %43 = vector.broadcast %cst_23 : f32 to vector<128x128xf32>
    %44 = arith.maximumf %42, %43 : vector<128x128xf32>
    %45 = vector.shape_cast %44 : vector<128x128xf32> to vector<8x16x128xf32>
    %46 = arith.truncf %45 : vector<8x16x128xf32> to vector<8x16x128xbf16>
    %c0_24 = arith.constant 0 : index
    %c0_25 = arith.constant 0 : index
    %c0_26 = arith.constant 0 : index
    %c0_27 = arith.constant 0 : index
    %47 = vector.load %arg6[%c0_24, %c0_25, %c0_26, %c0_27] : memref<1x8x16x128xbf16, #tpu.memory_space<vmem>>, vector<1x8x16x128xbf16>
    %48 = vector.shape_cast %47 : vector<1x8x16x128xbf16> to vector<8x16x128xbf16>
    %49 = vector.shape_cast %46 : vector<8x16x128xbf16> to vector<1x8x16x128xbf16>
    tpu.vector_store %arg6[%c0_24, %c0_25, %c0_26, %c0_27], %49 {strides = array<i32>} : memref<1x8x16x128xbf16, #tpu.memory_space<vmem>>, vector<1x8x16x128xbf16>,
    return
  }
  func.func @transform_0(%arg0: i32, %arg1: i32) -> (i32, i32, i32, i32) {
    %c0_i32 = arith.constant 0 : i32
    %c0_i32_0 = arith.constant 0 : i32
    %c0_i32_1 = arith.constant 0 : i32
    return %arg0, %arg1, %c0_i32, %c0_i32_0 : i32, i32, i32, i32
  }
  func.func @transform_1(%arg0: i32, %arg1: i32) -> (i32, i32, i32, i32) {
    %c0_i32 = arith.constant 0 : i32
    %c0_i32_0 = arith.constant 0 : i32
    %c0_i32_1 = arith.constant 0 : i32
    return %arg0, %arg1, %c0_i32, %c0_i32_0 : i32, i32, i32, i32
  }
  func.func @transform_2(%arg0: i32, %arg1: i32) -> (i32, i32, i32) {
    %c0_i32 = arith.constant 0 : i32
    %c0_i32_0 = arith.constant 0 : i32
    %c0_i32_1 = arith.constant 0 : i32
    %c0_i32_2 = arith.constant 0 : i32
    return %c0_i32, %c0_i32_0, %c0_i32_1 : i32, i32, i32
  }
  func.func @transform_3(%arg0: i32, %arg1: i32) -> (i32, i32) {
    %c0_i32 = arith.constant 0 : i32
    %c0_i32_0 = arith.constant 0 : i32
    %c0_i32_1 = arith.constant 0 : i32
    return %c0_i32, %c0_i32_0 : i32, i32
  }
  func.func @transform_4(%arg0: i32, %arg1: i32) -> (i32, i32, i32, i32) {
    %c0_i32 = arith.constant 0 : i32
    %c0_i32_0 = arith.constant 0 : i32
    %c0_i32_1 = arith.constant 0 : i32
    return %arg0, %arg1, %c0_i32, %c0_i32_0 : i32, i32, i32, i32
  }
}

module attributes {stable_mosaic.version = 11 : i64} {
  func.func @kernel(%arg0: i32, %arg1: i32, %arg2: memref<1x8x16x128xbf16, #tpu.memory_space<vmem>>, %arg3: memref<1x2x16x128xbf16, #tpu.memory_space<vmem>>, %arg4: memref<3x384x128xbf16, #tpu.memory_space<vmem>>, %arg5: memref<1x128xf32, #tpu.memory_space<vmem>>, %arg6: memref<1x4x8x128xbf16, #tpu.memory_space<vmem>>, %arg7: memref<4x16x128xf32, #tpu.memory_space<vmem>>) attributes {dimension_semantics = [#tpu.dimension_semantics<parallel>, #tpu.dimension_semantics<parallel>], iteration_bounds = array<i64: 2, 2>, scalar_prefetch = 0 : i64, scratch_operands = 1 : i64, tpu.core_type = #tpu.core_type<tc>, window_params = [{transform_indices = @transform_0, window_bounds = array<i64: 1, 8, 16, 128>}, {transform_indices = @transform_1, window_bounds = array<i64: 1, 2, 16, 128>}, {pipeline_mode = #tpu.pipeline_mode<synchronous>, transform_indices = @transform_2, window_bounds = array<i64: 3, 384, 128>}, {pipeline_mode = #tpu.pipeline_mode<synchronous>, transform_indices = @transform_3, window_bounds = array<i64: 1, 128>}, {transform_indices = @transform_4, window_bounds = array<i64: 1, 4, 8, 128>}]} {
    %c0 = arith.constant 0 : index
    %c0_0 = arith.constant 0 : index
    %c0_1 = arith.constant 0 : index
    %c0_2 = arith.constant 0 : index
    %0 = vector.load %arg2[%c0, %c0_0, %c0_1, %c0_2] : memref<1x8x16x128xbf16, #tpu.memory_space<vmem>>, vector<1x8x16x128xbf16>
    %1 = vector.shape_cast %0 : vector<1x8x16x128xbf16> to vector<8x16x128xbf16>
    %c0_3 = arith.constant 0 : index
    %c0_4 = arith.constant 0 : index
    %c0_5 = arith.constant 0 : index
    %c0_6 = arith.constant 0 : index
    %2 = vector.load %arg3[%c0_3, %c0_4, %c0_5, %c0_6] : memref<1x2x16x128xbf16, #tpu.memory_space<vmem>>, vector<1x1x16x128xbf16>
    %3 = vector.shape_cast %2 : vector<1x1x16x128xbf16> to vector<1x16x128xbf16>
    %c0_7 = arith.constant 0 : index
    %c1 = arith.constant 1 : index
    %c0_8 = arith.constant 0 : index
    %c0_9 = arith.constant 0 : index
    %4 = vector.load %arg3[%c0_7, %c1, %c0_8, %c0_9] : memref<1x2x16x128xbf16, #tpu.memory_space<vmem>>, vector<1x1x16x128xbf16>
    %5 = vector.shape_cast %4 : vector<1x1x16x128xbf16> to vector<1x16x128xbf16>
    %6 = vector.extract_strided_slice %1 {offsets = [0, 0, 0], sizes = [7, 16, 128], strides = [1, 1, 1]} : vector<8x16x128xbf16> to vector<7x16x128xbf16>
    %7 = tpu.concatenate %3, %6 in 0 : vector<1x16x128xbf16>, vector<7x16x128xbf16> -> vector<8x16x128xbf16>
    %8 = vector.extract_strided_slice %1 {offsets = [1, 0, 0], sizes = [7, 16, 128], strides = [1, 1, 1]} : vector<8x16x128xbf16> to vector<7x16x128xbf16>
    %9 = tpu.concatenate %8, %5 in 0 : vector<7x16x128xbf16>, vector<1x16x128xbf16> -> vector<8x16x128xbf16>
    %cst = arith.constant 0.000000e+00 : bf16
    %10 = vector.broadcast %cst : bf16 to vector<8x1x128xbf16>
    %11 = tpu.concatenate %10, %7, %10 in 1 : vector<8x1x128xbf16>, vector<8x16x128xbf16>, vector<8x1x128xbf16> -> vector<8x18x128xbf16>
    %12 = vector.extract_strided_slice %11 {offsets = [0, 0, 0], sizes = [8, 16, 128], strides = [1, 1, 1]} : vector<8x18x128xbf16> to vector<8x16x128xbf16>
    %13 = vector.extract_strided_slice %11 {offsets = [0, 1, 0], sizes = [8, 16, 128], strides = [1, 1, 1]} : vector<8x18x128xbf16> to vector<8x16x128xbf16>
    %14 = vector.extract_strided_slice %11 {offsets = [0, 2, 0], sizes = [8, 16, 128], strides = [1, 1, 1]} : vector<8x18x128xbf16> to vector<8x16x128xbf16>
    %15 = tpu.concatenate %12, %13, %14 in 2 : vector<8x16x128xbf16>, vector<8x16x128xbf16>, vector<8x16x128xbf16> -> vector<8x16x384xbf16>
    %16 = vector.shape_cast %15 : vector<8x16x384xbf16> to vector<128x384xbf16>
    %c0_10 = arith.constant 0 : index
    %c0_11 = arith.constant 0 : index
    %c0_12 = arith.constant 0 : index
    %17 = vector.load %arg4[%c0_10, %c0_11, %c0_12] : memref<3x384x128xbf16, #tpu.memory_space<vmem>>, vector<1x384x128xbf16>
    %18 = vector.shape_cast %17 : vector<1x384x128xbf16> to vector<384x128xbf16>
    %cst_13 = arith.constant dense<0.000000e+00> : vector<128x128xf32>
    %19 = tpu.matmul %16, %18, %cst_13 {dimension_numbers = #tpu.dot_dimension_numbers<[1], [0], [0], [1], [0, 0, 1, 1], [], []>} : vector<128x384xbf16>, vector<384x128xbf16>, vector<128x128xf32> -> vector<128x128xf32>
    %20 = tpu.concatenate %10, %1, %10 in 1 : vector<8x1x128xbf16>, vector<8x16x128xbf16>, vector<8x1x128xbf16> -> vector<8x18x128xbf16>
    %21 = vector.extract_strided_slice %20 {offsets = [0, 0, 0], sizes = [8, 16, 128], strides = [1, 1, 1]} : vector<8x18x128xbf16> to vector<8x16x128xbf16>
    %22 = vector.extract_strided_slice %20 {offsets = [0, 1, 0], sizes = [8, 16, 128], strides = [1, 1, 1]} : vector<8x18x128xbf16> to vector<8x16x128xbf16>
    %23 = vector.extract_strided_slice %20 {offsets = [0, 2, 0], sizes = [8, 16, 128], strides = [1, 1, 1]} : vector<8x18x128xbf16> to vector<8x16x128xbf16>
    %24 = tpu.concatenate %21, %22, %23 in 2 : vector<8x16x128xbf16>, vector<8x16x128xbf16>, vector<8x16x128xbf16> -> vector<8x16x384xbf16>
    %25 = vector.shape_cast %24 : vector<8x16x384xbf16> to vector<128x384xbf16>
    %c1_14 = arith.constant 1 : index
    %c0_15 = arith.constant 0 : index
    %c0_16 = arith.constant 0 : index
    %26 = vector.load %arg4[%c1_14, %c0_15, %c0_16] : memref<3x384x128xbf16, #tpu.memory_space<vmem>>, vector<1x384x128xbf16>
    %27 = vector.shape_cast %26 : vector<1x384x128xbf16> to vector<384x128xbf16>
    %cst_17 = arith.constant dense<0.000000e+00> : vector<128x128xf32>
    %28 = tpu.matmul %25, %27, %cst_17 {dimension_numbers = #tpu.dot_dimension_numbers<[1], [0], [0], [1], [0, 0, 1, 1], [], []>} : vector<128x384xbf16>, vector<384x128xbf16>, vector<128x128xf32> -> vector<128x128xf32>
    %29 = arith.addf %19, %28 : vector<128x128xf32>
    %30 = tpu.concatenate %10, %9, %10 in 1 : vector<8x1x128xbf16>, vector<8x16x128xbf16>, vector<8x1x128xbf16> -> vector<8x18x128xbf16>
    %31 = vector.extract_strided_slice %30 {offsets = [0, 0, 0], sizes = [8, 16, 128], strides = [1, 1, 1]} : vector<8x18x128xbf16> to vector<8x16x128xbf16>
    %32 = vector.extract_strided_slice %30 {offsets = [0, 1, 0], sizes = [8, 16, 128], strides = [1, 1, 1]} : vector<8x18x128xbf16> to vector<8x16x128xbf16>
    %33 = vector.extract_strided_slice %30 {offsets = [0, 2, 0], sizes = [8, 16, 128], strides = [1, 1, 1]} : vector<8x18x128xbf16> to vector<8x16x128xbf16>
    %34 = tpu.concatenate %31, %32, %33 in 2 : vector<8x16x128xbf16>, vector<8x16x128xbf16>, vector<8x16x128xbf16> -> vector<8x16x384xbf16>
    %35 = vector.shape_cast %34 : vector<8x16x384xbf16> to vector<128x384xbf16>
    %c2 = arith.constant 2 : index
    %c0_18 = arith.constant 0 : index
    %c0_19 = arith.constant 0 : index
    %36 = vector.load %arg4[%c2, %c0_18, %c0_19] : memref<3x384x128xbf16, #tpu.memory_space<vmem>>, vector<1x384x128xbf16>
    %37 = vector.shape_cast %36 : vector<1x384x128xbf16> to vector<384x128xbf16>
    %cst_20 = arith.constant dense<0.000000e+00> : vector<128x128xf32>
    %38 = tpu.matmul %35, %37, %cst_20 {dimension_numbers = #tpu.dot_dimension_numbers<[1], [0], [0], [1], [0, 0, 1, 1], [], []>} : vector<128x384xbf16>, vector<384x128xbf16>, vector<128x128xf32> -> vector<128x128xf32>
    %39 = arith.addf %29, %38 : vector<128x128xf32>
    %c0_21 = arith.constant 0 : index
    %c0_22 = arith.constant 0 : index
    %40 = vector.load %arg5[%c0_21, %c0_22] : memref<1x128xf32, #tpu.memory_space<vmem>>, vector<1x128xf32>
    %41 = vector.broadcast %40 : vector<1x128xf32> to vector<128x128xf32>
    %42 = arith.addf %39, %41 : vector<128x128xf32>
    %cst_23 = arith.constant 0.000000e+00 : f32
    %43 = vector.broadcast %cst_23 : f32 to vector<128x128xf32>
    %44 = arith.maximumf %42, %43 : vector<128x128xf32>
    %45 = vector.shape_cast %44 : vector<128x128xf32> to vector<4x2x16x128xf32>
    %46 = vector.extract_strided_slice %45 {offsets = [0, 0, 0, 0], sizes = [4, 1, 16, 128], strides = [1, 1, 1, 1]} : vector<4x2x16x128xf32> to vector<4x1x16x128xf32>
    %47 = vector.shape_cast %46 : vector<4x1x16x128xf32> to vector<4x16x128xf32>
    %48 = vector.extract_strided_slice %45 {offsets = [0, 1, 0, 0], sizes = [4, 1, 16, 128], strides = [1, 1, 1, 1]} : vector<4x2x16x128xf32> to vector<4x1x16x128xf32>
    %49 = vector.shape_cast %48 : vector<4x1x16x128xf32> to vector<4x16x128xf32>
    %50 = arith.maximumf %47, %49 : vector<4x16x128xf32>
    %c0_24 = arith.constant 0 : index
    %c0_25 = arith.constant 0 : index
    %c0_26 = arith.constant 0 : index
    %51 = vector.load %arg7[%c0_24, %c0_25, %c0_26] : memref<4x16x128xf32, #tpu.memory_space<vmem>>, vector<4x16x128xf32>
    tpu.vector_store %arg7[%c0_24, %c0_25, %c0_26], %50 {strides = array<i32>} : memref<4x16x128xf32, #tpu.memory_space<vmem>>, vector<4x16x128xf32>,
    %c0_27 = arith.constant 0 : index
    %c0_28 = arith.constant 0 : index
    %c0_29 = arith.constant 0 : index
    %52 = tpu.strided_load %arg7[%c0_27, %c0_28, %c0_29] {strides = array<i32: 1, 2, 1>} : memref<4x16x128xf32, #tpu.memory_space<vmem>>, vector<4x8x128xf32>
    %c0_30 = arith.constant 0 : index
    %c1_31 = arith.constant 1 : index
    %c0_32 = arith.constant 0 : index
    %53 = tpu.strided_load %arg7[%c0_30, %c1_31, %c0_32] {strides = array<i32: 1, 2, 1>} : memref<4x16x128xf32, #tpu.memory_space<vmem>>, vector<4x8x128xf32>
    %54 = arith.maximumf %52, %53 : vector<4x8x128xf32>
    %55 = arith.truncf %54 : vector<4x8x128xf32> to vector<4x8x128xbf16>
    %c0_33 = arith.constant 0 : index
    %c0_34 = arith.constant 0 : index
    %c0_35 = arith.constant 0 : index
    %c0_36 = arith.constant 0 : index
    %56 = vector.load %arg6[%c0_33, %c0_34, %c0_35, %c0_36] : memref<1x4x8x128xbf16, #tpu.memory_space<vmem>>, vector<1x4x8x128xbf16>
    %57 = vector.shape_cast %56 : vector<1x4x8x128xbf16> to vector<4x8x128xbf16>
    %58 = vector.shape_cast %55 : vector<4x8x128xbf16> to vector<1x4x8x128xbf16>
    tpu.vector_store %arg6[%c0_33, %c0_34, %c0_35, %c0_36], %58 {strides = array<i32>} : memref<1x4x8x128xbf16, #tpu.memory_space<vmem>>, vector<1x4x8x128xbf16>,
    return
  }
  func.func @transform_0(%arg0: i32, %arg1: i32) -> (i32, i32, i32, i32) {
    %c0_i32 = arith.constant 0 : i32
    %c0_i32_0 = arith.constant 0 : i32
    %c0_i32_1 = arith.constant 0 : i32
    return %arg0, %arg1, %c0_i32, %c0_i32_0 : i32, i32, i32, i32
  }
  func.func @transform_1(%arg0: i32, %arg1: i32) -> (i32, i32, i32, i32) {
    %c0_i32 = arith.constant 0 : i32
    %c0_i32_0 = arith.constant 0 : i32
    %c0_i32_1 = arith.constant 0 : i32
    return %arg0, %arg1, %c0_i32, %c0_i32_0 : i32, i32, i32, i32
  }
  func.func @transform_2(%arg0: i32, %arg1: i32) -> (i32, i32, i32) {
    %c0_i32 = arith.constant 0 : i32
    %c0_i32_0 = arith.constant 0 : i32
    %c0_i32_1 = arith.constant 0 : i32
    %c0_i32_2 = arith.constant 0 : i32
    return %c0_i32, %c0_i32_0, %c0_i32_1 : i32, i32, i32
  }
  func.func @transform_3(%arg0: i32, %arg1: i32) -> (i32, i32) {
    %c0_i32 = arith.constant 0 : i32
    %c0_i32_0 = arith.constant 0 : i32
    %c0_i32_1 = arith.constant 0 : i32
    return %c0_i32, %c0_i32_0 : i32, i32
  }
  func.func @transform_4(%arg0: i32, %arg1: i32) -> (i32, i32, i32, i32) {
    %c0_i32 = arith.constant 0 : i32
    %c0_i32_0 = arith.constant 0 : i32
    %c0_i32_1 = arith.constant 0 : i32
    return %arg0, %arg1, %c0_i32, %c0_i32_0 : i32, i32, i32, i32
  }
}

module attributes {stable_mosaic.version = 11 : i64} {
  func.func @kernel(%arg0: i32, %arg1: i32, %arg2: memref<1x8x8x128xbf16, #tpu.memory_space<vmem>>, %arg3: memref<1x2x8x128xbf16, #tpu.memory_space<vmem>>, %arg4: memref<3x384x128xbf16, #tpu.memory_space<vmem>>, %arg5: memref<1x128xf32, #tpu.memory_space<vmem>>, %arg6: memref<1x4x4x128xbf16, #tpu.memory_space<vmem>>, %arg7: memref<4x8x128xf32, #tpu.memory_space<vmem>>) attributes {dimension_semantics = [#tpu.dimension_semantics<parallel>, #tpu.dimension_semantics<parallel>], iteration_bounds = array<i64: 2, 1>, scalar_prefetch = 0 : i64, scratch_operands = 1 : i64, tpu.core_type = #tpu.core_type<tc>, window_params = [{transform_indices = @transform_0, window_bounds = array<i64: 1, 8, 8, 128>}, {transform_indices = @transform_1, window_bounds = array<i64: 1, 2, 8, 128>}, {pipeline_mode = #tpu.pipeline_mode<synchronous>, transform_indices = @transform_2, window_bounds = array<i64: 3, 384, 128>}, {pipeline_mode = #tpu.pipeline_mode<synchronous>, transform_indices = @transform_3, window_bounds = array<i64: 1, 128>}, {transform_indices = @transform_4, window_bounds = array<i64: 1, 4, 4, 128>}]} {
    %c0 = arith.constant 0 : index
    %c0_0 = arith.constant 0 : index
    %c0_1 = arith.constant 0 : index
    %c0_2 = arith.constant 0 : index
    %0 = vector.load %arg2[%c0, %c0_0, %c0_1, %c0_2] : memref<1x8x8x128xbf16, #tpu.memory_space<vmem>>, vector<1x8x8x128xbf16>
    %1 = vector.shape_cast %0 : vector<1x8x8x128xbf16> to vector<8x8x128xbf16>
    %c0_3 = arith.constant 0 : index
    %c0_4 = arith.constant 0 : index
    %c0_5 = arith.constant 0 : index
    %c0_6 = arith.constant 0 : index
    %2 = vector.load %arg3[%c0_3, %c0_4, %c0_5, %c0_6] : memref<1x2x8x128xbf16, #tpu.memory_space<vmem>>, vector<1x1x8x128xbf16>
    %3 = vector.shape_cast %2 : vector<1x1x8x128xbf16> to vector<1x8x128xbf16>
    %c0_7 = arith.constant 0 : index
    %c1 = arith.constant 1 : index
    %c0_8 = arith.constant 0 : index
    %c0_9 = arith.constant 0 : index
    %4 = vector.load %arg3[%c0_7, %c1, %c0_8, %c0_9] : memref<1x2x8x128xbf16, #tpu.memory_space<vmem>>, vector<1x1x8x128xbf16>
    %5 = vector.shape_cast %4 : vector<1x1x8x128xbf16> to vector<1x8x128xbf16>
    %6 = vector.extract_strided_slice %1 {offsets = [0, 0, 0], sizes = [7, 8, 128], strides = [1, 1, 1]} : vector<8x8x128xbf16> to vector<7x8x128xbf16>
    %7 = tpu.concatenate %3, %6 in 0 : vector<1x8x128xbf16>, vector<7x8x128xbf16> -> vector<8x8x128xbf16>
    %8 = vector.extract_strided_slice %1 {offsets = [1, 0, 0], sizes = [7, 8, 128], strides = [1, 1, 1]} : vector<8x8x128xbf16> to vector<7x8x128xbf16>
    %9 = tpu.concatenate %8, %5 in 0 : vector<7x8x128xbf16>, vector<1x8x128xbf16> -> vector<8x8x128xbf16>
    %cst = arith.constant 0.000000e+00 : bf16
    %10 = vector.broadcast %cst : bf16 to vector<8x1x128xbf16>
    %11 = tpu.concatenate %10, %7, %10 in 1 : vector<8x1x128xbf16>, vector<8x8x128xbf16>, vector<8x1x128xbf16> -> vector<8x10x128xbf16>
    %12 = vector.extract_strided_slice %11 {offsets = [0, 0, 0], sizes = [8, 8, 128], strides = [1, 1, 1]} : vector<8x10x128xbf16> to vector<8x8x128xbf16>
    %13 = vector.extract_strided_slice %11 {offsets = [0, 1, 0], sizes = [8, 8, 128], strides = [1, 1, 1]} : vector<8x10x128xbf16> to vector<8x8x128xbf16>
    %14 = vector.extract_strided_slice %11 {offsets = [0, 2, 0], sizes = [8, 8, 128], strides = [1, 1, 1]} : vector<8x10x128xbf16> to vector<8x8x128xbf16>
    %15 = tpu.concatenate %12, %13, %14 in 2 : vector<8x8x128xbf16>, vector<8x8x128xbf16>, vector<8x8x128xbf16> -> vector<8x8x384xbf16>
    %16 = vector.shape_cast %15 : vector<8x8x384xbf16> to vector<64x384xbf16>
    %c0_10 = arith.constant 0 : index
    %c0_11 = arith.constant 0 : index
    %c0_12 = arith.constant 0 : index
    %17 = vector.load %arg4[%c0_10, %c0_11, %c0_12] : memref<3x384x128xbf16, #tpu.memory_space<vmem>>, vector<1x384x128xbf16>
    %18 = vector.shape_cast %17 : vector<1x384x128xbf16> to vector<384x128xbf16>
    %cst_13 = arith.constant dense<0.000000e+00> : vector<64x128xf32>
    %19 = tpu.matmul %16, %18, %cst_13 {dimension_numbers = #tpu.dot_dimension_numbers<[1], [0], [0], [1], [0, 0, 1, 1], [], []>} : vector<64x384xbf16>, vector<384x128xbf16>, vector<64x128xf32> -> vector<64x128xf32>
    %20 = tpu.concatenate %10, %1, %10 in 1 : vector<8x1x128xbf16>, vector<8x8x128xbf16>, vector<8x1x128xbf16> -> vector<8x10x128xbf16>
    %21 = vector.extract_strided_slice %20 {offsets = [0, 0, 0], sizes = [8, 8, 128], strides = [1, 1, 1]} : vector<8x10x128xbf16> to vector<8x8x128xbf16>
    %22 = vector.extract_strided_slice %20 {offsets = [0, 1, 0], sizes = [8, 8, 128], strides = [1, 1, 1]} : vector<8x10x128xbf16> to vector<8x8x128xbf16>
    %23 = vector.extract_strided_slice %20 {offsets = [0, 2, 0], sizes = [8, 8, 128], strides = [1, 1, 1]} : vector<8x10x128xbf16> to vector<8x8x128xbf16>
    %24 = tpu.concatenate %21, %22, %23 in 2 : vector<8x8x128xbf16>, vector<8x8x128xbf16>, vector<8x8x128xbf16> -> vector<8x8x384xbf16>
    %25 = vector.shape_cast %24 : vector<8x8x384xbf16> to vector<64x384xbf16>
    %c1_14 = arith.constant 1 : index
    %c0_15 = arith.constant 0 : index
    %c0_16 = arith.constant 0 : index
    %26 = vector.load %arg4[%c1_14, %c0_15, %c0_16] : memref<3x384x128xbf16, #tpu.memory_space<vmem>>, vector<1x384x128xbf16>
    %27 = vector.shape_cast %26 : vector<1x384x128xbf16> to vector<384x128xbf16>
    %cst_17 = arith.constant dense<0.000000e+00> : vector<64x128xf32>
    %28 = tpu.matmul %25, %27, %cst_17 {dimension_numbers = #tpu.dot_dimension_numbers<[1], [0], [0], [1], [0, 0, 1, 1], [], []>} : vector<64x384xbf16>, vector<384x128xbf16>, vector<64x128xf32> -> vector<64x128xf32>
    %29 = arith.addf %19, %28 : vector<64x128xf32>
    %30 = tpu.concatenate %10, %9, %10 in 1 : vector<8x1x128xbf16>, vector<8x8x128xbf16>, vector<8x1x128xbf16> -> vector<8x10x128xbf16>
    %31 = vector.extract_strided_slice %30 {offsets = [0, 0, 0], sizes = [8, 8, 128], strides = [1, 1, 1]} : vector<8x10x128xbf16> to vector<8x8x128xbf16>
    %32 = vector.extract_strided_slice %30 {offsets = [0, 1, 0], sizes = [8, 8, 128], strides = [1, 1, 1]} : vector<8x10x128xbf16> to vector<8x8x128xbf16>
    %33 = vector.extract_strided_slice %30 {offsets = [0, 2, 0], sizes = [8, 8, 128], strides = [1, 1, 1]} : vector<8x10x128xbf16> to vector<8x8x128xbf16>
    %34 = tpu.concatenate %31, %32, %33 in 2 : vector<8x8x128xbf16>, vector<8x8x128xbf16>, vector<8x8x128xbf16> -> vector<8x8x384xbf16>
    %35 = vector.shape_cast %34 : vector<8x8x384xbf16> to vector<64x384xbf16>
    %c2 = arith.constant 2 : index
    %c0_18 = arith.constant 0 : index
    %c0_19 = arith.constant 0 : index
    %36 = vector.load %arg4[%c2, %c0_18, %c0_19] : memref<3x384x128xbf16, #tpu.memory_space<vmem>>, vector<1x384x128xbf16>
    %37 = vector.shape_cast %36 : vector<1x384x128xbf16> to vector<384x128xbf16>
    %cst_20 = arith.constant dense<0.000000e+00> : vector<64x128xf32>
    %38 = tpu.matmul %35, %37, %cst_20 {dimension_numbers = #tpu.dot_dimension_numbers<[1], [0], [0], [1], [0, 0, 1, 1], [], []>} : vector<64x384xbf16>, vector<384x128xbf16>, vector<64x128xf32> -> vector<64x128xf32>
    %39 = arith.addf %29, %38 : vector<64x128xf32>
    %c0_21 = arith.constant 0 : index
    %c0_22 = arith.constant 0 : index
    %40 = vector.load %arg5[%c0_21, %c0_22] : memref<1x128xf32, #tpu.memory_space<vmem>>, vector<1x128xf32>
    %41 = vector.broadcast %40 : vector<1x128xf32> to vector<64x128xf32>
    %42 = arith.addf %39, %41 : vector<64x128xf32>
    %cst_23 = arith.constant 0.000000e+00 : f32
    %43 = vector.broadcast %cst_23 : f32 to vector<64x128xf32>
    %44 = arith.maximumf %42, %43 : vector<64x128xf32>
    %45 = vector.shape_cast %44 : vector<64x128xf32> to vector<4x2x8x128xf32>
    %46 = vector.extract_strided_slice %45 {offsets = [0, 0, 0, 0], sizes = [4, 1, 8, 128], strides = [1, 1, 1, 1]} : vector<4x2x8x128xf32> to vector<4x1x8x128xf32>
    %47 = vector.shape_cast %46 : vector<4x1x8x128xf32> to vector<4x8x128xf32>
    %48 = vector.extract_strided_slice %45 {offsets = [0, 1, 0, 0], sizes = [4, 1, 8, 128], strides = [1, 1, 1, 1]} : vector<4x2x8x128xf32> to vector<4x1x8x128xf32>
    %49 = vector.shape_cast %48 : vector<4x1x8x128xf32> to vector<4x8x128xf32>
    %50 = arith.maximumf %47, %49 : vector<4x8x128xf32>
    %c0_24 = arith.constant 0 : index
    %c0_25 = arith.constant 0 : index
    %c0_26 = arith.constant 0 : index
    %51 = vector.load %arg7[%c0_24, %c0_25, %c0_26] : memref<4x8x128xf32, #tpu.memory_space<vmem>>, vector<4x8x128xf32>
    tpu.vector_store %arg7[%c0_24, %c0_25, %c0_26], %50 {strides = array<i32>} : memref<4x8x128xf32, #tpu.memory_space<vmem>>, vector<4x8x128xf32>,
    %c0_27 = arith.constant 0 : index
    %c0_28 = arith.constant 0 : index
    %c0_29 = arith.constant 0 : index
    %52 = tpu.strided_load %arg7[%c0_27, %c0_28, %c0_29] {strides = array<i32: 1, 2, 1>} : memref<4x8x128xf32, #tpu.memory_space<vmem>>, vector<4x4x128xf32>
    %c0_30 = arith.constant 0 : index
    %c1_31 = arith.constant 1 : index
    %c0_32 = arith.constant 0 : index
    %53 = tpu.strided_load %arg7[%c0_30, %c1_31, %c0_32] {strides = array<i32: 1, 2, 1>} : memref<4x8x128xf32, #tpu.memory_space<vmem>>, vector<4x4x128xf32>
    %54 = arith.maximumf %52, %53 : vector<4x4x128xf32>
    %55 = arith.truncf %54 : vector<4x4x128xf32> to vector<4x4x128xbf16>
    %c0_33 = arith.constant 0 : index
    %c0_34 = arith.constant 0 : index
    %c0_35 = arith.constant 0 : index
    %c0_36 = arith.constant 0 : index
    %56 = vector.load %arg6[%c0_33, %c0_34, %c0_35, %c0_36] : memref<1x4x4x128xbf16, #tpu.memory_space<vmem>>, vector<1x4x4x128xbf16>
    %57 = vector.shape_cast %56 : vector<1x4x4x128xbf16> to vector<4x4x128xbf16>
    %58 = vector.shape_cast %55 : vector<4x4x128xbf16> to vector<1x4x4x128xbf16>
    tpu.vector_store %arg6[%c0_33, %c0_34, %c0_35, %c0_36], %58 {strides = array<i32>} : memref<1x4x4x128xbf16, #tpu.memory_space<vmem>>, vector<1x4x4x128xbf16>,
    return
  }
  func.func @transform_0(%arg0: i32, %arg1: i32) -> (i32, i32, i32, i32) {
    %c0_i32 = arith.constant 0 : i32
    %c0_i32_0 = arith.constant 0 : i32
    %c0_i32_1 = arith.constant 0 : i32
    return %arg0, %arg1, %c0_i32, %c0_i32_0 : i32, i32, i32, i32
  }
  func.func @transform_1(%arg0: i32, %arg1: i32) -> (i32, i32, i32, i32) {
    %c0_i32 = arith.constant 0 : i32
    %c0_i32_0 = arith.constant 0 : i32
    %c0_i32_1 = arith.constant 0 : i32
    return %arg0, %arg1, %c0_i32, %c0_i32_0 : i32, i32, i32, i32
  }
  func.func @transform_2(%arg0: i32, %arg1: i32) -> (i32, i32, i32) {
    %c0_i32 = arith.constant 0 : i32
    %c0_i32_0 = arith.constant 0 : i32
    %c0_i32_1 = arith.constant 0 : i32
    %c0_i32_2 = arith.constant 0 : i32
    return %c0_i32, %c0_i32_0, %c0_i32_1 : i32, i32, i32
  }
  func.func @transform_3(%arg0: i32, %arg1: i32) -> (i32, i32) {
    %c0_i32 = arith.constant 0 : i32
    %c0_i32_0 = arith.constant 0 : i32
    %c0_i32_1 = arith.constant 0 : i32
    return %c0_i32, %c0_i32_0 : i32, i32
  }
  func.func @transform_4(%arg0: i32, %arg1: i32) -> (i32, i32, i32, i32) {
    %c0_i32 = arith.constant 0 : i32
    %c0_i32_0 = arith.constant 0 : i32
    %c0_i32_1 = arith.constant 0 : i32
    return %arg0, %arg1, %c0_i32, %c0_i32_0 : i32, i32, i32, i32
  }
}

module attributes {stable_mosaic.version = 11 : i64} {
  func.func @kernel(%arg0: i32, %arg1: i32, %arg2: memref<1x8x8x128xbf16, #tpu.memory_space<vmem>>, %arg3: memref<1x2x8x128xbf16, #tpu.memory_space<vmem>>, %arg4: memref<3x384x128xbf16, #tpu.memory_space<vmem>>, %arg5: memref<1x128xf32, #tpu.memory_space<vmem>>, %arg6: memref<1x8x8x128xbf16, #tpu.memory_space<vmem>>) attributes {dimension_semantics = [#tpu.dimension_semantics<parallel>, #tpu.dimension_semantics<parallel>], iteration_bounds = array<i64: 2, 1>, scalar_prefetch = 0 : i64, scratch_operands = 0 : i64, tpu.core_type = #tpu.core_type<tc>, window_params = [{transform_indices = @transform_0, window_bounds = array<i64: 1, 8, 8, 128>}, {transform_indices = @transform_1, window_bounds = array<i64: 1, 2, 8, 128>}, {pipeline_mode = #tpu.pipeline_mode<synchronous>, transform_indices = @transform_2, window_bounds = array<i64: 3, 384, 128>}, {pipeline_mode = #tpu.pipeline_mode<synchronous>, transform_indices = @transform_3, window_bounds = array<i64: 1, 128>}, {transform_indices = @transform_4, window_bounds = array<i64: 1, 8, 8, 128>}]} {
    %c0 = arith.constant 0 : index
    %c0_0 = arith.constant 0 : index
    %c0_1 = arith.constant 0 : index
    %c0_2 = arith.constant 0 : index
    %0 = vector.load %arg2[%c0, %c0_0, %c0_1, %c0_2] : memref<1x8x8x128xbf16, #tpu.memory_space<vmem>>, vector<1x8x8x128xbf16>
    %1 = vector.shape_cast %0 : vector<1x8x8x128xbf16> to vector<8x8x128xbf16>
    %c0_3 = arith.constant 0 : index
    %c0_4 = arith.constant 0 : index
    %c0_5 = arith.constant 0 : index
    %c0_6 = arith.constant 0 : index
    %2 = vector.load %arg3[%c0_3, %c0_4, %c0_5, %c0_6] : memref<1x2x8x128xbf16, #tpu.memory_space<vmem>>, vector<1x1x8x128xbf16>
    %3 = vector.shape_cast %2 : vector<1x1x8x128xbf16> to vector<1x8x128xbf16>
    %c0_7 = arith.constant 0 : index
    %c1 = arith.constant 1 : index
    %c0_8 = arith.constant 0 : index
    %c0_9 = arith.constant 0 : index
    %4 = vector.load %arg3[%c0_7, %c1, %c0_8, %c0_9] : memref<1x2x8x128xbf16, #tpu.memory_space<vmem>>, vector<1x1x8x128xbf16>
    %5 = vector.shape_cast %4 : vector<1x1x8x128xbf16> to vector<1x8x128xbf16>
    %6 = vector.extract_strided_slice %1 {offsets = [0, 0, 0], sizes = [7, 8, 128], strides = [1, 1, 1]} : vector<8x8x128xbf16> to vector<7x8x128xbf16>
    %7 = tpu.concatenate %3, %6 in 0 : vector<1x8x128xbf16>, vector<7x8x128xbf16> -> vector<8x8x128xbf16>
    %8 = vector.extract_strided_slice %1 {offsets = [1, 0, 0], sizes = [7, 8, 128], strides = [1, 1, 1]} : vector<8x8x128xbf16> to vector<7x8x128xbf16>
    %9 = tpu.concatenate %8, %5 in 0 : vector<7x8x128xbf16>, vector<1x8x128xbf16> -> vector<8x8x128xbf16>
    %cst = arith.constant 0.000000e+00 : bf16
    %10 = vector.broadcast %cst : bf16 to vector<8x1x128xbf16>
    %11 = tpu.concatenate %10, %7, %10 in 1 : vector<8x1x128xbf16>, vector<8x8x128xbf16>, vector<8x1x128xbf16> -> vector<8x10x128xbf16>
    %12 = vector.extract_strided_slice %11 {offsets = [0, 0, 0], sizes = [8, 8, 128], strides = [1, 1, 1]} : vector<8x10x128xbf16> to vector<8x8x128xbf16>
    %13 = vector.extract_strided_slice %11 {offsets = [0, 1, 0], sizes = [8, 8, 128], strides = [1, 1, 1]} : vector<8x10x128xbf16> to vector<8x8x128xbf16>
    %14 = vector.extract_strided_slice %11 {offsets = [0, 2, 0], sizes = [8, 8, 128], strides = [1, 1, 1]} : vector<8x10x128xbf16> to vector<8x8x128xbf16>
    %15 = tpu.concatenate %12, %13, %14 in 2 : vector<8x8x128xbf16>, vector<8x8x128xbf16>, vector<8x8x128xbf16> -> vector<8x8x384xbf16>
    %16 = vector.shape_cast %15 : vector<8x8x384xbf16> to vector<64x384xbf16>
    %c0_10 = arith.constant 0 : index
    %c0_11 = arith.constant 0 : index
    %c0_12 = arith.constant 0 : index
    %17 = vector.load %arg4[%c0_10, %c0_11, %c0_12] : memref<3x384x128xbf16, #tpu.memory_space<vmem>>, vector<1x384x128xbf16>
    %18 = vector.shape_cast %17 : vector<1x384x128xbf16> to vector<384x128xbf16>
    %cst_13 = arith.constant dense<0.000000e+00> : vector<64x128xf32>
    %19 = tpu.matmul %16, %18, %cst_13 {dimension_numbers = #tpu.dot_dimension_numbers<[1], [0], [0], [1], [0, 0, 1, 1], [], []>} : vector<64x384xbf16>, vector<384x128xbf16>, vector<64x128xf32> -> vector<64x128xf32>
    %20 = tpu.concatenate %10, %1, %10 in 1 : vector<8x1x128xbf16>, vector<8x8x128xbf16>, vector<8x1x128xbf16> -> vector<8x10x128xbf16>
    %21 = vector.extract_strided_slice %20 {offsets = [0, 0, 0], sizes = [8, 8, 128], strides = [1, 1, 1]} : vector<8x10x128xbf16> to vector<8x8x128xbf16>
    %22 = vector.extract_strided_slice %20 {offsets = [0, 1, 0], sizes = [8, 8, 128], strides = [1, 1, 1]} : vector<8x10x128xbf16> to vector<8x8x128xbf16>
    %23 = vector.extract_strided_slice %20 {offsets = [0, 2, 0], sizes = [8, 8, 128], strides = [1, 1, 1]} : vector<8x10x128xbf16> to vector<8x8x128xbf16>
    %24 = tpu.concatenate %21, %22, %23 in 2 : vector<8x8x128xbf16>, vector<8x8x128xbf16>, vector<8x8x128xbf16> -> vector<8x8x384xbf16>
    %25 = vector.shape_cast %24 : vector<8x8x384xbf16> to vector<64x384xbf16>
    %c1_14 = arith.constant 1 : index
    %c0_15 = arith.constant 0 : index
    %c0_16 = arith.constant 0 : index
    %26 = vector.load %arg4[%c1_14, %c0_15, %c0_16] : memref<3x384x128xbf16, #tpu.memory_space<vmem>>, vector<1x384x128xbf16>
    %27 = vector.shape_cast %26 : vector<1x384x128xbf16> to vector<384x128xbf16>
    %cst_17 = arith.constant dense<0.000000e+00> : vector<64x128xf32>
    %28 = tpu.matmul %25, %27, %cst_17 {dimension_numbers = #tpu.dot_dimension_numbers<[1], [0], [0], [1], [0, 0, 1, 1], [], []>} : vector<64x384xbf16>, vector<384x128xbf16>, vector<64x128xf32> -> vector<64x128xf32>
    %29 = arith.addf %19, %28 : vector<64x128xf32>
    %30 = tpu.concatenate %10, %9, %10 in 1 : vector<8x1x128xbf16>, vector<8x8x128xbf16>, vector<8x1x128xbf16> -> vector<8x10x128xbf16>
    %31 = vector.extract_strided_slice %30 {offsets = [0, 0, 0], sizes = [8, 8, 128], strides = [1, 1, 1]} : vector<8x10x128xbf16> to vector<8x8x128xbf16>
    %32 = vector.extract_strided_slice %30 {offsets = [0, 1, 0], sizes = [8, 8, 128], strides = [1, 1, 1]} : vector<8x10x128xbf16> to vector<8x8x128xbf16>
    %33 = vector.extract_strided_slice %30 {offsets = [0, 2, 0], sizes = [8, 8, 128], strides = [1, 1, 1]} : vector<8x10x128xbf16> to vector<8x8x128xbf16>
    %34 = tpu.concatenate %31, %32, %33 in 2 : vector<8x8x128xbf16>, vector<8x8x128xbf16>, vector<8x8x128xbf16> -> vector<8x8x384xbf16>
    %35 = vector.shape_cast %34 : vector<8x8x384xbf16> to vector<64x384xbf16>
    %c2 = arith.constant 2 : index
    %c0_18 = arith.constant 0 : index
    %c0_19 = arith.constant 0 : index
    %36 = vector.load %arg4[%c2, %c0_18, %c0_19] : memref<3x384x128xbf16, #tpu.memory_space<vmem>>, vector<1x384x128xbf16>
    %37 = vector.shape_cast %36 : vector<1x384x128xbf16> to vector<384x128xbf16>
    %cst_20 = arith.constant dense<0.000000e+00> : vector<64x128xf32>
    %38 = tpu.matmul %35, %37, %cst_20 {dimension_numbers = #tpu.dot_dimension_numbers<[1], [0], [0], [1], [0, 0, 1, 1], [], []>} : vector<64x384xbf16>, vector<384x128xbf16>, vector<64x128xf32> -> vector<64x128xf32>
    %39 = arith.addf %29, %38 : vector<64x128xf32>
    %c0_21 = arith.constant 0 : index
    %c0_22 = arith.constant 0 : index
    %40 = vector.load %arg5[%c0_21, %c0_22] : memref<1x128xf32, #tpu.memory_space<vmem>>, vector<1x128xf32>
    %41 = vector.broadcast %40 : vector<1x128xf32> to vector<64x128xf32>
    %42 = arith.addf %39, %41 : vector<64x128xf32>
    %cst_23 = arith.constant 0.000000e+00 : f32
    %43 = vector.broadcast %cst_23 : f32 to vector<64x128xf32>
    %44 = arith.maximumf %42, %43 : vector<64x128xf32>
    %45 = vector.shape_cast %44 : vector<64x128xf32> to vector<8x8x128xf32>
    %46 = arith.truncf %45 : vector<8x8x128xf32> to vector<8x8x128xbf16>
    %c0_24 = arith.constant 0 : index
    %c0_25 = arith.constant 0 : index
    %c0_26 = arith.constant 0 : index
    %c0_27 = arith.constant 0 : index
    %47 = vector.load %arg6[%c0_24, %c0_25, %c0_26, %c0_27] : memref<1x8x8x128xbf16, #tpu.memory_space<vmem>>, vector<1x8x8x128xbf16>
    %48 = vector.shape_cast %47 : vector<1x8x8x128xbf16> to vector<8x8x128xbf16>
    %49 = vector.shape_cast %46 : vector<8x8x128xbf16> to vector<1x8x8x128xbf16>
    tpu.vector_store %arg6[%c0_24, %c0_25, %c0_26, %c0_27], %49 {strides = array<i32>} : memref<1x8x8x128xbf16, #tpu.memory_space<vmem>>, vector<1x8x8x128xbf16>,
    return
  }
  func.func @transform_0(%arg0: i32, %arg1: i32) -> (i32, i32, i32, i32) {
    %c0_i32 = arith.constant 0 : i32
    %c0_i32_0 = arith.constant 0 : i32
    %c0_i32_1 = arith.constant 0 : i32
    return %arg0, %arg1, %c0_i32, %c0_i32_0 : i32, i32, i32, i32
  }
  func.func @transform_1(%arg0: i32, %arg1: i32) -> (i32, i32, i32, i32) {
    %c0_i32 = arith.constant 0 : i32
    %c0_i32_0 = arith.constant 0 : i32
    %c0_i32_1 = arith.constant 0 : i32
    return %arg0, %arg1, %c0_i32, %c0_i32_0 : i32, i32, i32, i32
  }
  func.func @transform_2(%arg0: i32, %arg1: i32) -> (i32, i32, i32) {
    %c0_i32 = arith.constant 0 : i32
    %c0_i32_0 = arith.constant 0 : i32
    %c0_i32_1 = arith.constant 0 : i32
    %c0_i32_2 = arith.constant 0 : i32
    return %c0_i32, %c0_i32_0, %c0_i32_1 : i32, i32, i32
  }
  func.func @transform_3(%arg0: i32, %arg1: i32) -> (i32, i32) {
    %c0_i32 = arith.constant 0 : i32
    %c0_i32_0 = arith.constant 0 : i32
    %c0_i32_1 = arith.constant 0 : i32
    return %c0_i32, %c0_i32_0 : i32, i32
  }
  func.func @transform_4(%arg0: i32, %arg1: i32) -> (i32, i32, i32, i32) {
    %c0_i32 = arith.constant 0 : i32
    %c0_i32_0 = arith.constant 0 : i32
    %c0_i32_1 = arith.constant 0 : i32
    return %arg0, %arg1, %c0_i32, %c0_i32_0 : i32, i32, i32, i32
  }
}

</mosaic_0001>

<llo_original>
// kernel: _lambda_.7
$region0: #{_lambda_.7}
  #allocation0 [shape = 'u32[]', space=smem, size = 0x4, offset = 0x4, fixed_abs, tag = 'smem constant byte address 0x4 - core index']
  #allocation1 [shape = 'u32[144,128]{1,0:T(1,128)}', space=vmem, size = 0x12000, scoped, tag = 'internal scratch']
  #allocation2 [shape = 'f32[4,8,128]{2,1,0:T(8,128)}', space=vmem, size = 0x4000, scoped, tag = 'scratch operand']
  %s0 = inlined_call_operand.vmem [shape: bf16[2,8,8,128], index: 0, kind: input, shape index: {}]
  %s1 = inlined_call_operand.vmem [shape: bf16[2,2,8,128], index: 1, kind: input, shape index: {}]
  %s2 = inlined_call_operand.vmem [shape: bf16[3,384,128], index: 2, kind: input, shape index: {}]
  %s3 = inlined_call_operand.vmem [shape: f32[1,128], index: 3, kind: input, shape index: {}]
  %s4 = inlined_call_operand.vmem [shape: bf16[2,4,4,128], index: 4, kind: output, shape index: {}]
  %s5 = sld [smem:[#allocation0]]
  $region49: #{_lambda_.7} parent=0
    _
  %s7 = ssub.s32 1, %s5
  %s8 = scalar_select 0, %s7, %s5
  loop: start=0, step=1, limit=4
  $region2: #{_lambda_.7} parent=0 // loop_pre_header
    _
  $region3: #{_lambda_.7} parent=0 // loop_header
    %s10 = sphi 0, %s14
    %p11 = scmp.ge.s32.totalorder %s10, 4
    %s17 = sphi 0, %s29
    %s18 = sphi 0, %s25
    %s19 = sphi 0, %s17
    %s20 = sphi 0, %s18
    %s21 = sphi 0, %s19
    %s22 = sphi 0, %s20
    %s34 = sphi 0, %s36
    %s37 = sphi 0, %s34
    %s38 = sphi 0, %s37
    %s54 = sphi 0, %s38
    %s62 = sphi 0, %s64
    %s65 = sphi 0, %s62
    %s66 = sphi 0, %s65
    %s82 = sphi 0, %s66
    %s86 = sphi 0, %s86
    %s88 = sphi 0, %s86
    %s89 = sphi 0, %s88
    %s103 = sphi 0, %s89
    %s107 = sphi 0, %s107
    %s109 = sphi 0, %s107
    %s110 = sphi 0, %s109
    %s124 = sphi 0, %s110
    %s132 = sphi 0, %s134
    %s135 = sphi 0, %s132
    %s136 = sphi 0, %s135
    %s152 = sphi 0, %s136
  $region4: #{_lambda_.7} parent=0 // loop_header_branch
    %13 = sbr.rel (%p11) target = $region8
  $region5: #{_lambda_.7} parent=0 // loop_body
    %s15 = ssub.s32 %s10, 1
    %s16 = ssub.s32 %s10, 2
    %s23 = sadd.s32 1, %s18
    %p24 = scmp.ge.s32.totalorder %s23, 1
    %s25 = scalar_select %p24, 0, %s23
    %s26 = sadd.s32 1, %s17
    %s27 = scalar_select %p24, %s26, %s17
    %p28 = scmp.ge.s32.totalorder %s27, 2
    %s29 = scalar_select %p28, 0, %s27
    %s30 = ssub.s32 %s17, %s29
    %s31 = ssub.s32 %s18, %s25
    %s32 = sor.u32 %s30, %s31
    %p33 = scmp.eq.s32.totalorder %s32, 0
    %s35 = sadd.s32 %s34, 1
    %s36 = scalar_select %p33, %s34, %s35
    %p39 = pneg %p33
    %p40 = scmp.eq.s32.totalorder %s10, 1
    %p41 = por %p39, %p40
    %p42 = scmp.ne.s32.totalorder %s34, %s37
    %p43 = scmp.eq.s32.totalorder %s10, 0
    %p44 = por %p42, %p43
    %p45 = scmp.ne.s32.totalorder %s34, %s37
    %p46 = scmp.eq.s32.totalorder %s15, 1
    %p47 = por %p45, %p46
    %p48 = scmp.ne.s32.totalorder %s37, %s38
    %p49 = scmp.eq.s32.totalorder %s15, 0
    %p50 = por %p48, %p49
    %p51 = scmp.ne.s32.totalorder %s37, %s38
    %p52 = scmp.eq.s32.totalorder %s16, 1
    %p53 = por %p51, %p52
    %p55 = scmp.ne.s32.totalorder %s38, %s54
    %p56 = scmp.eq.s32.totalorder %s16, 0
    %p57 = por %p55, %p56
    %s58 = ssub.s32 %s17, %s29
    %s59 = ssub.s32 %s18, %s25
    %s60 = sor.u32 %s58, %s59
    %p61 = scmp.eq.s32.totalorder %s60, 0
    %s63 = sadd.s32 %s62, 1
    %s64 = scalar_select %p61, %s62, %s63
    %p67 = pneg %p61
    %p68 = scmp.eq.s32.totalorder %s10, 1
    %p69 = por %p67, %p68
    %p70 = scmp.ne.s32.totalorder %s62, %s65
    %p71 = scmp.eq.s32.totalorder %s10, 0
    %p72 = por %p70, %p71
    %p73 = scmp.ne.s32.totalorder %s62, %s65
    %p74 = scmp.eq.s32.totalorder %s15, 1
    %p75 = por %p73, %p74
    %p76 = scmp.ne.s32.totalorder %s65, %s66
    %p77 = scmp.eq.s32.totalorder %s15, 0
    %p78 = por %p76, %p77
    %p79 = scmp.ne.s32.totalorder %s65, %s66
    %p80 = scmp.eq.s32.totalorder %s16, 1
    %p81 = por %p79, %p80
    %p83 = scmp.ne.s32.totalorder %s66, %s82
    %p84 = scmp.eq.s32.totalorder %s16, 0
    %p85 = por %p83, %p84
    %s87 = sadd.s32 %s86, 1
    %p90 = scmp.eq.s32.totalorder %s10, 1
    %p91 = scmp.ne.s32.totalorder %s86, %s88
    %p92 = scmp.eq.s32.totalorder %s10, 0
    %p93 = por %p91, %p92
    %p94 = scmp.ne.s32.totalorder %s86, %s88
    %p95 = scmp.eq.s32.totalorder %s15, 1
    %p96 = por %p94, %p95
    %p97 = scmp.ne.s32.totalorder %s88, %s89
    %p98 = scmp.eq.s32.totalorder %s15, 0
    %p99 = por %p97, %p98
    %p100 = scmp.ne.s32.totalorder %s88, %s89
    %p101 = scmp.eq.s32.totalorder %s16, 1
    %p102 = por %p100, %p101
    %p104 = scmp.ne.s32.totalorder %s89, %s103
    %p105 = scmp.eq.s32.totalorder %s16, 0
    %p106 = por %p104, %p105
    %s108 = sadd.s32 %s107, 1
    %p111 = scmp.eq.s32.totalorder %s10, 1
    %p112 = scmp.ne.s32.totalorder %s107, %s109
    %p113 = scmp.eq.s32.totalorder %s10, 0
    %p114 = por %p112, %p113
    %p115 = scmp.ne.s32.totalorder %s107, %s109
    %p116 = scmp.eq.s32.totalorder %s15, 1
    %p117 = por %p115, %p116
    %p118 = scmp.ne.s32.totalorder %s109, %s110
    %p119 = scmp.eq.s32.totalorder %s15, 0
    %p120 = por %p118, %p119
    %p121 = scmp.ne.s32.totalorder %s109, %s110
    %p122 = scmp.eq.s32.totalorder %s16, 1
    %p123 = por %p121, %p122
    %p125 = scmp.ne.s32.totalorder %s110, %s124
    %p126 = scmp.eq.s32.totalorder %s16, 0
    %p127 = por %p125, %p126
    %s128 = ssub.s32 %s17, %s29
    %s129 = ssub.s32 %s18, %s25
    %s130 = sor.u32 %s128, %s129
    %p131 = scmp.eq.s32.totalorder %s130, 0
    %s133 = sadd.s32 %s132, 1
    %s134 = scalar_select %p131, %s132, %s133
    %p137 = pneg %p131
    %p138 = scmp.eq.s32.totalorder %s10, 1
    %p139 = por %p137, %p138
    %p140 = scmp.ne.s32.totalorder %s132, %s135
    %p141 = scmp.eq.s32.totalorder %s10, 0
    %p142 = por %p140, %p141
    %p143 = scmp.ne.s32.totalorder %s132, %s135
    %p144 = scmp.eq.s32.totalorder %s15, 1
    %p145 = por %p143, %p144
    %p146 = scmp.ne.s32.totalorder %s135, %s136
    %p147 = scmp.eq.s32.totalorder %s15, 0
    %p148 = por %p146, %p147
    %p149 = scmp.ne.s32.totalorder %s135, %s136
    %p150 = scmp.eq.s32.totalorder %s16, 1
    %p151 = por %p149, %p150
    %p153 = scmp.ne.s32.totalorder %s136, %s152
    %p154 = scmp.eq.s32.totalorder %s16, 0
    %p155 = por %p153, %p154
    %p156 = scmp.le.s32.totalorder 1, %s10
    %p157 = scmp.lt.s32.totalorder %s10, 3
    %p158 = pnand %p156, %p157
    %p159 = pneg %p158
    // Predicated region
    $region9: #{_lambda_.7} parent=5 // pred_check
      _
    $region10: #{_lambda_.7} parent=5 // pred_check_branch
      %161 = sbr.rel (%p158) target = $region12
    $region11: #{_lambda_.7} parent=5 // pred_region
      %s162 = ssub.s32 %s10, 1
      // Predicated region
      $region13: #{_lambda_.7} parent=11 // pred_check
        %p163 = pneg %p99
      $region14: #{_lambda_.7} parent=11 // pred_check_branch
        %165 = sbr.rel (%p163) target = $region16
      $region15: #{_lambda_.7} parent=11 // pred_region
        _
      $region16: #{_lambda_.7} parent=11 // pred_fallthru
        _
      // Predicated region
      $region17: #{_lambda_.7} parent=11 // pred_check
        %p166 = pneg %p120
      $region18: #{_lambda_.7} parent=11 // pred_check_branch
        %168 = sbr.rel (%p166) target = $region20
      $region19: #{_lambda_.7} parent=11 // pred_region
        _
      $region20: #{_lambda_.7} parent=11 // pred_fallthru
        _
    $region12: #{_lambda_.7} parent=5 // pred_fallthru
      _
    %p169 = scmp.lt.s32.totalorder %s10, 2
    // Predicated region
    $region21: #{_lambda_.7} parent=5 // pred_check
      %p170 = pneg %p169
    $region22: #{_lambda_.7} parent=5 // pred_check_branch
      %172 = sbr.rel (%p170) target = $region24
    $region23: #{_lambda_.7} parent=5 // pred_region
      // Predicated region
      $region25: #{_lambda_.7} parent=23 // pred_check
        %p173 = pneg %p44
      $region26: #{_lambda_.7} parent=23 // pred_check_branch
        %175 = sbr.rel (%p173) target = $region28
      $region27: #{_lambda_.7} parent=23 // pred_region
        %s176 = smul.u32 8, %s18
        %p177 = scmp.lt.s32.totalorder %s17, 1
        %s178 = scalar_select %p177, %s17, 1
        %p179 = scmp.lt.s32.totalorder %s176, 7
        %s180 = scalar_select %p179, %s176, 7
        %s181 = smul.addr %s178, 8
        %s182 = sadd.s32 %s180, %s181
        %s183 = smul.addr %s182, 4
        %s184 = scalar_lea.vmem %s0, %s183
        %s185 = smul.u32 8, %s18
      $region28: #{_lambda_.7} parent=23 // pred_fallthru
        _
      // Predicated region
      $region29: #{_lambda_.7} parent=23 // pred_check
        %p186 = pneg %p72
      $region30: #{_lambda_.7} parent=23 // pred_check_branch
        %188 = sbr.rel (%p186) target = $region32
      $region31: #{_lambda_.7} parent=23 // pred_region
        %s189 = smul.u32 2, %s18
        %p190 = scmp.lt.s32.totalorder %s17, 1
        %s191 = scalar_select %p190, %s17, 1
        %p192 = scmp.lt.s32.totalorder %s189, 1
        %s193 = scalar_select %p192, %s189, 1
        %s194 = smul.addr %s191, 2
        %s195 = sadd.s32 %s193, %s194
        %s196 = smul.addr %s195, 4
        %s197 = scalar_lea.vmem %s1, %s196
        %s198 = smul.u32 2, %s18
      $region32: #{_lambda_.7} parent=23 // pred_fallthru
        _
    $region24: #{_lambda_.7} parent=5 // pred_fallthru
      _
    %p199 = scmp.le.s32.totalorder 1, %s10
    %p200 = scmp.lt.s32.totalorder %s10, 3
    %p201 = pnand %p199, %p200
    %p202 = pneg %p201
    // Predicated region
    $region33: #{_lambda_.7} parent=5 // pred_check
      _
    $region34: #{_lambda_.7} parent=5 // pred_check_branch
      %204 = sbr.rel (%p201) target = $region36
    $region35: #{_lambda_.7} parent=5 // pred_region
      %s205 = ssub.s32 %s10, 1
      %s206 = smul.u32 8, %s20
      %p207 = scmp.lt.s32.totalorder %s19, 1
      %s208 = scalar_select %p207, %s19, 1
      %p209 = scmp.lt.s32.totalorder %s206, 7
      %s210 = scalar_select %p209, %s206, 7
      %s211 = smul.addr %s208, 8
      %s212 = sadd.s32 %s210, %s211
      %s213 = smul.addr %s212, 4
      %s214 = scalar_lea.vmem %s0, %s213
      %p215 = pneg %p50
      %p216 = pneg %p47
      %s217 = smul.u32 2, %s20
      %p218 = scmp.lt.s32.totalorder %s19, 1
      %s219 = scalar_select %p218, %s19, 1
      %p220 = scmp.lt.s32.totalorder %s217, 1
      %s221 = scalar_select %p220, %s217, 1
      %s222 = smul.addr %s219, 2
      %s223 = sadd.s32 %s221, %s222
      %s224 = smul.addr %s223, 4
      %s225 = scalar_lea.vmem %s1, %s224
      %p226 = pneg %p78
      %p227 = pneg %p75
      %p228 = pneg %p99
      %p229 = pneg %p96
      %p230 = pneg %p120
      %p231 = pneg %p117
      %p232 = pneg %p148
      %p233 = pneg %p145
      %s234 = smul.u32 4, %s20
      %p235 = scmp.lt.s32.totalorder %s19, 1
      %s236 = scalar_select %p235, %s19, 1
      %p237 = scmp.lt.s32.totalorder %s234, 3
      %s238 = scalar_select %p237, %s234, 3
      %s239 = smul.addr %s236, 4
      %s240 = sadd.s32 %s238, %s239
      %s241 = smul.addr %s240, 2
      %s242 = scalar_lea.vmem %s4, %s241
      %s243 = smul.u32 8, %s20
      %p244 = scmp.lt.s32.totalorder %s19, 1
      %s245 = scalar_select %p244, %s19, 1
      %p246 = scmp.lt.s32.totalorder %s243, 7
      %s247 = scalar_select %p246, %s243, 7
      %s248 = smul.addr %s245, 8
      %s249 = sadd.s32 %s247, %s248
      %s250 = smul.addr %s249, 4
      %s251 = scalar_lea.vmem %s0, %s250
      %s252 = smul.u32 8, %s20
      %s253 = smul.u32 2, %s20
      %p254 = scmp.lt.s32.totalorder %s19, 1
      %s255 = scalar_select %p254, %s19, 1
      %p256 = scmp.lt.s32.totalorder %s253, 1
      %s257 = scalar_select %p256, %s253, 1
      %s258 = smul.addr %s255, 2
      %s259 = sadd.s32 %s257, %s258
      %s260 = smul.addr %s259, 4
      %s261 = scalar_lea.vmem %s1, %s260
      %s262 = smul.u32 2, %s20
      %s263 = smul.u32 4, %s20
      %p264 = scmp.lt.s32.totalorder %s19, 1
      %s265 = scalar_select %p264, %s19, 1
      %p266 = scmp.lt.s32.totalorder %s263, 3
      %s267 = scalar_select %p266, %s263, 3
      %s268 = smul.addr %s265, 4
      %s269 = sadd.s32 %s267, %s268
      %s270 = smul.addr %s269, 2
      %s271 = scalar_lea.vmem %s4, %s270
      %s272 = smul.u32 4, %s20
      %v274 = vld [vmem:[%s251] sm:$0xf]
      %v275 = vld [vmem:[%s251 + $0x4] sm:$0xf]
      %v276 = vld [vmem:[%s251 + $0x8] sm:$0xf]
      %v277 = vld [vmem:[%s251 + $0xc] sm:$0xf]
      %v278 = vld [vmem:[%s251 + $0x10] sm:$0xf]
      %v279 = vld [vmem:[%s251 + $0x14] sm:$0xf]
      %v280 = vld [vmem:[%s251 + $0x18] sm:$0xf]
      %v281 = vld [vmem:[%s251 + $0x1c] sm:$0xf]
      %v282 = vld [vmem:[%s261] sm:$0xf]
      %s283 = scalar_lea.vmem %s261, 4
      %v284 = vld [vmem:[%s283] sm:$0xf]
      %v293 = vunpack.c.l.b16 %v282
      %v294 = vunpack.c.l.b16 %v274
      %v295 = vunpack.c.l.b16 %v275
      %v296 = vunpack.c.l.b16 %v276
      %v297 = vunpack.c.l.b16 %v277
      %v298 = vunpack.c.l.b16 %v278
      %v299 = vunpack.c.l.b16 %v279
      %v300 = vunpack.c.l.b16 %v280
      %v301 = vpack.c.b16 %v293, %v293
      %v302 = vpack.c.b16 %v294, %v294
      %v303 = vpack.c.b16 %v295, %v295
      %v304 = vpack.c.b16 %v296, %v296
      %v305 = vpack.c.b16 %v297, %v297
      %v306 = vpack.c.b16 %v298, %v298
      %v307 = vpack.c.b16 %v299, %v299
      %v308 = vpack.c.b16 %v300, %v300
      %v310 = vshrl.u32 %v301, 16
      %v312 = vrot.slane %v310, 7
      %v313 = vshll.u32 %v301, 16
      %v315 = vor.u32 %v312, %v313
      %v317 = vshrl.u32 %v302, 16
      %v319 = vrot.slane %v317, 7
      %v320 = vshll.u32 %v302, 16
      %v322 = vor.u32 %v319, %v320
      %v324 = vshrl.u32 %v303, 16
      %v326 = vrot.slane %v324, 7
      %v327 = vshll.u32 %v303, 16
      %v329 = vor.u32 %v326, %v327
      %v331 = vshrl.u32 %v304, 16
      %v333 = vrot.slane %v331, 7
      %v334 = vshll.u32 %v304, 16
      %v336 = vor.u32 %v333, %v334
      %v338 = vshrl.u32 %v305, 16
      %v340 = vrot.slane %v338, 7
      %v341 = vshll.u32 %v305, 16
      %v343 = vor.u32 %v340, %v341
      %v345 = vshrl.u32 %v306, 16
      %v347 = vrot.slane %v345, 7
      %v348 = vshll.u32 %v306, 16
      %v350 = vor.u32 %v347, %v348
      %v352 = vshrl.u32 %v307, 16
      %v354 = vrot.slane %v352, 7
      %v355 = vshll.u32 %v307, 16
      %v357 = vor.u32 %v354, %v355
      %v359 = vshrl.u32 %v308, 16
      %v361 = vrot.slane %v359, 7
      %v362 = vshll.u32 %v308, 16
      %v364 = vor.u32 %v361, %v362
      %vm373 = vcmask 1040384
      %vm374 = vsmask.f32 256
      %vm375 = vmand %vm373, %vm374
      %v376 = vsel %vm375, 0, %v315
      %v377 = vsel %vm375, 0, %v322
      %v378 = vsel %vm375, 0, %v329
      %v379 = vsel %vm375, 0, %v336
      %v380 = vsel %vm375, 0, %v343
      %v381 = vsel %vm375, 0, %v350
      %v382 = vsel %vm375, 0, %v357
      %v383 = vsel %vm375, 0, %v364
      %vm384 = vcmask 1044480
      %vm385 = vsmask.f32 4352
      %vm386 = vmand %vm384, %vm385
      %v387 = vsel %vm386, %v376, 0
      %v388 = vsel %vm386, %v377, 0
      %v389 = vsel %vm386, %v378, 0
      %v390 = vsel %vm386, %v379, 0
      %v391 = vsel %vm386, %v380, 0
      %v392 = vsel %vm386, %v381, 0
      %v393 = vsel %vm386, %v382, 0
      %v394 = vsel %vm386, %v383, 0
      %v396 = vshrl.u32 %v387, 16
      %v398 = vshll.u32 %v387, 16
      %v400 = vrot.slane %v398, 1
      %v401 = vor.u32 %v396, %v400
      %v403 = vshrl.u32 %v388, 16
      %v405 = vshll.u32 %v388, 16
      %v407 = vrot.slane %v405, 1
      %v408 = vor.u32 %v403, %v407
      %v410 = vshrl.u32 %v389, 16
      %v412 = vshll.u32 %v389, 16
      %v414 = vrot.slane %v412, 1
      %v415 = vor.u32 %v410, %v414
      %v417 = vshrl.u32 %v390, 16
      %v419 = vshll.u32 %v390, 16
      %v421 = vrot.slane %v419, 1
      %v422 = vor.u32 %v417, %v421
      %v424 = vshrl.u32 %v391, 16
      %v426 = vshll.u32 %v391, 16
      %v428 = vrot.slane %v426, 1
      %v429 = vor.u32 %v424, %v428
      %v431 = vshrl.u32 %v392, 16
      %v433 = vshll.u32 %v392, 16
      %v435 = vrot.slane %v433, 1
      %v436 = vor.u32 %v431, %v435
      %v438 = vshrl.u32 %v393, 16
      %v440 = vshll.u32 %v393, 16
      %v442 = vrot.slane %v440, 1
      %v443 = vor.u32 %v438, %v442
      %v445 = vshrl.u32 %v394, 16
      %v447 = vshll.u32 %v394, 16
      %v449 = vrot.slane %v447, 1
      %v450 = vor.u32 %v445, %v449
      %v459 = vrot.slane %v387, 1
      %v460 = vrot.slane %v388, 1
      %v461 = vrot.slane %v389, 1
      %v462 = vrot.slane %v390, 1
      %v463 = vrot.slane %v391, 1
      %v464 = vrot.slane %v392, 1
      %v465 = vrot.slane %v393, 1
      %v466 = vrot.slane %v394, 1
      %v467 = vunpack.c.l.b16 %v387
      %v468 = vunpack.c.l.b16 %v401
      %v469 = vunpack.c.l.b16 %v459
      %v470 = vunpack.c.l.b16 %v388
      %v471 = vunpack.c.l.b16 %v408
      %v472 = vunpack.c.l.b16 %v460
      %v473 = vunpack.c.l.b16 %v389
      %v474 = vunpack.c.l.b16 %v415
      %v475 = vunpack.c.l.b16 %v461
      %v476 = vunpack.c.l.b16 %v390
      %v477 = vunpack.c.l.b16 %v422
      %v478 = vunpack.c.l.b16 %v462
      %v479 = vunpack.c.l.b16 %v391
      %v480 = vunpack.c.l.b16 %v429
      %v481 = vunpack.c.l.b16 %v463
      %v482 = vunpack.c.l.b16 %v392
      %v483 = vunpack.c.l.b16 %v436
      %v484 = vunpack.c.l.b16 %v464
      %v485 = vunpack.c.l.b16 %v393
      %v486 = vunpack.c.l.b16 %v443
      %v487 = vunpack.c.l.b16 %v465
      %v488 = vunpack.c.l.b16 %v394
      %v489 = vunpack.c.l.b16 %v450
      %v490 = vunpack.c.l.b16 %v466
      %v491 = vld [vmem:[%s2] sm:$0xf]
      %v492 = vld [vmem:[%s2 + $0x4] sm:$0xf]
      %v493 = vld [vmem:[%s2 + $0x8] sm:$0xf]
      %v494 = vld [vmem:[%s2 + $0xc] sm:$0xf]
      %v495 = vld [vmem:[%s2 + $0x10] sm:$0xf]
      %v496 = vld [vmem:[%s2 + $0x14] sm:$0xf]
      %v497 = vld [vmem:[%s2 + $0x18] sm:$0xf]
      %v498 = vld [vmem:[%s2 + $0x1c] sm:$0xf]
      %v499 = vld [vmem:[%s2 + $0x20] sm:$0xf]
      %v500 = vld [vmem:[%s2 + $0x24] sm:$0xf]
      %v501 = vld [vmem:[%s2 + $0x28] sm:$0xf]
      %v502 = vld [vmem:[%s2 + $0x2c] sm:$0xf]
      %v503 = vld [vmem:[%s2 + $0x30] sm:$0xf]
      %v504 = vld [vmem:[%s2 + $0x34] sm:$0xf]
      %v505 = vld [vmem:[%s2 + $0x38] sm:$0xf]
      %v506 = vld [vmem:[%s2 + $0x3c] sm:$0xf]
      %v507 = vld [vmem:[%s2 + $0x40] sm:$0xf]
      %v508 = vld [vmem:[%s2 + $0x44] sm:$0xf]
      %v509 = vld [vmem:[%s2 + $0x48] sm:$0xf]
      %v510 = vld [vmem:[%s2 + $0x4c] sm:$0xf]
      %v511 = vld [vmem:[%s2 + $0x50] sm:$0xf]
      %v512 = vld [vmem:[%s2 + $0x54] sm:$0xf]
      %v513 = vld [vmem:[%s2 + $0x58] sm:$0xf]
      %v514 = vld [vmem:[%s2 + $0x5c] sm:$0xf]
      %v515 = vld [vmem:[%s2 + $0x60] sm:$0xf]
      %v516 = vld [vmem:[%s2 + $0x64] sm:$0xf]
      %v517 = vld [vmem:[%s2 + $0x68] sm:$0xf]
      %v518 = vld [vmem:[%s2 + $0x6c] sm:$0xf]
      %v519 = vld [vmem:[%s2 + $0x70] sm:$0xf]
      %v520 = vld [vmem:[%s2 + $0x74] sm:$0xf]
      %v521 = vld [vmem:[%s2 + $0x78] sm:$0xf]
      %v522 = vld [vmem:[%s2 + $0x7c] sm:$0xf]
      %v523 = vld [vmem:[%s2 + $0x80] sm:$0xf]
      %v524 = vld [vmem:[%s2 + $0x84] sm:$0xf]
      %v525 = vld [vmem:[%s2 + $0x88] sm:$0xf]
      %v526 = vld [vmem:[%s2 + $0x8c] sm:$0xf]
      %v527 = vld [vmem:[%s2 + $0x90] sm:$0xf]
      %v528 = vld [vmem:[%s2 + $0x94] sm:$0xf]
      %v529 = vld [vmem:[%s2 + $0x98] sm:$0xf]
      %v530 = vld [vmem:[%s2 + $0x9c] sm:$0xf]
      %v531 = vld [vmem:[%s2 + $0xa0] sm:$0xf]
      %v532 = vld [vmem:[%s2 + $0xa4] sm:$0xf]
      %v533 = vld [vmem:[%s2 + $0xa8] sm:$0xf]
      %v534 = vld [vmem:[%s2 + $0xac] sm:$0xf]
      %v535 = vld [vmem:[%s2 + $0xb0] sm:$0xf]
      %v536 = vld [vmem:[%s2 + $0xb4] sm:$0xf]
      %v537 = vld [vmem:[%s2 + $0xb8] sm:$0xf]
      %v538 = vld [vmem:[%s2 + $0xbc] sm:$0xf]
      %v540 = vunpack.c.l.b16 %v281
      %v541 = vpack.c.b16 %v540, %v540
      %v543 = vshrl.u32 %v541, 16
      %v545 = vrot.slane %v543, 7
      %v546 = vshll.u32 %v541, 16
      %v548 = vor.u32 %v545, %v546
      %v550 = vsel %vm375, 0, %v548
      %v551 = vsel %vm386, %v550, 0
      %v553 = vshrl.u32 %v551, 16
      %v555 = vshll.u32 %v551, 16
      %v557 = vrot.slane %v555, 1
      %v558 = vor.u32 %v553, %v557
      %v560 = vrot.slane %v551, 1
      %v561 = vunpack.c.l.b16 %v551
      %v562 = vunpack.c.l.b16 %v558
      %v563 = vunpack.c.l.b16 %v560
      %s564 = scalar_lea.vmem %s2, 192
      %v565 = vld [vmem:[%s564] sm:$0xf]
      %v566 = vld [vmem:[%s564 + $0x4] sm:$0xf]
      %v567 = vld [vmem:[%s564 + $0x8] sm:$0xf]
      %v568 = vld [vmem:[%s564 + $0xc] sm:$0xf]
      %v569 = vld [vmem:[%s564 + $0x10] sm:$0xf]
      %v570 = vld [vmem:[%s564 + $0x14] sm:$0xf]
      %v571 = vld [vmem:[%s564 + $0x18] sm:$0xf]
      %v572 = vld [vmem:[%s564 + $0x1c] sm:$0xf]
      %v573 = vld [vmem:[%s564 + $0x20] sm:$0xf]
      %v574 = vld [vmem:[%s564 + $0x24] sm:$0xf]
      %v575 = vld [vmem:[%s564 + $0x28] sm:$0xf]
      %v576 = vld [vmem:[%s564 + $0x2c] sm:$0xf]
      %v577 = vld [vmem:[%s564 + $0x30] sm:$0xf]
      %v578 = vld [vmem:[%s564 + $0x34] sm:$0xf]
      %v579 = vld [vmem:[%s564 + $0x38] sm:$0xf]
      %v580 = vld [vmem:[%s564 + $0x3c] sm:$0xf]
      %v581 = vld [vmem:[%s564 + $0x40] sm:$0xf]
      %v582 = vld [vmem:[%s564 + $0x44] sm:$0xf]
      %v583 = vld [vmem:[%s564 + $0x48] sm:$0xf]
      %v584 = vld [vmem:[%s564 + $0x4c] sm:$0xf]
      %v585 = vld [vmem:[%s564 + $0x50] sm:$0xf]
      %v586 = vld [vmem:[%s564 + $0x54] sm:$0xf]
      %v587 = vld [vmem:[%s564 + $0x58] sm:$0xf]
      %v588 = vld [vmem:[%s564 + $0x5c] sm:$0xf]
      %v589 = vld [vmem:[%s564 + $0x60] sm:$0xf]
      %v590 = vld [vmem:[%s564 + $0x64] sm:$0xf]
      %v591 = vld [vmem:[%s564 + $0x68] sm:$0xf]
      %v592 = vld [vmem:[%s564 + $0x6c] sm:$0xf]
      %v593 = vld [vmem:[%s564 + $0x70] sm:$0xf]
      %v594 = vld [vmem:[%s564 + $0x74] sm:$0xf]
      %v595 = vld [vmem:[%s564 + $0x78] sm:$0xf]
      %v596 = vld [vmem:[%s564 + $0x7c] sm:$0xf]
      %v597 = vld [vmem:[%s564 + $0x80] sm:$0xf]
      %v598 = vld [vmem:[%s564 + $0x84] sm:$0xf]
      %v599 = vld [vmem:[%s564 + $0x88] sm:$0xf]
      %v600 = vld [vmem:[%s564 + $0x8c] sm:$0xf]
      %v601 = vld [vmem:[%s564 + $0x90] sm:$0xf]
      %v602 = vld [vmem:[%s564 + $0x94] sm:$0xf]
      %v603 = vld [vmem:[%s564 + $0x98] sm:$0xf]
      %v604 = vld [vmem:[%s564 + $0x9c] sm:$0xf]
      %v605 = vld [vmem:[%s564 + $0xa0] sm:$0xf]
      %v606 = vld [vmem:[%s564 + $0xa4] sm:$0xf]
      %v607 = vld [vmem:[%s564 + $0xa8] sm:$0xf]
      %v608 = vld [vmem:[%s564 + $0xac] sm:$0xf]
      %v609 = vld [vmem:[%s564 + $0xb0] sm:$0xf]
      %v610 = vld [vmem:[%s564 + $0xb4] sm:$0xf]
      %v611 = vld [vmem:[%s564 + $0xb8] sm:$0xf]
      %v612 = vld [vmem:[%s564 + $0xbc] sm:$0xf]
      %v613 = vpack.c.b16 %v473, %v470
      %v614 = vpack.c.b16 %v474, %v471
      %v615 = vpack.c.b16 %v475, %v472
      %v616 = vpack.c.b16 %v479, %v476
      %v617 = vpack.c.b16 %v480, %v477
      %v618 = vpack.c.b16 %v481, %v478
      %v619 = vpack.c.b16 %v485, %v482
      %v620 = vpack.c.b16 %v486, %v483
      %v621 = vpack.c.b16 %v487, %v484
      %v622 = vpack.c.b16 %v561, %v488
      %v623 = vpack.c.b16 %v562, %v489
      %v624 = vpack.c.b16 %v563, %v490
      %v685 = vunpack.c.l.b16 %v565
      %v686 = vunpack.c.l.b16 %v566
      %v687 = vunpack.c.l.b16 %v567
      %v688 = vunpack.c.l.b16 %v568
      %v689 = vunpack.c.l.b16 %v569
      %v690 = vunpack.c.l.b16 %v570
      %v691 = vunpack.c.l.b16 %v571
      %v692 = vunpack.c.l.b16 %v572
      %v693 = vunpack.c.l.b16 %v573
      %v694 = vunpack.c.l.b16 %v574
      %v695 = vunpack.c.l.b16 %v575
      %v696 = vunpack.c.l.b16 %v576
      %v697 = vunpack.c.l.b16 %v577
      %v698 = vunpack.c.l.b16 %v578
      %v699 = vunpack.c.l.b16 %v579
      %v700 = vunpack.c.l.b16 %v580
      %v701 = vunpack.c.l.b16 %v581
      %v702 = vunpack.c.l.b16 %v582
      %v703 = vunpack.c.l.b16 %v583
      %v704 = vunpack.c.l.b16 %v584
      %v705 = vunpack.c.l.b16 %v585
      %v706 = vunpack.c.l.b16 %v586
      %v707 = vunpack.c.l.b16 %v587
      %v708 = vunpack.c.l.b16 %v588
      %v709 = vunpack.c.l.b16 %v589
      %v710 = vunpack.c.l.b16 %v590
      %v711 = vunpack.c.l.b16 %v591
      %v712 = vunpack.c.l.b16 %v592
      %v713 = vunpack.c.l.b16 %v593
      %v714 = vunpack.c.l.b16 %v594
      %v715 = vunpack.c.l.b16 %v595
      %v716 = vunpack.c.l.b16 %v596
      %v717 = vunpack.c.l.b16 %v597
      %v718 = vunpack.c.l.b16 %v598
      %v719 = vunpack.c.l.b16 %v599
      %v720 = vunpack.c.l.b16 %v600
      %v721 = vunpack.c.l.b16 %v601
      %v722 = vunpack.c.l.b16 %v602
      %v723 = vunpack.c.l.b16 %v603
      %v724 = vunpack.c.l.b16 %v604
      %v725 = vunpack.c.l.b16 %v605
      %v726 = vunpack.c.l.b16 %v606
      %v727 = vunpack.c.l.b16 %v607
      %v728 = vunpack.c.l.b16 %v608
      %v729 = vunpack.c.l.b16 %v609
      %v730 = vunpack.c.l.b16 %v610
      %v731 = vunpack.c.l.b16 %v611
      %v732 = vunpack.c.l.b16 %v612
      %v733 = vpack.c.b16 %v686, %v685
      %v734 = vpack.c.b16 %v688, %v687
      %v735 = vpack.c.b16 %v690, %v689
      %v736 = vpack.c.b16 %v692, %v691
      %v737 = vpack.c.b16 %v694, %v693
      %v738 = vpack.c.b16 %v696, %v695
      %v739 = vpack.c.b16 %v698, %v697
      %v740 = vpack.c.b16 %v700, %v699
      %v741 = vpack.c.b16 %v702, %v701
      %v742 = vpack.c.b16 %v704, %v703
      %v743 = vpack.c.b16 %v706, %v705
      %v744 = vpack.c.b16 %v708, %v707
      %v745 = vpack.c.b16 %v710, %v709
      %v746 = vpack.c.b16 %v712, %v711
      %v747 = vpack.c.b16 %v714, %v713
      %v748 = vpack.c.b16 %v716, %v715
      %v749 = vpack.c.b16 %v718, %v717
      %v750 = vpack.c.b16 %v720, %v719
      %v751 = vpack.c.b16 %v722, %v721
      %v752 = vpack.c.b16 %v724, %v723
      %v753 = vpack.c.b16 %v726, %v725
      %v754 = vpack.c.b16 %v728, %v727
      %v755 = vpack.c.b16 %v730, %v729
      %v756 = vpack.c.b16 %v732, %v731
      %781 = vmatprep.subr.bf16.mxu0 0
      %782 = vmatpush1.bf16.msra.mxu0 %v733
      %783 = vmatprep.subr.bf16.mxu0 0
      %784 = vmatpush1.bf16.msra.mxu0 %v734
      %785 = vmatprep.subr.bf16.mxu0 0
      %786 = vmatpush1.bf16.msra.mxu0 %v735
      %787 = vmatprep.subr.bf16.mxu0 0
      %788 = vmatpush1.bf16.msra.mxu0 %v736
      %789 = vmatprep.subr.bf16.mxu0 0
      %790 = vmatpush1.bf16.msra.mxu0 %v737
      %791 = vmatprep.subr.bf16.mxu0 0
      %792 = vmatpush1.bf16.msra.mxu0 %v738
      %793 = vmatprep.subr.bf16.mxu0 0
      %794 = vmatpush1.bf16.msra.mxu0 %v739
      %795 = vmatprep.subr.bf16.mxu0 0
      %796 = vmatpush1.bf16.msra.mxu0 %v740
      %797 = vmatprep.subr.bf16.mxu0 0
      %798 = vmatpush1.bf16.msra.mxu0 %v741
      %799 = vmatprep.subr.bf16.mxu0 0
      %800 = vmatpush1.bf16.msra.mxu0 %v742
      %801 = vmatprep.subr.bf16.mxu0 0
      %802 = vmatpush1.bf16.msra.mxu0 %v743
      %803 = vmatprep.subr.bf16.mxu0 0
      %804 = vmatpush1.bf16.msra.mxu0 %v744
      %805 = vmatprep.subr.bf16.mxu0 0
      %806 = vmatpush1.bf16.msra.mxu0 %v745
      %807 = vmatprep.subr.bf16.mxu0 0
      %808 = vmatpush1.bf16.msra.mxu0 %v746
      %809 = vmatprep.subr.bf16.mxu0 0
      %810 = vmatpush1.bf16.msra.mxu0 %v747
      %811 = vmatprep.subr.bf16.mxu0 0
      %812 = vmatpush1.bf16.msra.mxu0 %v748
      %813 = vmatprep.mubr.bf16.mxu0 %v614
      %814 = vmatmul.mubr.bf16.gmra.mrb[0].mxu0 %v613
      %v815 = vpop.f32.mrb[0].mxu0
      %v816 = vadd.f32 0.0, %v815
      %v817 = vpop.f32.mrb[0].mxu0
      %v818 = vpop.f32.mrb[0].mxu0
      %v819 = vadd.f32 0.0, %v818
      %v820 = vpop.f32.mrb[0].mxu0
      %821 = vmatprep.mubr.bf16.mxu0 %v617
      %822 = vmatmul.mubr.bf16.gmra.mrb[0].mxu0 %v616
      %v823 = vpop.f32.mrb[0].mxu0
      %v824 = vadd.f32 0.0, %v823
      %v825 = vpop.f32.mrb[0].mxu0
      %v826 = vpop.f32.mrb[0].mxu0
      %v827 = vadd.f32 0.0, %v826
      %v828 = vpop.f32.mrb[0].mxu0
      %829 = vmatprep.mubr.bf16.mxu0 %v620
      %830 = vmatmul.mubr.bf16.gmra.mrb[0].mxu0 %v619
      %v831 = vpop.f32.mrb[0].mxu0
      %v832 = vadd.f32 0.0, %v831
      %v833 = vpop.f32.mrb[0].mxu0
      %v834 = vpop.f32.mrb[0].mxu0
      %v835 = vadd.f32 0.0, %v834
      %v836 = vpop.f32.mrb[0].mxu0
      %837 = vmatprep.mubr.bf16.mxu0 %v623
      %838 = vmatmul.mubr.bf16.gmra.mrb[0].mxu0 %v622
      %v839 = vpop.f32.mrb[0].mxu0
      %v840 = vadd.f32 0.0, %v839
      %v841 = vpop.f32.mrb[0].mxu0
      %v842 = vpop.f32.mrb[0].mxu0
      %v843 = vadd.f32 0.0, %v842
      %v844 = vpop.f32.mrb[0].mxu0
      %845 = vdwg.mxu0
      %846 = vmatprep.subr.bf16.mxu0 0
      %847 = vmatpush1.bf16.msra.mxu0 %v749
      %848 = vmatprep.subr.bf16.mxu0 0
      %849 = vmatpush1.bf16.msra.mxu0 %v750
      %850 = vmatprep.subr.bf16.mxu0 0
      %851 = vmatpush1.bf16.msra.mxu0 %v751
      %852 = vmatprep.subr.bf16.mxu0 0
      %853 = vmatpush1.bf16.msra.mxu0 %v752
      %854 = vmatprep.subr.bf16.mxu0 0
      %855 = vmatpush1.bf16.msra.mxu0 %v753
      %856 = vmatprep.subr.bf16.mxu0 0
      %857 = vmatpush1.bf16.msra.mxu0 %v754
      %858 = vmatprep.subr.bf16.mxu0 0
      %859 = vmatpush1.bf16.msra.mxu0 %v755
      %860 = vmatprep.subr.bf16.mxu0 0
      %861 = vmatpush1.bf16.msra.mxu0 %v756
      %862 = vmatprep.subr.bf16.mxu0 0
      %863 = vmatpush1.bf16.msra.mxu0 0
      %864 = vmatprep.subr.bf16.mxu0 0
      %865 = vmatpush1.bf16.msra.mxu0 0
      %866 = vmatprep.subr.bf16.mxu0 0
      %867 = vmatpush1.bf16.msra.mxu0 0
      %868 = vmatprep.subr.bf16.mxu0 0
      %869 = vmatpush1.bf16.msra.mxu0 0
      %870 = vmatprep.subr.bf16.mxu0 0
      %871 = vmatpush1.bf16.msra.mxu0 0
      %872 = vmatprep.subr.bf16.mxu0 0
      %873 = vmatpush1.bf16.msra.mxu0 0
      %874 = vmatprep.subr.bf16.mxu0 0
      %875 = vmatpush1.bf16.msra.mxu0 0
      %876 = vmatprep.subr.bf16.mxu0 0
      %877 = vmatpush1.bf16.msra.mxu0 0
      %878 = vmatprep.mubr.bf16.mxu0 0
      %879 = vmatmul.mubr.bf16.gmra.mrb[0].mxu0 %v615
      %v880 = vpop.f32.mrb[0].mxu0
      %v881 = vadd.f32 %v816, %v880
      %v882 = vpop.f32.mrb[0].mxu0
      %v883 = vpop.f32.mrb[0].mxu0
      %v884 = vadd.f32 %v819, %v883
      %v885 = vpop.f32.mrb[0].mxu0
      %886 = vmatprep.mubr.bf16.mxu0 0
      %887 = vmatmul.mubr.bf16.gmra.mrb[0].mxu0 %v618
      %v888 = vpop.f32.mrb[0].mxu0
      %v889 = vadd.f32 %v824, %v888
      %v890 = vpop.f32.mrb[0].mxu0
      %v891 = vpop.f32.mrb[0].mxu0
      %v892 = vadd.f32 %v827, %v891
      %v893 = vpop.f32.mrb[0].mxu0
      %894 = vmatprep.mubr.bf16.mxu0 0
      %895 = vmatmul.mubr.bf16.gmra.mrb[0].mxu0 %v621
      %v896 = vpop.f32.mrb[0].mxu0
      %v897 = vadd.f32 %v832, %v896
      %v898 = vpop.f32.mrb[0].mxu0
      %v899 = vpop.f32.mrb[0].mxu0
      %v900 = vadd.f32 %v835, %v899
      %v901 = vpop.f32.mrb[0].mxu0
      %902 = vmatprep.mubr.bf16.mxu0 0
      %903 = vmatmul.mubr.bf16.gmra.mrb[0].mxu0 %v624
      %v904 = vpop.f32.mrb[0].mxu0
      %v905 = vadd.f32 %v840, %v904
      %v906 = vpop.f32.mrb[0].mxu0
      %v907 = vpop.f32.mrb[0].mxu0
      %v908 = vadd.f32 %v843, %v907
      %v909 = vpop.f32.mrb[0].mxu0
      %910 = vdwg.mxu0
      %v911 = vpack.c.b16 %v470, %v467
      %v912 = vpack.c.b16 %v471, %v468
      %v913 = vpack.c.b16 %v472, %v469
      %v914 = vpack.c.b16 %v476, %v473
      %v915 = vpack.c.b16 %v477, %v474
      %v916 = vpack.c.b16 %v478, %v475
      %v917 = vpack.c.b16 %v482, %v479
      %v918 = vpack.c.b16 %v483, %v480
      %v919 = vpack.c.b16 %v484, %v481
      %v920 = vpack.c.b16 %v488, %v485
      %v921 = vpack.c.b16 %v489, %v486
      %v922 = vpack.c.b16 %v490, %v487
      %v983 = vunpack.c.l.b16 %v491
      %v984 = vunpack.c.l.b16 %v492
      %v985 = vunpack.c.l.b16 %v493
      %v986 = vunpack.c.l.b16 %v494
      %v987 = vunpack.c.l.b16 %v495
      %v988 = vunpack.c.l.b16 %v496
      %v989 = vunpack.c.l.b16 %v497
      %v990 = vunpack.c.l.b16 %v498
      %v991 = vunpack.c.l.b16 %v499
      %v992 = vunpack.c.l.b16 %v500
      %v993 = vunpack.c.l.b16 %v501
      %v994 = vunpack.c.l.b16 %v502
      %v995 = vunpack.c.l.b16 %v503
      %v996 = vunpack.c.l.b16 %v504
      %v997 = vunpack.c.l.b16 %v505
      %v998 = vunpack.c.l.b16 %v506
      %v999 = vunpack.c.l.b16 %v507
      %v1000 = vunpack.c.l.b16 %v508
      %v1001 = vunpack.c.l.b16 %v509
      %v1002 = vunpack.c.l.b16 %v510
      %v1003 = vunpack.c.l.b16 %v511
      %v1004 = vunpack.c.l.b16 %v512
      %v1005 = vunpack.c.l.b16 %v513
      %v1006 = vunpack.c.l.b16 %v514
      %v1007 = vunpack.c.l.b16 %v515
      %v1008 = vunpack.c.l.b16 %v516
      %v1009 = vunpack.c.l.b16 %v517
      %v1010 = vunpack.c.l.b16 %v518
      %v1011 = vunpack.c.l.b16 %v519
      %v1012 = vunpack.c.l.b16 %v520
      %v1013 = vunpack.c.l.b16 %v521
      %v1014 = vunpack.c.l.b16 %v522
      %v1015 = vunpack.c.l.b16 %v523
      %v1016 = vunpack.c.l.b16 %v524
      %v1017 = vunpack.c.l.b16 %v525
      %v1018 = vunpack.c.l.b16 %v526
      %v1019 = vunpack.c.l.b16 %v527
      %v1020 = vunpack.c.l.b16 %v528
      %v1021 = vunpack.c.l.b16 %v529
      %v1022 = vunpack.c.l.b16 %v530
      %v1023 = vunpack.c.l.b16 %v531
      %v1024 = vunpack.c.l.b16 %v532
      %v1025 = vunpack.c.l.b16 %v533
      %v1026 = vunpack.c.l.b16 %v534
      %v1027 = vunpack.c.l.b16 %v535
      %v1028 = vunpack.c.l.b16 %v536
      %v1029 = vunpack.c.l.b16 %v537
      %v1030 = vunpack.c.l.b16 %v538
      %v1031 = vpack.c.b16 %v984, %v983
      %v1032 = vpack.c.b16 %v986, %v985
      %v1033 = vpack.c.b16 %v988, %v987
      %v1034 = vpack.c.b16 %v990, %v989
      %v1035 = vpack.c.b16 %v992, %v991
      %v1036 = vpack.c.b16 %v994, %v993
      %v1037 = vpack.c.b16 %v996, %v995
      %v1038 = vpack.c.b16 %v998, %v997
      %v1039 = vpack.c.b16 %v1000, %v999
      %v1040 = vpack.c.b16 %v1002, %v1001
      %v1041 = vpack.c.b16 %v1004, %v1003
      %v1042 = vpack.c.b16 %v1006, %v1005
      %v1043 = vpack.c.b16 %v1008, %v1007
      %v1044 = vpack.c.b16 %v1010, %v1009
      %v1045 = vpack.c.b16 %v1012, %v1011
      %v1046 = vpack.c.b16 %v1014, %v1013
      %v1047 = vpack.c.b16 %v1016, %v1015
      %v1048 = vpack.c.b16 %v1018, %v1017
      %v1049 = vpack.c.b16 %v1020, %v1019
      %v1050 = vpack.c.b16 %v1022, %v1021
      %v1051 = vpack.c.b16 %v1024, %v1023
      %v1052 = vpack.c.b16 %v1026, %v1025
      %v1053 = vpack.c.b16 %v1028, %v1027
      %v1054 = vpack.c.b16 %v1030, %v1029
      %1079 = vmatprep.subr.bf16.mxu0 0
      %1080 = vmatpush1.bf16.msra.mxu0 %v1031
      %1081 = vmatprep.subr.bf16.mxu0 0
      %1082 = vmatpush1.bf16.msra.mxu0 %v1032
      %1083 = vmatprep.subr.bf16.mxu0 0
      %1084 = vmatpush1.bf16.msra.mxu0 %v1033
      %1085 = vmatprep.subr.bf16.mxu0 0
      %1086 = vmatpush1.bf16.msra.mxu0 %v1034
      %1087 = vmatprep.subr.bf16.mxu0 0
      %1088 = vmatpush1.bf16.msra.mxu0 %v1035
      %1089 = vmatprep.subr.bf16.mxu0 0
      %1090 = vmatpush1.bf16.msra.mxu0 %v1036
      %1091 = vmatprep.subr.bf16.mxu0 0
      %1092 = vmatpush1.bf16.msra.mxu0 %v1037
      %1093 = vmatprep.subr.bf16.mxu0 0
      %1094 = vmatpush1.bf16.msra.mxu0 %v1038
      %1095 = vmatprep.subr.bf16.mxu0 0
      %1096 = vmatpush1.bf16.msra.mxu0 %v1039
      %1097 = vmatprep.subr.bf16.mxu0 0
      %1098 = vmatpush1.bf16.msra.mxu0 %v1040
      %1099 = vmatprep.subr.bf16.mxu0 0
      %1100 = vmatpush1.bf16.msra.mxu0 %v1041
      %1101 = vmatprep.subr.bf16.mxu0 0
      %1102 = vmatpush1.bf16.msra.mxu0 %v1042
      %1103 = vmatprep.subr.bf16.mxu0 0
      %1104 = vmatpush1.bf16.msra.mxu0 %v1043
      %1105 = vmatprep.subr.bf16.mxu0 0
      %1106 = vmatpush1.bf16.msra.mxu0 %v1044
      %1107 = vmatprep.subr.bf16.mxu0 0
      %1108 = vmatpush1.bf16.msra.mxu0 %v1045
      %1109 = vmatprep.subr.bf16.mxu0 0
      %1110 = vmatpush1.bf16.msra.mxu0 %v1046
      %1111 = vmatprep.mubr.bf16.mxu0 %v912
      %1112 = vmatmul.mubr.bf16.gmra.mrb[0].mxu0 %v911
      %v1113 = vpop.f32.mrb[0].mxu0
      %v1114 = vadd.f32 %v881, %v1113
      %v1115 = vpop.f32.mrb[0].mxu0
      %v1116 = vpop.f32.mrb[0].mxu0
      %v1117 = vadd.f32 %v884, %v1116
      %v1118 = vpop.f32.mrb[0].mxu0
      %1119 = vmatprep.mubr.bf16.mxu0 %v915
      %1120 = vmatmul.mubr.bf16.gmra.mrb[0].mxu0 %v914
      %v1121 = vpop.f32.mrb[0].mxu0
      %v1122 = vadd.f32 %v889, %v1121
      %v1123 = vpop.f32.mrb[0].mxu0
      %v1124 = vpop.f32.mrb[0].mxu0
      %v1125 = vadd.f32 %v892, %v1124
      %v1126 = vpop.f32.mrb[0].mxu0
      %1127 = vmatprep.mubr.bf16.mxu0 %v918
      %1128 = vmatmul.mubr.bf16.gmra.mrb[0].mxu0 %v917
      %v1129 = vpop.f32.mrb[0].mxu0
      %v1130 = vadd.f32 %v897, %v1129
      %v1131 = vpop.f32.mrb[0].mxu0
      %v1132 = vpop.f32.mrb[0].mxu0
      %v1133 = vadd.f32 %v900, %v1132
      %v1134 = vpop.f32.mrb[0].mxu0
      %1135 = vmatprep.mubr.bf16.mxu0 %v921
      %1136 = vmatmul.mubr.bf16.gmra.mrb[0].mxu0 %v920
      %v1137 = vpop.f32.mrb[0].mxu0
      %v1138 = vadd.f32 %v905, %v1137
      %v1139 = vpop.f32.mrb[0].mxu0
      %v1140 = vpop.f32.mrb[0].mxu0
      %v1141 = vadd.f32 %v908, %v1140
      %v1142 = vpop.f32.mrb[0].mxu0
      %1143 = vdwg.mxu0
      %1144 = vmatprep.subr.bf16.mxu0 0
      %1145 = vmatpush1.bf16.msra.mxu0 %v1047
      %1146 = vmatprep.subr.bf16.mxu0 0
      %1147 = vmatpush1.bf16.msra.mxu0 %v1048
      %1148 = vmatprep.subr.bf16.mxu0 0
      %1149 = vmatpush1.bf16.msra.mxu0 %v1049
      %1150 = vmatprep.subr.bf16.mxu0 0
      %1151 = vmatpush1.bf16.msra.mxu0 %v1050
      %1152 = vmatprep.subr.bf16.mxu0 0
      %1153 = vmatpush1.bf16.msra.mxu0 %v1051
      %1154 = vmatprep.subr.bf16.mxu0 0
      %1155 = vmatpush1.bf16.msra.mxu0 %v1052
      %1156 = vmatprep.subr.bf16.mxu0 0
      %1157 = vmatpush1.bf16.msra.mxu0 %v1053
      %1158 = vmatprep.subr.bf16.mxu0 0
      %1159 = vmatpush1.bf16.msra.mxu0 %v1054
      %1160 = vmatprep.subr.bf16.mxu0 0
      %1161 = vmatpush1.bf16.msra.mxu0 0
      %1162 = vmatprep.subr.bf16.mxu0 0
      %1163 = vmatpush1.bf16.msra.mxu0 0
      %1164 = vmatprep.subr.bf16.mxu0 0
      %1165 = vmatpush1.bf16.msra.mxu0 0
      %1166 = vmatprep.subr.bf16.mxu0 0
      %1167 = vmatpush1.bf16.msra.mxu0 0
      %1168 = vmatprep.subr.bf16.mxu0 0
      %1169 = vmatpush1.bf16.msra.mxu0 0
      %1170 = vmatprep.subr.bf16.mxu0 0
      %1171 = vmatpush1.bf16.msra.mxu0 0
      %1172 = vmatprep.subr.bf16.mxu0 0
      %1173 = vmatpush1.bf16.msra.mxu0 0
      %1174 = vmatprep.subr.bf16.mxu0 0
      %1175 = vmatpush1.bf16.msra.mxu0 0
      %1176 = vmatprep.mubr.bf16.mxu0 0
      %1177 = vmatmul.mubr.bf16.gmra.mrb[0].mxu0 %v913
      %v1178 = vpop.f32.mrb[0].mxu0
      %v1179 = vadd.f32 %v1114, %v1178
      %v1180 = vpop.f32.mrb[0].mxu0
      %v1181 = vpop.f32.mrb[0].mxu0
      %v1182 = vadd.f32 %v1117, %v1181
      %v1183 = vpop.f32.mrb[0].mxu0
      %1184 = vmatprep.mubr.bf16.mxu0 0
      %1185 = vmatmul.mubr.bf16.gmra.mrb[0].mxu0 %v916
      %v1186 = vpop.f32.mrb[0].mxu0
      %v1187 = vadd.f32 %v1122, %v1186
      %v1188 = vpop.f32.mrb[0].mxu0
      %v1189 = vpop.f32.mrb[0].mxu0
      %v1190 = vadd.f32 %v1125, %v1189
      %v1191 = vpop.f32.mrb[0].mxu0
      %1192 = vmatprep.mubr.bf16.mxu0 0
      %1193 = vmatmul.mubr.bf16.gmra.mrb[0].mxu0 %v919
      %v1194 = vpop.f32.mrb[0].mxu0
      %v1195 = vadd.f32 %v1130, %v1194
      %v1196 = vpop.f32.mrb[0].mxu0
      %v1197 = vpop.f32.mrb[0].mxu0
      %v1198 = vadd.f32 %v1133, %v1197
      %v1199 = vpop.f32.mrb[0].mxu0
      %1200 = vmatprep.mubr.bf16.mxu0 0
      %1201 = vmatmul.mubr.bf16.gmra.mrb[0].mxu0 %v922
      %v1202 = vpop.f32.mrb[0].mxu0
      %v1203 = vadd.f32 %v1138, %v1202
      %v1204 = vpop.f32.mrb[0].mxu0
      %v1205 = vpop.f32.mrb[0].mxu0
      %v1206 = vadd.f32 %v1141, %v1205
      %v1207 = vpop.f32.mrb[0].mxu0
      %1208 = vdwg.mxu0
      %v1210 = vunpack.c.l.b16 %v284
      %v1211 = vpack.c.b16 %v1210, %v1210
      %v1213 = vshrl.u32 %v1211, 16
      %v1215 = vrot.slane %v1213, 7
      %v1216 = vshll.u32 %v1211, 16
      %v1218 = vor.u32 %v1215, %v1216
      %v1220 = vsel %vm375, 0, %v1218
      %v1221 = vsel %vm386, %v1220, 0
      %v1223 = vshrl.u32 %v1221, 16
      %v1225 = vshll.u32 %v1221, 16
      %v1227 = vrot.slane %v1225, 1
      %v1228 = vor.u32 %v1223, %v1227
      %v1230 = vrot.slane %v1221, 1
      %v1231 = vunpack.c.l.b16 %v1221
      %v1232 = vunpack.c.l.b16 %v1228
      %v1233 = vunpack.c.l.b16 %v1230
      %s1234 = scalar_lea.vmem %s2, 384
      %v1235 = vld [vmem:[%s1234] sm:$0xf]
      %v1236 = vld [vmem:[%s1234 + $0x4] sm:$0xf]
      %v1237 = vld [vmem:[%s1234 + $0x8] sm:$0xf]
      %v1238 = vld [vmem:[%s1234 + $0xc] sm:$0xf]
      %v1239 = vld [vmem:[%s1234 + $0x10] sm:$0xf]
      %v1240 = vld [vmem:[%s1234 + $0x14] sm:$0xf]
      %v1241 = vld [vmem:[%s1234 + $0x18] sm:$0xf]
      %v1242 = vld [vmem:[%s1234 + $0x1c] sm:$0xf]
      %v1243 = vld [vmem:[%s1234 + $0x20] sm:$0xf]
      %v1244 = vld [vmem:[%s1234 + $0x24] sm:$0xf]
      %v1245 = vld [vmem:[%s1234 + $0x28] sm:$0xf]
      %v1246 = vld [vmem:[%s1234 + $0x2c] sm:$0xf]
      %v1247 = vld [vmem:[%s1234 + $0x30] sm:$0xf]
      %v1248 = vld [vmem:[%s1234 + $0x34] sm:$0xf]
      %v1249 = vld [vmem:[%s1234 + $0x38] sm:$0xf]
      %v1250 = vld [vmem:[%s1234 + $0x3c] sm:$0xf]
      %v1251 = vld [vmem:[%s1234 + $0x40] sm:$0xf]
      %v1252 = vld [vmem:[%s1234 + $0x44] sm:$0xf]
      %v1253 = vld [vmem:[%s1234 + $0x48] sm:$0xf]
      %v1254 = vld [vmem:[%s1234 + $0x4c] sm:$0xf]
      %v1255 = vld [vmem:[%s1234 + $0x50] sm:$0xf]
      %v1256 = vld [vmem:[%s1234 + $0x54] sm:$0xf]
      %v1257 = vld [vmem:[%s1234 + $0x58] sm:$0xf]
      %v1258 = vld [vmem:[%s1234 + $0x5c] sm:$0xf]
      %v1259 = vld [vmem:[%s1234 + $0x60] sm:$0xf]
      %v1260 = vld [vmem:[%s1234 + $0x64] sm:$0xf]
      %v1261 = vld [vmem:[%s1234 + $0x68] sm:$0xf]
      %v1262 = vld [vmem:[%s1234 + $0x6c] sm:$0xf]
      %v1263 = vld [vmem:[%s1234 + $0x70] sm:$0xf]
      %v1264 = vld [vmem:[%s1234 + $0x74] sm:$0xf]
      %v1265 = vld [vmem:[%s1234 + $0x78] sm:$0xf]
      %v1266 = vld [vmem:[%s1234 + $0x7c] sm:$0xf]
      %v1267 = vld [vmem:[%s1234 + $0x80] sm:$0xf]
      %v1268 = vld [vmem:[%s1234 + $0x84] sm:$0xf]
      %v1269 = vld [vmem:[%s1234 + $0x88] sm:$0xf]
      %v1270 = vld [vmem:[%s1234 + $0x8c] sm:$0xf]
      %v1271 = vld [vmem:[%s1234 + $0x90] sm:$0xf]
      %v1272 = vld [vmem:[%s1234 + $0x94] sm:$0xf]
      %v1273 = vld [vmem:[%s1234 + $0x98] sm:$0xf]
      %v1274 = vld [vmem:[%s1234 + $0x9c] sm:$0xf]
      %v1275 = vld [vmem:[%s1234 + $0xa0] sm:$0xf]
      %v1276 = vld [vmem:[%s1234 + $0xa4] sm:$0xf]
      %v1277 = vld [vmem:[%s1234 + $0xa8] sm:$0xf]
      %v1278 = vld [vmem:[%s1234 + $0xac] sm:$0xf]
      %v1279 = vld [vmem:[%s1234 + $0xb0] sm:$0xf]
      %v1280 = vld [vmem:[%s1234 + $0xb4] sm:$0xf]
      %v1281 = vld [vmem:[%s1234 + $0xb8] sm:$0xf]
      %v1282 = vld [vmem:[%s1234 + $0xbc] sm:$0xf]
      %v1283 = vpack.c.b16 %v1231, %v561
      %v1284 = vpack.c.b16 %v1232, %v562
      %v1285 = vpack.c.b16 %v1233, %v563
      %v1337 = vunpack.c.l.b16 %v1235
      %v1338 = vunpack.c.l.b16 %v1236
      %v1339 = vunpack.c.l.b16 %v1237
      %v1340 = vunpack.c.l.b16 %v1238
      %v1341 = vunpack.c.l.b16 %v1239
      %v1342 = vunpack.c.l.b16 %v1240
      %v1343 = vunpack.c.l.b16 %v1241
      %v1344 = vunpack.c.l.b16 %v1242
      %v1345 = vunpack.c.l.b16 %v1243
      %v1346 = vunpack.c.l.b16 %v1244
      %v1347 = vunpack.c.l.b16 %v1245
      %v1348 = vunpack.c.l.b16 %v1246
      %v1349 = vunpack.c.l.b16 %v1247
      %v1350 = vunpack.c.l.b16 %v1248
      %v1351 = vunpack.c.l.b16 %v1249
      %v1352 = vunpack.c.l.b16 %v1250
      %v1353 = vunpack.c.l.b16 %v1251
      %v1354 = vunpack.c.l.b16 %v1252
      %v1355 = vunpack.c.l.b16 %v1253
      %v1356 = vunpack.c.l.b16 %v1254
      %v1357 = vunpack.c.l.b16 %v1255
      %v1358 = vunpack.c.l.b16 %v1256
      %v1359 = vunpack.c.l.b16 %v1257
      %v1360 = vunpack.c.l.b16 %v1258
      %v1361 = vunpack.c.l.b16 %v1259
      %v1362 = vunpack.c.l.b16 %v1260
      %v1363 = vunpack.c.l.b16 %v1261
      %v1364 = vunpack.c.l.b16 %v1262
      %v1365 = vunpack.c.l.b16 %v1263
      %v1366 = vunpack.c.l.b16 %v1264
      %v1367 = vunpack.c.l.b16 %v1265
      %v1368 = vunpack.c.l.b16 %v1266
      %v1369 = vunpack.c.l.b16 %v1267
      %v1370 = vunpack.c.l.b16 %v1268
      %v1371 = vunpack.c.l.b16 %v1269
      %v1372 = vunpack.c.l.b16 %v1270
      %v1373 = vunpack.c.l.b16 %v1271
      %v1374 = vunpack.c.l.b16 %v1272
      %v1375 = vunpack.c.l.b16 %v1273
      %v1376 = vunpack.c.l.b16 %v1274
      %v1377 = vunpack.c.l.b16 %v1275
      %v1378 = vunpack.c.l.b16 %v1276
      %v1379 = vunpack.c.l.b16 %v1277
      %v1380 = vunpack.c.l.b16 %v1278
      %v1381 = vunpack.c.l.b16 %v1279
      %v1382 = vunpack.c.l.b16 %v1280
      %v1383 = vunpack.c.l.b16 %v1281
      %v1384 = vunpack.c.l.b16 %v1282
      %v1385 = vpack.c.b16 %v1338, %v1337
      %v1386 = vpack.c.b16 %v1340, %v1339
      %v1387 = vpack.c.b16 %v1342, %v1341
      %v1388 = vpack.c.b16 %v1344, %v1343
      %v1389 = vpack.c.b16 %v1346, %v1345
      %v1390 = vpack.c.b16 %v1348, %v1347
      %v1391 = vpack.c.b16 %v1350, %v1349
      %v1392 = vpack.c.b16 %v1352, %v1351
      %v1393 = vpack.c.b16 %v1354, %v1353
      %v1394 = vpack.c.b16 %v1356, %v1355
      %v1395 = vpack.c.b16 %v1358, %v1357
      %v1396 = vpack.c.b16 %v1360, %v1359
      %v1397 = vpack.c.b16 %v1362, %v1361
      %v1398 = vpack.c.b16 %v1364, %v1363
      %v1399 = vpack.c.b16 %v1366, %v1365
      %v1400 = vpack.c.b16 %v1368, %v1367
      %v1401 = vpack.c.b16 %v1370, %v1369
      %v1402 = vpack.c.b16 %v1372, %v1371
      %v1403 = vpack.c.b16 %v1374, %v1373
      %v1404 = vpack.c.b16 %v1376, %v1375
      %v1405 = vpack.c.b16 %v1378, %v1377
      %v1406 = vpack.c.b16 %v1380, %v1379
      %v1407 = vpack.c.b16 %v1382, %v1381
      %v1408 = vpack.c.b16 %v1384, %v1383
      %1433 = vmatprep.subr.bf16.mxu0 0
      %1434 = vmatpush1.bf16.msra.mxu0 %v1385
      %1435 = vmatprep.subr.bf16.mxu0 0
      %1436 = vmatpush1.bf16.msra.mxu0 %v1386
      %1437 = vmatprep.subr.bf16.mxu0 0
      %1438 = vmatpush1.bf16.msra.mxu0 %v1387
      %1439 = vmatprep.subr.bf16.mxu0 0
      %1440 = vmatpush1.bf16.msra.mxu0 %v1388
      %1441 = vmatprep.subr.bf16.mxu0 0
      %1442 = vmatpush1.bf16.msra.mxu0 %v1389
      %1443 = vmatprep.subr.bf16.mxu0 0
      %1444 = vmatpush1.bf16.msra.mxu0 %v1390
      %1445 = vmatprep.subr.bf16.mxu0 0
      %1446 = vmatpush1.bf16.msra.mxu0 %v1391
      %1447 = vmatprep.subr.bf16.mxu0 0
      %1448 = vmatpush1.bf16.msra.mxu0 %v1392
      %1449 = vmatprep.subr.bf16.mxu0 0
      %1450 = vmatpush1.bf16.msra.mxu0 %v1393
      %1451 = vmatprep.subr.bf16.mxu0 0
      %1452 = vmatpush1.bf16.msra.mxu0 %v1394
      %1453 = vmatprep.subr.bf16.mxu0 0
      %1454 = vmatpush1.bf16.msra.mxu0 %v1395
      %1455 = vmatprep.subr.bf16.mxu0 0
      %1456 = vmatpush1.bf16.msra.mxu0 %v1396
      %1457 = vmatprep.subr.bf16.mxu0 0
      %1458 = vmatpush1.bf16.msra.mxu0 %v1397
      %1459 = vmatprep.subr.bf16.mxu0 0
      %1460 = vmatpush1.bf16.msra.mxu0 %v1398
      %1461 = vmatprep.subr.bf16.mxu0 0
      %1462 = vmatpush1.bf16.msra.mxu0 %v1399
      %1463 = vmatprep.subr.bf16.mxu0 0
      %1464 = vmatpush1.bf16.msra.mxu0 %v1400
      %1465 = vmatprep.mubr.bf16.mxu0 %v915
      %1466 = vmatmul.mubr.bf16.gmra.mrb[0].mxu0 %v914
      %v1467 = vpop.f32.mrb[0].mxu0
      %v1468 = vadd.f32 0.0, %v1467
      %v1469 = vpop.f32.mrb[0].mxu0
      %v1470 = vpop.f32.mrb[0].mxu0
      %v1471 = vadd.f32 0.0, %v1470
      %v1472 = vpop.f32.mrb[0].mxu0
      %1473 = vmatprep.mubr.bf16.mxu0 %v918
      %1474 = vmatmul.mubr.bf16.gmra.mrb[0].mxu0 %v917
      %v1475 = vpop.f32.mrb[0].mxu0
      %v1476 = vadd.f32 0.0, %v1475
      %v1477 = vpop.f32.mrb[0].mxu0
      %v1478 = vpop.f32.mrb[0].mxu0
      %v1479 = vadd.f32 0.0, %v1478
      %v1480 = vpop.f32.mrb[0].mxu0
      %1481 = vmatprep.mubr.bf16.mxu0 %v921
      %1482 = vmatmul.mubr.bf16.gmra.mrb[0].mxu0 %v920
      %v1483 = vpop.f32.mrb[0].mxu0
      %v1484 = vadd.f32 0.0, %v1483
      %v1485 = vpop.f32.mrb[0].mxu0
      %v1486 = vpop.f32.mrb[0].mxu0
      %v1487 = vadd.f32 0.0, %v1486
      %v1488 = vpop.f32.mrb[0].mxu0
      %1489 = vmatprep.mubr.bf16.mxu0 %v1284
      %1490 = vmatmul.mubr.bf16.gmra.mrb[0].mxu0 %v1283
      %v1491 = vpop.f32.mrb[0].mxu0
      %v1492 = vadd.f32 0.0, %v1491
      %v1493 = vpop.f32.mrb[0].mxu0
      %v1494 = vpop.f32.mrb[0].mxu0
      %v1495 = vadd.f32 0.0, %v1494
      %v1496 = vpop.f32.mrb[0].mxu0
      %1497 = vdwg.mxu0
      %1498 = vmatprep.subr.bf16.mxu0 0
      %1499 = vmatpush1.bf16.msra.mxu0 %v1401
      %1500 = vmatprep.subr.bf16.mxu0 0
      %1501 = vmatpush1.bf16.msra.mxu0 %v1402
      %1502 = vmatprep.subr.bf16.mxu0 0
      %1503 = vmatpush1.bf16.msra.mxu0 %v1403
      %1504 = vmatprep.subr.bf16.mxu0 0
      %1505 = vmatpush1.bf16.msra.mxu0 %v1404
      %1506 = vmatprep.subr.bf16.mxu0 0
      %1507 = vmatpush1.bf16.msra.mxu0 %v1405
      %1508 = vmatprep.subr.bf16.mxu0 0
      %1509 = vmatpush1.bf16.msra.mxu0 %v1406
      %1510 = vmatprep.subr.bf16.mxu0 0
      %1511 = vmatpush1.bf16.msra.mxu0 %v1407
      %1512 = vmatprep.subr.bf16.mxu0 0
      %1513 = vmatpush1.bf16.msra.mxu0 %v1408
      %1514 = vmatprep.subr.bf16.mxu0 0
      %1515 = vmatpush1.bf16.msra.mxu0 0
      %1516 = vmatprep.subr.bf16.mxu0 0
      %1517 = vmatpush1.bf16.msra.mxu0 0
      %1518 = vmatprep.subr.bf16.mxu0 0
      %1519 = vmatpush1.bf16.msra.mxu0 0
      %1520 = vmatprep.subr.bf16.mxu0 0
      %1521 = vmatpush1.bf16.msra.mxu0 0
      %1522 = vmatprep.subr.bf16.mxu0 0
      %1523 = vmatpush1.bf16.msra.mxu0 0
      %1524 = vmatprep.subr.bf16.mxu0 0
      %1525 = vmatpush1.bf16.msra.mxu0 0
      %1526 = vmatprep.subr.bf16.mxu0 0
      %1527 = vmatpush1.bf16.msra.mxu0 0
      %1528 = vmatprep.subr.bf16.mxu0 0
      %1529 = vmatpush1.bf16.msra.mxu0 0
      %1530 = vmatprep.mubr.bf16.mxu0 0
      %1531 = vmatmul.mubr.bf16.gmra.mrb[0].mxu0 %v916
      %v1532 = vpop.f32.mrb[0].mxu0
      %v1533 = vadd.f32 %v1468, %v1532
      %v1534 = vpop.f32.mrb[0].mxu0
      %v1535 = vpop.f32.mrb[0].mxu0
      %v1536 = vadd.f32 %v1471, %v1535
      %v1537 = vpop.f32.mrb[0].mxu0
      %1538 = vmatprep.mubr.bf16.mxu0 0
      %1539 = vmatmul.mubr.bf16.gmra.mrb[0].mxu0 %v919
      %v1540 = vpop.f32.mrb[0].mxu0
      %v1541 = vadd.f32 %v1476, %v1540
      %v1542 = vpop.f32.mrb[0].mxu0
      %v1543 = vpop.f32.mrb[0].mxu0
      %v1544 = vadd.f32 %v1479, %v1543
      %v1545 = vpop.f32.mrb[0].mxu0
      %1546 = vmatprep.mubr.bf16.mxu0 0
      %1547 = vmatmul.mubr.bf16.gmra.mrb[0].mxu0 %v922
      %v1548 = vpop.f32.mrb[0].mxu0
      %v1549 = vadd.f32 %v1484, %v1548
      %v1550 = vpop.f32.mrb[0].mxu0
      %v1551 = vpop.f32.mrb[0].mxu0
      %v1552 = vadd.f32 %v1487, %v1551
      %v1553 = vpop.f32.mrb[0].mxu0
      %1554 = vmatprep.mubr.bf16.mxu0 0
      %1555 = vmatmul.mubr.bf16.gmra.mrb[0].mxu0 %v1285
      %v1556 = vpop.f32.mrb[0].mxu0
      %v1557 = vadd.f32 %v1492, %v1556
      %v1558 = vpop.f32.mrb[0].mxu0
      %v1559 = vpop.f32.mrb[0].mxu0
      %v1560 = vadd.f32 %v1495, %v1559
      %v1561 = vpop.f32.mrb[0].mxu0
      %1562 = vdwg.mxu0
      %v1563 = vadd.f32 %v1179, %v1533
      %v1564 = vadd.f32 %v1182, %v1536
      %v1565 = vadd.f32 %v1187, %v1541
      %v1566 = vadd.f32 %v1190, %v1544
      %v1567 = vadd.f32 %v1195, %v1549
      %v1568 = vadd.f32 %v1198, %v1552
      %v1569 = vadd.f32 %v1203, %v1557
      %v1570 = vadd.f32 %v1206, %v1560
      %v1571 = vld [vmem:[%s3] sm:$0x1]
      %v1573 = vlaneseq
      %v1574 = vshrl.u32 %v1573, 7
      %v1575 = vsub.s32 0, %v1574
      %v1576 = vrot.slane %v1571, %v1575
      %v1578 = vadd.f32 %v1563, %v1576
      %v1579 = vadd.f32 %v1564, %v1576
      %v1580 = vadd.f32 %v1565, %v1576
      %v1581 = vadd.f32 %v1566, %v1576
      %v1582 = vadd.f32 %v1567, %v1576
      %v1583 = vadd.f32 %v1568, %v1576
      %v1584 = vadd.f32 %v1569, %v1576
      %v1585 = vadd.f32 %v1570, %v1576
      %v1586 = vmax.f32 %v1578, 0.0
      %v1587 = vmax.f32 %v1579, 0.0
      %v1588 = vmax.f32 %v1580, 0.0
      %v1589 = vmax.f32 %v1581, 0.0
      %v1590 = vmax.f32 %v1582, 0.0
      %v1591 = vmax.f32 %v1583, 0.0
      %v1592 = vmax.f32 %v1584, 0.0
      %v1593 = vmax.f32 %v1585, 0.0
      %v1594 = vmax.f32 %v1586, %v1587
      %v1595 = vmax.f32 %v1588, %v1589
      %v1596 = vmax.f32 %v1590, %v1591
      %v1597 = vmax.f32 %v1592, %v1593
      %1598 = vst [vmem:[#allocation2] sm:$0xff] %v1594
      %1599 = vst [vmem:[#allocation2 + $0x8] sm:$0xff] %v1595
      %1600 = vst [vmem:[#allocation2 + $0x10] sm:$0xff] %v1596
      %1601 = vst [vmem:[#allocation2 + $0x18] sm:$0xff] %v1597
      %v1602 = vld [vmem:[#allocation2] ss:$2 sm:$0xf]
      %s1603 = scalar_lea.vmem [#allocation2], 8
      %v1604 = vld [vmem:[%s1603] ss:$2 sm:$0xf]
      %s1605 = scalar_lea.vmem [#allocation2], 16
      %v1606 = vld [vmem:[%s1605] ss:$2 sm:$0xf]
      %s1607 = scalar_lea.vmem [#allocation2], 24
      %v1608 = vld [vmem:[%s1607] ss:$2 sm:$0xf]
      %s1609 = scalar_lea.vmem [#allocation2], 1
      %v1610 = vld [vmem:[%s1609] ss:$2 sm:$0xf]
      %s1611 = scalar_lea.vmem [#allocation2], 9
      %v1612 = vld [vmem:[%s1611] ss:$2 sm:$0xf]
      %s1613 = scalar_lea.vmem [#allocation2], 17
      %v1614 = vld [vmem:[%s1613] ss:$2 sm:$0xf]
      %s1615 = scalar_lea.vmem [#allocation2], 25
      %v1616 = vld [vmem:[%s1615] ss:$2 sm:$0xf]
      %v1617 = vmax.f32 %v1602, %v1610
      %v1618 = vmax.f32 %v1604, %v1612
      %v1619 = vmax.f32 %v1606, %v1614
      %v1620 = vmax.f32 %v1608, %v1616
      %v1621 = vpack.c.bf16 %v1617, %v1617
      %v1622 = vpack.c.bf16 %v1618, %v1618
      %v1623 = vpack.c.bf16 %v1619, %v1619
      %v1624 = vpack.c.bf16 %v1620, %v1620
      %1625 = vst [vmem:[%s271] sm:$0x3] %v1621
      %1626 = vst [vmem:[%s271 + $0x2] sm:$0x3] %v1622
      %1627 = vst [vmem:[%s271 + $0x4] sm:$0x3] %v1623
      %1628 = vst [vmem:[%s271 + $0x6] sm:$0x3] %v1624
      %s1629 = smul.u32 4, %s20
      %p1630 = scmp.lt.s32.totalorder %s19, 1
      %s1631 = scalar_select %p1630, %s19, 1
      %p1632 = scmp.lt.s32.totalorder %s1629, 3
      %s1633 = scalar_select %p1632, %s1629, 3
      %s1634 = smul.addr %s1631, 4
      %s1635 = sadd.s32 %s1633, %s1634
      %s1636 = smul.addr %s1635, 2
      %s1637 = scalar_lea.vmem %s4, %s1636
      // Predicated region
      $region37: #{_lambda_.7} parent=35 // pred_check
        %p1638 = pneg %p145
      $region38: #{_lambda_.7} parent=35 // pred_check_branch
        %1640 = sbr.rel (%p1638) target = $region40
      $region39: #{_lambda_.7} parent=35 // pred_region
        %s1641 = smul.u32 4, %s20
      $region40: #{_lambda_.7} parent=35 // pred_fallthru
        _
    $region36: #{_lambda_.7} parent=5 // pred_fallthru
      _
    %p1642 = scmp.le.s32.totalorder 2, %s10
    // Predicated region
    $region41: #{_lambda_.7} parent=5 // pred_check
      %p1643 = pneg %p1642
    $region42: #{_lambda_.7} parent=5 // pred_check_branch
      %1645 = sbr.rel (%p1643) target = $region44
    $region43: #{_lambda_.7} parent=5 // pred_region
      %s1646 = ssub.s32 %s10, 2
      // Predicated region
      $region45: #{_lambda_.7} parent=43 // pred_check
        %p1647 = pneg %p151
      $region46: #{_lambda_.7} parent=43 // pred_check_branch
        %1649 = sbr.rel (%p1647) target = $region48
      $region47: #{_lambda_.7} parent=43 // pred_region
        %s1650 = smul.u32 4, %s22
        %p1651 = scmp.lt.s32.totalorder %s21, 1
        %s1652 = scalar_select %p1651, %s21, 1
        %p1653 = scmp.lt.s32.totalorder %s1650, 3
        %s1654 = scalar_select %p1653, %s1650, 3
        %s1655 = smul.addr %s1652, 4
        %s1656 = sadd.s32 %s1654, %s1655
        %s1657 = smul.addr %s1656, 2
        %s1658 = scalar_lea.vmem %s4, %s1657
      $region48: #{_lambda_.7} parent=43 // pred_fallthru
        _
    $region44: #{_lambda_.7} parent=5 // pred_fallthru
      _
  $region6: #{_lambda_.7} parent=0 // loop_footer
    %s14 = sadd.s32 1, %s10
  $region7: #{_lambda_.7} parent=0 // loop_footer_branch
    %9 = sbr.rel target = $region3
  $region8: #{_lambda_.7} parent=0 // loop_exit
    _

// kernel: _lambda_.6
$region0: #{_lambda_.6}
  #allocation0 [shape = 'u32[]', space=smem, size = 0x4, offset = 0x4, fixed_abs, tag = 'smem constant byte address 0x4 - core index']
  #allocation1 [shape = 'u32[144,128]{1,0:T(1,128)}', space=vmem, size = 0x12000, scoped, tag = 'internal scratch']
  %s0 = inlined_call_operand.vmem [shape: bf16[2,8,8,128], index: 0, kind: input, shape index: {}]
  %s1 = inlined_call_operand.vmem [shape: bf16[2,2,8,128], index: 1, kind: input, shape index: {}]
  %s2 = inlined_call_operand.vmem [shape: bf16[3,384,128], index: 2, kind: input, shape index: {}]
  %s3 = inlined_call_operand.vmem [shape: f32[1,128], index: 3, kind: input, shape index: {}]
  %s4 = inlined_call_operand.vmem [shape: bf16[2,8,8,128], index: 4, kind: output, shape index: {}]
  %s5 = sld [smem:[#allocation0]]
  $region49: #{_lambda_.6} parent=0
    _
  %s7 = ssub.s32 1, %s5
  %s8 = scalar_select 0, %s7, %s5
  loop: start=0, step=1, limit=4
  $region2: #{_lambda_.6} parent=0 // loop_pre_header
    _
  $region3: #{_lambda_.6} parent=0 // loop_header
    %s10 = sphi 0, %s14
    %p11 = scmp.ge.s32.totalorder %s10, 4
    %s17 = sphi 0, %s29
    %s18 = sphi 0, %s25
    %s19 = sphi 0, %s17
    %s20 = sphi 0, %s18
    %s21 = sphi 0, %s19
    %s22 = sphi 0, %s20
    %s34 = sphi 0, %s36
    %s37 = sphi 0, %s34
    %s38 = sphi 0, %s37
    %s54 = sphi 0, %s38
    %s62 = sphi 0, %s64
    %s65 = sphi 0, %s62
    %s66 = sphi 0, %s65
    %s82 = sphi 0, %s66
    %s86 = sphi 0, %s86
    %s88 = sphi 0, %s86
    %s89 = sphi 0, %s88
    %s103 = sphi 0, %s89
    %s107 = sphi 0, %s107
    %s109 = sphi 0, %s107
    %s110 = sphi 0, %s109
    %s124 = sphi 0, %s110
    %s132 = sphi 0, %s134
    %s135 = sphi 0, %s132
    %s136 = sphi 0, %s135
    %s152 = sphi 0, %s136
  $region4: #{_lambda_.6} parent=0 // loop_header_branch
    %13 = sbr.rel (%p11) target = $region8
  $region5: #{_lambda_.6} parent=0 // loop_body
    %s15 = ssub.s32 %s10, 1
    %s16 = ssub.s32 %s10, 2
    %s23 = sadd.s32 1, %s18
    %p24 = scmp.ge.s32.totalorder %s23, 1
    %s25 = scalar_select %p24, 0, %s23
    %s26 = sadd.s32 1, %s17
    %s27 = scalar_select %p24, %s26, %s17
    %p28 = scmp.ge.s32.totalorder %s27, 2
    %s29 = scalar_select %p28, 0, %s27
    %s30 = ssub.s32 %s17, %s29
    %s31 = ssub.s32 %s18, %s25
    %s32 = sor.u32 %s30, %s31
    %p33 = scmp.eq.s32.totalorder %s32, 0
    %s35 = sadd.s32 %s34, 1
    %s36 = scalar_select %p33, %s34, %s35
    %p39 = pneg %p33
    %p40 = scmp.eq.s32.totalorder %s10, 1
    %p41 = por %p39, %p40
    %p42 = scmp.ne.s32.totalorder %s34, %s37
    %p43 = scmp.eq.s32.totalorder %s10, 0
    %p44 = por %p42, %p43
    %p45 = scmp.ne.s32.totalorder %s34, %s37
    %p46 = scmp.eq.s32.totalorder %s15, 1
    %p47 = por %p45, %p46
    %p48 = scmp.ne.s32.totalorder %s37, %s38
    %p49 = scmp.eq.s32.totalorder %s15, 0
    %p50 = por %p48, %p49
    %p51 = scmp.ne.s32.totalorder %s37, %s38
    %p52 = scmp.eq.s32.totalorder %s16, 1
    %p53 = por %p51, %p52
    %p55 = scmp.ne.s32.totalorder %s38, %s54
    %p56 = scmp.eq.s32.totalorder %s16, 0
    %p57 = por %p55, %p56
    %s58 = ssub.s32 %s17, %s29
    %s59 = ssub.s32 %s18, %s25
    %s60 = sor.u32 %s58, %s59
    %p61 = scmp.eq.s32.totalorder %s60, 0
    %s63 = sadd.s32 %s62, 1
    %s64 = scalar_select %p61, %s62, %s63
    %p67 = pneg %p61
    %p68 = scmp.eq.s32.totalorder %s10, 1
    %p69 = por %p67, %p68
    %p70 = scmp.ne.s32.totalorder %s62, %s65
    %p71 = scmp.eq.s32.totalorder %s10, 0
    %p72 = por %p70, %p71
    %p73 = scmp.ne.s32.totalorder %s62, %s65
    %p74 = scmp.eq.s32.totalorder %s15, 1
    %p75 = por %p73, %p74
    %p76 = scmp.ne.s32.totalorder %s65, %s66
    %p77 = scmp.eq.s32.totalorder %s15, 0
    %p78 = por %p76, %p77
    %p79 = scmp.ne.s32.totalorder %s65, %s66
    %p80 = scmp.eq.s32.totalorder %s16, 1
    %p81 = por %p79, %p80
    %p83 = scmp.ne.s32.totalorder %s66, %s82
    %p84 = scmp.eq.s32.totalorder %s16, 0
    %p85 = por %p83, %p84
    %s87 = sadd.s32 %s86, 1
    %p90 = scmp.eq.s32.totalorder %s10, 1
    %p91 = scmp.ne.s32.totalorder %s86, %s88
    %p92 = scmp.eq.s32.totalorder %s10, 0
    %p93 = por %p91, %p92
    %p94 = scmp.ne.s32.totalorder %s86, %s88
    %p95 = scmp.eq.s32.totalorder %s15, 1
    %p96 = por %p94, %p95
    %p97 = scmp.ne.s32.totalorder %s88, %s89
    %p98 = scmp.eq.s32.totalorder %s15, 0
    %p99 = por %p97, %p98
    %p100 = scmp.ne.s32.totalorder %s88, %s89
    %p101 = scmp.eq.s32.totalorder %s16, 1
    %p102 = por %p100, %p101
    %p104 = scmp.ne.s32.totalorder %s89, %s103
    %p105 = scmp.eq.s32.totalorder %s16, 0
    %p106 = por %p104, %p105
    %s108 = sadd.s32 %s107, 1
    %p111 = scmp.eq.s32.totalorder %s10, 1
    %p112 = scmp.ne.s32.totalorder %s107, %s109
    %p113 = scmp.eq.s32.totalorder %s10, 0
    %p114 = por %p112, %p113
    %p115 = scmp.ne.s32.totalorder %s107, %s109
    %p116 = scmp.eq.s32.totalorder %s15, 1
    %p117 = por %p115, %p116
    %p118 = scmp.ne.s32.totalorder %s109, %s110
    %p119 = scmp.eq.s32.totalorder %s15, 0
    %p120 = por %p118, %p119
    %p121 = scmp.ne.s32.totalorder %s109, %s110
    %p122 = scmp.eq.s32.totalorder %s16, 1
    %p123 = por %p121, %p122
    %p125 = scmp.ne.s32.totalorder %s110, %s124
    %p126 = scmp.eq.s32.totalorder %s16, 0
    %p127 = por %p125, %p126
    %s128 = ssub.s32 %s17, %s29
    %s129 = ssub.s32 %s18, %s25
    %s130 = sor.u32 %s128, %s129
    %p131 = scmp.eq.s32.totalorder %s130, 0
    %s133 = sadd.s32 %s132, 1
    %s134 = scalar_select %p131, %s132, %s133
    %p137 = pneg %p131
    %p138 = scmp.eq.s32.totalorder %s10, 1
    %p139 = por %p137, %p138
    %p140 = scmp.ne.s32.totalorder %s132, %s135
    %p141 = scmp.eq.s32.totalorder %s10, 0
    %p142 = por %p140, %p141
    %p143 = scmp.ne.s32.totalorder %s132, %s135
    %p144 = scmp.eq.s32.totalorder %s15, 1
    %p145 = por %p143, %p144
    %p146 = scmp.ne.s32.totalorder %s135, %s136
    %p147 = scmp.eq.s32.totalorder %s15, 0
    %p148 = por %p146, %p147
    %p149 = scmp.ne.s32.totalorder %s135, %s136
    %p150 = scmp.eq.s32.totalorder %s16, 1
    %p151 = por %p149, %p150
    %p153 = scmp.ne.s32.totalorder %s136, %s152
    %p154 = scmp.eq.s32.totalorder %s16, 0
    %p155 = por %p153, %p154
    %p156 = scmp.le.s32.totalorder 1, %s10
    %p157 = scmp.lt.s32.totalorder %s10, 3
    %p158 = pnand %p156, %p157
    %p159 = pneg %p158
    // Predicated region
    $region9: #{_lambda_.6} parent=5 // pred_check
      _
    $region10: #{_lambda_.6} parent=5 // pred_check_branch
      %161 = sbr.rel (%p158) target = $region12
    $region11: #{_lambda_.6} parent=5 // pred_region
      %s162 = ssub.s32 %s10, 1
      // Predicated region
      $region13: #{_lambda_.6} parent=11 // pred_check
        %p163 = pneg %p99
      $region14: #{_lambda_.6} parent=11 // pred_check_branch
        %165 = sbr.rel (%p163) target = $region16
      $region15: #{_lambda_.6} parent=11 // pred_region
        _
      $region16: #{_lambda_.6} parent=11 // pred_fallthru
        _
      // Predicated region
      $region17: #{_lambda_.6} parent=11 // pred_check
        %p166 = pneg %p120
      $region18: #{_lambda_.6} parent=11 // pred_check_branch
        %168 = sbr.rel (%p166) target = $region20
      $region19: #{_lambda_.6} parent=11 // pred_region
        _
      $region20: #{_lambda_.6} parent=11 // pred_fallthru
        _
    $region12: #{_lambda_.6} parent=5 // pred_fallthru
      _
    %p169 = scmp.lt.s32.totalorder %s10, 2
    // Predicated region
    $region21: #{_lambda_.6} parent=5 // pred_check
      %p170 = pneg %p169
    $region22: #{_lambda_.6} parent=5 // pred_check_branch
      %172 = sbr.rel (%p170) target = $region24
    $region23: #{_lambda_.6} parent=5 // pred_region
      // Predicated region
      $region25: #{_lambda_.6} parent=23 // pred_check
        %p173 = pneg %p44
      $region26: #{_lambda_.6} parent=23 // pred_check_branch
        %175 = sbr.rel (%p173) target = $region28
      $region27: #{_lambda_.6} parent=23 // pred_region
        %s176 = smul.u32 8, %s18
        %p177 = scmp.lt.s32.totalorder %s17, 1
        %s178 = scalar_select %p177, %s17, 1
        %p179 = scmp.lt.s32.totalorder %s176, 7
        %s180 = scalar_select %p179, %s176, 7
        %s181 = smul.addr %s178, 8
        %s182 = sadd.s32 %s180, %s181
        %s183 = smul.addr %s182, 4
        %s184 = scalar_lea.vmem %s0, %s183
        %s185 = smul.u32 8, %s18
      $region28: #{_lambda_.6} parent=23 // pred_fallthru
        _
      // Predicated region
      $region29: #{_lambda_.6} parent=23 // pred_check
        %p186 = pneg %p72
      $region30: #{_lambda_.6} parent=23 // pred_check_branch
        %188 = sbr.rel (%p186) target = $region32
      $region31: #{_lambda_.6} parent=23 // pred_region
        %s189 = smul.u32 2, %s18
        %p190 = scmp.lt.s32.totalorder %s17, 1
        %s191 = scalar_select %p190, %s17, 1
        %p192 = scmp.lt.s32.totalorder %s189, 1
        %s193 = scalar_select %p192, %s189, 1
        %s194 = smul.addr %s191, 2
        %s195 = sadd.s32 %s193, %s194
        %s196 = smul.addr %s195, 4
        %s197 = scalar_lea.vmem %s1, %s196
        %s198 = smul.u32 2, %s18
      $region32: #{_lambda_.6} parent=23 // pred_fallthru
        _
    $region24: #{_lambda_.6} parent=5 // pred_fallthru
      _
    %p199 = scmp.le.s32.totalorder 1, %s10
    %p200 = scmp.lt.s32.totalorder %s10, 3
    %p201 = pnand %p199, %p200
    %p202 = pneg %p201
    // Predicated region
    $region33: #{_lambda_.6} parent=5 // pred_check
      _
    $region34: #{_lambda_.6} parent=5 // pred_check_branch
      %204 = sbr.rel (%p201) target = $region36
    $region35: #{_lambda_.6} parent=5 // pred_region
      %s205 = ssub.s32 %s10, 1
      %s206 = smul.u32 8, %s20
      %p207 = scmp.lt.s32.totalorder %s19, 1
      %s208 = scalar_select %p207, %s19, 1
      %p209 = scmp.lt.s32.totalorder %s206, 7
      %s210 = scalar_select %p209, %s206, 7
      %s211 = smul.addr %s208, 8
      %s212 = sadd.s32 %s210, %s211
      %s213 = smul.addr %s212, 4
      %s214 = scalar_lea.vmem %s0, %s213
      %p215 = pneg %p50
      %p216 = pneg %p47
      %s217 = smul.u32 2, %s20
      %p218 = scmp.lt.s32.totalorder %s19, 1
      %s219 = scalar_select %p218, %s19, 1
      %p220 = scmp.lt.s32.totalorder %s217, 1
      %s221 = scalar_select %p220, %s217, 1
      %s222 = smul.addr %s219, 2
      %s223 = sadd.s32 %s221, %s222
      %s224 = smul.addr %s223, 4
      %s225 = scalar_lea.vmem %s1, %s224
      %p226 = pneg %p78
      %p227 = pneg %p75
      %p228 = pneg %p99
      %p229 = pneg %p96
      %p230 = pneg %p120
      %p231 = pneg %p117
      %p232 = pneg %p148
      %p233 = pneg %p145
      %s234 = smul.u32 8, %s20
      %p235 = scmp.lt.s32.totalorder %s19, 1
      %s236 = scalar_select %p235, %s19, 1
      %p237 = scmp.lt.s32.totalorder %s234, 7
      %s238 = scalar_select %p237, %s234, 7
      %s239 = smul.addr %s236, 8
      %s240 = sadd.s32 %s238, %s239
      %s241 = smul.addr %s240, 4
      %s242 = scalar_lea.vmem %s4, %s241
      %s243 = smul.u32 8, %s20
      %p244 = scmp.lt.s32.totalorder %s19, 1
      %s245 = scalar_select %p244, %s19, 1
      %p246 = scmp.lt.s32.totalorder %s243, 7
      %s247 = scalar_select %p246, %s243, 7
      %s248 = smul.addr %s245, 8
      %s249 = sadd.s32 %s247, %s248
      %s250 = smul.addr %s249, 4
      %s251 = scalar_lea.vmem %s0, %s250
      %s252 = smul.u32 8, %s20
      %s253 = smul.u32 2, %s20
      %p254 = scmp.lt.s32.totalorder %s19, 1
      %s255 = scalar_select %p254, %s19, 1
      %p256 = scmp.lt.s32.totalorder %s253, 1
      %s257 = scalar_select %p256, %s253, 1
      %s258 = smul.addr %s255, 2
      %s259 = sadd.s32 %s257, %s258
      %s260 = smul.addr %s259, 4
      %s261 = scalar_lea.vmem %s1, %s260
      %s262 = smul.u32 2, %s20
      %s263 = smul.u32 8, %s20
      %p264 = scmp.lt.s32.totalorder %s19, 1
      %s265 = scalar_select %p264, %s19, 1
      %p266 = scmp.lt.s32.totalorder %s263, 7
      %s267 = scalar_select %p266, %s263, 7
      %s268 = smul.addr %s265, 8
      %s269 = sadd.s32 %s267, %s268
      %s270 = smul.addr %s269, 4
      %s271 = scalar_lea.vmem %s4, %s270
      %s272 = smul.u32 8, %s20
      %v274 = vld [vmem:[%s251] sm:$0xf]
      %v275 = vld [vmem:[%s251 + $0x4] sm:$0xf]
      %v276 = vld [vmem:[%s251 + $0x8] sm:$0xf]
      %v277 = vld [vmem:[%s251 + $0xc] sm:$0xf]
      %v278 = vld [vmem:[%s251 + $0x10] sm:$0xf]
      %v279 = vld [vmem:[%s251 + $0x14] sm:$0xf]
      %v280 = vld [vmem:[%s251 + $0x18] sm:$0xf]
      %v281 = vld [vmem:[%s251 + $0x1c] sm:$0xf]
      %v282 = vld [vmem:[%s261] sm:$0xf]
      %s283 = scalar_lea.vmem %s261, 4
      %v284 = vld [vmem:[%s283] sm:$0xf]
      %v293 = vunpack.c.l.b16 %v282
      %v294 = vunpack.c.l.b16 %v274
      %v295 = vunpack.c.l.b16 %v275
      %v296 = vunpack.c.l.b16 %v276
      %v297 = vunpack.c.l.b16 %v277
      %v298 = vunpack.c.l.b16 %v278
      %v299 = vunpack.c.l.b16 %v279
      %v300 = vunpack.c.l.b16 %v280
      %v301 = vpack.c.b16 %v293, %v293
      %v302 = vpack.c.b16 %v294, %v294
      %v303 = vpack.c.b16 %v295, %v295
      %v304 = vpack.c.b16 %v296, %v296
      %v305 = vpack.c.b16 %v297, %v297
      %v306 = vpack.c.b16 %v298, %v298
      %v307 = vpack.c.b16 %v299, %v299
      %v308 = vpack.c.b16 %v300, %v300
      %v310 = vshrl.u32 %v301, 16
      %v312 = vrot.slane %v310, 7
      %v313 = vshll.u32 %v301, 16
      %v315 = vor.u32 %v312, %v313
      %v317 = vshrl.u32 %v302, 16
      %v319 = vrot.slane %v317, 7
      %v320 = vshll.u32 %v302, 16
      %v322 = vor.u32 %v319, %v320
      %v324 = vshrl.u32 %v303, 16
      %v326 = vrot.slane %v324, 7
      %v327 = vshll.u32 %v303, 16
      %v329 = vor.u32 %v326, %v327
      %v331 = vshrl.u32 %v304, 16
      %v333 = vrot.slane %v331, 7
      %v334 = vshll.u32 %v304, 16
      %v336 = vor.u32 %v333, %v334
      %v338 = vshrl.u32 %v305, 16
      %v340 = vrot.slane %v338, 7
      %v341 = vshll.u32 %v305, 16
      %v343 = vor.u32 %v340, %v341
      %v345 = vshrl.u32 %v306, 16
      %v347 = vrot.slane %v345, 7
      %v348 = vshll.u32 %v306, 16
      %v350 = vor.u32 %v347, %v348
      %v352 = vshrl.u32 %v307, 16
      %v354 = vrot.slane %v352, 7
      %v355 = vshll.u32 %v307, 16
      %v357 = vor.u32 %v354, %v355
      %v359 = vshrl.u32 %v308, 16
      %v361 = vrot.slane %v359, 7
      %v362 = vshll.u32 %v308, 16
      %v364 = vor.u32 %v361, %v362
      %vm373 = vcmask 1040384
      %vm374 = vsmask.f32 256
      %vm375 = vmand %vm373, %vm374
      %v376 = vsel %vm375, 0, %v315
      %v377 = vsel %vm375, 0, %v322
      %v378 = vsel %vm375, 0, %v329
      %v379 = vsel %vm375, 0, %v336
      %v380 = vsel %vm375, 0, %v343
      %v381 = vsel %vm375, 0, %v350
      %v382 = vsel %vm375, 0, %v357
      %v383 = vsel %vm375, 0, %v364
      %vm384 = vcmask 1044480
      %vm385 = vsmask.f32 4352
      %vm386 = vmand %vm384, %vm385
      %v387 = vsel %vm386, %v376, 0
      %v388 = vsel %vm386, %v377, 0
      %v389 = vsel %vm386, %v378, 0
      %v390 = vsel %vm386, %v379, 0
      %v391 = vsel %vm386, %v380, 0
      %v392 = vsel %vm386, %v381, 0
      %v393 = vsel %vm386, %v382, 0
      %v394 = vsel %vm386, %v383, 0
      %v396 = vshrl.u32 %v387, 16
      %v398 = vshll.u32 %v387, 16
      %v400 = vrot.slane %v398, 1
      %v401 = vor.u32 %v396, %v400
      %v403 = vshrl.u32 %v388, 16
      %v405 = vshll.u32 %v388, 16
      %v407 = vrot.slane %v405, 1
      %v408 = vor.u32 %v403, %v407
      %v410 = vshrl.u32 %v389, 16
      %v412 = vshll.u32 %v389, 16
      %v414 = vrot.slane %v412, 1
      %v415 = vor.u32 %v410, %v414
      %v417 = vshrl.u32 %v390, 16
      %v419 = vshll.u32 %v390, 16
      %v421 = vrot.slane %v419, 1
      %v422 = vor.u32 %v417, %v421
      %v424 = vshrl.u32 %v391, 16
      %v426 = vshll.u32 %v391, 16
      %v428 = vrot.slane %v426, 1
      %v429 = vor.u32 %v424, %v428
      %v431 = vshrl.u32 %v392, 16
      %v433 = vshll.u32 %v392, 16
      %v435 = vrot.slane %v433, 1
      %v436 = vor.u32 %v431, %v435
      %v438 = vshrl.u32 %v393, 16
      %v440 = vshll.u32 %v393, 16
      %v442 = vrot.slane %v440, 1
      %v443 = vor.u32 %v438, %v442
      %v445 = vshrl.u32 %v394, 16
      %v447 = vshll.u32 %v394, 16
      %v449 = vrot.slane %v447, 1
      %v450 = vor.u32 %v445, %v449
      %v459 = vrot.slane %v387, 1
      %v460 = vrot.slane %v388, 1
      %v461 = vrot.slane %v389, 1
      %v462 = vrot.slane %v390, 1
      %v463 = vrot.slane %v391, 1
      %v464 = vrot.slane %v392, 1
      %v465 = vrot.slane %v393, 1
      %v466 = vrot.slane %v394, 1
      %v467 = vunpack.c.l.b16 %v387
      %v468 = vunpack.c.l.b16 %v401
      %v469 = vunpack.c.l.b16 %v459
      %v470 = vunpack.c.l.b16 %v388
      %v471 = vunpack.c.l.b16 %v408
      %v472 = vunpack.c.l.b16 %v460
      %v473 = vunpack.c.l.b16 %v389
      %v474 = vunpack.c.l.b16 %v415
      %v475 = vunpack.c.l.b16 %v461
      %v476 = vunpack.c.l.b16 %v390
      %v477 = vunpack.c.l.b16 %v422
      %v478 = vunpack.c.l.b16 %v462
      %v479 = vunpack.c.l.b16 %v391
      %v480 = vunpack.c.l.b16 %v429
      %v481 = vunpack.c.l.b16 %v463
      %v482 = vunpack.c.l.b16 %v392
      %v483 = vunpack.c.l.b16 %v436
      %v484 = vunpack.c.l.b16 %v464
      %v485 = vunpack.c.l.b16 %v393
      %v486 = vunpack.c.l.b16 %v443
      %v487 = vunpack.c.l.b16 %v465
      %v488 = vunpack.c.l.b16 %v394
      %v489 = vunpack.c.l.b16 %v450
      %v490 = vunpack.c.l.b16 %v466
      %v491 = vld [vmem:[%s2] sm:$0xf]
      %v492 = vld [vmem:[%s2 + $0x4] sm:$0xf]
      %v493 = vld [vmem:[%s2 + $0x8] sm:$0xf]
      %v494 = vld [vmem:[%s2 + $0xc] sm:$0xf]
      %v495 = vld [vmem:[%s2 + $0x10] sm:$0xf]
      %v496 = vld [vmem:[%s2 + $0x14] sm:$0xf]
      %v497 = vld [vmem:[%s2 + $0x18] sm:$0xf]
      %v498 = vld [vmem:[%s2 + $0x1c] sm:$0xf]
      %v499 = vld [vmem:[%s2 + $0x20] sm:$0xf]
      %v500 = vld [vmem:[%s2 + $0x24] sm:$0xf]
      %v501 = vld [vmem:[%s2 + $0x28] sm:$0xf]
      %v502 = vld [vmem:[%s2 + $0x2c] sm:$0xf]
      %v503 = vld [vmem:[%s2 + $0x30] sm:$0xf]
      %v504 = vld [vmem:[%s2 + $0x34] sm:$0xf]
      %v505 = vld [vmem:[%s2 + $0x38] sm:$0xf]
      %v506 = vld [vmem:[%s2 + $0x3c] sm:$0xf]
      %v507 = vld [vmem:[%s2 + $0x40] sm:$0xf]
      %v508 = vld [vmem:[%s2 + $0x44] sm:$0xf]
      %v509 = vld [vmem:[%s2 + $0x48] sm:$0xf]
      %v510 = vld [vmem:[%s2 + $0x4c] sm:$0xf]
      %v511 = vld [vmem:[%s2 + $0x50] sm:$0xf]
      %v512 = vld [vmem:[%s2 + $0x54] sm:$0xf]
      %v513 = vld [vmem:[%s2 + $0x58] sm:$0xf]
      %v514 = vld [vmem:[%s2 + $0x5c] sm:$0xf]
      %v515 = vld [vmem:[%s2 + $0x60] sm:$0xf]
      %v516 = vld [vmem:[%s2 + $0x64] sm:$0xf]
      %v517 = vld [vmem:[%s2 + $0x68] sm:$0xf]
      %v518 = vld [vmem:[%s2 + $0x6c] sm:$0xf]
      %v519 = vld [vmem:[%s2 + $0x70] sm:$0xf]
      %v520 = vld [vmem:[%s2 + $0x74] sm:$0xf]
      %v521 = vld [vmem:[%s2 + $0x78] sm:$0xf]
      %v522 = vld [vmem:[%s2 + $0x7c] sm:$0xf]
      %v523 = vld [vmem:[%s2 + $0x80] sm:$0xf]
      %v524 = vld [vmem:[%s2 + $0x84] sm:$0xf]
      %v525 = vld [vmem:[%s2 + $0x88] sm:$0xf]
      %v526 = vld [vmem:[%s2 + $0x8c] sm:$0xf]
      %v527 = vld [vmem:[%s2 + $0x90] sm:$0xf]
      %v528 = vld [vmem:[%s2 + $0x94] sm:$0xf]
      %v529 = vld [vmem:[%s2 + $0x98] sm:$0xf]
      %v530 = vld [vmem:[%s2 + $0x9c] sm:$0xf]
      %v531 = vld [vmem:[%s2 + $0xa0] sm:$0xf]
      %v532 = vld [vmem:[%s2 + $0xa4] sm:$0xf]
      %v533 = vld [vmem:[%s2 + $0xa8] sm:$0xf]
      %v534 = vld [vmem:[%s2 + $0xac] sm:$0xf]
      %v535 = vld [vmem:[%s2 + $0xb0] sm:$0xf]
      %v536 = vld [vmem:[%s2 + $0xb4] sm:$0xf]
      %v537 = vld [vmem:[%s2 + $0xb8] sm:$0xf]
      %v538 = vld [vmem:[%s2 + $0xbc] sm:$0xf]
      %v540 = vunpack.c.l.b16 %v281
      %v541 = vpack.c.b16 %v540, %v540
      %v543 = vshrl.u32 %v541, 16
      %v545 = vrot.slane %v543, 7
      %v546 = vshll.u32 %v541, 16
      %v548 = vor.u32 %v545, %v546
      %v550 = vsel %vm375, 0, %v548
      %v551 = vsel %vm386, %v550, 0
      %v553 = vshrl.u32 %v551, 16
      %v555 = vshll.u32 %v551, 16
      %v557 = vrot.slane %v555, 1
      %v558 = vor.u32 %v553, %v557
      %v560 = vrot.slane %v551, 1
      %v561 = vunpack.c.l.b16 %v551
      %v562 = vunpack.c.l.b16 %v558
      %v563 = vunpack.c.l.b16 %v560
      %s564 = scalar_lea.vmem %s2, 192
      %v565 = vld [vmem:[%s564] sm:$0xf]
      %v566 = vld [vmem:[%s564 + $0x4] sm:$0xf]
      %v567 = vld [vmem:[%s564 + $0x8] sm:$0xf]
      %v568 = vld [vmem:[%s564 + $0xc] sm:$0xf]
      %v569 = vld [vmem:[%s564 + $0x10] sm:$0xf]
      %v570 = vld [vmem:[%s564 + $0x14] sm:$0xf]
      %v571 = vld [vmem:[%s564 + $0x18] sm:$0xf]
      %v572 = vld [vmem:[%s564 + $0x1c] sm:$0xf]
      %v573 = vld [vmem:[%s564 + $0x20] sm:$0xf]
      %v574 = vld [vmem:[%s564 + $0x24] sm:$0xf]
      %v575 = vld [vmem:[%s564 + $0x28] sm:$0xf]
      %v576 = vld [vmem:[%s564 + $0x2c] sm:$0xf]
      %v577 = vld [vmem:[%s564 + $0x30] sm:$0xf]
      %v578 = vld [vmem:[%s564 + $0x34] sm:$0xf]
      %v579 = vld [vmem:[%s564 + $0x38] sm:$0xf]
      %v580 = vld [vmem:[%s564 + $0x3c] sm:$0xf]
      %v581 = vld [vmem:[%s564 + $0x40] sm:$0xf]
      %v582 = vld [vmem:[%s564 + $0x44] sm:$0xf]
      %v583 = vld [vmem:[%s564 + $0x48] sm:$0xf]
      %v584 = vld [vmem:[%s564 + $0x4c] sm:$0xf]
      %v585 = vld [vmem:[%s564 + $0x50] sm:$0xf]
      %v586 = vld [vmem:[%s564 + $0x54] sm:$0xf]
      %v587 = vld [vmem:[%s564 + $0x58] sm:$0xf]
      %v588 = vld [vmem:[%s564 + $0x5c] sm:$0xf]
      %v589 = vld [vmem:[%s564 + $0x60] sm:$0xf]
      %v590 = vld [vmem:[%s564 + $0x64] sm:$0xf]
      %v591 = vld [vmem:[%s564 + $0x68] sm:$0xf]
      %v592 = vld [vmem:[%s564 + $0x6c] sm:$0xf]
      %v593 = vld [vmem:[%s564 + $0x70] sm:$0xf]
      %v594 = vld [vmem:[%s564 + $0x74] sm:$0xf]
      %v595 = vld [vmem:[%s564 + $0x78] sm:$0xf]
      %v596 = vld [vmem:[%s564 + $0x7c] sm:$0xf]
      %v597 = vld [vmem:[%s564 + $0x80] sm:$0xf]
      %v598 = vld [vmem:[%s564 + $0x84] sm:$0xf]
      %v599 = vld [vmem:[%s564 + $0x88] sm:$0xf]
      %v600 = vld [vmem:[%s564 + $0x8c] sm:$0xf]
      %v601 = vld [vmem:[%s564 + $0x90] sm:$0xf]
      %v602 = vld [vmem:[%s564 + $0x94] sm:$0xf]
      %v603 = vld [vmem:[%s564 + $0x98] sm:$0xf]
      %v604 = vld [vmem:[%s564 + $0x9c] sm:$0xf]
      %v605 = vld [vmem:[%s564 + $0xa0] sm:$0xf]
      %v606 = vld [vmem:[%s564 + $0xa4] sm:$0xf]
      %v607 = vld [vmem:[%s564 + $0xa8] sm:$0xf]
      %v608 = vld [vmem:[%s564 + $0xac] sm:$0xf]
      %v609 = vld [vmem:[%s564 + $0xb0] sm:$0xf]
      %v610 = vld [vmem:[%s564 + $0xb4] sm:$0xf]
      %v611 = vld [vmem:[%s564 + $0xb8] sm:$0xf]
      %v612 = vld [vmem:[%s564 + $0xbc] sm:$0xf]
      %v613 = vpack.c.b16 %v473, %v470
      %v614 = vpack.c.b16 %v474, %v471
      %v615 = vpack.c.b16 %v475, %v472
      %v616 = vpack.c.b16 %v479, %v476
      %v617 = vpack.c.b16 %v480, %v477
      %v618 = vpack.c.b16 %v481, %v478
      %v619 = vpack.c.b16 %v485, %v482
      %v620 = vpack.c.b16 %v486, %v483
      %v621 = vpack.c.b16 %v487, %v484
      %v622 = vpack.c.b16 %v561, %v488
      %v623 = vpack.c.b16 %v562, %v489
      %v624 = vpack.c.b16 %v563, %v490
      %v685 = vunpack.c.l.b16 %v565
      %v686 = vunpack.c.l.b16 %v566
      %v687 = vunpack.c.l.b16 %v567
      %v688 = vunpack.c.l.b16 %v568
      %v689 = vunpack.c.l.b16 %v569
      %v690 = vunpack.c.l.b16 %v570
      %v691 = vunpack.c.l.b16 %v571
      %v692 = vunpack.c.l.b16 %v572
      %v693 = vunpack.c.l.b16 %v573
      %v694 = vunpack.c.l.b16 %v574
      %v695 = vunpack.c.l.b16 %v575
      %v696 = vunpack.c.l.b16 %v576
      %v697 = vunpack.c.l.b16 %v577
      %v698 = vunpack.c.l.b16 %v578
      %v699 = vunpack.c.l.b16 %v579
      %v700 = vunpack.c.l.b16 %v580
      %v701 = vunpack.c.l.b16 %v581
      %v702 = vunpack.c.l.b16 %v582
      %v703 = vunpack.c.l.b16 %v583
      %v704 = vunpack.c.l.b16 %v584
      %v705 = vunpack.c.l.b16 %v585
      %v706 = vunpack.c.l.b16 %v586
      %v707 = vunpack.c.l.b16 %v587
      %v708 = vunpack.c.l.b16 %v588
      %v709 = vunpack.c.l.b16 %v589
      %v710 = vunpack.c.l.b16 %v590
      %v711 = vunpack.c.l.b16 %v591
      %v712 = vunpack.c.l.b16 %v592
      %v713 = vunpack.c.l.b16 %v593
      %v714 = vunpack.c.l.b16 %v594
      %v715 = vunpack.c.l.b16 %v595
      %v716 = vunpack.c.l.b16 %v596
      %v717 = vunpack.c.l.b16 %v597
      %v718 = vunpack.c.l.b16 %v598
      %v719 = vunpack.c.l.b16 %v599
      %v720 = vunpack.c.l.b16 %v600
      %v721 = vunpack.c.l.b16 %v601
      %v722 = vunpack.c.l.b16 %v602
      %v723 = vunpack.c.l.b16 %v603
      %v724 = vunpack.c.l.b16 %v604
      %v725 = vunpack.c.l.b16 %v605
      %v726 = vunpack.c.l.b16 %v606
      %v727 = vunpack.c.l.b16 %v607
      %v728 = vunpack.c.l.b16 %v608
      %v729 = vunpack.c.l.b16 %v609
      %v730 = vunpack.c.l.b16 %v610
      %v731 = vunpack.c.l.b16 %v611
      %v732 = vunpack.c.l.b16 %v612
      %v733 = vpack.c.b16 %v686, %v685
      %v734 = vpack.c.b16 %v688, %v687
      %v735 = vpack.c.b16 %v690, %v689
      %v736 = vpack.c.b16 %v692, %v691
      %v737 = vpack.c.b16 %v694, %v693
      %v738 = vpack.c.b16 %v696, %v695
      %v739 = vpack.c.b16 %v698, %v697
      %v740 = vpack.c.b16 %v700, %v699
      %v741 = vpack.c.b16 %v702, %v701
      %v742 = vpack.c.b16 %v704, %v703
      %v743 = vpack.c.b16 %v706, %v705
      %v744 = vpack.c.b16 %v708, %v707
      %v745 = vpack.c.b16 %v710, %v709
      %v746 = vpack.c.b16 %v712, %v711
      %v747 = vpack.c.b16 %v714, %v713
      %v748 = vpack.c.b16 %v716, %v715
      %v749 = vpack.c.b16 %v718, %v717
      %v750 = vpack.c.b16 %v720, %v719
      %v751 = vpack.c.b16 %v722, %v721
      %v752 = vpack.c.b16 %v724, %v723
      %v753 = vpack.c.b16 %v726, %v725
      %v754 = vpack.c.b16 %v728, %v727
      %v755 = vpack.c.b16 %v730, %v729
      %v756 = vpack.c.b16 %v732, %v731
      %781 = vmatprep.subr.bf16.mxu0 0
      %782 = vmatpush1.bf16.msra.mxu0 %v733
      %783 = vmatprep.subr.bf16.mxu0 0
      %784 = vmatpush1.bf16.msra.mxu0 %v734
      %785 = vmatprep.subr.bf16.mxu0 0
      %786 = vmatpush1.bf16.msra.mxu0 %v735
      %787 = vmatprep.subr.bf16.mxu0 0
      %788 = vmatpush1.bf16.msra.mxu0 %v736
      %789 = vmatprep.subr.bf16.mxu0 0
      %790 = vmatpush1.bf16.msra.mxu0 %v737
      %791 = vmatprep.subr.bf16.mxu0 0
      %792 = vmatpush1.bf16.msra.mxu0 %v738
      %793 = vmatprep.subr.bf16.mxu0 0
      %794 = vmatpush1.bf16.msra.mxu0 %v739
      %795 = vmatprep.subr.bf16.mxu0 0
      %796 = vmatpush1.bf16.msra.mxu0 %v740
      %797 = vmatprep.subr.bf16.mxu0 0
      %798 = vmatpush1.bf16.msra.mxu0 %v741
      %799 = vmatprep.subr.bf16.mxu0 0
      %800 = vmatpush1.bf16.msra.mxu0 %v742
      %801 = vmatprep.subr.bf16.mxu0 0
      %802 = vmatpush1.bf16.msra.mxu0 %v743
      %803 = vmatprep.subr.bf16.mxu0 0
      %804 = vmatpush1.bf16.msra.mxu0 %v744
      %805 = vmatprep.subr.bf16.mxu0 0
      %806 = vmatpush1.bf16.msra.mxu0 %v745
      %807 = vmatprep.subr.bf16.mxu0 0
      %808 = vmatpush1.bf16.msra.mxu0 %v746
      %809 = vmatprep.subr.bf16.mxu0 0
      %810 = vmatpush1.bf16.msra.mxu0 %v747
      %811 = vmatprep.subr.bf16.mxu0 0
      %812 = vmatpush1.bf16.msra.mxu0 %v748
      %813 = vmatprep.mubr.bf16.mxu0 %v614
      %814 = vmatmul.mubr.bf16.gmra.mrb[0].mxu0 %v613
      %v815 = vpop.f32.mrb[0].mxu0
      %v816 = vadd.f32 0.0, %v815
      %v817 = vpop.f32.mrb[0].mxu0
      %v818 = vpop.f32.mrb[0].mxu0
      %v819 = vadd.f32 0.0, %v818
      %v820 = vpop.f32.mrb[0].mxu0
      %821 = vmatprep.mubr.bf16.mxu0 %v617
      %822 = vmatmul.mubr.bf16.gmra.mrb[0].mxu0 %v616
      %v823 = vpop.f32.mrb[0].mxu0
      %v824 = vadd.f32 0.0, %v823
      %v825 = vpop.f32.mrb[0].mxu0
      %v826 = vpop.f32.mrb[0].mxu0
      %v827 = vadd.f32 0.0, %v826
      %v828 = vpop.f32.mrb[0].mxu0
      %829 = vmatprep.mubr.bf16.mxu0 %v620
      %830 = vmatmul.mubr.bf16.gmra.mrb[0].mxu0 %v619
      %v831 = vpop.f32.mrb[0].mxu0
      %v832 = vadd.f32 0.0, %v831
      %v833 = vpop.f32.mrb[0].mxu0
      %v834 = vpop.f32.mrb[0].mxu0
      %v835 = vadd.f32 0.0, %v834
      %v836 = vpop.f32.mrb[0].mxu0
      %837 = vmatprep.mubr.bf16.mxu0 %v623
      %838 = vmatmul.mubr.bf16.gmra.mrb[0].mxu0 %v622
      %v839 = vpop.f32.mrb[0].mxu0
      %v840 = vadd.f32 0.0, %v839
      %v841 = vpop.f32.mrb[0].mxu0
      %v842 = vpop.f32.mrb[0].mxu0
      %v843 = vadd.f32 0.0, %v842
      %v844 = vpop.f32.mrb[0].mxu0
      %845 = vdwg.mxu0
      %846 = vmatprep.subr.bf16.mxu0 0
      %847 = vmatpush1.bf16.msra.mxu0 %v749
      %848 = vmatprep.subr.bf16.mxu0 0
      %849 = vmatpush1.bf16.msra.mxu0 %v750
      %850 = vmatprep.subr.bf16.mxu0 0
      %851 = vmatpush1.bf16.msra.mxu0 %v751
      %852 = vmatprep.subr.bf16.mxu0 0
      %853 = vmatpush1.bf16.msra.mxu0 %v752
      %854 = vmatprep.subr.bf16.mxu0 0
      %855 = vmatpush1.bf16.msra.mxu0 %v753
      %856 = vmatprep.subr.bf16.mxu0 0
      %857 = vmatpush1.bf16.msra.mxu0 %v754
      %858 = vmatprep.subr.bf16.mxu0 0
      %859 = vmatpush1.bf16.msra.mxu0 %v755
      %860 = vmatprep.subr.bf16.mxu0 0
      %861 = vmatpush1.bf16.msra.mxu0 %v756
      %862 = vmatprep.subr.bf16.mxu0 0
      %863 = vmatpush1.bf16.msra.mxu0 0
      %864 = vmatprep.subr.bf16.mxu0 0
      %865 = vmatpush1.bf16.msra.mxu0 0
      %866 = vmatprep.subr.bf16.mxu0 0
      %867 = vmatpush1.bf16.msra.mxu0 0
      %868 = vmatprep.subr.bf16.mxu0 0
      %869 = vmatpush1.bf16.msra.mxu0 0
      %870 = vmatprep.subr.bf16.mxu0 0
      %871 = vmatpush1.bf16.msra.mxu0 0
      %872 = vmatprep.subr.bf16.mxu0 0
      %873 = vmatpush1.bf16.msra.mxu0 0
      %874 = vmatprep.subr.bf16.mxu0 0
      %875 = vmatpush1.bf16.msra.mxu0 0
      %876 = vmatprep.subr.bf16.mxu0 0
      %877 = vmatpush1.bf16.msra.mxu0 0
      %878 = vmatprep.mubr.bf16.mxu0 0
      %879 = vmatmul.mubr.bf16.gmra.mrb[0].mxu0 %v615
      %v880 = vpop.f32.mrb[0].mxu0
      %v881 = vadd.f32 %v816, %v880
      %v882 = vpop.f32.mrb[0].mxu0
      %v883 = vpop.f32.mrb[0].mxu0
      %v884 = vadd.f32 %v819, %v883
      %v885 = vpop.f32.mrb[0].mxu0
      %886 = vmatprep.mubr.bf16.mxu0 0
      %887 = vmatmul.mubr.bf16.gmra.mrb[0].mxu0 %v618
      %v888 = vpop.f32.mrb[0].mxu0
      %v889 = vadd.f32 %v824, %v888
      %v890 = vpop.f32.mrb[0].mxu0
      %v891 = vpop.f32.mrb[0].mxu0
      %v892 = vadd.f32 %v827, %v891
      %v893 = vpop.f32.mrb[0].mxu0
      %894 = vmatprep.mubr.bf16.mxu0 0
      %895 = vmatmul.mubr.bf16.gmra.mrb[0].mxu0 %v621
      %v896 = vpop.f32.mrb[0].mxu0
      %v897 = vadd.f32 %v832, %v896
      %v898 = vpop.f32.mrb[0].mxu0
      %v899 = vpop.f32.mrb[0].mxu0
      %v900 = vadd.f32 %v835, %v899
      %v901 = vpop.f32.mrb[0].mxu0
      %902 = vmatprep.mubr.bf16.mxu0 0
      %903 = vmatmul.mubr.bf16.gmra.mrb[0].mxu0 %v624
      %v904 = vpop.f32.mrb[0].mxu0
      %v905 = vadd.f32 %v840, %v904
      %v906 = vpop.f32.mrb[0].mxu0
      %v907 = vpop.f32.mrb[0].mxu0
      %v908 = vadd.f32 %v843, %v907
      %v909 = vpop.f32.mrb[0].mxu0
      %910 = vdwg.mxu0
      %v911 = vpack.c.b16 %v470, %v467
      %v912 = vpack.c.b16 %v471, %v468
      %v913 = vpack.c.b16 %v472, %v469
      %v914 = vpack.c.b16 %v476, %v473
      %v915 = vpack.c.b16 %v477, %v474
      %v916 = vpack.c.b16 %v478, %v475
      %v917 = vpack.c.b16 %v482, %v479
      %v918 = vpack.c.b16 %v483, %v480
      %v919 = vpack.c.b16 %v484, %v481
      %v920 = vpack.c.b16 %v488, %v485
      %v921 = vpack.c.b16 %v489, %v486
      %v922 = vpack.c.b16 %v490, %v487
      %v983 = vunpack.c.l.b16 %v491
      %v984 = vunpack.c.l.b16 %v492
      %v985 = vunpack.c.l.b16 %v493
      %v986 = vunpack.c.l.b16 %v494
      %v987 = vunpack.c.l.b16 %v495
      %v988 = vunpack.c.l.b16 %v496
      %v989 = vunpack.c.l.b16 %v497
      %v990 = vunpack.c.l.b16 %v498
      %v991 = vunpack.c.l.b16 %v499
      %v992 = vunpack.c.l.b16 %v500
      %v993 = vunpack.c.l.b16 %v501
      %v994 = vunpack.c.l.b16 %v502
      %v995 = vunpack.c.l.b16 %v503
      %v996 = vunpack.c.l.b16 %v504
      %v997 = vunpack.c.l.b16 %v505
      %v998 = vunpack.c.l.b16 %v506
      %v999 = vunpack.c.l.b16 %v507
      %v1000 = vunpack.c.l.b16 %v508
      %v1001 = vunpack.c.l.b16 %v509
      %v1002 = vunpack.c.l.b16 %v510
      %v1003 = vunpack.c.l.b16 %v511
      %v1004 = vunpack.c.l.b16 %v512
      %v1005 = vunpack.c.l.b16 %v513
      %v1006 = vunpack.c.l.b16 %v514
      %v1007 = vunpack.c.l.b16 %v515
      %v1008 = vunpack.c.l.b16 %v516
      %v1009 = vunpack.c.l.b16 %v517
      %v1010 = vunpack.c.l.b16 %v518
      %v1011 = vunpack.c.l.b16 %v519
      %v1012 = vunpack.c.l.b16 %v520
      %v1013 = vunpack.c.l.b16 %v521
      %v1014 = vunpack.c.l.b16 %v522
      %v1015 = vunpack.c.l.b16 %v523
      %v1016 = vunpack.c.l.b16 %v524
      %v1017 = vunpack.c.l.b16 %v525
      %v1018 = vunpack.c.l.b16 %v526
      %v1019 = vunpack.c.l.b16 %v527
      %v1020 = vunpack.c.l.b16 %v528
      %v1021 = vunpack.c.l.b16 %v529
      %v1022 = vunpack.c.l.b16 %v530
      %v1023 = vunpack.c.l.b16 %v531
      %v1024 = vunpack.c.l.b16 %v532
      %v1025 = vunpack.c.l.b16 %v533
      %v1026 = vunpack.c.l.b16 %v534
      %v1027 = vunpack.c.l.b16 %v535
      %v1028 = vunpack.c.l.b16 %v536
      %v1029 = vunpack.c.l.b16 %v537
      %v1030 = vunpack.c.l.b16 %v538
      %v1031 = vpack.c.b16 %v984, %v983
      %v1032 = vpack.c.b16 %v986, %v985
      %v1033 = vpack.c.b16 %v988, %v987
      %v1034 = vpack.c.b16 %v990, %v989
      %v1035 = vpack.c.b16 %v992, %v991
      %v1036 = vpack.c.b16 %v994, %v993
      %v1037 = vpack.c.b16 %v996, %v995
      %v1038 = vpack.c.b16 %v998, %v997
      %v1039 = vpack.c.b16 %v1000, %v999
      %v1040 = vpack.c.b16 %v1002, %v1001
      %v1041 = vpack.c.b16 %v1004, %v1003
      %v1042 = vpack.c.b16 %v1006, %v1005
      %v1043 = vpack.c.b16 %v1008, %v1007
      %v1044 = vpack.c.b16 %v1010, %v1009
      %v1045 = vpack.c.b16 %v1012, %v1011
      %v1046 = vpack.c.b16 %v1014, %v1013
      %v1047 = vpack.c.b16 %v1016, %v1015
      %v1048 = vpack.c.b16 %v1018, %v1017
      %v1049 = vpack.c.b16 %v1020, %v1019
      %v1050 = vpack.c.b16 %v1022, %v1021
      %v1051 = vpack.c.b16 %v1024, %v1023
      %v1052 = vpack.c.b16 %v1026, %v1025
      %v1053 = vpack.c.b16 %v1028, %v1027
      %v1054 = vpack.c.b16 %v1030, %v1029
      %1079 = vmatprep.subr.bf16.mxu0 0
      %1080 = vmatpush1.bf16.msra.mxu0 %v1031
      %1081 = vmatprep.subr.bf16.mxu0 0
      %1082 = vmatpush1.bf16.msra.mxu0 %v1032
      %1083 = vmatprep.subr.bf16.mxu0 0
      %1084 = vmatpush1.bf16.msra.mxu0 %v1033
      %1085 = vmatprep.subr.bf16.mxu0 0
      %1086 = vmatpush1.bf16.msra.mxu0 %v1034
      %1087 = vmatprep.subr.bf16.mxu0 0
      %1088 = vmatpush1.bf16.msra.mxu0 %v1035
      %1089 = vmatprep.subr.bf16.mxu0 0
      %1090 = vmatpush1.bf16.msra.mxu0 %v1036
      %1091 = vmatprep.subr.bf16.mxu0 0
      %1092 = vmatpush1.bf16.msra.mxu0 %v1037
      %1093 = vmatprep.subr.bf16.mxu0 0
      %1094 = vmatpush1.bf16.msra.mxu0 %v1038
      %1095 = vmatprep.subr.bf16.mxu0 0
      %1096 = vmatpush1.bf16.msra.mxu0 %v1039
      %1097 = vmatprep.subr.bf16.mxu0 0
      %1098 = vmatpush1.bf16.msra.mxu0 %v1040
      %1099 = vmatprep.subr.bf16.mxu0 0
      %1100 = vmatpush1.bf16.msra.mxu0 %v1041
      %1101 = vmatprep.subr.bf16.mxu0 0
      %1102 = vmatpush1.bf16.msra.mxu0 %v1042
      %1103 = vmatprep.subr.bf16.mxu0 0
      %1104 = vmatpush1.bf16.msra.mxu0 %v1043
      %1105 = vmatprep.subr.bf16.mxu0 0
      %1106 = vmatpush1.bf16.msra.mxu0 %v1044
      %1107 = vmatprep.subr.bf16.mxu0 0
      %1108 = vmatpush1.bf16.msra.mxu0 %v1045
      %1109 = vmatprep.subr.bf16.mxu0 0
      %1110 = vmatpush1.bf16.msra.mxu0 %v1046
      %1111 = vmatprep.mubr.bf16.mxu0 %v912
      %1112 = vmatmul.mubr.bf16.gmra.mrb[0].mxu0 %v911
      %v1113 = vpop.f32.mrb[0].mxu0
      %v1114 = vadd.f32 %v881, %v1113
      %v1115 = vpop.f32.mrb[0].mxu0
      %v1116 = vpop.f32.mrb[0].mxu0
      %v1117 = vadd.f32 %v884, %v1116
      %v1118 = vpop.f32.mrb[0].mxu0
      %1119 = vmatprep.mubr.bf16.mxu0 %v915
      %1120 = vmatmul.mubr.bf16.gmra.mrb[0].mxu0 %v914
      %v1121 = vpop.f32.mrb[0].mxu0
      %v1122 = vadd.f32 %v889, %v1121
      %v1123 = vpop.f32.mrb[0].mxu0
      %v1124 = vpop.f32.mrb[0].mxu0
      %v1125 = vadd.f32 %v892, %v1124
      %v1126 = vpop.f32.mrb[0].mxu0
      %1127 = vmatprep.mubr.bf16.mxu0 %v918
      %1128 = vmatmul.mubr.bf16.gmra.mrb[0].mxu0 %v917
      %v1129 = vpop.f32.mrb[0].mxu0
      %v1130 = vadd.f32 %v897, %v1129
      %v1131 = vpop.f32.mrb[0].mxu0
      %v1132 = vpop.f32.mrb[0].mxu0
      %v1133 = vadd.f32 %v900, %v1132
      %v1134 = vpop.f32.mrb[0].mxu0
      %1135 = vmatprep.mubr.bf16.mxu0 %v921
      %1136 = vmatmul.mubr.bf16.gmra.mrb[0].mxu0 %v920
      %v1137 = vpop.f32.mrb[0].mxu0
      %v1138 = vadd.f32 %v905, %v1137
      %v1139 = vpop.f32.mrb[0].mxu0
      %v1140 = vpop.f32.mrb[0].mxu0
      %v1141 = vadd.f32 %v908, %v1140
      %v1142 = vpop.f32.mrb[0].mxu0
      %1143 = vdwg.mxu0
      %1144 = vmatprep.subr.bf16.mxu0 0
      %1145 = vmatpush1.bf16.msra.mxu0 %v1047
      %1146 = vmatprep.subr.bf16.mxu0 0
      %1147 = vmatpush1.bf16.msra.mxu0 %v1048
      %1148 = vmatprep.subr.bf16.mxu0 0
      %1149 = vmatpush1.bf16.msra.mxu0 %v1049
      %1150 = vmatprep.subr.bf16.mxu0 0
      %1151 = vmatpush1.bf16.msra.mxu0 %v1050
      %1152 = vmatprep.subr.bf16.mxu0 0
      %1153 = vmatpush1.bf16.msra.mxu0 %v1051
      %1154 = vmatprep.subr.bf16.mxu0 0
      %1155 = vmatpush1.bf16.msra.mxu0 %v1052
      %1156 = vmatprep.subr.bf16.mxu0 0
      %1157 = vmatpush1.bf16.msra.mxu0 %v1053
      %1158 = vmatprep.subr.bf16.mxu0 0
      %1159 = vmatpush1.bf16.msra.mxu0 %v1054
      %1160 = vmatprep.subr.bf16.mxu0 0
      %1161 = vmatpush1.bf16.msra.mxu0 0
      %1162 = vmatprep.subr.bf16.mxu0 0
      %1163 = vmatpush1.bf16.msra.mxu0 0
      %1164 = vmatprep.subr.bf16.mxu0 0
      %1165 = vmatpush1.bf16.msra.mxu0 0
      %1166 = vmatprep.subr.bf16.mxu0 0
      %1167 = vmatpush1.bf16.msra.mxu0 0
      %1168 = vmatprep.subr.bf16.mxu0 0
      %1169 = vmatpush1.bf16.msra.mxu0 0
      %1170 = vmatprep.subr.bf16.mxu0 0
      %1171 = vmatpush1.bf16.msra.mxu0 0
      %1172 = vmatprep.subr.bf16.mxu0 0
      %1173 = vmatpush1.bf16.msra.mxu0 0
      %1174 = vmatprep.subr.bf16.mxu0 0
      %1175 = vmatpush1.bf16.msra.mxu0 0
      %1176 = vmatprep.mubr.bf16.mxu0 0
      %1177 = vmatmul.mubr.bf16.gmra.mrb[0].mxu0 %v913
      %v1178 = vpop.f32.mrb[0].mxu0
      %v1179 = vadd.f32 %v1114, %v1178
      %v1180 = vpop.f32.mrb[0].mxu0
      %v1181 = vpop.f32.mrb[0].mxu0
      %v1182 = vadd.f32 %v1117, %v1181
      %v1183 = vpop.f32.mrb[0].mxu0
      %1184 = vmatprep.mubr.bf16.mxu0 0
      %1185 = vmatmul.mubr.bf16.gmra.mrb[0].mxu0 %v916
      %v1186 = vpop.f32.mrb[0].mxu0
      %v1187 = vadd.f32 %v1122, %v1186
      %v1188 = vpop.f32.mrb[0].mxu0
      %v1189 = vpop.f32.mrb[0].mxu0
      %v1190 = vadd.f32 %v1125, %v1189
      %v1191 = vpop.f32.mrb[0].mxu0
      %1192 = vmatprep.mubr.bf16.mxu0 0
      %1193 = vmatmul.mubr.bf16.gmra.mrb[0].mxu0 %v919
      %v1194 = vpop.f32.mrb[0].mxu0
      %v1195 = vadd.f32 %v1130, %v1194
      %v1196 = vpop.f32.mrb[0].mxu0
      %v1197 = vpop.f32.mrb[0].mxu0
      %v1198 = vadd.f32 %v1133, %v1197
      %v1199 = vpop.f32.mrb[0].mxu0
      %1200 = vmatprep.mubr.bf16.mxu0 0
      %1201 = vmatmul.mubr.bf16.gmra.mrb[0].mxu0 %v922
      %v1202 = vpop.f32.mrb[0].mxu0
      %v1203 = vadd.f32 %v1138, %v1202
      %v1204 = vpop.f32.mrb[0].mxu0
      %v1205 = vpop.f32.mrb[0].mxu0
      %v1206 = vadd.f32 %v1141, %v1205
      %v1207 = vpop.f32.mrb[0].mxu0
      %1208 = vdwg.mxu0
      %v1210 = vunpack.c.l.b16 %v284
      %v1211 = vpack.c.b16 %v1210, %v1210
      %v1213 = vshrl.u32 %v1211, 16
      %v1215 = vrot.slane %v1213, 7
      %v1216 = vshll.u32 %v1211, 16
      %v1218 = vor.u32 %v1215, %v1216
      %v1220 = vsel %vm375, 0, %v1218
      %v1221 = vsel %vm386, %v1220, 0
      %v1223 = vshrl.u32 %v1221, 16
      %v1225 = vshll.u32 %v1221, 16
      %v1227 = vrot.slane %v1225, 1
      %v1228 = vor.u32 %v1223, %v1227
      %v1230 = vrot.slane %v1221, 1
      %v1231 = vunpack.c.l.b16 %v1221
      %v1232 = vunpack.c.l.b16 %v1228
      %v1233 = vunpack.c.l.b16 %v1230
      %s1234 = scalar_lea.vmem %s2, 384
      %v1235 = vld [vmem:[%s1234] sm:$0xf]
      %v1236 = vld [vmem:[%s1234 + $0x4] sm:$0xf]
      %v1237 = vld [vmem:[%s1234 + $0x8] sm:$0xf]
      %v1238 = vld [vmem:[%s1234 + $0xc] sm:$0xf]
      %v1239 = vld [vmem:[%s1234 + $0x10] sm:$0xf]
      %v1240 = vld [vmem:[%s1234 + $0x14] sm:$0xf]
      %v1241 = vld [vmem:[%s1234 + $0x18] sm:$0xf]
      %v1242 = vld [vmem:[%s1234 + $0x1c] sm:$0xf]
      %v1243 = vld [vmem:[%s1234 + $0x20] sm:$0xf]
      %v1244 = vld [vmem:[%s1234 + $0x24] sm:$0xf]
      %v1245 = vld [vmem:[%s1234 + $0x28] sm:$0xf]
      %v1246 = vld [vmem:[%s1234 + $0x2c] sm:$0xf]
      %v1247 = vld [vmem:[%s1234 + $0x30] sm:$0xf]
      %v1248 = vld [vmem:[%s1234 + $0x34] sm:$0xf]
      %v1249 = vld [vmem:[%s1234 + $0x38] sm:$0xf]
      %v1250 = vld [vmem:[%s1234 + $0x3c] sm:$0xf]
      %v1251 = vld [vmem:[%s1234 + $0x40] sm:$0xf]
      %v1252 = vld [vmem:[%s1234 + $0x44] sm:$0xf]
      %v1253 = vld [vmem:[%s1234 + $0x48] sm:$0xf]
      %v1254 = vld [vmem:[%s1234 + $0x4c] sm:$0xf]
      %v1255 = vld [vmem:[%s1234 + $0x50] sm:$0xf]
      %v1256 = vld [vmem:[%s1234 + $0x54] sm:$0xf]
      %v1257 = vld [vmem:[%s1234 + $0x58] sm:$0xf]
      %v1258 = vld [vmem:[%s1234 + $0x5c] sm:$0xf]
      %v1259 = vld [vmem:[%s1234 + $0x60] sm:$0xf]
      %v1260 = vld [vmem:[%s1234 + $0x64] sm:$0xf]
      %v1261 = vld [vmem:[%s1234 + $0x68] sm:$0xf]
      %v1262 = vld [vmem:[%s1234 + $0x6c] sm:$0xf]
      %v1263 = vld [vmem:[%s1234 + $0x70] sm:$0xf]
      %v1264 = vld [vmem:[%s1234 + $0x74] sm:$0xf]
      %v1265 = vld [vmem:[%s1234 + $0x78] sm:$0xf]
      %v1266 = vld [vmem:[%s1234 + $0x7c] sm:$0xf]
      %v1267 = vld [vmem:[%s1234 + $0x80] sm:$0xf]
      %v1268 = vld [vmem:[%s1234 + $0x84] sm:$0xf]
      %v1269 = vld [vmem:[%s1234 + $0x88] sm:$0xf]
      %v1270 = vld [vmem:[%s1234 + $0x8c] sm:$0xf]
      %v1271 = vld [vmem:[%s1234 + $0x90] sm:$0xf]
      %v1272 = vld [vmem:[%s1234 + $0x94] sm:$0xf]
      %v1273 = vld [vmem:[%s1234 + $0x98] sm:$0xf]
      %v1274 = vld [vmem:[%s1234 + $0x9c] sm:$0xf]
      %v1275 = vld [vmem:[%s1234 + $0xa0] sm:$0xf]
      %v1276 = vld [vmem:[%s1234 + $0xa4] sm:$0xf]
      %v1277 = vld [vmem:[%s1234 + $0xa8] sm:$0xf]
      %v1278 = vld [vmem:[%s1234 + $0xac] sm:$0xf]
      %v1279 = vld [vmem:[%s1234 + $0xb0] sm:$0xf]
      %v1280 = vld [vmem:[%s1234 + $0xb4] sm:$0xf]
      %v1281 = vld [vmem:[%s1234 + $0xb8] sm:$0xf]
      %v1282 = vld [vmem:[%s1234 + $0xbc] sm:$0xf]
      %v1283 = vpack.c.b16 %v1231, %v561
      %v1284 = vpack.c.b16 %v1232, %v562
      %v1285 = vpack.c.b16 %v1233, %v563
      %v1337 = vunpack.c.l.b16 %v1235
      %v1338 = vunpack.c.l.b16 %v1236
      %v1339 = vunpack.c.l.b16 %v1237
      %v1340 = vunpack.c.l.b16 %v1238
      %v1341 = vunpack.c.l.b16 %v1239
      %v1342 = vunpack.c.l.b16 %v1240
      %v1343 = vunpack.c.l.b16 %v1241
      %v1344 = vunpack.c.l.b16 %v1242
      %v1345 = vunpack.c.l.b16 %v1243
      %v1346 = vunpack.c.l.b16 %v1244
      %v1347 = vunpack.c.l.b16 %v1245
      %v1348 = vunpack.c.l.b16 %v1246
      %v1349 = vunpack.c.l.b16 %v1247
      %v1350 = vunpack.c.l.b16 %v1248
      %v1351 = vunpack.c.l.b16 %v1249
      %v1352 = vunpack.c.l.b16 %v1250
      %v1353 = vunpack.c.l.b16 %v1251
      %v1354 = vunpack.c.l.b16 %v1252
      %v1355 = vunpack.c.l.b16 %v1253
      %v1356 = vunpack.c.l.b16 %v1254
      %v1357 = vunpack.c.l.b16 %v1255
      %v1358 = vunpack.c.l.b16 %v1256
      %v1359 = vunpack.c.l.b16 %v1257
      %v1360 = vunpack.c.l.b16 %v1258
      %v1361 = vunpack.c.l.b16 %v1259
      %v1362 = vunpack.c.l.b16 %v1260
      %v1363 = vunpack.c.l.b16 %v1261
      %v1364 = vunpack.c.l.b16 %v1262
      %v1365 = vunpack.c.l.b16 %v1263
      %v1366 = vunpack.c.l.b16 %v1264
      %v1367 = vunpack.c.l.b16 %v1265
      %v1368 = vunpack.c.l.b16 %v1266
      %v1369 = vunpack.c.l.b16 %v1267
      %v1370 = vunpack.c.l.b16 %v1268
      %v1371 = vunpack.c.l.b16 %v1269
      %v1372 = vunpack.c.l.b16 %v1270
      %v1373 = vunpack.c.l.b16 %v1271
      %v1374 = vunpack.c.l.b16 %v1272
      %v1375 = vunpack.c.l.b16 %v1273
      %v1376 = vunpack.c.l.b16 %v1274
      %v1377 = vunpack.c.l.b16 %v1275
      %v1378 = vunpack.c.l.b16 %v1276
      %v1379 = vunpack.c.l.b16 %v1277
      %v1380 = vunpack.c.l.b16 %v1278
      %v1381 = vunpack.c.l.b16 %v1279
      %v1382 = vunpack.c.l.b16 %v1280
      %v1383 = vunpack.c.l.b16 %v1281
      %v1384 = vunpack.c.l.b16 %v1282
      %v1385 = vpack.c.b16 %v1338, %v1337
      %v1386 = vpack.c.b16 %v1340, %v1339
      %v1387 = vpack.c.b16 %v1342, %v1341
      %v1388 = vpack.c.b16 %v1344, %v1343
      %v1389 = vpack.c.b16 %v1346, %v1345
      %v1390 = vpack.c.b16 %v1348, %v1347
      %v1391 = vpack.c.b16 %v1350, %v1349
      %v1392 = vpack.c.b16 %v1352, %v1351
      %v1393 = vpack.c.b16 %v1354, %v1353
      %v1394 = vpack.c.b16 %v1356, %v1355
      %v1395 = vpack.c.b16 %v1358, %v1357
      %v1396 = vpack.c.b16 %v1360, %v1359
      %v1397 = vpack.c.b16 %v1362, %v1361
      %v1398 = vpack.c.b16 %v1364, %v1363
      %v1399 = vpack.c.b16 %v1366, %v1365
      %v1400 = vpack.c.b16 %v1368, %v1367
      %v1401 = vpack.c.b16 %v1370, %v1369
      %v1402 = vpack.c.b16 %v1372, %v1371
      %v1403 = vpack.c.b16 %v1374, %v1373
      %v1404 = vpack.c.b16 %v1376, %v1375
      %v1405 = vpack.c.b16 %v1378, %v1377
      %v1406 = vpack.c.b16 %v1380, %v1379
      %v1407 = vpack.c.b16 %v1382, %v1381
      %v1408 = vpack.c.b16 %v1384, %v1383
      %1433 = vmatprep.subr.bf16.mxu0 0
      %1434 = vmatpush1.bf16.msra.mxu0 %v1385
      %1435 = vmatprep.subr.bf16.mxu0 0
      %1436 = vmatpush1.bf16.msra.mxu0 %v1386
      %1437 = vmatprep.subr.bf16.mxu0 0
      %1438 = vmatpush1.bf16.msra.mxu0 %v1387
      %1439 = vmatprep.subr.bf16.mxu0 0
      %1440 = vmatpush1.bf16.msra.mxu0 %v1388
      %1441 = vmatprep.subr.bf16.mxu0 0
      %1442 = vmatpush1.bf16.msra.mxu0 %v1389
      %1443 = vmatprep.subr.bf16.mxu0 0
      %1444 = vmatpush1.bf16.msra.mxu0 %v1390
      %1445 = vmatprep.subr.bf16.mxu0 0
      %1446 = vmatpush1.bf16.msra.mxu0 %v1391
      %1447 = vmatprep.subr.bf16.mxu0 0
      %1448 = vmatpush1.bf16.msra.mxu0 %v1392
      %1449 = vmatprep.subr.bf16.mxu0 0
      %1450 = vmatpush1.bf16.msra.mxu0 %v1393
      %1451 = vmatprep.subr.bf16.mxu0 0
      %1452 = vmatpush1.bf16.msra.mxu0 %v1394
      %1453 = vmatprep.subr.bf16.mxu0 0
      %1454 = vmatpush1.bf16.msra.mxu0 %v1395
      %1455 = vmatprep.subr.bf16.mxu0 0
      %1456 = vmatpush1.bf16.msra.mxu0 %v1396
      %1457 = vmatprep.subr.bf16.mxu0 0
      %1458 = vmatpush1.bf16.msra.mxu0 %v1397
      %1459 = vmatprep.subr.bf16.mxu0 0
      %1460 = vmatpush1.bf16.msra.mxu0 %v1398
      %1461 = vmatprep.subr.bf16.mxu0 0
      %1462 = vmatpush1.bf16.msra.mxu0 %v1399
      %1463 = vmatprep.subr.bf16.mxu0 0
      %1464 = vmatpush1.bf16.msra.mxu0 %v1400
      %1465 = vmatprep.mubr.bf16.mxu0 %v915
      %1466 = vmatmul.mubr.bf16.gmra.mrb[0].mxu0 %v914
      %v1467 = vpop.f32.mrb[0].mxu0
      %v1468 = vadd.f32 0.0, %v1467
      %v1469 = vpop.f32.mrb[0].mxu0
      %v1470 = vpop.f32.mrb[0].mxu0
      %v1471 = vadd.f32 0.0, %v1470
      %v1472 = vpop.f32.mrb[0].mxu0
      %1473 = vmatprep.mubr.bf16.mxu0 %v918
      %1474 = vmatmul.mubr.bf16.gmra.mrb[0].mxu0 %v917
      %v1475 = vpop.f32.mrb[0].mxu0
      %v1476 = vadd.f32 0.0, %v1475
      %v1477 = vpop.f32.mrb[0].mxu0
      %v1478 = vpop.f32.mrb[0].mxu0
      %v1479 = vadd.f32 0.0, %v1478
      %v1480 = vpop.f32.mrb[0].mxu0
      %1481 = vmatprep.mubr.bf16.mxu0 %v921
      %1482 = vmatmul.mubr.bf16.gmra.mrb[0].mxu0 %v920
      %v1483 = vpop.f32.mrb[0].mxu0
      %v1484 = vadd.f32 0.0, %v1483
      %v1485 = vpop.f32.mrb[0].mxu0
      %v1486 = vpop.f32.mrb[0].mxu0
      %v1487 = vadd.f32 0.0, %v1486
      %v1488 = vpop.f32.mrb[0].mxu0
      %1489 = vmatprep.mubr.bf16.mxu0 %v1284
      %1490 = vmatmul.mubr.bf16.gmra.mrb[0].mxu0 %v1283
      %v1491 = vpop.f32.mrb[0].mxu0
      %v1492 = vadd.f32 0.0, %v1491
      %v1493 = vpop.f32.mrb[0].mxu0
      %v1494 = vpop.f32.mrb[0].mxu0
      %v1495 = vadd.f32 0.0, %v1494
      %v1496 = vpop.f32.mrb[0].mxu0
      %1497 = vdwg.mxu0
      %1498 = vmatprep.subr.bf16.mxu0 0
      %1499 = vmatpush1.bf16.msra.mxu0 %v1401
      %1500 = vmatprep.subr.bf16.mxu0 0
      %1501 = vmatpush1.bf16.msra.mxu0 %v1402
      %1502 = vmatprep.subr.bf16.mxu0 0
      %1503 = vmatpush1.bf16.msra.mxu0 %v1403
      %1504 = vmatprep.subr.bf16.mxu0 0
      %1505 = vmatpush1.bf16.msra.mxu0 %v1404
      %1506 = vmatprep.subr.bf16.mxu0 0
      %1507 = vmatpush1.bf16.msra.mxu0 %v1405
      %1508 = vmatprep.subr.bf16.mxu0 0
      %1509 = vmatpush1.bf16.msra.mxu0 %v1406
      %1510 = vmatprep.subr.bf16.mxu0 0
      %1511 = vmatpush1.bf16.msra.mxu0 %v1407
      %1512 = vmatprep.subr.bf16.mxu0 0
      %1513 = vmatpush1.bf16.msra.mxu0 %v1408
      %1514 = vmatprep.subr.bf16.mxu0 0
      %1515 = vmatpush1.bf16.msra.mxu0 0
      %1516 = vmatprep.subr.bf16.mxu0 0
      %1517 = vmatpush1.bf16.msra.mxu0 0
      %1518 = vmatprep.subr.bf16.mxu0 0
      %1519 = vmatpush1.bf16.msra.mxu0 0
      %1520 = vmatprep.subr.bf16.mxu0 0
      %1521 = vmatpush1.bf16.msra.mxu0 0
      %1522 = vmatprep.subr.bf16.mxu0 0
      %1523 = vmatpush1.bf16.msra.mxu0 0
      %1524 = vmatprep.subr.bf16.mxu0 0
      %1525 = vmatpush1.bf16.msra.mxu0 0
      %1526 = vmatprep.subr.bf16.mxu0 0
      %1527 = vmatpush1.bf16.msra.mxu0 0
      %1528 = vmatprep.subr.bf16.mxu0 0
      %1529 = vmatpush1.bf16.msra.mxu0 0
      %1530 = vmatprep.mubr.bf16.mxu0 0
      %1531 = vmatmul.mubr.bf16.gmra.mrb[0].mxu0 %v916
      %v1532 = vpop.f32.mrb[0].mxu0
      %v1533 = vadd.f32 %v1468, %v1532
      %v1534 = vpop.f32.mrb[0].mxu0
      %v1535 = vpop.f32.mrb[0].mxu0
      %v1536 = vadd.f32 %v1471, %v1535
      %v1537 = vpop.f32.mrb[0].mxu0
      %1538 = vmatprep.mubr.bf16.mxu0 0
      %1539 = vmatmul.mubr.bf16.gmra.mrb[0].mxu0 %v919
      %v1540 = vpop.f32.mrb[0].mxu0
      %v1541 = vadd.f32 %v1476, %v1540
      %v1542 = vpop.f32.mrb[0].mxu0
      %v1543 = vpop.f32.mrb[0].mxu0
      %v1544 = vadd.f32 %v1479, %v1543
      %v1545 = vpop.f32.mrb[0].mxu0
      %1546 = vmatprep.mubr.bf16.mxu0 0
      %1547 = vmatmul.mubr.bf16.gmra.mrb[0].mxu0 %v922
      %v1548 = vpop.f32.mrb[0].mxu0
      %v1549 = vadd.f32 %v1484, %v1548
      %v1550 = vpop.f32.mrb[0].mxu0
      %v1551 = vpop.f32.mrb[0].mxu0
      %v1552 = vadd.f32 %v1487, %v1551
      %v1553 = vpop.f32.mrb[0].mxu0
      %1554 = vmatprep.mubr.bf16.mxu0 0
      %1555 = vmatmul.mubr.bf16.gmra.mrb[0].mxu0 %v1285
      %v1556 = vpop.f32.mrb[0].mxu0
      %v1557 = vadd.f32 %v1492, %v1556
      %v1558 = vpop.f32.mrb[0].mxu0
      %v1559 = vpop.f32.mrb[0].mxu0
      %v1560 = vadd.f32 %v1495, %v1559
      %v1561 = vpop.f32.mrb[0].mxu0
      %1562 = vdwg.mxu0
      %v1563 = vadd.f32 %v1179, %v1533
      %v1564 = vadd.f32 %v1182, %v1536
      %v1565 = vadd.f32 %v1187, %v1541
      %v1566 = vadd.f32 %v1190, %v1544
      %v1567 = vadd.f32 %v1195, %v1549
      %v1568 = vadd.f32 %v1198, %v1552
      %v1569 = vadd.f32 %v1203, %v1557
      %v1570 = vadd.f32 %v1206, %v1560
      %v1571 = vld [vmem:[%s3] sm:$0x1]
      %v1573 = vlaneseq
      %v1574 = vshrl.u32 %v1573, 7
      %v1575 = vsub.s32 0, %v1574
      %v1576 = vrot.slane %v1571, %v1575
      %v1578 = vadd.f32 %v1563, %v1576
      %v1579 = vadd.f32 %v1564, %v1576
      %v1580 = vadd.f32 %v1565, %v1576
      %v1581 = vadd.f32 %v1566, %v1576
      %v1582 = vadd.f32 %v1567, %v1576
      %v1583 = vadd.f32 %v1568, %v1576
      %v1584 = vadd.f32 %v1569, %v1576
      %v1585 = vadd.f32 %v1570, %v1576
      %v1586 = vmax.f32 %v1578, 0.0
      %v1587 = vmax.f32 %v1579, 0.0
      %v1588 = vmax.f32 %v1580, 0.0
      %v1589 = vmax.f32 %v1581, 0.0
      %v1590 = vmax.f32 %v1582, 0.0
      %v1591 = vmax.f32 %v1583, 0.0
      %v1592 = vmax.f32 %v1584, 0.0
      %v1593 = vmax.f32 %v1585, 0.0
      %v1594 = vpack.c.bf16 %v1586, %v1586
      %v1595 = vpack.c.bf16 %v1587, %v1587
      %v1596 = vpack.c.bf16 %v1588, %v1588
      %v1597 = vpack.c.bf16 %v1589, %v1589
      %v1598 = vpack.c.bf16 %v1590, %v1590
      %v1599 = vpack.c.bf16 %v1591, %v1591
      %v1600 = vpack.c.bf16 %v1592, %v1592
      %v1601 = vpack.c.bf16 %v1593, %v1593
      %1602 = vst [vmem:[%s271] sm:$0xf] %v1594
      %1603 = vst [vmem:[%s271 + $0x4] sm:$0xf] %v1595
      %1604 = vst [vmem:[%s271 + $0x8] sm:$0xf] %v1596
      %1605 = vst [vmem:[%s271 + $0xc] sm:$0xf] %v1597
      %1606 = vst [vmem:[%s271 + $0x10] sm:$0xf] %v1598
      %1607 = vst [vmem:[%s271 + $0x14] sm:$0xf] %v1599
      %1608 = vst [vmem:[%s271 + $0x18] sm:$0xf] %v1600
      %1609 = vst [vmem:[%s271 + $0x1c] sm:$0xf] %v1601
      %s1610 = smul.u32 8, %s20
      %p1611 = scmp.lt.s32.totalorder %s19, 1
      %s1612 = scalar_select %p1611, %s19, 1
      %p1613 = scmp.lt.s32.totalorder %s1610, 7
      %s1614 = scalar_select %p1613, %s1610, 7
      %s1615 = smul.addr %s1612, 8
      %s1616 = sadd.s32 %s1614, %s1615
      %s1617 = smul.addr %s1616, 4
      %s1618 = scalar_lea.vmem %s4, %s1617
      // Predicated region
      $region37: #{_lambda_.6} parent=35 // pred_check
        %p1619 = pneg %p145
      $region38: #{_lambda_.6} parent=35 // pred_check_branch
        %1621 = sbr.rel (%p1619) target = $region40
      $region39: #{_lambda_.6} parent=35 // pred_region
        %s1622 = smul.u32 8, %s20
      $region40: #{_lambda_.6} parent=35 // pred_fallthru
        _
    $region36: #{_lambda_.6} parent=5 // pred_fallthru
      _
    %p1623 = scmp.le.s32.totalorder 2, %s10
    // Predicated region
    $region41: #{_lambda_.6} parent=5 // pred_check
      %p1624 = pneg %p1623
    $region42: #{_lambda_.6} parent=5 // pred_check_branch
      %1626 = sbr.rel (%p1624) target = $region44
    $region43: #{_lambda_.6} parent=5 // pred_region
      %s1627 = ssub.s32 %s10, 2
      // Predicated region
      $region45: #{_lambda_.6} parent=43 // pred_check
        %p1628 = pneg %p151
      $region46: #{_lambda_.6} parent=43 // pred_check_branch
        %1630 = sbr.rel (%p1628) target = $region48
      $region47: #{_lambda_.6} parent=43 // pred_region
        %s1631 = smul.u32 8, %s22
        %p1632 = scmp.lt.s32.totalorder %s21, 1
        %s1633 = scalar_select %p1632, %s21, 1
        %p1634 = scmp.lt.s32.totalorder %s1631, 7
        %s1635 = scalar_select %p1634, %s1631, 7
        %s1636 = smul.addr %s1633, 8
        %s1637 = sadd.s32 %s1635, %s1636
        %s1638 = smul.addr %s1637, 4
        %s1639 = scalar_lea.vmem %s4, %s1638
      $region48: #{_lambda_.6} parent=43 // pred_fallthru
        _
    $region44: #{_lambda_.6} parent=5 // pred_fallthru
      _
  $region6: #{_lambda_.6} parent=0 // loop_footer
    %s14 = sadd.s32 1, %s10
  $region7: #{_lambda_.6} parent=0 // loop_footer_branch
    %9 = sbr.rel target = $region3
  $region8: #{_lambda_.6} parent=0 // loop_exit
    _

// kernel: _lambda_.5
$region0: #{_lambda_.5}
  #allocation0 [shape = 'u32[]', space=smem, size = 0x4, offset = 0x4, fixed_abs, tag = 'smem constant byte address 0x4 - core index']
  #allocation1 [shape = 'u32[144,128]{1,0:T(1,128)}', space=vmem, size = 0x12000, scoped, tag = 'internal scratch']
  #allocation2 [shape = 'f32[4,16,128]{2,1,0:T(8,128)}', space=vmem, size = 0x8000, scoped, tag = 'scratch operand']
  %s0 = inlined_call_operand.vmem [shape: bf16[2,16,16,128], index: 0, kind: input, shape index: {}]
  %s1 = inlined_call_operand.vmem [shape: bf16[2,4,16,128], index: 1, kind: input, shape index: {}]
  %s2 = inlined_call_operand.vmem [shape: bf16[3,384,128], index: 2, kind: input, shape index: {}]
  %s3 = inlined_call_operand.vmem [shape: f32[1,128], index: 3, kind: input, shape index: {}]
  %s4 = inlined_call_operand.vmem [shape: bf16[2,8,8,128], index: 4, kind: output, shape index: {}]
  %s5 = sld [smem:[#allocation0]]
  $region49: #{_lambda_.5} parent=0
    _
  %s7 = ssub.s32 1, %s5
  %s8 = scalar_select 0, %s7, %s5
  loop: start=0, step=1, limit=6
  $region2: #{_lambda_.5} parent=0 // loop_pre_header
    _
  $region3: #{_lambda_.5} parent=0 // loop_header
    %s10 = sphi 0, %s14
    %p11 = scmp.ge.s32.totalorder %s10, 6
    %s17 = sphi 0, %s29
    %s18 = sphi 0, %s25
    %s19 = sphi 0, %s17
    %s20 = sphi 0, %s18
    %s21 = sphi 0, %s19
    %s22 = sphi 0, %s20
    %s34 = sphi 0, %s36
    %s37 = sphi 0, %s34
    %s38 = sphi 0, %s37
    %s54 = sphi 0, %s38
    %s62 = sphi 0, %s64
    %s65 = sphi 0, %s62
    %s66 = sphi 0, %s65
    %s82 = sphi 0, %s66
    %s86 = sphi 0, %s86
    %s88 = sphi 0, %s86
    %s89 = sphi 0, %s88
    %s103 = sphi 0, %s89
    %s107 = sphi 0, %s107
    %s109 = sphi 0, %s107
    %s110 = sphi 0, %s109
    %s124 = sphi 0, %s110
    %s132 = sphi 0, %s134
    %s135 = sphi 0, %s132
    %s136 = sphi 0, %s135
    %s152 = sphi 0, %s136
  $region4: #{_lambda_.5} parent=0 // loop_header_branch
    %13 = sbr.rel (%p11) target = $region8
  $region5: #{_lambda_.5} parent=0 // loop_body
    %s15 = ssub.s32 %s10, 1
    %s16 = ssub.s32 %s10, 2
    %s23 = sadd.s32 1, %s18
    %p24 = scmp.ge.s32.totalorder %s23, 2
    %s25 = scalar_select %p24, 0, %s23
    %s26 = sadd.s32 1, %s17
    %s27 = scalar_select %p24, %s26, %s17
    %p28 = scmp.ge.s32.totalorder %s27, 2
    %s29 = scalar_select %p28, 0, %s27
    %s30 = ssub.s32 %s17, %s29
    %s31 = ssub.s32 %s18, %s25
    %s32 = sor.u32 %s30, %s31
    %p33 = scmp.eq.s32.totalorder %s32, 0
    %s35 = sadd.s32 %s34, 1
    %s36 = scalar_select %p33, %s34, %s35
    %p39 = pneg %p33
    %p40 = scmp.eq.s32.totalorder %s10, 3
    %p41 = por %p39, %p40
    %p42 = scmp.ne.s32.totalorder %s34, %s37
    %p43 = scmp.eq.s32.totalorder %s10, 0
    %p44 = por %p42, %p43
    %p45 = scmp.ne.s32.totalorder %s34, %s37
    %p46 = scmp.eq.s32.totalorder %s15, 3
    %p47 = por %p45, %p46
    %p48 = scmp.ne.s32.totalorder %s37, %s38
    %p49 = scmp.eq.s32.totalorder %s15, 0
    %p50 = por %p48, %p49
    %p51 = scmp.ne.s32.totalorder %s37, %s38
    %p52 = scmp.eq.s32.totalorder %s16, 3
    %p53 = por %p51, %p52
    %p55 = scmp.ne.s32.totalorder %s38, %s54
    %p56 = scmp.eq.s32.totalorder %s16, 0
    %p57 = por %p55, %p56
    %s58 = ssub.s32 %s17, %s29
    %s59 = ssub.s32 %s18, %s25
    %s60 = sor.u32 %s58, %s59
    %p61 = scmp.eq.s32.totalorder %s60, 0
    %s63 = sadd.s32 %s62, 1
    %s64 = scalar_select %p61, %s62, %s63
    %p67 = pneg %p61
    %p68 = scmp.eq.s32.totalorder %s10, 3
    %p69 = por %p67, %p68
    %p70 = scmp.ne.s32.totalorder %s62, %s65
    %p71 = scmp.eq.s32.totalorder %s10, 0
    %p72 = por %p70, %p71
    %p73 = scmp.ne.s32.totalorder %s62, %s65
    %p74 = scmp.eq.s32.totalorder %s15, 3
    %p75 = por %p73, %p74
    %p76 = scmp.ne.s32.totalorder %s65, %s66
    %p77 = scmp.eq.s32.totalorder %s15, 0
    %p78 = por %p76, %p77
    %p79 = scmp.ne.s32.totalorder %s65, %s66
    %p80 = scmp.eq.s32.totalorder %s16, 3
    %p81 = por %p79, %p80
    %p83 = scmp.ne.s32.totalorder %s66, %s82
    %p84 = scmp.eq.s32.totalorder %s16, 0
    %p85 = por %p83, %p84
    %s87 = sadd.s32 %s86, 1
    %p90 = scmp.eq.s32.totalorder %s10, 3
    %p91 = scmp.ne.s32.totalorder %s86, %s88
    %p92 = scmp.eq.s32.totalorder %s10, 0
    %p93 = por %p91, %p92
    %p94 = scmp.ne.s32.totalorder %s86, %s88
    %p95 = scmp.eq.s32.totalorder %s15, 3
    %p96 = por %p94, %p95
    %p97 = scmp.ne.s32.totalorder %s88, %s89
    %p98 = scmp.eq.s32.totalorder %s15, 0
    %p99 = por %p97, %p98
    %p100 = scmp.ne.s32.totalorder %s88, %s89
    %p101 = scmp.eq.s32.totalorder %s16, 3
    %p102 = por %p100, %p101
    %p104 = scmp.ne.s32.totalorder %s89, %s103
    %p105 = scmp.eq.s32.totalorder %s16, 0
    %p106 = por %p104, %p105
    %s108 = sadd.s32 %s107, 1
    %p111 = scmp.eq.s32.totalorder %s10, 3
    %p112 = scmp.ne.s32.totalorder %s107, %s109
    %p113 = scmp.eq.s32.totalorder %s10, 0
    %p114 = por %p112, %p113
    %p115 = scmp.ne.s32.totalorder %s107, %s109
    %p116 = scmp.eq.s32.totalorder %s15, 3
    %p117 = por %p115, %p116
    %p118 = scmp.ne.s32.totalorder %s109, %s110
    %p119 = scmp.eq.s32.totalorder %s15, 0
    %p120 = por %p118, %p119
    %p121 = scmp.ne.s32.totalorder %s109, %s110
    %p122 = scmp.eq.s32.totalorder %s16, 3
    %p123 = por %p121, %p122
    %p125 = scmp.ne.s32.totalorder %s110, %s124
    %p126 = scmp.eq.s32.totalorder %s16, 0
    %p127 = por %p125, %p126
    %s128 = ssub.s32 %s17, %s29
    %s129 = ssub.s32 %s18, %s25
    %s130 = sor.u32 %s128, %s129
    %p131 = scmp.eq.s32.totalorder %s130, 0
    %s133 = sadd.s32 %s132, 1
    %s134 = scalar_select %p131, %s132, %s133
    %p137 = pneg %p131
    %p138 = scmp.eq.s32.totalorder %s10, 3
    %p139 = por %p137, %p138
    %p140 = scmp.ne.s32.totalorder %s132, %s135
    %p141 = scmp.eq.s32.totalorder %s10, 0
    %p142 = por %p140, %p141
    %p143 = scmp.ne.s32.totalorder %s132, %s135
    %p144 = scmp.eq.s32.totalorder %s15, 3
    %p145 = por %p143, %p144
    %p146 = scmp.ne.s32.totalorder %s135, %s136
    %p147 = scmp.eq.s32.totalorder %s15, 0
    %p148 = por %p146, %p147
    %p149 = scmp.ne.s32.totalorder %s135, %s136
    %p150 = scmp.eq.s32.totalorder %s16, 3
    %p151 = por %p149, %p150
    %p153 = scmp.ne.s32.totalorder %s136, %s152
    %p154 = scmp.eq.s32.totalorder %s16, 0
    %p155 = por %p153, %p154
    %p156 = scmp.le.s32.totalorder 1, %s10
    %p157 = scmp.lt.s32.totalorder %s10, 5
    %p158 = pnand %p156, %p157
    %p159 = pneg %p158
    // Predicated region
    $region9: #{_lambda_.5} parent=5 // pred_check
      _
    $region10: #{_lambda_.5} parent=5 // pred_check_branch
      %161 = sbr.rel (%p158) target = $region12
    $region11: #{_lambda_.5} parent=5 // pred_region
      %s162 = ssub.s32 %s10, 1
      // Predicated region
      $region13: #{_lambda_.5} parent=11 // pred_check
        %p163 = pneg %p99
      $region14: #{_lambda_.5} parent=11 // pred_check_branch
        %165 = sbr.rel (%p163) target = $region16
      $region15: #{_lambda_.5} parent=11 // pred_region
        _
      $region16: #{_lambda_.5} parent=11 // pred_fallthru
        _
      // Predicated region
      $region17: #{_lambda_.5} parent=11 // pred_check
        %p166 = pneg %p120
      $region18: #{_lambda_.5} parent=11 // pred_check_branch
        %168 = sbr.rel (%p166) target = $region20
      $region19: #{_lambda_.5} parent=11 // pred_region
        _
      $region20: #{_lambda_.5} parent=11 // pred_fallthru
        _
    $region12: #{_lambda_.5} parent=5 // pred_fallthru
      _
    %p169 = scmp.lt.s32.totalorder %s10, 4
    // Predicated region
    $region21: #{_lambda_.5} parent=5 // pred_check
      %p170 = pneg %p169
    $region22: #{_lambda_.5} parent=5 // pred_check_branch
      %172 = sbr.rel (%p170) target = $region24
    $region23: #{_lambda_.5} parent=5 // pred_region
      // Predicated region
      $region25: #{_lambda_.5} parent=23 // pred_check
        %p173 = pneg %p44
      $region26: #{_lambda_.5} parent=23 // pred_check_branch
        %175 = sbr.rel (%p173) target = $region28
      $region27: #{_lambda_.5} parent=23 // pred_region
        %s176 = smul.u32 8, %s18
        %p177 = scmp.lt.s32.totalorder %s17, 1
        %s178 = scalar_select %p177, %s17, 1
        %p179 = scmp.lt.s32.totalorder %s176, 15
        %s180 = scalar_select %p179, %s176, 15
        %s181 = smul.addr %s180, 2
        %s182 = smul.addr %s178, 32
        %s183 = sadd.s32 %s181, %s182
        %s184 = smul.addr %s183, 4
        %s185 = scalar_lea.vmem %s0, %s184
        %s186 = smul.u32 8, %s18
      $region28: #{_lambda_.5} parent=23 // pred_fallthru
        _
      // Predicated region
      $region29: #{_lambda_.5} parent=23 // pred_check
        %p187 = pneg %p72
      $region30: #{_lambda_.5} parent=23 // pred_check_branch
        %189 = sbr.rel (%p187) target = $region32
      $region31: #{_lambda_.5} parent=23 // pred_region
        %s190 = smul.u32 2, %s18
        %p191 = scmp.lt.s32.totalorder %s17, 1
        %s192 = scalar_select %p191, %s17, 1
        %p193 = scmp.lt.s32.totalorder %s190, 3
        %s194 = scalar_select %p193, %s190, 3
        %s195 = smul.addr %s194, 2
        %s196 = smul.addr %s192, 8
        %s197 = sadd.s32 %s195, %s196
        %s198 = smul.addr %s197, 4
        %s199 = scalar_lea.vmem %s1, %s198
        %s200 = smul.u32 2, %s18
      $region32: #{_lambda_.5} parent=23 // pred_fallthru
        _
    $region24: #{_lambda_.5} parent=5 // pred_fallthru
      _
    %p201 = scmp.le.s32.totalorder 1, %s10
    %p202 = scmp.lt.s32.totalorder %s10, 5
    %p203 = pnand %p201, %p202
    %p204 = pneg %p203
    // Predicated region
    $region33: #{_lambda_.5} parent=5 // pred_check
      _
    $region34: #{_lambda_.5} parent=5 // pred_check_branch
      %206 = sbr.rel (%p203) target = $region36
    $region35: #{_lambda_.5} parent=5 // pred_region
      %s207 = ssub.s32 %s10, 1
      %s208 = smul.u32 8, %s20
      %p209 = scmp.lt.s32.totalorder %s19, 1
      %s210 = scalar_select %p209, %s19, 1
      %p211 = scmp.lt.s32.totalorder %s208, 15
      %s212 = scalar_select %p211, %s208, 15
      %s213 = smul.addr %s212, 2
      %s214 = smul.addr %s210, 32
      %s215 = sadd.s32 %s213, %s214
      %s216 = smul.addr %s215, 4
      %s217 = scalar_lea.vmem %s0, %s216
      %p218 = pneg %p50
      %p219 = pneg %p47
      %s220 = smul.u32 2, %s20
      %p221 = scmp.lt.s32.totalorder %s19, 1
      %s222 = scalar_select %p221, %s19, 1
      %p223 = scmp.lt.s32.totalorder %s220, 3
      %s224 = scalar_select %p223, %s220, 3
      %s225 = smul.addr %s224, 2
      %s226 = smul.addr %s222, 8
      %s227 = sadd.s32 %s225, %s226
      %s228 = smul.addr %s227, 4
      %s229 = scalar_lea.vmem %s1, %s228
      %p230 = pneg %p78
      %p231 = pneg %p75
      %p232 = pneg %p99
      %p233 = pneg %p96
      %p234 = pneg %p120
      %p235 = pneg %p117
      %p236 = pneg %p148
      %p237 = pneg %p145
      %s238 = smul.u32 4, %s20
      %p239 = scmp.lt.s32.totalorder %s19, 1
      %s240 = scalar_select %p239, %s19, 1
      %p241 = scmp.lt.s32.totalorder %s238, 7
      %s242 = scalar_select %p241, %s238, 7
      %s243 = smul.addr %s240, 8
      %s244 = sadd.s32 %s242, %s243
      %s245 = smul.addr %s244, 4
      %s246 = scalar_lea.vmem %s4, %s245
      %s247 = smul.u32 8, %s20
      %p248 = scmp.lt.s32.totalorder %s19, 1
      %s249 = scalar_select %p248, %s19, 1
      %p250 = scmp.lt.s32.totalorder %s247, 15
      %s251 = scalar_select %p250, %s247, 15
      %s252 = smul.addr %s251, 2
      %s253 = smul.addr %s249, 32
      %s254 = sadd.s32 %s252, %s253
      %s255 = smul.addr %s254, 4
      %s256 = scalar_lea.vmem %s0, %s255
      %s257 = smul.u32 8, %s20
      %s258 = smul.u32 2, %s20
      %p259 = scmp.lt.s32.totalorder %s19, 1
      %s260 = scalar_select %p259, %s19, 1
      %p261 = scmp.lt.s32.totalorder %s258, 3
      %s262 = scalar_select %p261, %s258, 3
      %s263 = smul.addr %s262, 2
      %s264 = smul.addr %s260, 8
      %s265 = sadd.s32 %s263, %s264
      %s266 = smul.addr %s265, 4
      %s267 = scalar_lea.vmem %s1, %s266
      %s268 = smul.u32 2, %s20
      %s269 = smul.u32 4, %s20
      %p270 = scmp.lt.s32.totalorder %s19, 1
      %s271 = scalar_select %p270, %s19, 1
      %p272 = scmp.lt.s32.totalorder %s269, 7
      %s273 = scalar_select %p272, %s269, 7
      %s274 = smul.addr %s271, 8
      %s275 = sadd.s32 %s273, %s274
      %s276 = smul.addr %s275, 4
      %s277 = scalar_lea.vmem %s4, %s276
      %s278 = smul.u32 4, %s20
      %v280 = vld [vmem:[%s256] sm:$0xf]
      %v281 = vld [vmem:[%s256 + $0x4] sm:$0xf]
      %v282 = vld [vmem:[%s256 + $0x8] sm:$0xf]
      %v283 = vld [vmem:[%s256 + $0xc] sm:$0xf]
      %v284 = vld [vmem:[%s256 + $0x10] sm:$0xf]
      %v285 = vld [vmem:[%s256 + $0x14] sm:$0xf]
      %v286 = vld [vmem:[%s256 + $0x18] sm:$0xf]
      %v287 = vld [vmem:[%s256 + $0x1c] sm:$0xf]
      %v288 = vld [vmem:[%s256 + $0x20] sm:$0xf]
      %v289 = vld [vmem:[%s256 + $0x24] sm:$0xf]
      %v290 = vld [vmem:[%s256 + $0x28] sm:$0xf]
      %v291 = vld [vmem:[%s256 + $0x2c] sm:$0xf]
      %v292 = vld [vmem:[%s256 + $0x30] sm:$0xf]
      %v293 = vld [vmem:[%s256 + $0x34] sm:$0xf]
      %v294 = vld [vmem:[%s256 + $0x38] sm:$0xf]
      %v295 = vld [vmem:[%s256 + $0x3c] sm:$0xf]
      %v296 = vld [vmem:[%s267] sm:$0xf]
      %v297 = vld [vmem:[%s267 + $0x4] sm:$0xf]
      %s298 = scalar_lea.vmem %s267, 8
      %v299 = vld [vmem:[%s298] sm:$0xf]
      %v300 = vld [vmem:[%s298 + $0x4] sm:$0xf]
      %v317 = vunpack.c.l.b16 %v296
      %v318 = vunpack.c.l.b16 %v297
      %v319 = vunpack.c.l.b16 %v280
      %v320 = vunpack.c.l.b16 %v281
      %v321 = vunpack.c.l.b16 %v282
      %v322 = vunpack.c.l.b16 %v283
      %v323 = vunpack.c.l.b16 %v284
      %v324 = vunpack.c.l.b16 %v285
      %v325 = vunpack.c.l.b16 %v286
      %v326 = vunpack.c.l.b16 %v287
      %v327 = vunpack.c.l.b16 %v288
      %v328 = vunpack.c.l.b16 %v289
      %v329 = vunpack.c.l.b16 %v290
      %v330 = vunpack.c.l.b16 %v291
      %v331 = vunpack.c.l.b16 %v292
      %v332 = vunpack.c.l.b16 %v293
      %v333 = vpack.c.b16 %v318, %v317
      %v334 = vpack.c.b16 %v320, %v319
      %v335 = vpack.c.b16 %v322, %v321
      %v336 = vpack.c.b16 %v324, %v323
      %v337 = vpack.c.b16 %v326, %v325
      %v338 = vpack.c.b16 %v328, %v327
      %v339 = vpack.c.b16 %v330, %v329
      %v340 = vpack.c.b16 %v332, %v331
      %v342 = vshrl.u32 %v333, 16
      %v344 = vrot.slane %v342, 7
      %v345 = vshll.u32 %v333, 16
      %v347 = vor.u32 %v344, %v345
      %v349 = vshrl.u32 %v334, 16
      %v351 = vrot.slane %v349, 7
      %v352 = vshll.u32 %v334, 16
      %v354 = vor.u32 %v351, %v352
      %v356 = vshrl.u32 %v335, 16
      %v358 = vrot.slane %v356, 7
      %v359 = vshll.u32 %v335, 16
      %v361 = vor.u32 %v358, %v359
      %v363 = vshrl.u32 %v336, 16
      %v365 = vrot.slane %v363, 7
      %v366 = vshll.u32 %v336, 16
      %v368 = vor.u32 %v365, %v366
      %v370 = vshrl.u32 %v337, 16
      %v372 = vrot.slane %v370, 7
      %v373 = vshll.u32 %v337, 16
      %v375 = vor.u32 %v372, %v373
      %v377 = vshrl.u32 %v338, 16
      %v379 = vrot.slane %v377, 7
      %v380 = vshll.u32 %v338, 16
      %v382 = vor.u32 %v379, %v380
      %v384 = vshrl.u32 %v339, 16
      %v386 = vrot.slane %v384, 7
      %v387 = vshll.u32 %v339, 16
      %v389 = vor.u32 %v386, %v387
      %v391 = vshrl.u32 %v340, 16
      %v393 = vrot.slane %v391, 7
      %v394 = vshll.u32 %v340, 16
      %v396 = vor.u32 %v393, %v394
      %vm413 = vcmask 1040384
      %vm414 = vsmask.f32 256
      %vm415 = vmand %vm413, %vm414
      %v416 = vsel %vm415, 0, %v347
      %v417 = vsel %vm415, 0, %v354
      %v418 = vsel %vm415, 0, %v361
      %v419 = vsel %vm415, 0, %v368
      %v420 = vsel %vm415, 0, %v375
      %v421 = vsel %vm415, 0, %v382
      %v422 = vsel %vm415, 0, %v389
      %v423 = vsel %vm415, 0, %v396
      %v424 = vsel %vm415, %v344, 0
      %v425 = vsel %vm415, %v351, 0
      %v426 = vsel %vm415, %v358, 0
      %v427 = vsel %vm415, %v365, 0
      %v428 = vsel %vm415, %v372, 0
      %v429 = vsel %vm415, %v379, 0
      %v430 = vsel %vm415, %v386, 0
      %v431 = vsel %vm415, %v393, 0
      %vm432 = vsmask.f32 7424
      %v434 = vshrl.u32 %v416, 16
      %v436 = vshll.u32 %v416, 16
      %v438 = vrot.slane %v436, 1
      %v439 = vor.u32 %v434, %v438
      %v441 = vshll.u32 %v424, 16
      %v443 = vrot.slane %v441, 1
      %v444 = vsel %vm432, %v439, %v443
      %v446 = vshrl.u32 %v417, 16
      %v448 = vshll.u32 %v417, 16
      %v450 = vrot.slane %v448, 1
      %v451 = vor.u32 %v446, %v450
      %v453 = vshll.u32 %v425, 16
      %v455 = vrot.slane %v453, 1
      %v456 = vsel %vm432, %v451, %v455
      %v458 = vshrl.u32 %v418, 16
      %v460 = vshll.u32 %v418, 16
      %v462 = vrot.slane %v460, 1
      %v463 = vor.u32 %v458, %v462
      %v465 = vshll.u32 %v426, 16
      %v467 = vrot.slane %v465, 1
      %v468 = vsel %vm432, %v463, %v467
      %v470 = vshrl.u32 %v419, 16
      %v472 = vshll.u32 %v419, 16
      %v474 = vrot.slane %v472, 1
      %v475 = vor.u32 %v470, %v474
      %v477 = vshll.u32 %v427, 16
      %v479 = vrot.slane %v477, 1
      %v480 = vsel %vm432, %v475, %v479
      %v482 = vshrl.u32 %v420, 16
      %v484 = vshll.u32 %v420, 16
      %v486 = vrot.slane %v484, 1
      %v487 = vor.u32 %v482, %v486
      %v489 = vshll.u32 %v428, 16
      %v491 = vrot.slane %v489, 1
      %v492 = vsel %vm432, %v487, %v491
      %v494 = vshrl.u32 %v421, 16
      %v496 = vshll.u32 %v421, 16
      %v498 = vrot.slane %v496, 1
      %v499 = vor.u32 %v494, %v498
      %v501 = vshll.u32 %v429, 16
      %v503 = vrot.slane %v501, 1
      %v504 = vsel %vm432, %v499, %v503
      %v506 = vshrl.u32 %v422, 16
      %v508 = vshll.u32 %v422, 16
      %v510 = vrot.slane %v508, 1
      %v511 = vor.u32 %v506, %v510
      %v513 = vshll.u32 %v430, 16
      %v515 = vrot.slane %v513, 1
      %v516 = vsel %vm432, %v511, %v515
      %v518 = vshrl.u32 %v423, 16
      %v520 = vshll.u32 %v423, 16
      %v522 = vrot.slane %v520, 1
      %v523 = vor.u32 %v518, %v522
      %v525 = vshll.u32 %v431, 16
      %v527 = vrot.slane %v525, 1
      %v528 = vsel %vm432, %v523, %v527
      %vm553 = vcmask 1046528
      %v554 = vrot.slane %v416, 1
      %v555 = vrot.slane %v424, 1
      %v556 = vsel %vm553, %v554, %v555
      %v557 = vrot.slane %v417, 1
      %v558 = vrot.slane %v425, 1
      %v559 = vsel %vm553, %v557, %v558
      %v560 = vrot.slane %v418, 1
      %v561 = vrot.slane %v426, 1
      %v562 = vsel %vm553, %v560, %v561
      %v563 = vrot.slane %v419, 1
      %v564 = vrot.slane %v427, 1
      %v565 = vsel %vm553, %v563, %v564
      %v566 = vrot.slane %v420, 1
      %v567 = vrot.slane %v428, 1
      %v568 = vsel %vm553, %v566, %v567
      %v569 = vrot.slane %v421, 1
      %v570 = vrot.slane %v429, 1
      %v571 = vsel %vm553, %v569, %v570
      %v572 = vrot.slane %v422, 1
      %v573 = vrot.slane %v430, 1
      %v574 = vsel %vm553, %v572, %v573
      %v575 = vrot.slane %v423, 1
      %v576 = vrot.slane %v431, 1
      %v577 = vsel %vm553, %v575, %v576
      %v586 = vld [vmem:[%s2] sm:$0xf]
      %v587 = vld [vmem:[%s2 + $0x4] sm:$0xf]
      %v588 = vld [vmem:[%s2 + $0x8] sm:$0xf]
      %v589 = vld [vmem:[%s2 + $0xc] sm:$0xf]
      %v590 = vld [vmem:[%s2 + $0x10] sm:$0xf]
      %v591 = vld [vmem:[%s2 + $0x14] sm:$0xf]
      %v592 = vld [vmem:[%s2 + $0x18] sm:$0xf]
      %v593 = vld [vmem:[%s2 + $0x1c] sm:$0xf]
      %v594 = vld [vmem:[%s2 + $0x20] sm:$0xf]
      %v595 = vld [vmem:[%s2 + $0x24] sm:$0xf]
      %v596 = vld [vmem:[%s2 + $0x28] sm:$0xf]
      %v597 = vld [vmem:[%s2 + $0x2c] sm:$0xf]
      %v598 = vld [vmem:[%s2 + $0x30] sm:$0xf]
      %v599 = vld [vmem:[%s2 + $0x34] sm:$0xf]
      %v600 = vld [vmem:[%s2 + $0x38] sm:$0xf]
      %v601 = vld [vmem:[%s2 + $0x3c] sm:$0xf]
      %v602 = vld [vmem:[%s2 + $0x40] sm:$0xf]
      %v603 = vld [vmem:[%s2 + $0x44] sm:$0xf]
      %v604 = vld [vmem:[%s2 + $0x48] sm:$0xf]
      %v605 = vld [vmem:[%s2 + $0x4c] sm:$0xf]
      %v606 = vld [vmem:[%s2 + $0x50] sm:$0xf]
      %v607 = vld [vmem:[%s2 + $0x54] sm:$0xf]
      %v608 = vld [vmem:[%s2 + $0x58] sm:$0xf]
      %v609 = vld [vmem:[%s2 + $0x5c] sm:$0xf]
      %v610 = vld [vmem:[%s2 + $0x60] sm:$0xf]
      %v611 = vld [vmem:[%s2 + $0x64] sm:$0xf]
      %v612 = vld [vmem:[%s2 + $0x68] sm:$0xf]
      %v613 = vld [vmem:[%s2 + $0x6c] sm:$0xf]
      %v614 = vld [vmem:[%s2 + $0x70] sm:$0xf]
      %v615 = vld [vmem:[%s2 + $0x74] sm:$0xf]
      %v616 = vld [vmem:[%s2 + $0x78] sm:$0xf]
      %v617 = vld [vmem:[%s2 + $0x7c] sm:$0xf]
      %v618 = vld [vmem:[%s2 + $0x80] sm:$0xf]
      %v619 = vld [vmem:[%s2 + $0x84] sm:$0xf]
      %v620 = vld [vmem:[%s2 + $0x88] sm:$0xf]
      %v621 = vld [vmem:[%s2 + $0x8c] sm:$0xf]
      %v622 = vld [vmem:[%s2 + $0x90] sm:$0xf]
      %v623 = vld [vmem:[%s2 + $0x94] sm:$0xf]
      %v624 = vld [vmem:[%s2 + $0x98] sm:$0xf]
      %v625 = vld [vmem:[%s2 + $0x9c] sm:$0xf]
      %v626 = vld [vmem:[%s2 + $0xa0] sm:$0xf]
      %v627 = vld [vmem:[%s2 + $0xa4] sm:$0xf]
      %v628 = vld [vmem:[%s2 + $0xa8] sm:$0xf]
      %v629 = vld [vmem:[%s2 + $0xac] sm:$0xf]
      %v630 = vld [vmem:[%s2 + $0xb0] sm:$0xf]
      %v631 = vld [vmem:[%s2 + $0xb4] sm:$0xf]
      %v632 = vld [vmem:[%s2 + $0xb8] sm:$0xf]
      %v633 = vld [vmem:[%s2 + $0xbc] sm:$0xf]
      %v636 = vunpack.c.l.b16 %v294
      %v637 = vunpack.c.l.b16 %v295
      %v638 = vpack.c.b16 %v637, %v636
      %v640 = vshrl.u32 %v638, 16
      %v642 = vrot.slane %v640, 7
      %v643 = vshll.u32 %v638, 16
      %v645 = vor.u32 %v642, %v643
      %v648 = vsel %vm415, 0, %v645
      %v649 = vsel %vm415, %v642, 0
      %v651 = vshrl.u32 %v648, 16
      %v653 = vshll.u32 %v648, 16
      %v655 = vrot.slane %v653, 1
      %v656 = vor.u32 %v651, %v655
      %v658 = vshll.u32 %v649, 16
      %v660 = vrot.slane %v658, 1
      %v661 = vsel %vm432, %v656, %v660
      %v665 = vrot.slane %v648, 1
      %v666 = vrot.slane %v649, 1
      %v667 = vsel %vm553, %v665, %v666
      %s669 = scalar_lea.vmem %s2, 192
      %v670 = vld [vmem:[%s669] sm:$0xf]
      %v671 = vld [vmem:[%s669 + $0x4] sm:$0xf]
      %v672 = vld [vmem:[%s669 + $0x8] sm:$0xf]
      %v673 = vld [vmem:[%s669 + $0xc] sm:$0xf]
      %v674 = vld [vmem:[%s669 + $0x10] sm:$0xf]
      %v675 = vld [vmem:[%s669 + $0x14] sm:$0xf]
      %v676 = vld [vmem:[%s669 + $0x18] sm:$0xf]
      %v677 = vld [vmem:[%s669 + $0x1c] sm:$0xf]
      %v678 = vld [vmem:[%s669 + $0x20] sm:$0xf]
      %v679 = vld [vmem:[%s669 + $0x24] sm:$0xf]
      %v680 = vld [vmem:[%s669 + $0x28] sm:$0xf]
      %v681 = vld [vmem:[%s669 + $0x2c] sm:$0xf]
      %v682 = vld [vmem:[%s669 + $0x30] sm:$0xf]
      %v683 = vld [vmem:[%s669 + $0x34] sm:$0xf]
      %v684 = vld [vmem:[%s669 + $0x38] sm:$0xf]
      %v685 = vld [vmem:[%s669 + $0x3c] sm:$0xf]
      %v686 = vld [vmem:[%s669 + $0x40] sm:$0xf]
      %v687 = vld [vmem:[%s669 + $0x44] sm:$0xf]
      %v688 = vld [vmem:[%s669 + $0x48] sm:$0xf]
      %v689 = vld [vmem:[%s669 + $0x4c] sm:$0xf]
      %v690 = vld [vmem:[%s669 + $0x50] sm:$0xf]
      %v691 = vld [vmem:[%s669 + $0x54] sm:$0xf]
      %v692 = vld [vmem:[%s669 + $0x58] sm:$0xf]
      %v693 = vld [vmem:[%s669 + $0x5c] sm:$0xf]
      %v694 = vld [vmem:[%s669 + $0x60] sm:$0xf]
      %v695 = vld [vmem:[%s669 + $0x64] sm:$0xf]
      %v696 = vld [vmem:[%s669 + $0x68] sm:$0xf]
      %v697 = vld [vmem:[%s669 + $0x6c] sm:$0xf]
      %v698 = vld [vmem:[%s669 + $0x70] sm:$0xf]
      %v699 = vld [vmem:[%s669 + $0x74] sm:$0xf]
      %v700 = vld [vmem:[%s669 + $0x78] sm:$0xf]
      %v701 = vld [vmem:[%s669 + $0x7c] sm:$0xf]
      %v702 = vld [vmem:[%s669 + $0x80] sm:$0xf]
      %v703 = vld [vmem:[%s669 + $0x84] sm:$0xf]
      %v704 = vld [vmem:[%s669 + $0x88] sm:$0xf]
      %v705 = vld [vmem:[%s669 + $0x8c] sm:$0xf]
      %v706 = vld [vmem:[%s669 + $0x90] sm:$0xf]
      %v707 = vld [vmem:[%s669 + $0x94] sm:$0xf]
      %v708 = vld [vmem:[%s669 + $0x98] sm:$0xf]
      %v709 = vld [vmem:[%s669 + $0x9c] sm:$0xf]
      %v710 = vld [vmem:[%s669 + $0xa0] sm:$0xf]
      %v711 = vld [vmem:[%s669 + $0xa4] sm:$0xf]
      %v712 = vld [vmem:[%s669 + $0xa8] sm:$0xf]
      %v713 = vld [vmem:[%s669 + $0xac] sm:$0xf]
      %v714 = vld [vmem:[%s669 + $0xb0] sm:$0xf]
      %v715 = vld [vmem:[%s669 + $0xb4] sm:$0xf]
      %v716 = vld [vmem:[%s669 + $0xb8] sm:$0xf]
      %v717 = vld [vmem:[%s669 + $0xbc] sm:$0xf]
      %v766 = vunpack.c.l.b16 %v670
      %v767 = vunpack.c.l.b16 %v671
      %v768 = vunpack.c.l.b16 %v672
      %v769 = vunpack.c.l.b16 %v673
      %v770 = vunpack.c.l.b16 %v674
      %v771 = vunpack.c.l.b16 %v675
      %v772 = vunpack.c.l.b16 %v676
      %v773 = vunpack.c.l.b16 %v677
      %v774 = vunpack.c.l.b16 %v678
      %v775 = vunpack.c.l.b16 %v679
      %v776 = vunpack.c.l.b16 %v680
      %v777 = vunpack.c.l.b16 %v681
      %v778 = vunpack.c.l.b16 %v682
      %v779 = vunpack.c.l.b16 %v683
      %v780 = vunpack.c.l.b16 %v684
      %v781 = vunpack.c.l.b16 %v685
      %v782 = vunpack.c.l.b16 %v686
      %v783 = vunpack.c.l.b16 %v687
      %v784 = vunpack.c.l.b16 %v688
      %v785 = vunpack.c.l.b16 %v689
      %v786 = vunpack.c.l.b16 %v690
      %v787 = vunpack.c.l.b16 %v691
      %v788 = vunpack.c.l.b16 %v692
      %v789 = vunpack.c.l.b16 %v693
      %v790 = vunpack.c.l.b16 %v694
      %v791 = vunpack.c.l.b16 %v695
      %v792 = vunpack.c.l.b16 %v696
      %v793 = vunpack.c.l.b16 %v697
      %v794 = vunpack.c.l.b16 %v698
      %v795 = vunpack.c.l.b16 %v699
      %v796 = vunpack.c.l.b16 %v700
      %v797 = vunpack.c.l.b16 %v701
      %v798 = vunpack.c.l.b16 %v702
      %v799 = vunpack.c.l.b16 %v703
      %v800 = vunpack.c.l.b16 %v704
      %v801 = vunpack.c.l.b16 %v705
      %v802 = vunpack.c.l.b16 %v706
      %v803 = vunpack.c.l.b16 %v707
      %v804 = vunpack.c.l.b16 %v708
      %v805 = vunpack.c.l.b16 %v709
      %v806 = vunpack.c.l.b16 %v710
      %v807 = vunpack.c.l.b16 %v711
      %v808 = vunpack.c.l.b16 %v712
      %v809 = vunpack.c.l.b16 %v713
      %v810 = vunpack.c.l.b16 %v714
      %v811 = vunpack.c.l.b16 %v715
      %v812 = vunpack.c.l.b16 %v716
      %v813 = vunpack.c.l.b16 %v717
      %v814 = vpack.c.b16 %v767, %v766
      %v815 = vpack.c.b16 %v769, %v768
      %v816 = vpack.c.b16 %v771, %v770
      %v817 = vpack.c.b16 %v773, %v772
      %v818 = vpack.c.b16 %v775, %v774
      %v819 = vpack.c.b16 %v777, %v776
      %v820 = vpack.c.b16 %v779, %v778
      %v821 = vpack.c.b16 %v781, %v780
      %v822 = vpack.c.b16 %v783, %v782
      %v823 = vpack.c.b16 %v785, %v784
      %v824 = vpack.c.b16 %v787, %v786
      %v825 = vpack.c.b16 %v789, %v788
      %v826 = vpack.c.b16 %v791, %v790
      %v827 = vpack.c.b16 %v793, %v792
      %v828 = vpack.c.b16 %v795, %v794
      %v829 = vpack.c.b16 %v797, %v796
      %v830 = vpack.c.b16 %v799, %v798
      %v831 = vpack.c.b16 %v801, %v800
      %v832 = vpack.c.b16 %v803, %v802
      %v833 = vpack.c.b16 %v805, %v804
      %v834 = vpack.c.b16 %v807, %v806
      %v835 = vpack.c.b16 %v809, %v808
      %v836 = vpack.c.b16 %v811, %v810
      %v837 = vpack.c.b16 %v813, %v812
      %862 = vmatprep.subr.bf16.mxu0 0
      %863 = vmatpush1.bf16.msra.mxu0 %v814
      %864 = vmatprep.subr.bf16.mxu0 0
      %865 = vmatpush1.bf16.msra.mxu0 %v815
      %866 = vmatprep.subr.bf16.mxu0 0
      %867 = vmatpush1.bf16.msra.mxu0 %v816
      %868 = vmatprep.subr.bf16.mxu0 0
      %869 = vmatpush1.bf16.msra.mxu0 %v817
      %870 = vmatprep.subr.bf16.mxu0 0
      %871 = vmatpush1.bf16.msra.mxu0 %v818
      %872 = vmatprep.subr.bf16.mxu0 0
      %873 = vmatpush1.bf16.msra.mxu0 %v819
      %874 = vmatprep.subr.bf16.mxu0 0
      %875 = vmatpush1.bf16.msra.mxu0 %v820
      %876 = vmatprep.subr.bf16.mxu0 0
      %877 = vmatpush1.bf16.msra.mxu0 %v821
      %878 = vmatprep.subr.bf16.mxu0 0
      %879 = vmatpush1.bf16.msra.mxu0 %v822
      %880 = vmatprep.subr.bf16.mxu0 0
      %881 = vmatpush1.bf16.msra.mxu0 %v823
      %882 = vmatprep.subr.bf16.mxu0 0
      %883 = vmatpush1.bf16.msra.mxu0 %v824
      %884 = vmatprep.subr.bf16.mxu0 0
      %885 = vmatpush1.bf16.msra.mxu0 %v825
      %886 = vmatprep.subr.bf16.mxu0 0
      %887 = vmatpush1.bf16.msra.mxu0 %v826
      %888 = vmatprep.subr.bf16.mxu0 0
      %889 = vmatpush1.bf16.msra.mxu0 %v827
      %890 = vmatprep.subr.bf16.mxu0 0
      %891 = vmatpush1.bf16.msra.mxu0 %v828
      %892 = vmatprep.subr.bf16.mxu0 0
      %893 = vmatpush1.bf16.msra.mxu0 %v829
      %894 = vmatprep.mubr.bf16.mxu0 %v456
      %895 = vmatmul.mubr.bf16.gmra.mrb[0].mxu0 %v417
      %v896 = vpop.f32.mrb[0].mxu0
      %v897 = vadd.f32 0.0, %v896
      %v898 = vpop.f32.mrb[0].mxu0
      %v899 = vpop.f32.mrb[0].mxu0
      %v900 = vadd.f32 0.0, %v899
      %v901 = vpop.f32.mrb[0].mxu0
      %902 = vmatprep.mubr.bf16.mxu0 %v468
      %903 = vmatmul.mubr.bf16.gmra.mrb[0].mxu0 %v418
      %v904 = vpop.f32.mrb[0].mxu0
      %v905 = vadd.f32 0.0, %v904
      %v906 = vpop.f32.mrb[0].mxu0
      %v907 = vpop.f32.mrb[0].mxu0
      %v908 = vadd.f32 0.0, %v907
      %v909 = vpop.f32.mrb[0].mxu0
      %910 = vmatprep.mubr.bf16.mxu0 %v480
      %911 = vmatmul.mubr.bf16.gmra.mrb[0].mxu0 %v419
      %v912 = vpop.f32.mrb[0].mxu0
      %v913 = vadd.f32 0.0, %v912
      %v914 = vpop.f32.mrb[0].mxu0
      %v915 = vpop.f32.mrb[0].mxu0
      %v916 = vadd.f32 0.0, %v915
      %v917 = vpop.f32.mrb[0].mxu0
      %918 = vmatprep.mubr.bf16.mxu0 %v492
      %919 = vmatmul.mubr.bf16.gmra.mrb[0].mxu0 %v420
      %v920 = vpop.f32.mrb[0].mxu0
      %v921 = vadd.f32 0.0, %v920
      %v922 = vpop.f32.mrb[0].mxu0
      %v923 = vpop.f32.mrb[0].mxu0
      %v924 = vadd.f32 0.0, %v923
      %v925 = vpop.f32.mrb[0].mxu0
      %926 = vmatprep.mubr.bf16.mxu0 %v504
      %927 = vmatmul.mubr.bf16.gmra.mrb[0].mxu0 %v421
      %v928 = vpop.f32.mrb[0].mxu0
      %v929 = vadd.f32 0.0, %v928
      %v930 = vpop.f32.mrb[0].mxu0
      %v931 = vpop.f32.mrb[0].mxu0
      %v932 = vadd.f32 0.0, %v931
      %v933 = vpop.f32.mrb[0].mxu0
      %934 = vmatprep.mubr.bf16.mxu0 %v516
      %935 = vmatmul.mubr.bf16.gmra.mrb[0].mxu0 %v422
      %v936 = vpop.f32.mrb[0].mxu0
      %v937 = vadd.f32 0.0, %v936
      %v938 = vpop.f32.mrb[0].mxu0
      %v939 = vpop.f32.mrb[0].mxu0
      %v940 = vadd.f32 0.0, %v939
      %v941 = vpop.f32.mrb[0].mxu0
      %942 = vmatprep.mubr.bf16.mxu0 %v528
      %943 = vmatmul.mubr.bf16.gmra.mrb[0].mxu0 %v423
      %v944 = vpop.f32.mrb[0].mxu0
      %v945 = vadd.f32 0.0, %v944
      %v946 = vpop.f32.mrb[0].mxu0
      %v947 = vpop.f32.mrb[0].mxu0
      %v948 = vadd.f32 0.0, %v947
      %v949 = vpop.f32.mrb[0].mxu0
      %950 = vmatprep.mubr.bf16.mxu0 %v661
      %951 = vmatmul.mubr.bf16.gmra.mrb[0].mxu0 %v648
      %v952 = vpop.f32.mrb[0].mxu0
      %v953 = vadd.f32 0.0, %v952
      %v954 = vpop.f32.mrb[0].mxu0
      %v955 = vpop.f32.mrb[0].mxu0
      %v956 = vadd.f32 0.0, %v955
      %v957 = vpop.f32.mrb[0].mxu0
      %958 = vdwg.mxu0
      %959 = vmatprep.subr.bf16.mxu0 0
      %960 = vmatpush1.bf16.msra.mxu0 %v830
      %961 = vmatprep.subr.bf16.mxu0 0
      %962 = vmatpush1.bf16.msra.mxu0 %v831
      %963 = vmatprep.subr.bf16.mxu0 0
      %964 = vmatpush1.bf16.msra.mxu0 %v832
      %965 = vmatprep.subr.bf16.mxu0 0
      %966 = vmatpush1.bf16.msra.mxu0 %v833
      %967 = vmatprep.subr.bf16.mxu0 0
      %968 = vmatpush1.bf16.msra.mxu0 %v834
      %969 = vmatprep.subr.bf16.mxu0 0
      %970 = vmatpush1.bf16.msra.mxu0 %v835
      %971 = vmatprep.subr.bf16.mxu0 0
      %972 = vmatpush1.bf16.msra.mxu0 %v836
      %973 = vmatprep.subr.bf16.mxu0 0
      %974 = vmatpush1.bf16.msra.mxu0 %v837
      %975 = vmatprep.subr.bf16.mxu0 0
      %976 = vmatpush1.bf16.msra.mxu0 0
      %977 = vmatprep.subr.bf16.mxu0 0
      %978 = vmatpush1.bf16.msra.mxu0 0
      %979 = vmatprep.subr.bf16.mxu0 0
      %980 = vmatpush1.bf16.msra.mxu0 0
      %981 = vmatprep.subr.bf16.mxu0 0
      %982 = vmatpush1.bf16.msra.mxu0 0
      %983 = vmatprep.subr.bf16.mxu0 0
      %984 = vmatpush1.bf16.msra.mxu0 0
      %985 = vmatprep.subr.bf16.mxu0 0
      %986 = vmatpush1.bf16.msra.mxu0 0
      %987 = vmatprep.subr.bf16.mxu0 0
      %988 = vmatpush1.bf16.msra.mxu0 0
      %989 = vmatprep.subr.bf16.mxu0 0
      %990 = vmatpush1.bf16.msra.mxu0 0
      %991 = vmatprep.mubr.bf16.mxu0 0
      %992 = vmatmul.mubr.bf16.gmra.mrb[0].mxu0 %v559
      %v993 = vpop.f32.mrb[0].mxu0
      %v994 = vadd.f32 %v897, %v993
      %v995 = vpop.f32.mrb[0].mxu0
      %v996 = vpop.f32.mrb[0].mxu0
      %v997 = vadd.f32 %v900, %v996
      %v998 = vpop.f32.mrb[0].mxu0
      %999 = vmatprep.mubr.bf16.mxu0 0
      %1000 = vmatmul.mubr.bf16.gmra.mrb[0].mxu0 %v562
      %v1001 = vpop.f32.mrb[0].mxu0
      %v1002 = vadd.f32 %v905, %v1001
      %v1003 = vpop.f32.mrb[0].mxu0
      %v1004 = vpop.f32.mrb[0].mxu0
      %v1005 = vadd.f32 %v908, %v1004
      %v1006 = vpop.f32.mrb[0].mxu0
      %1007 = vmatprep.mubr.bf16.mxu0 0
      %1008 = vmatmul.mubr.bf16.gmra.mrb[0].mxu0 %v565
      %v1009 = vpop.f32.mrb[0].mxu0
      %v1010 = vadd.f32 %v913, %v1009
      %v1011 = vpop.f32.mrb[0].mxu0
      %v1012 = vpop.f32.mrb[0].mxu0
      %v1013 = vadd.f32 %v916, %v1012
      %v1014 = vpop.f32.mrb[0].mxu0
      %1015 = vmatprep.mubr.bf16.mxu0 0
      %1016 = vmatmul.mubr.bf16.gmra.mrb[0].mxu0 %v568
      %v1017 = vpop.f32.mrb[0].mxu0
      %v1018 = vadd.f32 %v921, %v1017
      %v1019 = vpop.f32.mrb[0].mxu0
      %v1020 = vpop.f32.mrb[0].mxu0
      %v1021 = vadd.f32 %v924, %v1020
      %v1022 = vpop.f32.mrb[0].mxu0
      %1023 = vmatprep.mubr.bf16.mxu0 0
      %1024 = vmatmul.mubr.bf16.gmra.mrb[0].mxu0 %v571
      %v1025 = vpop.f32.mrb[0].mxu0
      %v1026 = vadd.f32 %v929, %v1025
      %v1027 = vpop.f32.mrb[0].mxu0
      %v1028 = vpop.f32.mrb[0].mxu0
      %v1029 = vadd.f32 %v932, %v1028
      %v1030 = vpop.f32.mrb[0].mxu0
      %1031 = vmatprep.mubr.bf16.mxu0 0
      %1032 = vmatmul.mubr.bf16.gmra.mrb[0].mxu0 %v574
      %v1033 = vpop.f32.mrb[0].mxu0
      %v1034 = vadd.f32 %v937, %v1033
      %v1035 = vpop.f32.mrb[0].mxu0
      %v1036 = vpop.f32.mrb[0].mxu0
      %v1037 = vadd.f32 %v940, %v1036
      %v1038 = vpop.f32.mrb[0].mxu0
      %1039 = vmatprep.mubr.bf16.mxu0 0
      %1040 = vmatmul.mubr.bf16.gmra.mrb[0].mxu0 %v577
      %v1041 = vpop.f32.mrb[0].mxu0
      %v1042 = vadd.f32 %v945, %v1041
      %v1043 = vpop.f32.mrb[0].mxu0
      %v1044 = vpop.f32.mrb[0].mxu0
      %v1045 = vadd.f32 %v948, %v1044
      %v1046 = vpop.f32.mrb[0].mxu0
      %1047 = vmatprep.mubr.bf16.mxu0 0
      %1048 = vmatmul.mubr.bf16.gmra.mrb[0].mxu0 %v667
      %v1049 = vpop.f32.mrb[0].mxu0
      %v1050 = vadd.f32 %v953, %v1049
      %v1051 = vpop.f32.mrb[0].mxu0
      %v1052 = vpop.f32.mrb[0].mxu0
      %v1053 = vadd.f32 %v956, %v1052
      %v1054 = vpop.f32.mrb[0].mxu0
      %1055 = vdwg.mxu0
      %v1104 = vunpack.c.l.b16 %v586
      %v1105 = vunpack.c.l.b16 %v587
      %v1106 = vunpack.c.l.b16 %v588
      %v1107 = vunpack.c.l.b16 %v589
      %v1108 = vunpack.c.l.b16 %v590
      %v1109 = vunpack.c.l.b16 %v591
      %v1110 = vunpack.c.l.b16 %v592
      %v1111 = vunpack.c.l.b16 %v593
      %v1112 = vunpack.c.l.b16 %v594
      %v1113 = vunpack.c.l.b16 %v595
      %v1114 = vunpack.c.l.b16 %v596
      %v1115 = vunpack.c.l.b16 %v597
      %v1116 = vunpack.c.l.b16 %v598
      %v1117 = vunpack.c.l.b16 %v599
      %v1118 = vunpack.c.l.b16 %v600
      %v1119 = vunpack.c.l.b16 %v601
      %v1120 = vunpack.c.l.b16 %v602
      %v1121 = vunpack.c.l.b16 %v603
      %v1122 = vunpack.c.l.b16 %v604
      %v1123 = vunpack.c.l.b16 %v605
      %v1124 = vunpack.c.l.b16 %v606
      %v1125 = vunpack.c.l.b16 %v607
      %v1126 = vunpack.c.l.b16 %v608
      %v1127 = vunpack.c.l.b16 %v609
      %v1128 = vunpack.c.l.b16 %v610
      %v1129 = vunpack.c.l.b16 %v611
      %v1130 = vunpack.c.l.b16 %v612
      %v1131 = vunpack.c.l.b16 %v613
      %v1132 = vunpack.c.l.b16 %v614
      %v1133 = vunpack.c.l.b16 %v615
      %v1134 = vunpack.c.l.b16 %v616
      %v1135 = vunpack.c.l.b16 %v617
      %v1136 = vunpack.c.l.b16 %v618
      %v1137 = vunpack.c.l.b16 %v619
      %v1138 = vunpack.c.l.b16 %v620
      %v1139 = vunpack.c.l.b16 %v621
      %v1140 = vunpack.c.l.b16 %v622
      %v1141 = vunpack.c.l.b16 %v623
      %v1142 = vunpack.c.l.b16 %v624
      %v1143 = vunpack.c.l.b16 %v625
      %v1144 = vunpack.c.l.b16 %v626
      %v1145 = vunpack.c.l.b16 %v627
      %v1146 = vunpack.c.l.b16 %v628
      %v1147 = vunpack.c.l.b16 %v629
      %v1148 = vunpack.c.l.b16 %v630
      %v1149 = vunpack.c.l.b16 %v631
      %v1150 = vunpack.c.l.b16 %v632
      %v1151 = vunpack.c.l.b16 %v633
      %v1152 = vpack.c.b16 %v1105, %v1104
      %v1153 = vpack.c.b16 %v1107, %v1106
      %v1154 = vpack.c.b16 %v1109, %v1108
      %v1155 = vpack.c.b16 %v1111, %v1110
      %v1156 = vpack.c.b16 %v1113, %v1112
      %v1157 = vpack.c.b16 %v1115, %v1114
      %v1158 = vpack.c.b16 %v1117, %v1116
      %v1159 = vpack.c.b16 %v1119, %v1118
      %v1160 = vpack.c.b16 %v1121, %v1120
      %v1161 = vpack.c.b16 %v1123, %v1122
      %v1162 = vpack.c.b16 %v1125, %v1124
      %v1163 = vpack.c.b16 %v1127, %v1126
      %v1164 = vpack.c.b16 %v1129, %v1128
      %v1165 = vpack.c.b16 %v1131, %v1130
      %v1166 = vpack.c.b16 %v1133, %v1132
      %v1167 = vpack.c.b16 %v1135, %v1134
      %v1168 = vpack.c.b16 %v1137, %v1136
      %v1169 = vpack.c.b16 %v1139, %v1138
      %v1170 = vpack.c.b16 %v1141, %v1140
      %v1171 = vpack.c.b16 %v1143, %v1142
      %v1172 = vpack.c.b16 %v1145, %v1144
      %v1173 = vpack.c.b16 %v1147, %v1146
      %v1174 = vpack.c.b16 %v1149, %v1148
      %v1175 = vpack.c.b16 %v1151, %v1150
      %1200 = vmatprep.subr.bf16.mxu0 0
      %1201 = vmatpush1.bf16.msra.mxu0 %v1152
      %1202 = vmatprep.subr.bf16.mxu0 0
      %1203 = vmatpush1.bf16.msra.mxu0 %v1153
      %1204 = vmatprep.subr.bf16.mxu0 0
      %1205 = vmatpush1.bf16.msra.mxu0 %v1154
      %1206 = vmatprep.subr.bf16.mxu0 0
      %1207 = vmatpush1.bf16.msra.mxu0 %v1155
      %1208 = vmatprep.subr.bf16.mxu0 0
      %1209 = vmatpush1.bf16.msra.mxu0 %v1156
      %1210 = vmatprep.subr.bf16.mxu0 0
      %1211 = vmatpush1.bf16.msra.mxu0 %v1157
      %1212 = vmatprep.subr.bf16.mxu0 0
      %1213 = vmatpush1.bf16.msra.mxu0 %v1158
      %1214 = vmatprep.subr.bf16.mxu0 0
      %1215 = vmatpush1.bf16.msra.mxu0 %v1159
      %1216 = vmatprep.subr.bf16.mxu0 0
      %1217 = vmatpush1.bf16.msra.mxu0 %v1160
      %1218 = vmatprep.subr.bf16.mxu0 0
      %1219 = vmatpush1.bf16.msra.mxu0 %v1161
      %1220 = vmatprep.subr.bf16.mxu0 0
      %1221 = vmatpush1.bf16.msra.mxu0 %v1162
      %1222 = vmatprep.subr.bf16.mxu0 0
      %1223 = vmatpush1.bf16.msra.mxu0 %v1163
      %1224 = vmatprep.subr.bf16.mxu0 0
      %1225 = vmatpush1.bf16.msra.mxu0 %v1164
      %1226 = vmatprep.subr.bf16.mxu0 0
      %1227 = vmatpush1.bf16.msra.mxu0 %v1165
      %1228 = vmatprep.subr.bf16.mxu0 0
      %1229 = vmatpush1.bf16.msra.mxu0 %v1166
      %1230 = vmatprep.subr.bf16.mxu0 0
      %1231 = vmatpush1.bf16.msra.mxu0 %v1167
      %1232 = vmatprep.mubr.bf16.mxu0 %v444
      %1233 = vmatmul.mubr.bf16.gmra.mrb[0].mxu0 %v416
      %v1234 = vpop.f32.mrb[0].mxu0
      %v1235 = vadd.f32 %v994, %v1234
      %v1236 = vpop.f32.mrb[0].mxu0
      %v1237 = vpop.f32.mrb[0].mxu0
      %v1238 = vadd.f32 %v997, %v1237
      %v1239 = vpop.f32.mrb[0].mxu0
      %1240 = vmatprep.mubr.bf16.mxu0 %v456
      %1241 = vmatmul.mubr.bf16.gmra.mrb[0].mxu0 %v417
      %v1242 = vpop.f32.mrb[0].mxu0
      %v1243 = vadd.f32 %v1002, %v1242
      %v1244 = vpop.f32.mrb[0].mxu0
      %v1245 = vpop.f32.mrb[0].mxu0
      %v1246 = vadd.f32 %v1005, %v1245
      %v1247 = vpop.f32.mrb[0].mxu0
      %1248 = vmatprep.mubr.bf16.mxu0 %v468
      %1249 = vmatmul.mubr.bf16.gmra.mrb[0].mxu0 %v418
      %v1250 = vpop.f32.mrb[0].mxu0
      %v1251 = vadd.f32 %v1010, %v1250
      %v1252 = vpop.f32.mrb[0].mxu0
      %v1253 = vpop.f32.mrb[0].mxu0
      %v1254 = vadd.f32 %v1013, %v1253
      %v1255 = vpop.f32.mrb[0].mxu0
      %1256 = vmatprep.mubr.bf16.mxu0 %v480
      %1257 = vmatmul.mubr.bf16.gmra.mrb[0].mxu0 %v419
      %v1258 = vpop.f32.mrb[0].mxu0
      %v1259 = vadd.f32 %v1018, %v1258
      %v1260 = vpop.f32.mrb[0].mxu0
      %v1261 = vpop.f32.mrb[0].mxu0
      %v1262 = vadd.f32 %v1021, %v1261
      %v1263 = vpop.f32.mrb[0].mxu0
      %1264 = vmatprep.mubr.bf16.mxu0 %v492
      %1265 = vmatmul.mubr.bf16.gmra.mrb[0].mxu0 %v420
      %v1266 = vpop.f32.mrb[0].mxu0
      %v1267 = vadd.f32 %v1026, %v1266
      %v1268 = vpop.f32.mrb[0].mxu0
      %v1269 = vpop.f32.mrb[0].mxu0
      %v1270 = vadd.f32 %v1029, %v1269
      %v1271 = vpop.f32.mrb[0].mxu0
      %1272 = vmatprep.mubr.bf16.mxu0 %v504
      %1273 = vmatmul.mubr.bf16.gmra.mrb[0].mxu0 %v421
      %v1274 = vpop.f32.mrb[0].mxu0
      %v1275 = vadd.f32 %v1034, %v1274
      %v1276 = vpop.f32.mrb[0].mxu0
      %v1277 = vpop.f32.mrb[0].mxu0
      %v1278 = vadd.f32 %v1037, %v1277
      %v1279 = vpop.f32.mrb[0].mxu0
      %1280 = vmatprep.mubr.bf16.mxu0 %v516
      %1281 = vmatmul.mubr.bf16.gmra.mrb[0].mxu0 %v422
      %v1282 = vpop.f32.mrb[0].mxu0
      %v1283 = vadd.f32 %v1042, %v1282
      %v1284 = vpop.f32.mrb[0].mxu0
      %v1285 = vpop.f32.mrb[0].mxu0
      %v1286 = vadd.f32 %v1045, %v1285
      %v1287 = vpop.f32.mrb[0].mxu0
      %1288 = vmatprep.mubr.bf16.mxu0 %v528
      %1289 = vmatmul.mubr.bf16.gmra.mrb[0].mxu0 %v423
      %v1290 = vpop.f32.mrb[0].mxu0
      %v1291 = vadd.f32 %v1050, %v1290
      %v1292 = vpop.f32.mrb[0].mxu0
      %v1293 = vpop.f32.mrb[0].mxu0
      %v1294 = vadd.f32 %v1053, %v1293
      %v1295 = vpop.f32.mrb[0].mxu0
      %1296 = vdwg.mxu0
      %1297 = vmatprep.subr.bf16.mxu0 0
      %1298 = vmatpush1.bf16.msra.mxu0 %v1168
      %1299 = vmatprep.subr.bf16.mxu0 0
      %1300 = vmatpush1.bf16.msra.mxu0 %v1169
      %1301 = vmatprep.subr.bf16.mxu0 0
      %1302 = vmatpush1.bf16.msra.mxu0 %v1170
      %1303 = vmatprep.subr.bf16.mxu0 0
      %1304 = vmatpush1.bf16.msra.mxu0 %v1171
      %1305 = vmatprep.subr.bf16.mxu0 0
      %1306 = vmatpush1.bf16.msra.mxu0 %v1172
      %1307 = vmatprep.subr.bf16.mxu0 0
      %1308 = vmatpush1.bf16.msra.mxu0 %v1173
      %1309 = vmatprep.subr.bf16.mxu0 0
      %1310 = vmatpush1.bf16.msra.mxu0 %v1174
      %1311 = vmatprep.subr.bf16.mxu0 0
      %1312 = vmatpush1.bf16.msra.mxu0 %v1175
      %1313 = vmatprep.subr.bf16.mxu0 0
      %1314 = vmatpush1.bf16.msra.mxu0 0
      %1315 = vmatprep.subr.bf16.mxu0 0
      %1316 = vmatpush1.bf16.msra.mxu0 0
      %1317 = vmatprep.subr.bf16.mxu0 0
      %1318 = vmatpush1.bf16.msra.mxu0 0
      %1319 = vmatprep.subr.bf16.mxu0 0
      %1320 = vmatpush1.bf16.msra.mxu0 0
      %1321 = vmatprep.subr.bf16.mxu0 0
      %1322 = vmatpush1.bf16.msra.mxu0 0
      %1323 = vmatprep.subr.bf16.mxu0 0
      %1324 = vmatpush1.bf16.msra.mxu0 0
      %1325 = vmatprep.subr.bf16.mxu0 0
      %1326 = vmatpush1.bf16.msra.mxu0 0
      %1327 = vmatprep.subr.bf16.mxu0 0
      %1328 = vmatpush1.bf16.msra.mxu0 0
      %1329 = vmatprep.mubr.bf16.mxu0 0
      %1330 = vmatmul.mubr.bf16.gmra.mrb[0].mxu0 %v556
      %v1331 = vpop.f32.mrb[0].mxu0
      %v1332 = vadd.f32 %v1235, %v1331
      %v1333 = vpop.f32.mrb[0].mxu0
      %v1334 = vpop.f32.mrb[0].mxu0
      %v1335 = vadd.f32 %v1238, %v1334
      %v1336 = vpop.f32.mrb[0].mxu0
      %1337 = vmatprep.mubr.bf16.mxu0 0
      %1338 = vmatmul.mubr.bf16.gmra.mrb[0].mxu0 %v559
      %v1339 = vpop.f32.mrb[0].mxu0
      %v1340 = vadd.f32 %v1243, %v1339
      %v1341 = vpop.f32.mrb[0].mxu0
      %v1342 = vpop.f32.mrb[0].mxu0
      %v1343 = vadd.f32 %v1246, %v1342
      %v1344 = vpop.f32.mrb[0].mxu0
      %1345 = vmatprep.mubr.bf16.mxu0 0
      %1346 = vmatmul.mubr.bf16.gmra.mrb[0].mxu0 %v562
      %v1347 = vpop.f32.mrb[0].mxu0
      %v1348 = vadd.f32 %v1251, %v1347
      %v1349 = vpop.f32.mrb[0].mxu0
      %v1350 = vpop.f32.mrb[0].mxu0
      %v1351 = vadd.f32 %v1254, %v1350
      %v1352 = vpop.f32.mrb[0].mxu0
      %1353 = vmatprep.mubr.bf16.mxu0 0
      %1354 = vmatmul.mubr.bf16.gmra.mrb[0].mxu0 %v565
      %v1355 = vpop.f32.mrb[0].mxu0
      %v1356 = vadd.f32 %v1259, %v1355
      %v1357 = vpop.f32.mrb[0].mxu0
      %v1358 = vpop.f32.mrb[0].mxu0
      %v1359 = vadd.f32 %v1262, %v1358
      %v1360 = vpop.f32.mrb[0].mxu0
      %1361 = vmatprep.mubr.bf16.mxu0 0
      %1362 = vmatmul.mubr.bf16.gmra.mrb[0].mxu0 %v568
      %v1363 = vpop.f32.mrb[0].mxu0
      %v1364 = vadd.f32 %v1267, %v1363
      %v1365 = vpop.f32.mrb[0].mxu0
      %v1366 = vpop.f32.mrb[0].mxu0
      %v1367 = vadd.f32 %v1270, %v1366
      %v1368 = vpop.f32.mrb[0].mxu0
      %1369 = vmatprep.mubr.bf16.mxu0 0
      %1370 = vmatmul.mubr.bf16.gmra.mrb[0].mxu0 %v571
      %v1371 = vpop.f32.mrb[0].mxu0
      %v1372 = vadd.f32 %v1275, %v1371
      %v1373 = vpop.f32.mrb[0].mxu0
      %v1374 = vpop.f32.mrb[0].mxu0
      %v1375 = vadd.f32 %v1278, %v1374
      %v1376 = vpop.f32.mrb[0].mxu0
      %1377 = vmatprep.mubr.bf16.mxu0 0
      %1378 = vmatmul.mubr.bf16.gmra.mrb[0].mxu0 %v574
      %v1379 = vpop.f32.mrb[0].mxu0
      %v1380 = vadd.f32 %v1283, %v1379
      %v1381 = vpop.f32.mrb[0].mxu0
      %v1382 = vpop.f32.mrb[0].mxu0
      %v1383 = vadd.f32 %v1286, %v1382
      %v1384 = vpop.f32.mrb[0].mxu0
      %1385 = vmatprep.mubr.bf16.mxu0 0
      %1386 = vmatmul.mubr.bf16.gmra.mrb[0].mxu0 %v577
      %v1387 = vpop.f32.mrb[0].mxu0
      %v1388 = vadd.f32 %v1291, %v1387
      %v1389 = vpop.f32.mrb[0].mxu0
      %v1390 = vpop.f32.mrb[0].mxu0
      %v1391 = vadd.f32 %v1294, %v1390
      %v1392 = vpop.f32.mrb[0].mxu0
      %1393 = vdwg.mxu0
      %v1396 = vunpack.c.l.b16 %v299
      %v1397 = vunpack.c.l.b16 %v300
      %v1398 = vpack.c.b16 %v1397, %v1396
      %v1400 = vshrl.u32 %v1398, 16
      %v1402 = vrot.slane %v1400, 7
      %v1403 = vshll.u32 %v1398, 16
      %v1405 = vor.u32 %v1402, %v1403
      %v1408 = vsel %vm415, 0, %v1405
      %v1409 = vsel %vm415, %v1402, 0
      %v1411 = vshrl.u32 %v1408, 16
      %v1413 = vshll.u32 %v1408, 16
      %v1415 = vrot.slane %v1413, 1
      %v1416 = vor.u32 %v1411, %v1415
      %v1418 = vshll.u32 %v1409, 16
      %v1420 = vrot.slane %v1418, 1
      %v1421 = vsel %vm432, %v1416, %v1420
      %v1425 = vrot.slane %v1408, 1
      %v1426 = vrot.slane %v1409, 1
      %v1427 = vsel %vm553, %v1425, %v1426
      %s1429 = scalar_lea.vmem %s2, 384
      %v1430 = vld [vmem:[%s1429] sm:$0xf]
      %v1431 = vld [vmem:[%s1429 + $0x4] sm:$0xf]
      %v1432 = vld [vmem:[%s1429 + $0x8] sm:$0xf]
      %v1433 = vld [vmem:[%s1429 + $0xc] sm:$0xf]
      %v1434 = vld [vmem:[%s1429 + $0x10] sm:$0xf]
      %v1435 = vld [vmem:[%s1429 + $0x14] sm:$0xf]
      %v1436 = vld [vmem:[%s1429 + $0x18] sm:$0xf]
      %v1437 = vld [vmem:[%s1429 + $0x1c] sm:$0xf]
      %v1438 = vld [vmem:[%s1429 + $0x20] sm:$0xf]
      %v1439 = vld [vmem:[%s1429 + $0x24] sm:$0xf]
      %v1440 = vld [vmem:[%s1429 + $0x28] sm:$0xf]
      %v1441 = vld [vmem:[%s1429 + $0x2c] sm:$0xf]
      %v1442 = vld [vmem:[%s1429 + $0x30] sm:$0xf]
      %v1443 = vld [vmem:[%s1429 + $0x34] sm:$0xf]
      %v1444 = vld [vmem:[%s1429 + $0x38] sm:$0xf]
      %v1445 = vld [vmem:[%s1429 + $0x3c] sm:$0xf]
      %v1446 = vld [vmem:[%s1429 + $0x40] sm:$0xf]
      %v1447 = vld [vmem:[%s1429 + $0x44] sm:$0xf]
      %v1448 = vld [vmem:[%s1429 + $0x48] sm:$0xf]
      %v1449 = vld [vmem:[%s1429 + $0x4c] sm:$0xf]
      %v1450 = vld [vmem:[%s1429 + $0x50] sm:$0xf]
      %v1451 = vld [vmem:[%s1429 + $0x54] sm:$0xf]
      %v1452 = vld [vmem:[%s1429 + $0x58] sm:$0xf]
      %v1453 = vld [vmem:[%s1429 + $0x5c] sm:$0xf]
      %v1454 = vld [vmem:[%s1429 + $0x60] sm:$0xf]
      %v1455 = vld [vmem:[%s1429 + $0x64] sm:$0xf]
      %v1456 = vld [vmem:[%s1429 + $0x68] sm:$0xf]
      %v1457 = vld [vmem:[%s1429 + $0x6c] sm:$0xf]
      %v1458 = vld [vmem:[%s1429 + $0x70] sm:$0xf]
      %v1459 = vld [vmem:[%s1429 + $0x74] sm:$0xf]
      %v1460 = vld [vmem:[%s1429 + $0x78] sm:$0xf]
      %v1461 = vld [vmem:[%s1429 + $0x7c] sm:$0xf]
      %v1462 = vld [vmem:[%s1429 + $0x80] sm:$0xf]
      %v1463 = vld [vmem:[%s1429 + $0x84] sm:$0xf]
      %v1464 = vld [vmem:[%s1429 + $0x88] sm:$0xf]
      %v1465 = vld [vmem:[%s1429 + $0x8c] sm:$0xf]
      %v1466 = vld [vmem:[%s1429 + $0x90] sm:$0xf]
      %v1467 = vld [vmem:[%s1429 + $0x94] sm:$0xf]
      %v1468 = vld [vmem:[%s1429 + $0x98] sm:$0xf]
      %v1469 = vld [vmem:[%s1429 + $0x9c] sm:$0xf]
      %v1470 = vld [vmem:[%s1429 + $0xa0] sm:$0xf]
      %v1471 = vld [vmem:[%s1429 + $0xa4] sm:$0xf]
      %v1472 = vld [vmem:[%s1429 + $0xa8] sm:$0xf]
      %v1473 = vld [vmem:[%s1429 + $0xac] sm:$0xf]
      %v1474 = vld [vmem:[%s1429 + $0xb0] sm:$0xf]
      %v1475 = vld [vmem:[%s1429 + $0xb4] sm:$0xf]
      %v1476 = vld [vmem:[%s1429 + $0xb8] sm:$0xf]
      %v1477 = vld [vmem:[%s1429 + $0xbc] sm:$0xf]
      %v1526 = vunpack.c.l.b16 %v1430
      %v1527 = vunpack.c.l.b16 %v1431
      %v1528 = vunpack.c.l.b16 %v1432
      %v1529 = vunpack.c.l.b16 %v1433
      %v1530 = vunpack.c.l.b16 %v1434
      %v1531 = vunpack.c.l.b16 %v1435
      %v1532 = vunpack.c.l.b16 %v1436
      %v1533 = vunpack.c.l.b16 %v1437
      %v1534 = vunpack.c.l.b16 %v1438
      %v1535 = vunpack.c.l.b16 %v1439
      %v1536 = vunpack.c.l.b16 %v1440
      %v1537 = vunpack.c.l.b16 %v1441
      %v1538 = vunpack.c.l.b16 %v1442
      %v1539 = vunpack.c.l.b16 %v1443
      %v1540 = vunpack.c.l.b16 %v1444
      %v1541 = vunpack.c.l.b16 %v1445
      %v1542 = vunpack.c.l.b16 %v1446
      %v1543 = vunpack.c.l.b16 %v1447
      %v1544 = vunpack.c.l.b16 %v1448
      %v1545 = vunpack.c.l.b16 %v1449
      %v1546 = vunpack.c.l.b16 %v1450
      %v1547 = vunpack.c.l.b16 %v1451
      %v1548 = vunpack.c.l.b16 %v1452
      %v1549 = vunpack.c.l.b16 %v1453
      %v1550 = vunpack.c.l.b16 %v1454
      %v1551 = vunpack.c.l.b16 %v1455
      %v1552 = vunpack.c.l.b16 %v1456
      %v1553 = vunpack.c.l.b16 %v1457
      %v1554 = vunpack.c.l.b16 %v1458
      %v1555 = vunpack.c.l.b16 %v1459
      %v1556 = vunpack.c.l.b16 %v1460
      %v1557 = vunpack.c.l.b16 %v1461
      %v1558 = vunpack.c.l.b16 %v1462
      %v1559 = vunpack.c.l.b16 %v1463
      %v1560 = vunpack.c.l.b16 %v1464
      %v1561 = vunpack.c.l.b16 %v1465
      %v1562 = vunpack.c.l.b16 %v1466
      %v1563 = vunpack.c.l.b16 %v1467
      %v1564 = vunpack.c.l.b16 %v1468
      %v1565 = vunpack.c.l.b16 %v1469
      %v1566 = vunpack.c.l.b16 %v1470
      %v1567 = vunpack.c.l.b16 %v1471
      %v1568 = vunpack.c.l.b16 %v1472
      %v1569 = vunpack.c.l.b16 %v1473
      %v1570 = vunpack.c.l.b16 %v1474
      %v1571 = vunpack.c.l.b16 %v1475
      %v1572 = vunpack.c.l.b16 %v1476
      %v1573 = vunpack.c.l.b16 %v1477
      %v1574 = vpack.c.b16 %v1527, %v1526
      %v1575 = vpack.c.b16 %v1529, %v1528
      %v1576 = vpack.c.b16 %v1531, %v1530
      %v1577 = vpack.c.b16 %v1533, %v1532
      %v1578 = vpack.c.b16 %v1535, %v1534
      %v1579 = vpack.c.b16 %v1537, %v1536
      %v1580 = vpack.c.b16 %v1539, %v1538
      %v1581 = vpack.c.b16 %v1541, %v1540
      %v1582 = vpack.c.b16 %v1543, %v1542
      %v1583 = vpack.c.b16 %v1545, %v1544
      %v1584 = vpack.c.b16 %v1547, %v1546
      %v1585 = vpack.c.b16 %v1549, %v1548
      %v1586 = vpack.c.b16 %v1551, %v1550
      %v1587 = vpack.c.b16 %v1553, %v1552
      %v1588 = vpack.c.b16 %v1555, %v1554
      %v1589 = vpack.c.b16 %v1557, %v1556
      %v1590 = vpack.c.b16 %v1559, %v1558
      %v1591 = vpack.c.b16 %v1561, %v1560
      %v1592 = vpack.c.b16 %v1563, %v1562
      %v1593 = vpack.c.b16 %v1565, %v1564
      %v1594 = vpack.c.b16 %v1567, %v1566
      %v1595 = vpack.c.b16 %v1569, %v1568
      %v1596 = vpack.c.b16 %v1571, %v1570
      %v1597 = vpack.c.b16 %v1573, %v1572
      %1622 = vmatprep.subr.bf16.mxu0 0
      %1623 = vmatpush1.bf16.msra.mxu0 %v1574
      %1624 = vmatprep.subr.bf16.mxu0 0
      %1625 = vmatpush1.bf16.msra.mxu0 %v1575
      %1626 = vmatprep.subr.bf16.mxu0 0
      %1627 = vmatpush1.bf16.msra.mxu0 %v1576
      %1628 = vmatprep.subr.bf16.mxu0 0
      %1629 = vmatpush1.bf16.msra.mxu0 %v1577
      %1630 = vmatprep.subr.bf16.mxu0 0
      %1631 = vmatpush1.bf16.msra.mxu0 %v1578
      %1632 = vmatprep.subr.bf16.mxu0 0
      %1633 = vmatpush1.bf16.msra.mxu0 %v1579
      %1634 = vmatprep.subr.bf16.mxu0 0
      %1635 = vmatpush1.bf16.msra.mxu0 %v1580
      %1636 = vmatprep.subr.bf16.mxu0 0
      %1637 = vmatpush1.bf16.msra.mxu0 %v1581
      %1638 = vmatprep.subr.bf16.mxu0 0
      %1639 = vmatpush1.bf16.msra.mxu0 %v1582
      %1640 = vmatprep.subr.bf16.mxu0 0
      %1641 = vmatpush1.bf16.msra.mxu0 %v1583
      %1642 = vmatprep.subr.bf16.mxu0 0
      %1643 = vmatpush1.bf16.msra.mxu0 %v1584
      %1644 = vmatprep.subr.bf16.mxu0 0
      %1645 = vmatpush1.bf16.msra.mxu0 %v1585
      %1646 = vmatprep.subr.bf16.mxu0 0
      %1647 = vmatpush1.bf16.msra.mxu0 %v1586
      %1648 = vmatprep.subr.bf16.mxu0 0
      %1649 = vmatpush1.bf16.msra.mxu0 %v1587
      %1650 = vmatprep.subr.bf16.mxu0 0
      %1651 = vmatpush1.bf16.msra.mxu0 %v1588
      %1652 = vmatprep.subr.bf16.mxu0 0
      %1653 = vmatpush1.bf16.msra.mxu0 %v1589
      %1654 = vmatprep.mubr.bf16.mxu0 %v468
      %1655 = vmatmul.mubr.bf16.gmra.mrb[0].mxu0 %v418
      %v1656 = vpop.f32.mrb[0].mxu0
      %v1657 = vadd.f32 0.0, %v1656
      %v1658 = vpop.f32.mrb[0].mxu0
      %v1659 = vpop.f32.mrb[0].mxu0
      %v1660 = vadd.f32 0.0, %v1659
      %v1661 = vpop.f32.mrb[0].mxu0
      %1662 = vmatprep.mubr.bf16.mxu0 %v480
      %1663 = vmatmul.mubr.bf16.gmra.mrb[0].mxu0 %v419
      %v1664 = vpop.f32.mrb[0].mxu0
      %v1665 = vadd.f32 0.0, %v1664
      %v1666 = vpop.f32.mrb[0].mxu0
      %v1667 = vpop.f32.mrb[0].mxu0
      %v1668 = vadd.f32 0.0, %v1667
      %v1669 = vpop.f32.mrb[0].mxu0
      %1670 = vmatprep.mubr.bf16.mxu0 %v492
      %1671 = vmatmul.mubr.bf16.gmra.mrb[0].mxu0 %v420
      %v1672 = vpop.f32.mrb[0].mxu0
      %v1673 = vadd.f32 0.0, %v1672
      %v1674 = vpop.f32.mrb[0].mxu0
      %v1675 = vpop.f32.mrb[0].mxu0
      %v1676 = vadd.f32 0.0, %v1675
      %v1677 = vpop.f32.mrb[0].mxu0
      %1678 = vmatprep.mubr.bf16.mxu0 %v504
      %1679 = vmatmul.mubr.bf16.gmra.mrb[0].mxu0 %v421
      %v1680 = vpop.f32.mrb[0].mxu0
      %v1681 = vadd.f32 0.0, %v1680
      %v1682 = vpop.f32.mrb[0].mxu0
      %v1683 = vpop.f32.mrb[0].mxu0
      %v1684 = vadd.f32 0.0, %v1683
      %v1685 = vpop.f32.mrb[0].mxu0
      %1686 = vmatprep.mubr.bf16.mxu0 %v516
      %1687 = vmatmul.mubr.bf16.gmra.mrb[0].mxu0 %v422
      %v1688 = vpop.f32.mrb[0].mxu0
      %v1689 = vadd.f32 0.0, %v1688
      %v1690 = vpop.f32.mrb[0].mxu0
      %v1691 = vpop.f32.mrb[0].mxu0
      %v1692 = vadd.f32 0.0, %v1691
      %v1693 = vpop.f32.mrb[0].mxu0
      %1694 = vmatprep.mubr.bf16.mxu0 %v528
      %1695 = vmatmul.mubr.bf16.gmra.mrb[0].mxu0 %v423
      %v1696 = vpop.f32.mrb[0].mxu0
      %v1697 = vadd.f32 0.0, %v1696
      %v1698 = vpop.f32.mrb[0].mxu0
      %v1699 = vpop.f32.mrb[0].mxu0
      %v1700 = vadd.f32 0.0, %v1699
      %v1701 = vpop.f32.mrb[0].mxu0
      %1702 = vmatprep.mubr.bf16.mxu0 %v661
      %1703 = vmatmul.mubr.bf16.gmra.mrb[0].mxu0 %v648
      %v1704 = vpop.f32.mrb[0].mxu0
      %v1705 = vadd.f32 0.0, %v1704
      %v1706 = vpop.f32.mrb[0].mxu0
      %v1707 = vpop.f32.mrb[0].mxu0
      %v1708 = vadd.f32 0.0, %v1707
      %v1709 = vpop.f32.mrb[0].mxu0
      %1710 = vmatprep.mubr.bf16.mxu0 %v1421
      %1711 = vmatmul.mubr.bf16.gmra.mrb[0].mxu0 %v1408
      %v1712 = vpop.f32.mrb[0].mxu0
      %v1713 = vadd.f32 0.0, %v1712
      %v1714 = vpop.f32.mrb[0].mxu0
      %v1715 = vpop.f32.mrb[0].mxu0
      %v1716 = vadd.f32 0.0, %v1715
      %v1717 = vpop.f32.mrb[0].mxu0
      %1718 = vdwg.mxu0
      %1719 = vmatprep.subr.bf16.mxu0 0
      %1720 = vmatpush1.bf16.msra.mxu0 %v1590
      %1721 = vmatprep.subr.bf16.mxu0 0
      %1722 = vmatpush1.bf16.msra.mxu0 %v1591
      %1723 = vmatprep.subr.bf16.mxu0 0
      %1724 = vmatpush1.bf16.msra.mxu0 %v1592
      %1725 = vmatprep.subr.bf16.mxu0 0
      %1726 = vmatpush1.bf16.msra.mxu0 %v1593
      %1727 = vmatprep.subr.bf16.mxu0 0
      %1728 = vmatpush1.bf16.msra.mxu0 %v1594
      %1729 = vmatprep.subr.bf16.mxu0 0
      %1730 = vmatpush1.bf16.msra.mxu0 %v1595
      %1731 = vmatprep.subr.bf16.mxu0 0
      %1732 = vmatpush1.bf16.msra.mxu0 %v1596
      %1733 = vmatprep.subr.bf16.mxu0 0
      %1734 = vmatpush1.bf16.msra.mxu0 %v1597
      %1735 = vmatprep.subr.bf16.mxu0 0
      %1736 = vmatpush1.bf16.msra.mxu0 0
      %1737 = vmatprep.subr.bf16.mxu0 0
      %1738 = vmatpush1.bf16.msra.mxu0 0
      %1739 = vmatprep.subr.bf16.mxu0 0
      %1740 = vmatpush1.bf16.msra.mxu0 0
      %1741 = vmatprep.subr.bf16.mxu0 0
      %1742 = vmatpush1.bf16.msra.mxu0 0
      %1743 = vmatprep.subr.bf16.mxu0 0
      %1744 = vmatpush1.bf16.msra.mxu0 0
      %1745 = vmatprep.subr.bf16.mxu0 0
      %1746 = vmatpush1.bf16.msra.mxu0 0
      %1747 = vmatprep.subr.bf16.mxu0 0
      %1748 = vmatpush1.bf16.msra.mxu0 0
      %1749 = vmatprep.subr.bf16.mxu0 0
      %1750 = vmatpush1.bf16.msra.mxu0 0
      %1751 = vmatprep.mubr.bf16.mxu0 0
      %1752 = vmatmul.mubr.bf16.gmra.mrb[0].mxu0 %v562
      %v1753 = vpop.f32.mrb[0].mxu0
      %v1754 = vadd.f32 %v1657, %v1753
      %v1755 = vpop.f32.mrb[0].mxu0
      %v1756 = vpop.f32.mrb[0].mxu0
      %v1757 = vadd.f32 %v1660, %v1756
      %v1758 = vpop.f32.mrb[0].mxu0
      %1759 = vmatprep.mubr.bf16.mxu0 0
      %1760 = vmatmul.mubr.bf16.gmra.mrb[0].mxu0 %v565
      %v1761 = vpop.f32.mrb[0].mxu0
      %v1762 = vadd.f32 %v1665, %v1761
      %v1763 = vpop.f32.mrb[0].mxu0
      %v1764 = vpop.f32.mrb[0].mxu0
      %v1765 = vadd.f32 %v1668, %v1764
      %v1766 = vpop.f32.mrb[0].mxu0
      %1767 = vmatprep.mubr.bf16.mxu0 0
      %1768 = vmatmul.mubr.bf16.gmra.mrb[0].mxu0 %v568
      %v1769 = vpop.f32.mrb[0].mxu0
      %v1770 = vadd.f32 %v1673, %v1769
      %v1771 = vpop.f32.mrb[0].mxu0
      %v1772 = vpop.f32.mrb[0].mxu0
      %v1773 = vadd.f32 %v1676, %v1772
      %v1774 = vpop.f32.mrb[0].mxu0
      %1775 = vmatprep.mubr.bf16.mxu0 0
      %1776 = vmatmul.mubr.bf16.gmra.mrb[0].mxu0 %v571
      %v1777 = vpop.f32.mrb[0].mxu0
      %v1778 = vadd.f32 %v1681, %v1777
      %v1779 = vpop.f32.mrb[0].mxu0
      %v1780 = vpop.f32.mrb[0].mxu0
      %v1781 = vadd.f32 %v1684, %v1780
      %v1782 = vpop.f32.mrb[0].mxu0
      %1783 = vmatprep.mubr.bf16.mxu0 0
      %1784 = vmatmul.mubr.bf16.gmra.mrb[0].mxu0 %v574
      %v1785 = vpop.f32.mrb[0].mxu0
      %v1786 = vadd.f32 %v1689, %v1785
      %v1787 = vpop.f32.mrb[0].mxu0
      %v1788 = vpop.f32.mrb[0].mxu0
      %v1789 = vadd.f32 %v1692, %v1788
      %v1790 = vpop.f32.mrb[0].mxu0
      %1791 = vmatprep.mubr.bf16.mxu0 0
      %1792 = vmatmul.mubr.bf16.gmra.mrb[0].mxu0 %v577
      %v1793 = vpop.f32.mrb[0].mxu0
      %v1794 = vadd.f32 %v1697, %v1793
      %v1795 = vpop.f32.mrb[0].mxu0
      %v1796 = vpop.f32.mrb[0].mxu0
      %v1797 = vadd.f32 %v1700, %v1796
      %v1798 = vpop.f32.mrb[0].mxu0
      %1799 = vmatprep.mubr.bf16.mxu0 0
      %1800 = vmatmul.mubr.bf16.gmra.mrb[0].mxu0 %v667
      %v1801 = vpop.f32.mrb[0].mxu0
      %v1802 = vadd.f32 %v1705, %v1801
      %v1803 = vpop.f32.mrb[0].mxu0
      %v1804 = vpop.f32.mrb[0].mxu0
      %v1805 = vadd.f32 %v1708, %v1804
      %v1806 = vpop.f32.mrb[0].mxu0
      %1807 = vmatprep.mubr.bf16.mxu0 0
      %1808 = vmatmul.mubr.bf16.gmra.mrb[0].mxu0 %v1427
      %v1809 = vpop.f32.mrb[0].mxu0
      %v1810 = vadd.f32 %v1713, %v1809
      %v1811 = vpop.f32.mrb[0].mxu0
      %v1812 = vpop.f32.mrb[0].mxu0
      %v1813 = vadd.f32 %v1716, %v1812
      %v1814 = vpop.f32.mrb[0].mxu0
      %1815 = vdwg.mxu0
      %v1816 = vadd.f32 %v1332, %v1754
      %v1817 = vadd.f32 %v1335, %v1757
      %v1818 = vadd.f32 %v1340, %v1762
      %v1819 = vadd.f32 %v1343, %v1765
      %v1820 = vadd.f32 %v1348, %v1770
      %v1821 = vadd.f32 %v1351, %v1773
      %v1822 = vadd.f32 %v1356, %v1778
      %v1823 = vadd.f32 %v1359, %v1781
      %v1824 = vadd.f32 %v1364, %v1786
      %v1825 = vadd.f32 %v1367, %v1789
      %v1826 = vadd.f32 %v1372, %v1794
      %v1827 = vadd.f32 %v1375, %v1797
      %v1828 = vadd.f32 %v1380, %v1802
      %v1829 = vadd.f32 %v1383, %v1805
      %v1830 = vadd.f32 %v1388, %v1810
      %v1831 = vadd.f32 %v1391, %v1813
      %v1832 = vld [vmem:[%s3] sm:$0x1]
      %v1834 = vlaneseq
      %v1835 = vshrl.u32 %v1834, 7
      %v1836 = vsub.s32 0, %v1835
      %v1837 = vrot.slane %v1832, %v1836
      %v1839 = vadd.f32 %v1816, %v1837
      %v1840 = vadd.f32 %v1817, %v1837
      %v1841 = vadd.f32 %v1818, %v1837
      %v1842 = vadd.f32 %v1819, %v1837
      %v1843 = vadd.f32 %v1820, %v1837
      %v1844 = vadd.f32 %v1821, %v1837
      %v1845 = vadd.f32 %v1822, %v1837
      %v1846 = vadd.f32 %v1823, %v1837
      %v1847 = vadd.f32 %v1824, %v1837
      %v1848 = vadd.f32 %v1825, %v1837
      %v1849 = vadd.f32 %v1826, %v1837
      %v1850 = vadd.f32 %v1827, %v1837
      %v1851 = vadd.f32 %v1828, %v1837
      %v1852 = vadd.f32 %v1829, %v1837
      %v1853 = vadd.f32 %v1830, %v1837
      %v1854 = vadd.f32 %v1831, %v1837
      %v1855 = vmax.f32 %v1839, 0.0
      %v1856 = vmax.f32 %v1840, 0.0
      %v1857 = vmax.f32 %v1841, 0.0
      %v1858 = vmax.f32 %v1842, 0.0
      %v1859 = vmax.f32 %v1843, 0.0
      %v1860 = vmax.f32 %v1844, 0.0
      %v1861 = vmax.f32 %v1845, 0.0
      %v1862 = vmax.f32 %v1846, 0.0
      %v1863 = vmax.f32 %v1847, 0.0
      %v1864 = vmax.f32 %v1848, 0.0
      %v1865 = vmax.f32 %v1849, 0.0
      %v1866 = vmax.f32 %v1850, 0.0
      %v1867 = vmax.f32 %v1851, 0.0
      %v1868 = vmax.f32 %v1852, 0.0
      %v1869 = vmax.f32 %v1853, 0.0
      %v1870 = vmax.f32 %v1854, 0.0
      %v1871 = vmax.f32 %v1855, %v1857
      %v1872 = vmax.f32 %v1856, %v1858
      %v1873 = vmax.f32 %v1859, %v1861
      %v1874 = vmax.f32 %v1860, %v1862
      %v1875 = vmax.f32 %v1863, %v1865
      %v1876 = vmax.f32 %v1864, %v1866
      %v1877 = vmax.f32 %v1867, %v1869
      %v1878 = vmax.f32 %v1868, %v1870
      %1879 = vst [vmem:[#allocation2] sm:$0xff] %v1871
      %1880 = vst [vmem:[#allocation2 + $0x8] sm:$0xff] %v1872
      %1881 = vst [vmem:[#allocation2 + $0x10] sm:$0xff] %v1873
      %1882 = vst [vmem:[#allocation2 + $0x18] sm:$0xff] %v1874
      %1883 = vst [vmem:[#allocation2 + $0x20] sm:$0xff] %v1875
      %1884 = vst [vmem:[#allocation2 + $0x28] sm:$0xff] %v1876
      %1885 = vst [vmem:[#allocation2 + $0x30] sm:$0xff] %v1877
      %1886 = vst [vmem:[#allocation2 + $0x38] sm:$0xff] %v1878
      %v1887 = vld [vmem:[#allocation2] ss:$2 sm:$0xff]
      %s1888 = scalar_lea.vmem [#allocation2], 16
      %v1889 = vld [vmem:[%s1888] ss:$2 sm:$0xff]
      %s1890 = scalar_lea.vmem [#allocation2], 32
      %v1891 = vld [vmem:[%s1890] ss:$2 sm:$0xff]
      %s1892 = scalar_lea.vmem [#allocation2], 48
      %v1893 = vld [vmem:[%s1892] ss:$2 sm:$0xff]
      %s1894 = scalar_lea.vmem [#allocation2], 1
      %v1895 = vld [vmem:[%s1894] ss:$2 sm:$0xff]
      %s1896 = scalar_lea.vmem [#allocation2], 17
      %v1897 = vld [vmem:[%s1896] ss:$2 sm:$0xff]
      %s1898 = scalar_lea.vmem [#allocation2], 33
      %v1899 = vld [vmem:[%s1898] ss:$2 sm:$0xff]
      %s1900 = scalar_lea.vmem [#allocation2], 49
      %v1901 = vld [vmem:[%s1900] ss:$2 sm:$0xff]
      %v1902 = vmax.f32 %v1887, %v1895
      %v1903 = vmax.f32 %v1889, %v1897
      %v1904 = vmax.f32 %v1891, %v1899
      %v1905 = vmax.f32 %v1893, %v1901
      %v1906 = vpack.c.bf16 %v1902, %v1902
      %v1907 = vpack.c.bf16 %v1903, %v1903
      %v1908 = vpack.c.bf16 %v1904, %v1904
      %v1909 = vpack.c.bf16 %v1905, %v1905
      %1910 = vst [vmem:[%s277] sm:$0xf] %v1906
      %1911 = vst [vmem:[%s277 + $0x4] sm:$0xf] %v1907
      %1912 = vst [vmem:[%s277 + $0x8] sm:$0xf] %v1908
      %1913 = vst [vmem:[%s277 + $0xc] sm:$0xf] %v1909
      %s1914 = smul.u32 4, %s20
      %p1915 = scmp.lt.s32.totalorder %s19, 1
      %s1916 = scalar_select %p1915, %s19, 1
      %p1917 = scmp.lt.s32.totalorder %s1914, 7
      %s1918 = scalar_select %p1917, %s1914, 7
      %s1919 = smul.addr %s1916, 8
      %s1920 = sadd.s32 %s1918, %s1919
      %s1921 = smul.addr %s1920, 4
      %s1922 = scalar_lea.vmem %s4, %s1921
      // Predicated region
      $region37: #{_lambda_.5} parent=35 // pred_check
        %p1923 = pneg %p145
      $region38: #{_lambda_.5} parent=35 // pred_check_branch
        %1925 = sbr.rel (%p1923) target = $region40
      $region39: #{_lambda_.5} parent=35 // pred_region
        %s1926 = smul.u32 4, %s20
      $region40: #{_lambda_.5} parent=35 // pred_fallthru
        _
    $region36: #{_lambda_.5} parent=5 // pred_fallthru
      _
    %p1927 = scmp.le.s32.totalorder 2, %s10
    // Predicated region
    $region41: #{_lambda_.5} parent=5 // pred_check
      %p1928 = pneg %p1927
    $region42: #{_lambda_.5} parent=5 // pred_check_branch
      %1930 = sbr.rel (%p1928) target = $region44
    $region43: #{_lambda_.5} parent=5 // pred_region
      %s1931 = ssub.s32 %s10, 2
      // Predicated region
      $region45: #{_lambda_.5} parent=43 // pred_check
        %p1932 = pneg %p151
      $region46: #{_lambda_.5} parent=43 // pred_check_branch
        %1934 = sbr.rel (%p1932) target = $region48
      $region47: #{_lambda_.5} parent=43 // pred_region
        %s1935 = smul.u32 4, %s22
        %p1936 = scmp.lt.s32.totalorder %s21, 1
        %s1937 = scalar_select %p1936, %s21, 1
        %p1938 = scmp.lt.s32.totalorder %s1935, 7
        %s1939 = scalar_select %p1938, %s1935, 7
        %s1940 = smul.addr %s1937, 8
        %s1941 = sadd.s32 %s1939, %s1940
        %s1942 = smul.addr %s1941, 4
        %s1943 = scalar_lea.vmem %s4, %s1942
      $region48: #{_lambda_.5} parent=43 // pred_fallthru
        _
    $region44: #{_lambda_.5} parent=5 // pred_fallthru
      _
  $region6: #{_lambda_.5} parent=0 // loop_footer
    %s14 = sadd.s32 1, %s10
  $region7: #{_lambda_.5} parent=0 // loop_footer_branch
    %9 = sbr.rel target = $region3
  $region8: #{_lambda_.5} parent=0 // loop_exit
    _

// kernel: _lambda_.4
$region0: #{_lambda_.4}
  #allocation0 [shape = 'u32[]', space=smem, size = 0x4, offset = 0x4, fixed_abs, tag = 'smem constant byte address 0x4 - core index']
  #allocation1 [shape = 'u32[144,128]{1,0:T(1,128)}', space=vmem, size = 0x12000, scoped, tag = 'internal scratch']
  %s0 = inlined_call_operand.vmem [shape: bf16[2,16,16,128], index: 0, kind: input, shape index: {}]
  %s1 = inlined_call_operand.vmem [shape: bf16[2,4,16,128], index: 1, kind: input, shape index: {}]
  %s2 = inlined_call_operand.vmem [shape: bf16[3,384,128], index: 2, kind: input, shape index: {}]
  %s3 = inlined_call_operand.vmem [shape: f32[1,128], index: 3, kind: input, shape index: {}]
  %s4 = inlined_call_operand.vmem [shape: bf16[2,16,16,128], index: 4, kind: output, shape index: {}]
  %s5 = sld [smem:[#allocation0]]
  $region49: #{_lambda_.4} parent=0
    _
  %s7 = ssub.s32 1, %s5
  %s8 = scalar_select 0, %s7, %s5
  loop: start=0, step=1, limit=6
  $region2: #{_lambda_.4} parent=0 // loop_pre_header
    _
  $region3: #{_lambda_.4} parent=0 // loop_header
    %s10 = sphi 0, %s14
    %p11 = scmp.ge.s32.totalorder %s10, 6
    %s17 = sphi 0, %s29
    %s18 = sphi 0, %s25
    %s19 = sphi 0, %s17
    %s20 = sphi 0, %s18
    %s21 = sphi 0, %s19
    %s22 = sphi 0, %s20
    %s34 = sphi 0, %s36
    %s37 = sphi 0, %s34
    %s38 = sphi 0, %s37
    %s54 = sphi 0, %s38
    %s62 = sphi 0, %s64
    %s65 = sphi 0, %s62
    %s66 = sphi 0, %s65
    %s82 = sphi 0, %s66
    %s86 = sphi 0, %s86
    %s88 = sphi 0, %s86
    %s89 = sphi 0, %s88
    %s103 = sphi 0, %s89
    %s107 = sphi 0, %s107
    %s109 = sphi 0, %s107
    %s110 = sphi 0, %s109
    %s124 = sphi 0, %s110
    %s132 = sphi 0, %s134
    %s135 = sphi 0, %s132
    %s136 = sphi 0, %s135
    %s152 = sphi 0, %s136
  $region4: #{_lambda_.4} parent=0 // loop_header_branch
    %13 = sbr.rel (%p11) target = $region8
  $region5: #{_lambda_.4} parent=0 // loop_body
    %s15 = ssub.s32 %s10, 1
    %s16 = ssub.s32 %s10, 2
    %s23 = sadd.s32 1, %s18
    %p24 = scmp.ge.s32.totalorder %s23, 2
    %s25 = scalar_select %p24, 0, %s23
    %s26 = sadd.s32 1, %s17
    %s27 = scalar_select %p24, %s26, %s17
    %p28 = scmp.ge.s32.totalorder %s27, 2
    %s29 = scalar_select %p28, 0, %s27
    %s30 = ssub.s32 %s17, %s29
    %s31 = ssub.s32 %s18, %s25
    %s32 = sor.u32 %s30, %s31
    %p33 = scmp.eq.s32.totalorder %s32, 0
    %s35 = sadd.s32 %s34, 1
    %s36 = scalar_select %p33, %s34, %s35
    %p39 = pneg %p33
    %p40 = scmp.eq.s32.totalorder %s10, 3
    %p41 = por %p39, %p40
    %p42 = scmp.ne.s32.totalorder %s34, %s37
    %p43 = scmp.eq.s32.totalorder %s10, 0
    %p44 = por %p42, %p43
    %p45 = scmp.ne.s32.totalorder %s34, %s37
    %p46 = scmp.eq.s32.totalorder %s15, 3
    %p47 = por %p45, %p46
    %p48 = scmp.ne.s32.totalorder %s37, %s38
    %p49 = scmp.eq.s32.totalorder %s15, 0
    %p50 = por %p48, %p49
    %p51 = scmp.ne.s32.totalorder %s37, %s38
    %p52 = scmp.eq.s32.totalorder %s16, 3
    %p53 = por %p51, %p52
    %p55 = scmp.ne.s32.totalorder %s38, %s54
    %p56 = scmp.eq.s32.totalorder %s16, 0
    %p57 = por %p55, %p56
    %s58 = ssub.s32 %s17, %s29
    %s59 = ssub.s32 %s18, %s25
    %s60 = sor.u32 %s58, %s59
    %p61 = scmp.eq.s32.totalorder %s60, 0
    %s63 = sadd.s32 %s62, 1
    %s64 = scalar_select %p61, %s62, %s63
    %p67 = pneg %p61
    %p68 = scmp.eq.s32.totalorder %s10, 3
    %p69 = por %p67, %p68
    %p70 = scmp.ne.s32.totalorder %s62, %s65
    %p71 = scmp.eq.s32.totalorder %s10, 0
    %p72 = por %p70, %p71
    %p73 = scmp.ne.s32.totalorder %s62, %s65
    %p74 = scmp.eq.s32.totalorder %s15, 3
    %p75 = por %p73, %p74
    %p76 = scmp.ne.s32.totalorder %s65, %s66
    %p77 = scmp.eq.s32.totalorder %s15, 0
    %p78 = por %p76, %p77
    %p79 = scmp.ne.s32.totalorder %s65, %s66
    %p80 = scmp.eq.s32.totalorder %s16, 3
    %p81 = por %p79, %p80
    %p83 = scmp.ne.s32.totalorder %s66, %s82
    %p84 = scmp.eq.s32.totalorder %s16, 0
    %p85 = por %p83, %p84
    %s87 = sadd.s32 %s86, 1
    %p90 = scmp.eq.s32.totalorder %s10, 3
    %p91 = scmp.ne.s32.totalorder %s86, %s88
    %p92 = scmp.eq.s32.totalorder %s10, 0
    %p93 = por %p91, %p92
    %p94 = scmp.ne.s32.totalorder %s86, %s88
    %p95 = scmp.eq.s32.totalorder %s15, 3
    %p96 = por %p94, %p95
    %p97 = scmp.ne.s32.totalorder %s88, %s89
    %p98 = scmp.eq.s32.totalorder %s15, 0
    %p99 = por %p97, %p98
    %p100 = scmp.ne.s32.totalorder %s88, %s89
    %p101 = scmp.eq.s32.totalorder %s16, 3
    %p102 = por %p100, %p101
    %p104 = scmp.ne.s32.totalorder %s89, %s103
    %p105 = scmp.eq.s32.totalorder %s16, 0
    %p106 = por %p104, %p105
    %s108 = sadd.s32 %s107, 1
    %p111 = scmp.eq.s32.totalorder %s10, 3
    %p112 = scmp.ne.s32.totalorder %s107, %s109
    %p113 = scmp.eq.s32.totalorder %s10, 0
    %p114 = por %p112, %p113
    %p115 = scmp.ne.s32.totalorder %s107, %s109
    %p116 = scmp.eq.s32.totalorder %s15, 3
    %p117 = por %p115, %p116
    %p118 = scmp.ne.s32.totalorder %s109, %s110
    %p119 = scmp.eq.s32.totalorder %s15, 0
    %p120 = por %p118, %p119
    %p121 = scmp.ne.s32.totalorder %s109, %s110
    %p122 = scmp.eq.s32.totalorder %s16, 3
    %p123 = por %p121, %p122
    %p125 = scmp.ne.s32.totalorder %s110, %s124
    %p126 = scmp.eq.s32.totalorder %s16, 0
    %p127 = por %p125, %p126
    %s128 = ssub.s32 %s17, %s29
    %s129 = ssub.s32 %s18, %s25
    %s130 = sor.u32 %s128, %s129
    %p131 = scmp.eq.s32.totalorder %s130, 0
    %s133 = sadd.s32 %s132, 1
    %s134 = scalar_select %p131, %s132, %s133
    %p137 = pneg %p131
    %p138 = scmp.eq.s32.totalorder %s10, 3
    %p139 = por %p137, %p138
    %p140 = scmp.ne.s32.totalorder %s132, %s135
    %p141 = scmp.eq.s32.totalorder %s10, 0
    %p142 = por %p140, %p141
    %p143 = scmp.ne.s32.totalorder %s132, %s135
    %p144 = scmp.eq.s32.totalorder %s15, 3
    %p145 = por %p143, %p144
    %p146 = scmp.ne.s32.totalorder %s135, %s136
    %p147 = scmp.eq.s32.totalorder %s15, 0
    %p148 = por %p146, %p147
    %p149 = scmp.ne.s32.totalorder %s135, %s136
    %p150 = scmp.eq.s32.totalorder %s16, 3
    %p151 = por %p149, %p150
    %p153 = scmp.ne.s32.totalorder %s136, %s152
    %p154 = scmp.eq.s32.totalorder %s16, 0
    %p155 = por %p153, %p154
    %p156 = scmp.le.s32.totalorder 1, %s10
    %p157 = scmp.lt.s32.totalorder %s10, 5
    %p158 = pnand %p156, %p157
    %p159 = pneg %p158
    // Predicated region
    $region9: #{_lambda_.4} parent=5 // pred_check
      _
    $region10: #{_lambda_.4} parent=5 // pred_check_branch
      %161 = sbr.rel (%p158) target = $region12
    $region11: #{_lambda_.4} parent=5 // pred_region
      %s162 = ssub.s32 %s10, 1
      // Predicated region
      $region13: #{_lambda_.4} parent=11 // pred_check
        %p163 = pneg %p99
      $region14: #{_lambda_.4} parent=11 // pred_check_branch
        %165 = sbr.rel (%p163) target = $region16
      $region15: #{_lambda_.4} parent=11 // pred_region
        _
      $region16: #{_lambda_.4} parent=11 // pred_fallthru
        _
      // Predicated region
      $region17: #{_lambda_.4} parent=11 // pred_check
        %p166 = pneg %p120
      $region18: #{_lambda_.4} parent=11 // pred_check_branch
        %168 = sbr.rel (%p166) target = $region20
      $region19: #{_lambda_.4} parent=11 // pred_region
        _
      $region20: #{_lambda_.4} parent=11 // pred_fallthru
        _
    $region12: #{_lambda_.4} parent=5 // pred_fallthru
      _
    %p169 = scmp.lt.s32.totalorder %s10, 4
    // Predicated region
    $region21: #{_lambda_.4} parent=5 // pred_check
      %p170 = pneg %p169
    $region22: #{_lambda_.4} parent=5 // pred_check_branch
      %172 = sbr.rel (%p170) target = $region24
    $region23: #{_lambda_.4} parent=5 // pred_region
      // Predicated region
      $region25: #{_lambda_.4} parent=23 // pred_check
        %p173 = pneg %p44
      $region26: #{_lambda_.4} parent=23 // pred_check_branch
        %175 = sbr.rel (%p173) target = $region28
      $region27: #{_lambda_.4} parent=23 // pred_region
        %s176 = smul.u32 8, %s18
        %p177 = scmp.lt.s32.totalorder %s17, 1
        %s178 = scalar_select %p177, %s17, 1
        %p179 = scmp.lt.s32.totalorder %s176, 15
        %s180 = scalar_select %p179, %s176, 15
        %s181 = smul.addr %s180, 2
        %s182 = smul.addr %s178, 32
        %s183 = sadd.s32 %s181, %s182
        %s184 = smul.addr %s183, 4
        %s185 = scalar_lea.vmem %s0, %s184
        %s186 = smul.u32 8, %s18
      $region28: #{_lambda_.4} parent=23 // pred_fallthru
        _
      // Predicated region
      $region29: #{_lambda_.4} parent=23 // pred_check
        %p187 = pneg %p72
      $region30: #{_lambda_.4} parent=23 // pred_check_branch
        %189 = sbr.rel (%p187) target = $region32
      $region31: #{_lambda_.4} parent=23 // pred_region
        %s190 = smul.u32 2, %s18
        %p191 = scmp.lt.s32.totalorder %s17, 1
        %s192 = scalar_select %p191, %s17, 1
        %p193 = scmp.lt.s32.totalorder %s190, 3
        %s194 = scalar_select %p193, %s190, 3
        %s195 = smul.addr %s194, 2
        %s196 = smul.addr %s192, 8
        %s197 = sadd.s32 %s195, %s196
        %s198 = smul.addr %s197, 4
        %s199 = scalar_lea.vmem %s1, %s198
        %s200 = smul.u32 2, %s18
      $region32: #{_lambda_.4} parent=23 // pred_fallthru
        _
    $region24: #{_lambda_.4} parent=5 // pred_fallthru
      _
    %p201 = scmp.le.s32.totalorder 1, %s10
    %p202 = scmp.lt.s32.totalorder %s10, 5
    %p203 = pnand %p201, %p202
    %p204 = pneg %p203
    // Predicated region
    $region33: #{_lambda_.4} parent=5 // pred_check
      _
    $region34: #{_lambda_.4} parent=5 // pred_check_branch
      %206 = sbr.rel (%p203) target = $region36
    $region35: #{_lambda_.4} parent=5 // pred_region
      %s207 = ssub.s32 %s10, 1
      %s208 = smul.u32 8, %s20
      %p209 = scmp.lt.s32.totalorder %s19, 1
      %s210 = scalar_select %p209, %s19, 1
      %p211 = scmp.lt.s32.totalorder %s208, 15
      %s212 = scalar_select %p211, %s208, 15
      %s213 = smul.addr %s212, 2
      %s214 = smul.addr %s210, 32
      %s215 = sadd.s32 %s213, %s214
      %s216 = smul.addr %s215, 4
      %s217 = scalar_lea.vmem %s0, %s216
      %p218 = pneg %p50
      %p219 = pneg %p47
      %s220 = smul.u32 2, %s20
      %p221 = scmp.lt.s32.totalorder %s19, 1
      %s222 = scalar_select %p221, %s19, 1
      %p223 = scmp.lt.s32.totalorder %s220, 3
      %s224 = scalar_select %p223, %s220, 3
      %s225 = smul.addr %s224, 2
      %s226 = smul.addr %s222, 8
      %s227 = sadd.s32 %s225, %s226
      %s228 = smul.addr %s227, 4
      %s229 = scalar_lea.vmem %s1, %s228
      %p230 = pneg %p78
      %p231 = pneg %p75
      %p232 = pneg %p99
      %p233 = pneg %p96
      %p234 = pneg %p120
      %p235 = pneg %p117
      %p236 = pneg %p148
      %p237 = pneg %p145
      %s238 = smul.u32 8, %s20
      %p239 = scmp.lt.s32.totalorder %s19, 1
      %s240 = scalar_select %p239, %s19, 1
      %p241 = scmp.lt.s32.totalorder %s238, 15
      %s242 = scalar_select %p241, %s238, 15
      %s243 = smul.addr %s242, 2
      %s244 = smul.addr %s240, 32
      %s245 = sadd.s32 %s243, %s244
      %s246 = smul.addr %s245, 4
      %s247 = scalar_lea.vmem %s4, %s246
      %s248 = smul.u32 8, %s20
      %p249 = scmp.lt.s32.totalorder %s19, 1
      %s250 = scalar_select %p249, %s19, 1
      %p251 = scmp.lt.s32.totalorder %s248, 15
      %s252 = scalar_select %p251, %s248, 15
      %s253 = smul.addr %s252, 2
      %s254 = smul.addr %s250, 32
      %s255 = sadd.s32 %s253, %s254
      %s256 = smul.addr %s255, 4
      %s257 = scalar_lea.vmem %s0, %s256
      %s258 = smul.u32 8, %s20
      %s259 = smul.u32 2, %s20
      %p260 = scmp.lt.s32.totalorder %s19, 1
      %s261 = scalar_select %p260, %s19, 1
      %p262 = scmp.lt.s32.totalorder %s259, 3
      %s263 = scalar_select %p262, %s259, 3
      %s264 = smul.addr %s263, 2
      %s265 = smul.addr %s261, 8
      %s266 = sadd.s32 %s264, %s265
      %s267 = smul.addr %s266, 4
      %s268 = scalar_lea.vmem %s1, %s267
      %s269 = smul.u32 2, %s20
      %s270 = smul.u32 8, %s20
      %p271 = scmp.lt.s32.totalorder %s19, 1
      %s272 = scalar_select %p271, %s19, 1
      %p273 = scmp.lt.s32.totalorder %s270, 15
      %s274 = scalar_select %p273, %s270, 15
      %s275 = smul.addr %s274, 2
      %s276 = smul.addr %s272, 32
      %s277 = sadd.s32 %s275, %s276
      %s278 = smul.addr %s277, 4
      %s279 = scalar_lea.vmem %s4, %s278
      %s280 = smul.u32 8, %s20
      %v282 = vld [vmem:[%s257] sm:$0xf]
      %v283 = vld [vmem:[%s257 + $0x4] sm:$0xf]
      %v284 = vld [vmem:[%s257 + $0x8] sm:$0xf]
      %v285 = vld [vmem:[%s257 + $0xc] sm:$0xf]
      %v286 = vld [vmem:[%s257 + $0x10] sm:$0xf]
      %v287 = vld [vmem:[%s257 + $0x14] sm:$0xf]
      %v288 = vld [vmem:[%s257 + $0x18] sm:$0xf]
      %v289 = vld [vmem:[%s257 + $0x1c] sm:$0xf]
      %v290 = vld [vmem:[%s257 + $0x20] sm:$0xf]
      %v291 = vld [vmem:[%s257 + $0x24] sm:$0xf]
      %v292 = vld [vmem:[%s257 + $0x28] sm:$0xf]
      %v293 = vld [vmem:[%s257 + $0x2c] sm:$0xf]
      %v294 = vld [vmem:[%s257 + $0x30] sm:$0xf]
      %v295 = vld [vmem:[%s257 + $0x34] sm:$0xf]
      %v296 = vld [vmem:[%s257 + $0x38] sm:$0xf]
      %v297 = vld [vmem:[%s257 + $0x3c] sm:$0xf]
      %v298 = vld [vmem:[%s268] sm:$0xf]
      %v299 = vld [vmem:[%s268 + $0x4] sm:$0xf]
      %s300 = scalar_lea.vmem %s268, 8
      %v301 = vld [vmem:[%s300] sm:$0xf]
      %v302 = vld [vmem:[%s300 + $0x4] sm:$0xf]
      %v319 = vunpack.c.l.b16 %v298
      %v320 = vunpack.c.l.b16 %v299
      %v321 = vunpack.c.l.b16 %v282
      %v322 = vunpack.c.l.b16 %v283
      %v323 = vunpack.c.l.b16 %v284
      %v324 = vunpack.c.l.b16 %v285
      %v325 = vunpack.c.l.b16 %v286
      %v326 = vunpack.c.l.b16 %v287
      %v327 = vunpack.c.l.b16 %v288
      %v328 = vunpack.c.l.b16 %v289
      %v329 = vunpack.c.l.b16 %v290
      %v330 = vunpack.c.l.b16 %v291
      %v331 = vunpack.c.l.b16 %v292
      %v332 = vunpack.c.l.b16 %v293
      %v333 = vunpack.c.l.b16 %v294
      %v334 = vunpack.c.l.b16 %v295
      %v335 = vpack.c.b16 %v320, %v319
      %v336 = vpack.c.b16 %v322, %v321
      %v337 = vpack.c.b16 %v324, %v323
      %v338 = vpack.c.b16 %v326, %v325
      %v339 = vpack.c.b16 %v328, %v327
      %v340 = vpack.c.b16 %v330, %v329
      %v341 = vpack.c.b16 %v332, %v331
      %v342 = vpack.c.b16 %v334, %v333
      %v344 = vshrl.u32 %v335, 16
      %v346 = vrot.slane %v344, 7
      %v347 = vshll.u32 %v335, 16
      %v349 = vor.u32 %v346, %v347
      %v351 = vshrl.u32 %v336, 16
      %v353 = vrot.slane %v351, 7
      %v354 = vshll.u32 %v336, 16
      %v356 = vor.u32 %v353, %v354
      %v358 = vshrl.u32 %v337, 16
      %v360 = vrot.slane %v358, 7
      %v361 = vshll.u32 %v337, 16
      %v363 = vor.u32 %v360, %v361
      %v365 = vshrl.u32 %v338, 16
      %v367 = vrot.slane %v365, 7
      %v368 = vshll.u32 %v338, 16
      %v370 = vor.u32 %v367, %v368
      %v372 = vshrl.u32 %v339, 16
      %v374 = vrot.slane %v372, 7
      %v375 = vshll.u32 %v339, 16
      %v377 = vor.u32 %v374, %v375
      %v379 = vshrl.u32 %v340, 16
      %v381 = vrot.slane %v379, 7
      %v382 = vshll.u32 %v340, 16
      %v384 = vor.u32 %v381, %v382
      %v386 = vshrl.u32 %v341, 16
      %v388 = vrot.slane %v386, 7
      %v389 = vshll.u32 %v341, 16
      %v391 = vor.u32 %v388, %v389
      %v393 = vshrl.u32 %v342, 16
      %v395 = vrot.slane %v393, 7
      %v396 = vshll.u32 %v342, 16
      %v398 = vor.u32 %v395, %v396
      %vm415 = vcmask 1040384
      %vm416 = vsmask.f32 256
      %vm417 = vmand %vm415, %vm416
      %v418 = vsel %vm417, 0, %v349
      %v419 = vsel %vm417, 0, %v356
      %v420 = vsel %vm417, 0, %v363
      %v421 = vsel %vm417, 0, %v370
      %v422 = vsel %vm417, 0, %v377
      %v423 = vsel %vm417, 0, %v384
      %v424 = vsel %vm417, 0, %v391
      %v425 = vsel %vm417, 0, %v398
      %v426 = vsel %vm417, %v346, 0
      %v427 = vsel %vm417, %v353, 0
      %v428 = vsel %vm417, %v360, 0
      %v429 = vsel %vm417, %v367, 0
      %v430 = vsel %vm417, %v374, 0
      %v431 = vsel %vm417, %v381, 0
      %v432 = vsel %vm417, %v388, 0
      %v433 = vsel %vm417, %v395, 0
      %vm434 = vsmask.f32 7424
      %v436 = vshrl.u32 %v418, 16
      %v438 = vshll.u32 %v418, 16
      %v440 = vrot.slane %v438, 1
      %v441 = vor.u32 %v436, %v440
      %v443 = vshll.u32 %v426, 16
      %v445 = vrot.slane %v443, 1
      %v446 = vsel %vm434, %v441, %v445
      %v448 = vshrl.u32 %v419, 16
      %v450 = vshll.u32 %v419, 16
      %v452 = vrot.slane %v450, 1
      %v453 = vor.u32 %v448, %v452
      %v455 = vshll.u32 %v427, 16
      %v457 = vrot.slane %v455, 1
      %v458 = vsel %vm434, %v453, %v457
      %v460 = vshrl.u32 %v420, 16
      %v462 = vshll.u32 %v420, 16
      %v464 = vrot.slane %v462, 1
      %v465 = vor.u32 %v460, %v464
      %v467 = vshll.u32 %v428, 16
      %v469 = vrot.slane %v467, 1
      %v470 = vsel %vm434, %v465, %v469
      %v472 = vshrl.u32 %v421, 16
      %v474 = vshll.u32 %v421, 16
      %v476 = vrot.slane %v474, 1
      %v477 = vor.u32 %v472, %v476
      %v479 = vshll.u32 %v429, 16
      %v481 = vrot.slane %v479, 1
      %v482 = vsel %vm434, %v477, %v481
      %v484 = vshrl.u32 %v422, 16
      %v486 = vshll.u32 %v422, 16
      %v488 = vrot.slane %v486, 1
      %v489 = vor.u32 %v484, %v488
      %v491 = vshll.u32 %v430, 16
      %v493 = vrot.slane %v491, 1
      %v494 = vsel %vm434, %v489, %v493
      %v496 = vshrl.u32 %v423, 16
      %v498 = vshll.u32 %v423, 16
      %v500 = vrot.slane %v498, 1
      %v501 = vor.u32 %v496, %v500
      %v503 = vshll.u32 %v431, 16
      %v505 = vrot.slane %v503, 1
      %v506 = vsel %vm434, %v501, %v505
      %v508 = vshrl.u32 %v424, 16
      %v510 = vshll.u32 %v424, 16
      %v512 = vrot.slane %v510, 1
      %v513 = vor.u32 %v508, %v512
      %v515 = vshll.u32 %v432, 16
      %v517 = vrot.slane %v515, 1
      %v518 = vsel %vm434, %v513, %v517
      %v520 = vshrl.u32 %v425, 16
      %v522 = vshll.u32 %v425, 16
      %v524 = vrot.slane %v522, 1
      %v525 = vor.u32 %v520, %v524
      %v527 = vshll.u32 %v433, 16
      %v529 = vrot.slane %v527, 1
      %v530 = vsel %vm434, %v525, %v529
      %vm555 = vcmask 1046528
      %v556 = vrot.slane %v418, 1
      %v557 = vrot.slane %v426, 1
      %v558 = vsel %vm555, %v556, %v557
      %v559 = vrot.slane %v419, 1
      %v560 = vrot.slane %v427, 1
      %v561 = vsel %vm555, %v559, %v560
      %v562 = vrot.slane %v420, 1
      %v563 = vrot.slane %v428, 1
      %v564 = vsel %vm555, %v562, %v563
      %v565 = vrot.slane %v421, 1
      %v566 = vrot.slane %v429, 1
      %v567 = vsel %vm555, %v565, %v566
      %v568 = vrot.slane %v422, 1
      %v569 = vrot.slane %v430, 1
      %v570 = vsel %vm555, %v568, %v569
      %v571 = vrot.slane %v423, 1
      %v572 = vrot.slane %v431, 1
      %v573 = vsel %vm555, %v571, %v572
      %v574 = vrot.slane %v424, 1
      %v575 = vrot.slane %v432, 1
      %v576 = vsel %vm555, %v574, %v575
      %v577 = vrot.slane %v425, 1
      %v578 = vrot.slane %v433, 1
      %v579 = vsel %vm555, %v577, %v578
      %v588 = vld [vmem:[%s2] sm:$0xf]
      %v589 = vld [vmem:[%s2 + $0x4] sm:$0xf]
      %v590 = vld [vmem:[%s2 + $0x8] sm:$0xf]
      %v591 = vld [vmem:[%s2 + $0xc] sm:$0xf]
      %v592 = vld [vmem:[%s2 + $0x10] sm:$0xf]
      %v593 = vld [vmem:[%s2 + $0x14] sm:$0xf]
      %v594 = vld [vmem:[%s2 + $0x18] sm:$0xf]
      %v595 = vld [vmem:[%s2 + $0x1c] sm:$0xf]
      %v596 = vld [vmem:[%s2 + $0x20] sm:$0xf]
      %v597 = vld [vmem:[%s2 + $0x24] sm:$0xf]
      %v598 = vld [vmem:[%s2 + $0x28] sm:$0xf]
      %v599 = vld [vmem:[%s2 + $0x2c] sm:$0xf]
      %v600 = vld [vmem:[%s2 + $0x30] sm:$0xf]
      %v601 = vld [vmem:[%s2 + $0x34] sm:$0xf]
      %v602 = vld [vmem:[%s2 + $0x38] sm:$0xf]
      %v603 = vld [vmem:[%s2 + $0x3c] sm:$0xf]
      %v604 = vld [vmem:[%s2 + $0x40] sm:$0xf]
      %v605 = vld [vmem:[%s2 + $0x44] sm:$0xf]
      %v606 = vld [vmem:[%s2 + $0x48] sm:$0xf]
      %v607 = vld [vmem:[%s2 + $0x4c] sm:$0xf]
      %v608 = vld [vmem:[%s2 + $0x50] sm:$0xf]
      %v609 = vld [vmem:[%s2 + $0x54] sm:$0xf]
      %v610 = vld [vmem:[%s2 + $0x58] sm:$0xf]
      %v611 = vld [vmem:[%s2 + $0x5c] sm:$0xf]
      %v612 = vld [vmem:[%s2 + $0x60] sm:$0xf]
      %v613 = vld [vmem:[%s2 + $0x64] sm:$0xf]
      %v614 = vld [vmem:[%s2 + $0x68] sm:$0xf]
      %v615 = vld [vmem:[%s2 + $0x6c] sm:$0xf]
      %v616 = vld [vmem:[%s2 + $0x70] sm:$0xf]
      %v617 = vld [vmem:[%s2 + $0x74] sm:$0xf]
      %v618 = vld [vmem:[%s2 + $0x78] sm:$0xf]
      %v619 = vld [vmem:[%s2 + $0x7c] sm:$0xf]
      %v620 = vld [vmem:[%s2 + $0x80] sm:$0xf]
      %v621 = vld [vmem:[%s2 + $0x84] sm:$0xf]
      %v622 = vld [vmem:[%s2 + $0x88] sm:$0xf]
      %v623 = vld [vmem:[%s2 + $0x8c] sm:$0xf]
      %v624 = vld [vmem:[%s2 + $0x90] sm:$0xf]
      %v625 = vld [vmem:[%s2 + $0x94] sm:$0xf]
      %v626 = vld [vmem:[%s2 + $0x98] sm:$0xf]
      %v627 = vld [vmem:[%s2 + $0x9c] sm:$0xf]
      %v628 = vld [vmem:[%s2 + $0xa0] sm:$0xf]
      %v629 = vld [vmem:[%s2 + $0xa4] sm:$0xf]
      %v630 = vld [vmem:[%s2 + $0xa8] sm:$0xf]
      %v631 = vld [vmem:[%s2 + $0xac] sm:$0xf]
      %v632 = vld [vmem:[%s2 + $0xb0] sm:$0xf]
      %v633 = vld [vmem:[%s2 + $0xb4] sm:$0xf]
      %v634 = vld [vmem:[%s2 + $0xb8] sm:$0xf]
      %v635 = vld [vmem:[%s2 + $0xbc] sm:$0xf]
      %v638 = vunpack.c.l.b16 %v296
      %v639 = vunpack.c.l.b16 %v297
      %v640 = vpack.c.b16 %v639, %v638
      %v642 = vshrl.u32 %v640, 16
      %v644 = vrot.slane %v642, 7
      %v645 = vshll.u32 %v640, 16
      %v647 = vor.u32 %v644, %v645
      %v650 = vsel %vm417, 0, %v647
      %v651 = vsel %vm417, %v644, 0
      %v653 = vshrl.u32 %v650, 16
      %v655 = vshll.u32 %v650, 16
      %v657 = vrot.slane %v655, 1
      %v658 = vor.u32 %v653, %v657
      %v660 = vshll.u32 %v651, 16
      %v662 = vrot.slane %v660, 1
      %v663 = vsel %vm434, %v658, %v662
      %v667 = vrot.slane %v650, 1
      %v668 = vrot.slane %v651, 1
      %v669 = vsel %vm555, %v667, %v668
      %s671 = scalar_lea.vmem %s2, 192
      %v672 = vld [vmem:[%s671] sm:$0xf]
      %v673 = vld [vmem:[%s671 + $0x4] sm:$0xf]
      %v674 = vld [vmem:[%s671 + $0x8] sm:$0xf]
      %v675 = vld [vmem:[%s671 + $0xc] sm:$0xf]
      %v676 = vld [vmem:[%s671 + $0x10] sm:$0xf]
      %v677 = vld [vmem:[%s671 + $0x14] sm:$0xf]
      %v678 = vld [vmem:[%s671 + $0x18] sm:$0xf]
      %v679 = vld [vmem:[%s671 + $0x1c] sm:$0xf]
      %v680 = vld [vmem:[%s671 + $0x20] sm:$0xf]
      %v681 = vld [vmem:[%s671 + $0x24] sm:$0xf]
      %v682 = vld [vmem:[%s671 + $0x28] sm:$0xf]
      %v683 = vld [vmem:[%s671 + $0x2c] sm:$0xf]
      %v684 = vld [vmem:[%s671 + $0x30] sm:$0xf]
      %v685 = vld [vmem:[%s671 + $0x34] sm:$0xf]
      %v686 = vld [vmem:[%s671 + $0x38] sm:$0xf]
      %v687 = vld [vmem:[%s671 + $0x3c] sm:$0xf]
      %v688 = vld [vmem:[%s671 + $0x40] sm:$0xf]
      %v689 = vld [vmem:[%s671 + $0x44] sm:$0xf]
      %v690 = vld [vmem:[%s671 + $0x48] sm:$0xf]
      %v691 = vld [vmem:[%s671 + $0x4c] sm:$0xf]
      %v692 = vld [vmem:[%s671 + $0x50] sm:$0xf]
      %v693 = vld [vmem:[%s671 + $0x54] sm:$0xf]
      %v694 = vld [vmem:[%s671 + $0x58] sm:$0xf]
      %v695 = vld [vmem:[%s671 + $0x5c] sm:$0xf]
      %v696 = vld [vmem:[%s671 + $0x60] sm:$0xf]
      %v697 = vld [vmem:[%s671 + $0x64] sm:$0xf]
      %v698 = vld [vmem:[%s671 + $0x68] sm:$0xf]
      %v699 = vld [vmem:[%s671 + $0x6c] sm:$0xf]
      %v700 = vld [vmem:[%s671 + $0x70] sm:$0xf]
      %v701 = vld [vmem:[%s671 + $0x74] sm:$0xf]
      %v702 = vld [vmem:[%s671 + $0x78] sm:$0xf]
      %v703 = vld [vmem:[%s671 + $0x7c] sm:$0xf]
      %v704 = vld [vmem:[%s671 + $0x80] sm:$0xf]
      %v705 = vld [vmem:[%s671 + $0x84] sm:$0xf]
      %v706 = vld [vmem:[%s671 + $0x88] sm:$0xf]
      %v707 = vld [vmem:[%s671 + $0x8c] sm:$0xf]
      %v708 = vld [vmem:[%s671 + $0x90] sm:$0xf]
      %v709 = vld [vmem:[%s671 + $0x94] sm:$0xf]
      %v710 = vld [vmem:[%s671 + $0x98] sm:$0xf]
      %v711 = vld [vmem:[%s671 + $0x9c] sm:$0xf]
      %v712 = vld [vmem:[%s671 + $0xa0] sm:$0xf]
      %v713 = vld [vmem:[%s671 + $0xa4] sm:$0xf]
      %v714 = vld [vmem:[%s671 + $0xa8] sm:$0xf]
      %v715 = vld [vmem:[%s671 + $0xac] sm:$0xf]
      %v716 = vld [vmem:[%s671 + $0xb0] sm:$0xf]
      %v717 = vld [vmem:[%s671 + $0xb4] sm:$0xf]
      %v718 = vld [vmem:[%s671 + $0xb8] sm:$0xf]
      %v719 = vld [vmem:[%s671 + $0xbc] sm:$0xf]
      %v768 = vunpack.c.l.b16 %v672
      %v769 = vunpack.c.l.b16 %v673
      %v770 = vunpack.c.l.b16 %v674
      %v771 = vunpack.c.l.b16 %v675
      %v772 = vunpack.c.l.b16 %v676
      %v773 = vunpack.c.l.b16 %v677
      %v774 = vunpack.c.l.b16 %v678
      %v775 = vunpack.c.l.b16 %v679
      %v776 = vunpack.c.l.b16 %v680
      %v777 = vunpack.c.l.b16 %v681
      %v778 = vunpack.c.l.b16 %v682
      %v779 = vunpack.c.l.b16 %v683
      %v780 = vunpack.c.l.b16 %v684
      %v781 = vunpack.c.l.b16 %v685
      %v782 = vunpack.c.l.b16 %v686
      %v783 = vunpack.c.l.b16 %v687
      %v784 = vunpack.c.l.b16 %v688
      %v785 = vunpack.c.l.b16 %v689
      %v786 = vunpack.c.l.b16 %v690
      %v787 = vunpack.c.l.b16 %v691
      %v788 = vunpack.c.l.b16 %v692
      %v789 = vunpack.c.l.b16 %v693
      %v790 = vunpack.c.l.b16 %v694
      %v791 = vunpack.c.l.b16 %v695
      %v792 = vunpack.c.l.b16 %v696
      %v793 = vunpack.c.l.b16 %v697
      %v794 = vunpack.c.l.b16 %v698
      %v795 = vunpack.c.l.b16 %v699
      %v796 = vunpack.c.l.b16 %v700
      %v797 = vunpack.c.l.b16 %v701
      %v798 = vunpack.c.l.b16 %v702
      %v799 = vunpack.c.l.b16 %v703
      %v800 = vunpack.c.l.b16 %v704
      %v801 = vunpack.c.l.b16 %v705
      %v802 = vunpack.c.l.b16 %v706
      %v803 = vunpack.c.l.b16 %v707
      %v804 = vunpack.c.l.b16 %v708
      %v805 = vunpack.c.l.b16 %v709
      %v806 = vunpack.c.l.b16 %v710
      %v807 = vunpack.c.l.b16 %v711
      %v808 = vunpack.c.l.b16 %v712
      %v809 = vunpack.c.l.b16 %v713
      %v810 = vunpack.c.l.b16 %v714
      %v811 = vunpack.c.l.b16 %v715
      %v812 = vunpack.c.l.b16 %v716
      %v813 = vunpack.c.l.b16 %v717
      %v814 = vunpack.c.l.b16 %v718
      %v815 = vunpack.c.l.b16 %v719
      %v816 = vpack.c.b16 %v769, %v768
      %v817 = vpack.c.b16 %v771, %v770
      %v818 = vpack.c.b16 %v773, %v772
      %v819 = vpack.c.b16 %v775, %v774
      %v820 = vpack.c.b16 %v777, %v776
      %v821 = vpack.c.b16 %v779, %v778
      %v822 = vpack.c.b16 %v781, %v780
      %v823 = vpack.c.b16 %v783, %v782
      %v824 = vpack.c.b16 %v785, %v784
      %v825 = vpack.c.b16 %v787, %v786
      %v826 = vpack.c.b16 %v789, %v788
      %v827 = vpack.c.b16 %v791, %v790
      %v828 = vpack.c.b16 %v793, %v792
      %v829 = vpack.c.b16 %v795, %v794
      %v830 = vpack.c.b16 %v797, %v796
      %v831 = vpack.c.b16 %v799, %v798
      %v832 = vpack.c.b16 %v801, %v800
      %v833 = vpack.c.b16 %v803, %v802
      %v834 = vpack.c.b16 %v805, %v804
      %v835 = vpack.c.b16 %v807, %v806
      %v836 = vpack.c.b16 %v809, %v808
      %v837 = vpack.c.b16 %v811, %v810
      %v838 = vpack.c.b16 %v813, %v812
      %v839 = vpack.c.b16 %v815, %v814
      %864 = vmatprep.subr.bf16.mxu0 0
      %865 = vmatpush1.bf16.msra.mxu0 %v816
      %866 = vmatprep.subr.bf16.mxu0 0
      %867 = vmatpush1.bf16.msra.mxu0 %v817
      %868 = vmatprep.subr.bf16.mxu0 0
      %869 = vmatpush1.bf16.msra.mxu0 %v818
      %870 = vmatprep.subr.bf16.mxu0 0
      %871 = vmatpush1.bf16.msra.mxu0 %v819
      %872 = vmatprep.subr.bf16.mxu0 0
      %873 = vmatpush1.bf16.msra.mxu0 %v820
      %874 = vmatprep.subr.bf16.mxu0 0
      %875 = vmatpush1.bf16.msra.mxu0 %v821
      %876 = vmatprep.subr.bf16.mxu0 0
      %877 = vmatpush1.bf16.msra.mxu0 %v822
      %878 = vmatprep.subr.bf16.mxu0 0
      %879 = vmatpush1.bf16.msra.mxu0 %v823
      %880 = vmatprep.subr.bf16.mxu0 0
      %881 = vmatpush1.bf16.msra.mxu0 %v824
      %882 = vmatprep.subr.bf16.mxu0 0
      %883 = vmatpush1.bf16.msra.mxu0 %v825
      %884 = vmatprep.subr.bf16.mxu0 0
      %885 = vmatpush1.bf16.msra.mxu0 %v826
      %886 = vmatprep.subr.bf16.mxu0 0
      %887 = vmatpush1.bf16.msra.mxu0 %v827
      %888 = vmatprep.subr.bf16.mxu0 0
      %889 = vmatpush1.bf16.msra.mxu0 %v828
      %890 = vmatprep.subr.bf16.mxu0 0
      %891 = vmatpush1.bf16.msra.mxu0 %v829
      %892 = vmatprep.subr.bf16.mxu0 0
      %893 = vmatpush1.bf16.msra.mxu0 %v830
      %894 = vmatprep.subr.bf16.mxu0 0
      %895 = vmatpush1.bf16.msra.mxu0 %v831
      %896 = vmatprep.mubr.bf16.mxu0 %v458
      %897 = vmatmul.mubr.bf16.gmra.mrb[0].mxu0 %v419
      %v898 = vpop.f32.mrb[0].mxu0
      %v899 = vadd.f32 0.0, %v898
      %v900 = vpop.f32.mrb[0].mxu0
      %v901 = vpop.f32.mrb[0].mxu0
      %v902 = vadd.f32 0.0, %v901
      %v903 = vpop.f32.mrb[0].mxu0
      %904 = vmatprep.mubr.bf16.mxu0 %v470
      %905 = vmatmul.mubr.bf16.gmra.mrb[0].mxu0 %v420
      %v906 = vpop.f32.mrb[0].mxu0
      %v907 = vadd.f32 0.0, %v906
      %v908 = vpop.f32.mrb[0].mxu0
      %v909 = vpop.f32.mrb[0].mxu0
      %v910 = vadd.f32 0.0, %v909
      %v911 = vpop.f32.mrb[0].mxu0
      %912 = vmatprep.mubr.bf16.mxu0 %v482
      %913 = vmatmul.mubr.bf16.gmra.mrb[0].mxu0 %v421
      %v914 = vpop.f32.mrb[0].mxu0
      %v915 = vadd.f32 0.0, %v914
      %v916 = vpop.f32.mrb[0].mxu0
      %v917 = vpop.f32.mrb[0].mxu0
      %v918 = vadd.f32 0.0, %v917
      %v919 = vpop.f32.mrb[0].mxu0
      %920 = vmatprep.mubr.bf16.mxu0 %v494
      %921 = vmatmul.mubr.bf16.gmra.mrb[0].mxu0 %v422
      %v922 = vpop.f32.mrb[0].mxu0
      %v923 = vadd.f32 0.0, %v922
      %v924 = vpop.f32.mrb[0].mxu0
      %v925 = vpop.f32.mrb[0].mxu0
      %v926 = vadd.f32 0.0, %v925
      %v927 = vpop.f32.mrb[0].mxu0
      %928 = vmatprep.mubr.bf16.mxu0 %v506
      %929 = vmatmul.mubr.bf16.gmra.mrb[0].mxu0 %v423
      %v930 = vpop.f32.mrb[0].mxu0
      %v931 = vadd.f32 0.0, %v930
      %v932 = vpop.f32.mrb[0].mxu0
      %v933 = vpop.f32.mrb[0].mxu0
      %v934 = vadd.f32 0.0, %v933
      %v935 = vpop.f32.mrb[0].mxu0
      %936 = vmatprep.mubr.bf16.mxu0 %v518
      %937 = vmatmul.mubr.bf16.gmra.mrb[0].mxu0 %v424
      %v938 = vpop.f32.mrb[0].mxu0
      %v939 = vadd.f32 0.0, %v938
      %v940 = vpop.f32.mrb[0].mxu0
      %v941 = vpop.f32.mrb[0].mxu0
      %v942 = vadd.f32 0.0, %v941
      %v943 = vpop.f32.mrb[0].mxu0
      %944 = vmatprep.mubr.bf16.mxu0 %v530
      %945 = vmatmul.mubr.bf16.gmra.mrb[0].mxu0 %v425
      %v946 = vpop.f32.mrb[0].mxu0
      %v947 = vadd.f32 0.0, %v946
      %v948 = vpop.f32.mrb[0].mxu0
      %v949 = vpop.f32.mrb[0].mxu0
      %v950 = vadd.f32 0.0, %v949
      %v951 = vpop.f32.mrb[0].mxu0
      %952 = vmatprep.mubr.bf16.mxu0 %v663
      %953 = vmatmul.mubr.bf16.gmra.mrb[0].mxu0 %v650
      %v954 = vpop.f32.mrb[0].mxu0
      %v955 = vadd.f32 0.0, %v954
      %v956 = vpop.f32.mrb[0].mxu0
      %v957 = vpop.f32.mrb[0].mxu0
      %v958 = vadd.f32 0.0, %v957
      %v959 = vpop.f32.mrb[0].mxu0
      %960 = vdwg.mxu0
      %961 = vmatprep.subr.bf16.mxu0 0
      %962 = vmatpush1.bf16.msra.mxu0 %v832
      %963 = vmatprep.subr.bf16.mxu0 0
      %964 = vmatpush1.bf16.msra.mxu0 %v833
      %965 = vmatprep.subr.bf16.mxu0 0
      %966 = vmatpush1.bf16.msra.mxu0 %v834
      %967 = vmatprep.subr.bf16.mxu0 0
      %968 = vmatpush1.bf16.msra.mxu0 %v835
      %969 = vmatprep.subr.bf16.mxu0 0
      %970 = vmatpush1.bf16.msra.mxu0 %v836
      %971 = vmatprep.subr.bf16.mxu0 0
      %972 = vmatpush1.bf16.msra.mxu0 %v837
      %973 = vmatprep.subr.bf16.mxu0 0
      %974 = vmatpush1.bf16.msra.mxu0 %v838
      %975 = vmatprep.subr.bf16.mxu0 0
      %976 = vmatpush1.bf16.msra.mxu0 %v839
      %977 = vmatprep.subr.bf16.mxu0 0
      %978 = vmatpush1.bf16.msra.mxu0 0
      %979 = vmatprep.subr.bf16.mxu0 0
      %980 = vmatpush1.bf16.msra.mxu0 0
      %981 = vmatprep.subr.bf16.mxu0 0
      %982 = vmatpush1.bf16.msra.mxu0 0
      %983 = vmatprep.subr.bf16.mxu0 0
      %984 = vmatpush1.bf16.msra.mxu0 0
      %985 = vmatprep.subr.bf16.mxu0 0
      %986 = vmatpush1.bf16.msra.mxu0 0
      %987 = vmatprep.subr.bf16.mxu0 0
      %988 = vmatpush1.bf16.msra.mxu0 0
      %989 = vmatprep.subr.bf16.mxu0 0
      %990 = vmatpush1.bf16.msra.mxu0 0
      %991 = vmatprep.subr.bf16.mxu0 0
      %992 = vmatpush1.bf16.msra.mxu0 0
      %993 = vmatprep.mubr.bf16.mxu0 0
      %994 = vmatmul.mubr.bf16.gmra.mrb[0].mxu0 %v561
      %v995 = vpop.f32.mrb[0].mxu0
      %v996 = vadd.f32 %v899, %v995
      %v997 = vpop.f32.mrb[0].mxu0
      %v998 = vpop.f32.mrb[0].mxu0
      %v999 = vadd.f32 %v902, %v998
      %v1000 = vpop.f32.mrb[0].mxu0
      %1001 = vmatprep.mubr.bf16.mxu0 0
      %1002 = vmatmul.mubr.bf16.gmra.mrb[0].mxu0 %v564
      %v1003 = vpop.f32.mrb[0].mxu0
      %v1004 = vadd.f32 %v907, %v1003
      %v1005 = vpop.f32.mrb[0].mxu0
      %v1006 = vpop.f32.mrb[0].mxu0
      %v1007 = vadd.f32 %v910, %v1006
      %v1008 = vpop.f32.mrb[0].mxu0
      %1009 = vmatprep.mubr.bf16.mxu0 0
      %1010 = vmatmul.mubr.bf16.gmra.mrb[0].mxu0 %v567
      %v1011 = vpop.f32.mrb[0].mxu0
      %v1012 = vadd.f32 %v915, %v1011
      %v1013 = vpop.f32.mrb[0].mxu0
      %v1014 = vpop.f32.mrb[0].mxu0
      %v1015 = vadd.f32 %v918, %v1014
      %v1016 = vpop.f32.mrb[0].mxu0
      %1017 = vmatprep.mubr.bf16.mxu0 0
      %1018 = vmatmul.mubr.bf16.gmra.mrb[0].mxu0 %v570
      %v1019 = vpop.f32.mrb[0].mxu0
      %v1020 = vadd.f32 %v923, %v1019
      %v1021 = vpop.f32.mrb[0].mxu0
      %v1022 = vpop.f32.mrb[0].mxu0
      %v1023 = vadd.f32 %v926, %v1022
      %v1024 = vpop.f32.mrb[0].mxu0
      %1025 = vmatprep.mubr.bf16.mxu0 0
      %1026 = vmatmul.mubr.bf16.gmra.mrb[0].mxu0 %v573
      %v1027 = vpop.f32.mrb[0].mxu0
      %v1028 = vadd.f32 %v931, %v1027
      %v1029 = vpop.f32.mrb[0].mxu0
      %v1030 = vpop.f32.mrb[0].mxu0
      %v1031 = vadd.f32 %v934, %v1030
      %v1032 = vpop.f32.mrb[0].mxu0
      %1033 = vmatprep.mubr.bf16.mxu0 0
      %1034 = vmatmul.mubr.bf16.gmra.mrb[0].mxu0 %v576
      %v1035 = vpop.f32.mrb[0].mxu0
      %v1036 = vadd.f32 %v939, %v1035
      %v1037 = vpop.f32.mrb[0].mxu0
      %v1038 = vpop.f32.mrb[0].mxu0
      %v1039 = vadd.f32 %v942, %v1038
      %v1040 = vpop.f32.mrb[0].mxu0
      %1041 = vmatprep.mubr.bf16.mxu0 0
      %1042 = vmatmul.mubr.bf16.gmra.mrb[0].mxu0 %v579
      %v1043 = vpop.f32.mrb[0].mxu0
      %v1044 = vadd.f32 %v947, %v1043
      %v1045 = vpop.f32.mrb[0].mxu0
      %v1046 = vpop.f32.mrb[0].mxu0
      %v1047 = vadd.f32 %v950, %v1046
      %v1048 = vpop.f32.mrb[0].mxu0
      %1049 = vmatprep.mubr.bf16.mxu0 0
      %1050 = vmatmul.mubr.bf16.gmra.mrb[0].mxu0 %v669
      %v1051 = vpop.f32.mrb[0].mxu0
      %v1052 = vadd.f32 %v955, %v1051
      %v1053 = vpop.f32.mrb[0].mxu0
      %v1054 = vpop.f32.mrb[0].mxu0
      %v1055 = vadd.f32 %v958, %v1054
      %v1056 = vpop.f32.mrb[0].mxu0
      %1057 = vdwg.mxu0
      %v1106 = vunpack.c.l.b16 %v588
      %v1107 = vunpack.c.l.b16 %v589
      %v1108 = vunpack.c.l.b16 %v590
      %v1109 = vunpack.c.l.b16 %v591
      %v1110 = vunpack.c.l.b16 %v592
      %v1111 = vunpack.c.l.b16 %v593
      %v1112 = vunpack.c.l.b16 %v594
      %v1113 = vunpack.c.l.b16 %v595
      %v1114 = vunpack.c.l.b16 %v596
      %v1115 = vunpack.c.l.b16 %v597
      %v1116 = vunpack.c.l.b16 %v598
      %v1117 = vunpack.c.l.b16 %v599
      %v1118 = vunpack.c.l.b16 %v600
      %v1119 = vunpack.c.l.b16 %v601
      %v1120 = vunpack.c.l.b16 %v602
      %v1121 = vunpack.c.l.b16 %v603
      %v1122 = vunpack.c.l.b16 %v604
      %v1123 = vunpack.c.l.b16 %v605
      %v1124 = vunpack.c.l.b16 %v606
      %v1125 = vunpack.c.l.b16 %v607
      %v1126 = vunpack.c.l.b16 %v608
      %v1127 = vunpack.c.l.b16 %v609
      %v1128 = vunpack.c.l.b16 %v610
      %v1129 = vunpack.c.l.b16 %v611
      %v1130 = vunpack.c.l.b16 %v612
      %v1131 = vunpack.c.l.b16 %v613
      %v1132 = vunpack.c.l.b16 %v614
      %v1133 = vunpack.c.l.b16 %v615
      %v1134 = vunpack.c.l.b16 %v616
      %v1135 = vunpack.c.l.b16 %v617
      %v1136 = vunpack.c.l.b16 %v618
      %v1137 = vunpack.c.l.b16 %v619
      %v1138 = vunpack.c.l.b16 %v620
      %v1139 = vunpack.c.l.b16 %v621
      %v1140 = vunpack.c.l.b16 %v622
      %v1141 = vunpack.c.l.b16 %v623
      %v1142 = vunpack.c.l.b16 %v624
      %v1143 = vunpack.c.l.b16 %v625
      %v1144 = vunpack.c.l.b16 %v626
      %v1145 = vunpack.c.l.b16 %v627
      %v1146 = vunpack.c.l.b16 %v628
      %v1147 = vunpack.c.l.b16 %v629
      %v1148 = vunpack.c.l.b16 %v630
      %v1149 = vunpack.c.l.b16 %v631
      %v1150 = vunpack.c.l.b16 %v632
      %v1151 = vunpack.c.l.b16 %v633
      %v1152 = vunpack.c.l.b16 %v634
      %v1153 = vunpack.c.l.b16 %v635
      %v1154 = vpack.c.b16 %v1107, %v1106
      %v1155 = vpack.c.b16 %v1109, %v1108
      %v1156 = vpack.c.b16 %v1111, %v1110
      %v1157 = vpack.c.b16 %v1113, %v1112
      %v1158 = vpack.c.b16 %v1115, %v1114
      %v1159 = vpack.c.b16 %v1117, %v1116
      %v1160 = vpack.c.b16 %v1119, %v1118
      %v1161 = vpack.c.b16 %v1121, %v1120
      %v1162 = vpack.c.b16 %v1123, %v1122
      %v1163 = vpack.c.b16 %v1125, %v1124
      %v1164 = vpack.c.b16 %v1127, %v1126
      %v1165 = vpack.c.b16 %v1129, %v1128
      %v1166 = vpack.c.b16 %v1131, %v1130
      %v1167 = vpack.c.b16 %v1133, %v1132
      %v1168 = vpack.c.b16 %v1135, %v1134
      %v1169 = vpack.c.b16 %v1137, %v1136
      %v1170 = vpack.c.b16 %v1139, %v1138
      %v1171 = vpack.c.b16 %v1141, %v1140
      %v1172 = vpack.c.b16 %v1143, %v1142
      %v1173 = vpack.c.b16 %v1145, %v1144
      %v1174 = vpack.c.b16 %v1147, %v1146
      %v1175 = vpack.c.b16 %v1149, %v1148
      %v1176 = vpack.c.b16 %v1151, %v1150
      %v1177 = vpack.c.b16 %v1153, %v1152
      %1202 = vmatprep.subr.bf16.mxu0 0
      %1203 = vmatpush1.bf16.msra.mxu0 %v1154
      %1204 = vmatprep.subr.bf16.mxu0 0
      %1205 = vmatpush1.bf16.msra.mxu0 %v1155
      %1206 = vmatprep.subr.bf16.mxu0 0
      %1207 = vmatpush1.bf16.msra.mxu0 %v1156
      %1208 = vmatprep.subr.bf16.mxu0 0
      %1209 = vmatpush1.bf16.msra.mxu0 %v1157
      %1210 = vmatprep.subr.bf16.mxu0 0
      %1211 = vmatpush1.bf16.msra.mxu0 %v1158
      %1212 = vmatprep.subr.bf16.mxu0 0
      %1213 = vmatpush1.bf16.msra.mxu0 %v1159
      %1214 = vmatprep.subr.bf16.mxu0 0
      %1215 = vmatpush1.bf16.msra.mxu0 %v1160
      %1216 = vmatprep.subr.bf16.mxu0 0
      %1217 = vmatpush1.bf16.msra.mxu0 %v1161
      %1218 = vmatprep.subr.bf16.mxu0 0
      %1219 = vmatpush1.bf16.msra.mxu0 %v1162
      %1220 = vmatprep.subr.bf16.mxu0 0
      %1221 = vmatpush1.bf16.msra.mxu0 %v1163
      %1222 = vmatprep.subr.bf16.mxu0 0
      %1223 = vmatpush1.bf16.msra.mxu0 %v1164
      %1224 = vmatprep.subr.bf16.mxu0 0
      %1225 = vmatpush1.bf16.msra.mxu0 %v1165
      %1226 = vmatprep.subr.bf16.mxu0 0
      %1227 = vmatpush1.bf16.msra.mxu0 %v1166
      %1228 = vmatprep.subr.bf16.mxu0 0
      %1229 = vmatpush1.bf16.msra.mxu0 %v1167
      %1230 = vmatprep.subr.bf16.mxu0 0
      %1231 = vmatpush1.bf16.msra.mxu0 %v1168
      %1232 = vmatprep.subr.bf16.mxu0 0
      %1233 = vmatpush1.bf16.msra.mxu0 %v1169
      %1234 = vmatprep.mubr.bf16.mxu0 %v446
      %1235 = vmatmul.mubr.bf16.gmra.mrb[0].mxu0 %v418
      %v1236 = vpop.f32.mrb[0].mxu0
      %v1237 = vadd.f32 %v996, %v1236
      %v1238 = vpop.f32.mrb[0].mxu0
      %v1239 = vpop.f32.mrb[0].mxu0
      %v1240 = vadd.f32 %v999, %v1239
      %v1241 = vpop.f32.mrb[0].mxu0
      %1242 = vmatprep.mubr.bf16.mxu0 %v458
      %1243 = vmatmul.mubr.bf16.gmra.mrb[0].mxu0 %v419
      %v1244 = vpop.f32.mrb[0].mxu0
      %v1245 = vadd.f32 %v1004, %v1244
      %v1246 = vpop.f32.mrb[0].mxu0
      %v1247 = vpop.f32.mrb[0].mxu0
      %v1248 = vadd.f32 %v1007, %v1247
      %v1249 = vpop.f32.mrb[0].mxu0
      %1250 = vmatprep.mubr.bf16.mxu0 %v470
      %1251 = vmatmul.mubr.bf16.gmra.mrb[0].mxu0 %v420
      %v1252 = vpop.f32.mrb[0].mxu0
      %v1253 = vadd.f32 %v1012, %v1252
      %v1254 = vpop.f32.mrb[0].mxu0
      %v1255 = vpop.f32.mrb[0].mxu0
      %v1256 = vadd.f32 %v1015, %v1255
      %v1257 = vpop.f32.mrb[0].mxu0
      %1258 = vmatprep.mubr.bf16.mxu0 %v482
      %1259 = vmatmul.mubr.bf16.gmra.mrb[0].mxu0 %v421
      %v1260 = vpop.f32.mrb[0].mxu0
      %v1261 = vadd.f32 %v1020, %v1260
      %v1262 = vpop.f32.mrb[0].mxu0
      %v1263 = vpop.f32.mrb[0].mxu0
      %v1264 = vadd.f32 %v1023, %v1263
      %v1265 = vpop.f32.mrb[0].mxu0
      %1266 = vmatprep.mubr.bf16.mxu0 %v494
      %1267 = vmatmul.mubr.bf16.gmra.mrb[0].mxu0 %v422
      %v1268 = vpop.f32.mrb[0].mxu0
      %v1269 = vadd.f32 %v1028, %v1268
      %v1270 = vpop.f32.mrb[0].mxu0
      %v1271 = vpop.f32.mrb[0].mxu0
      %v1272 = vadd.f32 %v1031, %v1271
      %v1273 = vpop.f32.mrb[0].mxu0
      %1274 = vmatprep.mubr.bf16.mxu0 %v506
      %1275 = vmatmul.mubr.bf16.gmra.mrb[0].mxu0 %v423
      %v1276 = vpop.f32.mrb[0].mxu0
      %v1277 = vadd.f32 %v1036, %v1276
      %v1278 = vpop.f32.mrb[0].mxu0
      %v1279 = vpop.f32.mrb[0].mxu0
      %v1280 = vadd.f32 %v1039, %v1279
      %v1281 = vpop.f32.mrb[0].mxu0
      %1282 = vmatprep.mubr.bf16.mxu0 %v518
      %1283 = vmatmul.mubr.bf16.gmra.mrb[0].mxu0 %v424
      %v1284 = vpop.f32.mrb[0].mxu0
      %v1285 = vadd.f32 %v1044, %v1284
      %v1286 = vpop.f32.mrb[0].mxu0
      %v1287 = vpop.f32.mrb[0].mxu0
      %v1288 = vadd.f32 %v1047, %v1287
      %v1289 = vpop.f32.mrb[0].mxu0
      %1290 = vmatprep.mubr.bf16.mxu0 %v530
      %1291 = vmatmul.mubr.bf16.gmra.mrb[0].mxu0 %v425
      %v1292 = vpop.f32.mrb[0].mxu0
      %v1293 = vadd.f32 %v1052, %v1292
      %v1294 = vpop.f32.mrb[0].mxu0
      %v1295 = vpop.f32.mrb[0].mxu0
      %v1296 = vadd.f32 %v1055, %v1295
      %v1297 = vpop.f32.mrb[0].mxu0
      %1298 = vdwg.mxu0
      %1299 = vmatprep.subr.bf16.mxu0 0
      %1300 = vmatpush1.bf16.msra.mxu0 %v1170
      %1301 = vmatprep.subr.bf16.mxu0 0
      %1302 = vmatpush1.bf16.msra.mxu0 %v1171
      %1303 = vmatprep.subr.bf16.mxu0 0
      %1304 = vmatpush1.bf16.msra.mxu0 %v1172
      %1305 = vmatprep.subr.bf16.mxu0 0
      %1306 = vmatpush1.bf16.msra.mxu0 %v1173
      %1307 = vmatprep.subr.bf16.mxu0 0
      %1308 = vmatpush1.bf16.msra.mxu0 %v1174
      %1309 = vmatprep.subr.bf16.mxu0 0
      %1310 = vmatpush1.bf16.msra.mxu0 %v1175
      %1311 = vmatprep.subr.bf16.mxu0 0
      %1312 = vmatpush1.bf16.msra.mxu0 %v1176
      %1313 = vmatprep.subr.bf16.mxu0 0
      %1314 = vmatpush1.bf16.msra.mxu0 %v1177
      %1315 = vmatprep.subr.bf16.mxu0 0
      %1316 = vmatpush1.bf16.msra.mxu0 0
      %1317 = vmatprep.subr.bf16.mxu0 0
      %1318 = vmatpush1.bf16.msra.mxu0 0
      %1319 = vmatprep.subr.bf16.mxu0 0
      %1320 = vmatpush1.bf16.msra.mxu0 0
      %1321 = vmatprep.subr.bf16.mxu0 0
      %1322 = vmatpush1.bf16.msra.mxu0 0
      %1323 = vmatprep.subr.bf16.mxu0 0
      %1324 = vmatpush1.bf16.msra.mxu0 0
      %1325 = vmatprep.subr.bf16.mxu0 0
      %1326 = vmatpush1.bf16.msra.mxu0 0
      %1327 = vmatprep.subr.bf16.mxu0 0
      %1328 = vmatpush1.bf16.msra.mxu0 0
      %1329 = vmatprep.subr.bf16.mxu0 0
      %1330 = vmatpush1.bf16.msra.mxu0 0
      %1331 = vmatprep.mubr.bf16.mxu0 0
      %1332 = vmatmul.mubr.bf16.gmra.mrb[0].mxu0 %v558
      %v1333 = vpop.f32.mrb[0].mxu0
      %v1334 = vadd.f32 %v1237, %v1333
      %v1335 = vpop.f32.mrb[0].mxu0
      %v1336 = vpop.f32.mrb[0].mxu0
      %v1337 = vadd.f32 %v1240, %v1336
      %v1338 = vpop.f32.mrb[0].mxu0
      %1339 = vmatprep.mubr.bf16.mxu0 0
      %1340 = vmatmul.mubr.bf16.gmra.mrb[0].mxu0 %v561
      %v1341 = vpop.f32.mrb[0].mxu0
      %v1342 = vadd.f32 %v1245, %v1341
      %v1343 = vpop.f32.mrb[0].mxu0
      %v1344 = vpop.f32.mrb[0].mxu0
      %v1345 = vadd.f32 %v1248, %v1344
      %v1346 = vpop.f32.mrb[0].mxu0
      %1347 = vmatprep.mubr.bf16.mxu0 0
      %1348 = vmatmul.mubr.bf16.gmra.mrb[0].mxu0 %v564
      %v1349 = vpop.f32.mrb[0].mxu0
      %v1350 = vadd.f32 %v1253, %v1349
      %v1351 = vpop.f32.mrb[0].mxu0
      %v1352 = vpop.f32.mrb[0].mxu0
      %v1353 = vadd.f32 %v1256, %v1352
      %v1354 = vpop.f32.mrb[0].mxu0
      %1355 = vmatprep.mubr.bf16.mxu0 0
      %1356 = vmatmul.mubr.bf16.gmra.mrb[0].mxu0 %v567
      %v1357 = vpop.f32.mrb[0].mxu0
      %v1358 = vadd.f32 %v1261, %v1357
      %v1359 = vpop.f32.mrb[0].mxu0
      %v1360 = vpop.f32.mrb[0].mxu0
      %v1361 = vadd.f32 %v1264, %v1360
      %v1362 = vpop.f32.mrb[0].mxu0
      %1363 = vmatprep.mubr.bf16.mxu0 0
      %1364 = vmatmul.mubr.bf16.gmra.mrb[0].mxu0 %v570
      %v1365 = vpop.f32.mrb[0].mxu0
      %v1366 = vadd.f32 %v1269, %v1365
      %v1367 = vpop.f32.mrb[0].mxu0
      %v1368 = vpop.f32.mrb[0].mxu0
      %v1369 = vadd.f32 %v1272, %v1368
      %v1370 = vpop.f32.mrb[0].mxu0
      %1371 = vmatprep.mubr.bf16.mxu0 0
      %1372 = vmatmul.mubr.bf16.gmra.mrb[0].mxu0 %v573
      %v1373 = vpop.f32.mrb[0].mxu0
      %v1374 = vadd.f32 %v1277, %v1373
      %v1375 = vpop.f32.mrb[0].mxu0
      %v1376 = vpop.f32.mrb[0].mxu0
      %v1377 = vadd.f32 %v1280, %v1376
      %v1378 = vpop.f32.mrb[0].mxu0
      %1379 = vmatprep.mubr.bf16.mxu0 0
      %1380 = vmatmul.mubr.bf16.gmra.mrb[0].mxu0 %v576
      %v1381 = vpop.f32.mrb[0].mxu0
      %v1382 = vadd.f32 %v1285, %v1381
      %v1383 = vpop.f32.mrb[0].mxu0
      %v1384 = vpop.f32.mrb[0].mxu0
      %v1385 = vadd.f32 %v1288, %v1384
      %v1386 = vpop.f32.mrb[0].mxu0
      %1387 = vmatprep.mubr.bf16.mxu0 0
      %1388 = vmatmul.mubr.bf16.gmra.mrb[0].mxu0 %v579
      %v1389 = vpop.f32.mrb[0].mxu0
      %v1390 = vadd.f32 %v1293, %v1389
      %v1391 = vpop.f32.mrb[0].mxu0
      %v1392 = vpop.f32.mrb[0].mxu0
      %v1393 = vadd.f32 %v1296, %v1392
      %v1394 = vpop.f32.mrb[0].mxu0
      %1395 = vdwg.mxu0
      %v1398 = vunpack.c.l.b16 %v301
      %v1399 = vunpack.c.l.b16 %v302
      %v1400 = vpack.c.b16 %v1399, %v1398
      %v1402 = vshrl.u32 %v1400, 16
      %v1404 = vrot.slane %v1402, 7
      %v1405 = vshll.u32 %v1400, 16
      %v1407 = vor.u32 %v1404, %v1405
      %v1410 = vsel %vm417, 0, %v1407
      %v1411 = vsel %vm417, %v1404, 0
      %v1413 = vshrl.u32 %v1410, 16
      %v1415 = vshll.u32 %v1410, 16
      %v1417 = vrot.slane %v1415, 1
      %v1418 = vor.u32 %v1413, %v1417
      %v1420 = vshll.u32 %v1411, 16
      %v1422 = vrot.slane %v1420, 1
      %v1423 = vsel %vm434, %v1418, %v1422
      %v1427 = vrot.slane %v1410, 1
      %v1428 = vrot.slane %v1411, 1
      %v1429 = vsel %vm555, %v1427, %v1428
      %s1431 = scalar_lea.vmem %s2, 384
      %v1432 = vld [vmem:[%s1431] sm:$0xf]
      %v1433 = vld [vmem:[%s1431 + $0x4] sm:$0xf]
      %v1434 = vld [vmem:[%s1431 + $0x8] sm:$0xf]
      %v1435 = vld [vmem:[%s1431 + $0xc] sm:$0xf]
      %v1436 = vld [vmem:[%s1431 + $0x10] sm:$0xf]
      %v1437 = vld [vmem:[%s1431 + $0x14] sm:$0xf]
      %v1438 = vld [vmem:[%s1431 + $0x18] sm:$0xf]
      %v1439 = vld [vmem:[%s1431 + $0x1c] sm:$0xf]
      %v1440 = vld [vmem:[%s1431 + $0x20] sm:$0xf]
      %v1441 = vld [vmem:[%s1431 + $0x24] sm:$0xf]
      %v1442 = vld [vmem:[%s1431 + $0x28] sm:$0xf]
      %v1443 = vld [vmem:[%s1431 + $0x2c] sm:$0xf]
      %v1444 = vld [vmem:[%s1431 + $0x30] sm:$0xf]
      %v1445 = vld [vmem:[%s1431 + $0x34] sm:$0xf]
      %v1446 = vld [vmem:[%s1431 + $0x38] sm:$0xf]
      %v1447 = vld [vmem:[%s1431 + $0x3c] sm:$0xf]
      %v1448 = vld [vmem:[%s1431 + $0x40] sm:$0xf]
      %v1449 = vld [vmem:[%s1431 + $0x44] sm:$0xf]
      %v1450 = vld [vmem:[%s1431 + $0x48] sm:$0xf]
      %v1451 = vld [vmem:[%s1431 + $0x4c] sm:$0xf]
      %v1452 = vld [vmem:[%s1431 + $0x50] sm:$0xf]
      %v1453 = vld [vmem:[%s1431 + $0x54] sm:$0xf]
      %v1454 = vld [vmem:[%s1431 + $0x58] sm:$0xf]
      %v1455 = vld [vmem:[%s1431 + $0x5c] sm:$0xf]
      %v1456 = vld [vmem:[%s1431 + $0x60] sm:$0xf]
      %v1457 = vld [vmem:[%s1431 + $0x64] sm:$0xf]
      %v1458 = vld [vmem:[%s1431 + $0x68] sm:$0xf]
      %v1459 = vld [vmem:[%s1431 + $0x6c] sm:$0xf]
      %v1460 = vld [vmem:[%s1431 + $0x70] sm:$0xf]
      %v1461 = vld [vmem:[%s1431 + $0x74] sm:$0xf]
      %v1462 = vld [vmem:[%s1431 + $0x78] sm:$0xf]
      %v1463 = vld [vmem:[%s1431 + $0x7c] sm:$0xf]
      %v1464 = vld [vmem:[%s1431 + $0x80] sm:$0xf]
      %v1465 = vld [vmem:[%s1431 + $0x84] sm:$0xf]
      %v1466 = vld [vmem:[%s1431 + $0x88] sm:$0xf]
      %v1467 = vld [vmem:[%s1431 + $0x8c] sm:$0xf]
      %v1468 = vld [vmem:[%s1431 + $0x90] sm:$0xf]
      %v1469 = vld [vmem:[%s1431 + $0x94] sm:$0xf]
      %v1470 = vld [vmem:[%s1431 + $0x98] sm:$0xf]
      %v1471 = vld [vmem:[%s1431 + $0x9c] sm:$0xf]
      %v1472 = vld [vmem:[%s1431 + $0xa0] sm:$0xf]
      %v1473 = vld [vmem:[%s1431 + $0xa4] sm:$0xf]
      %v1474 = vld [vmem:[%s1431 + $0xa8] sm:$0xf]
      %v1475 = vld [vmem:[%s1431 + $0xac] sm:$0xf]
      %v1476 = vld [vmem:[%s1431 + $0xb0] sm:$0xf]
      %v1477 = vld [vmem:[%s1431 + $0xb4] sm:$0xf]
      %v1478 = vld [vmem:[%s1431 + $0xb8] sm:$0xf]
      %v1479 = vld [vmem:[%s1431 + $0xbc] sm:$0xf]
      %v1528 = vunpack.c.l.b16 %v1432
      %v1529 = vunpack.c.l.b16 %v1433
      %v1530 = vunpack.c.l.b16 %v1434
      %v1531 = vunpack.c.l.b16 %v1435
      %v1532 = vunpack.c.l.b16 %v1436
      %v1533 = vunpack.c.l.b16 %v1437
      %v1534 = vunpack.c.l.b16 %v1438
      %v1535 = vunpack.c.l.b16 %v1439
      %v1536 = vunpack.c.l.b16 %v1440
      %v1537 = vunpack.c.l.b16 %v1441
      %v1538 = vunpack.c.l.b16 %v1442
      %v1539 = vunpack.c.l.b16 %v1443
      %v1540 = vunpack.c.l.b16 %v1444
      %v1541 = vunpack.c.l.b16 %v1445
      %v1542 = vunpack.c.l.b16 %v1446
      %v1543 = vunpack.c.l.b16 %v1447
      %v1544 = vunpack.c.l.b16 %v1448
      %v1545 = vunpack.c.l.b16 %v1449
      %v1546 = vunpack.c.l.b16 %v1450
      %v1547 = vunpack.c.l.b16 %v1451
      %v1548 = vunpack.c.l.b16 %v1452
      %v1549 = vunpack.c.l.b16 %v1453
      %v1550 = vunpack.c.l.b16 %v1454
      %v1551 = vunpack.c.l.b16 %v1455
      %v1552 = vunpack.c.l.b16 %v1456
      %v1553 = vunpack.c.l.b16 %v1457
      %v1554 = vunpack.c.l.b16 %v1458
      %v1555 = vunpack.c.l.b16 %v1459
      %v1556 = vunpack.c.l.b16 %v1460
      %v1557 = vunpack.c.l.b16 %v1461
      %v1558 = vunpack.c.l.b16 %v1462
      %v1559 = vunpack.c.l.b16 %v1463
      %v1560 = vunpack.c.l.b16 %v1464
      %v1561 = vunpack.c.l.b16 %v1465
      %v1562 = vunpack.c.l.b16 %v1466
      %v1563 = vunpack.c.l.b16 %v1467
      %v1564 = vunpack.c.l.b16 %v1468
      %v1565 = vunpack.c.l.b16 %v1469
      %v1566 = vunpack.c.l.b16 %v1470
      %v1567 = vunpack.c.l.b16 %v1471
      %v1568 = vunpack.c.l.b16 %v1472
      %v1569 = vunpack.c.l.b16 %v1473
      %v1570 = vunpack.c.l.b16 %v1474
      %v1571 = vunpack.c.l.b16 %v1475
      %v1572 = vunpack.c.l.b16 %v1476
      %v1573 = vunpack.c.l.b16 %v1477
      %v1574 = vunpack.c.l.b16 %v1478
      %v1575 = vunpack.c.l.b16 %v1479
      %v1576 = vpack.c.b16 %v1529, %v1528
      %v1577 = vpack.c.b16 %v1531, %v1530
      %v1578 = vpack.c.b16 %v1533, %v1532
      %v1579 = vpack.c.b16 %v1535, %v1534
      %v1580 = vpack.c.b16 %v1537, %v1536
      %v1581 = vpack.c.b16 %v1539, %v1538
      %v1582 = vpack.c.b16 %v1541, %v1540
      %v1583 = vpack.c.b16 %v1543, %v1542
      %v1584 = vpack.c.b16 %v1545, %v1544
      %v1585 = vpack.c.b16 %v1547, %v1546
      %v1586 = vpack.c.b16 %v1549, %v1548
      %v1587 = vpack.c.b16 %v1551, %v1550
      %v1588 = vpack.c.b16 %v1553, %v1552
      %v1589 = vpack.c.b16 %v1555, %v1554
      %v1590 = vpack.c.b16 %v1557, %v1556
      %v1591 = vpack.c.b16 %v1559, %v1558
      %v1592 = vpack.c.b16 %v1561, %v1560
      %v1593 = vpack.c.b16 %v1563, %v1562
      %v1594 = vpack.c.b16 %v1565, %v1564
      %v1595 = vpack.c.b16 %v1567, %v1566
      %v1596 = vpack.c.b16 %v1569, %v1568
      %v1597 = vpack.c.b16 %v1571, %v1570
      %v1598 = vpack.c.b16 %v1573, %v1572
      %v1599 = vpack.c.b16 %v1575, %v1574
      %1624 = vmatprep.subr.bf16.mxu0 0
      %1625 = vmatpush1.bf16.msra.mxu0 %v1576
      %1626 = vmatprep.subr.bf16.mxu0 0
      %1627 = vmatpush1.bf16.msra.mxu0 %v1577
      %1628 = vmatprep.subr.bf16.mxu0 0
      %1629 = vmatpush1.bf16.msra.mxu0 %v1578
      %1630 = vmatprep.subr.bf16.mxu0 0
      %1631 = vmatpush1.bf16.msra.mxu0 %v1579
      %1632 = vmatprep.subr.bf16.mxu0 0
      %1633 = vmatpush1.bf16.msra.mxu0 %v1580
      %1634 = vmatprep.subr.bf16.mxu0 0
      %1635 = vmatpush1.bf16.msra.mxu0 %v1581
      %1636 = vmatprep.subr.bf16.mxu0 0
      %1637 = vmatpush1.bf16.msra.mxu0 %v1582
      %1638 = vmatprep.subr.bf16.mxu0 0
      %1639 = vmatpush1.bf16.msra.mxu0 %v1583
      %1640 = vmatprep.subr.bf16.mxu0 0
      %1641 = vmatpush1.bf16.msra.mxu0 %v1584
      %1642 = vmatprep.subr.bf16.mxu0 0
      %1643 = vmatpush1.bf16.msra.mxu0 %v1585
      %1644 = vmatprep.subr.bf16.mxu0 0
      %1645 = vmatpush1.bf16.msra.mxu0 %v1586
      %1646 = vmatprep.subr.bf16.mxu0 0
      %1647 = vmatpush1.bf16.msra.mxu0 %v1587
      %1648 = vmatprep.subr.bf16.mxu0 0
      %1649 = vmatpush1.bf16.msra.mxu0 %v1588
      %1650 = vmatprep.subr.bf16.mxu0 0
      %1651 = vmatpush1.bf16.msra.mxu0 %v1589
      %1652 = vmatprep.subr.bf16.mxu0 0
      %1653 = vmatpush1.bf16.msra.mxu0 %v1590
      %1654 = vmatprep.subr.bf16.mxu0 0
      %1655 = vmatpush1.bf16.msra.mxu0 %v1591
      %1656 = vmatprep.mubr.bf16.mxu0 %v470
      %1657 = vmatmul.mubr.bf16.gmra.mrb[0].mxu0 %v420
      %v1658 = vpop.f32.mrb[0].mxu0
      %v1659 = vadd.f32 0.0, %v1658
      %v1660 = vpop.f32.mrb[0].mxu0
      %v1661 = vpop.f32.mrb[0].mxu0
      %v1662 = vadd.f32 0.0, %v1661
      %v1663 = vpop.f32.mrb[0].mxu0
      %1664 = vmatprep.mubr.bf16.mxu0 %v482
      %1665 = vmatmul.mubr.bf16.gmra.mrb[0].mxu0 %v421
      %v1666 = vpop.f32.mrb[0].mxu0
      %v1667 = vadd.f32 0.0, %v1666
      %v1668 = vpop.f32.mrb[0].mxu0
      %v1669 = vpop.f32.mrb[0].mxu0
      %v1670 = vadd.f32 0.0, %v1669
      %v1671 = vpop.f32.mrb[0].mxu0
      %1672 = vmatprep.mubr.bf16.mxu0 %v494
      %1673 = vmatmul.mubr.bf16.gmra.mrb[0].mxu0 %v422
      %v1674 = vpop.f32.mrb[0].mxu0
      %v1675 = vadd.f32 0.0, %v1674
      %v1676 = vpop.f32.mrb[0].mxu0
      %v1677 = vpop.f32.mrb[0].mxu0
      %v1678 = vadd.f32 0.0, %v1677
      %v1679 = vpop.f32.mrb[0].mxu0
      %1680 = vmatprep.mubr.bf16.mxu0 %v506
      %1681 = vmatmul.mubr.bf16.gmra.mrb[0].mxu0 %v423
      %v1682 = vpop.f32.mrb[0].mxu0
      %v1683 = vadd.f32 0.0, %v1682
      %v1684 = vpop.f32.mrb[0].mxu0
      %v1685 = vpop.f32.mrb[0].mxu0
      %v1686 = vadd.f32 0.0, %v1685
      %v1687 = vpop.f32.mrb[0].mxu0
      %1688 = vmatprep.mubr.bf16.mxu0 %v518
      %1689 = vmatmul.mubr.bf16.gmra.mrb[0].mxu0 %v424
      %v1690 = vpop.f32.mrb[0].mxu0
      %v1691 = vadd.f32 0.0, %v1690
      %v1692 = vpop.f32.mrb[0].mxu0
      %v1693 = vpop.f32.mrb[0].mxu0
      %v1694 = vadd.f32 0.0, %v1693
      %v1695 = vpop.f32.mrb[0].mxu0
      %1696 = vmatprep.mubr.bf16.mxu0 %v530
      %1697 = vmatmul.mubr.bf16.gmra.mrb[0].mxu0 %v425
      %v1698 = vpop.f32.mrb[0].mxu0
      %v1699 = vadd.f32 0.0, %v1698
      %v1700 = vpop.f32.mrb[0].mxu0
      %v1701 = vpop.f32.mrb[0].mxu0
      %v1702 = vadd.f32 0.0, %v1701
      %v1703 = vpop.f32.mrb[0].mxu0
      %1704 = vmatprep.mubr.bf16.mxu0 %v663
      %1705 = vmatmul.mubr.bf16.gmra.mrb[0].mxu0 %v650
      %v1706 = vpop.f32.mrb[0].mxu0
      %v1707 = vadd.f32 0.0, %v1706
      %v1708 = vpop.f32.mrb[0].mxu0
      %v1709 = vpop.f32.mrb[0].mxu0
      %v1710 = vadd.f32 0.0, %v1709
      %v1711 = vpop.f32.mrb[0].mxu0
      %1712 = vmatprep.mubr.bf16.mxu0 %v1423
      %1713 = vmatmul.mubr.bf16.gmra.mrb[0].mxu0 %v1410
      %v1714 = vpop.f32.mrb[0].mxu0
      %v1715 = vadd.f32 0.0, %v1714
      %v1716 = vpop.f32.mrb[0].mxu0
      %v1717 = vpop.f32.mrb[0].mxu0
      %v1718 = vadd.f32 0.0, %v1717
      %v1719 = vpop.f32.mrb[0].mxu0
      %1720 = vdwg.mxu0
      %1721 = vmatprep.subr.bf16.mxu0 0
      %1722 = vmatpush1.bf16.msra.mxu0 %v1592
      %1723 = vmatprep.subr.bf16.mxu0 0
      %1724 = vmatpush1.bf16.msra.mxu0 %v1593
      %1725 = vmatprep.subr.bf16.mxu0 0
      %1726 = vmatpush1.bf16.msra.mxu0 %v1594
      %1727 = vmatprep.subr.bf16.mxu0 0
      %1728 = vmatpush1.bf16.msra.mxu0 %v1595
      %1729 = vmatprep.subr.bf16.mxu0 0
      %1730 = vmatpush1.bf16.msra.mxu0 %v1596
      %1731 = vmatprep.subr.bf16.mxu0 0
      %1732 = vmatpush1.bf16.msra.mxu0 %v1597
      %1733 = vmatprep.subr.bf16.mxu0 0
      %1734 = vmatpush1.bf16.msra.mxu0 %v1598
      %1735 = vmatprep.subr.bf16.mxu0 0
      %1736 = vmatpush1.bf16.msra.mxu0 %v1599
      %1737 = vmatprep.subr.bf16.mxu0 0
      %1738 = vmatpush1.bf16.msra.mxu0 0
      %1739 = vmatprep.subr.bf16.mxu0 0
      %1740 = vmatpush1.bf16.msra.mxu0 0
      %1741 = vmatprep.subr.bf16.mxu0 0
      %1742 = vmatpush1.bf16.msra.mxu0 0
      %1743 = vmatprep.subr.bf16.mxu0 0
      %1744 = vmatpush1.bf16.msra.mxu0 0
      %1745 = vmatprep.subr.bf16.mxu0 0
      %1746 = vmatpush1.bf16.msra.mxu0 0
      %1747 = vmatprep.subr.bf16.mxu0 0
      %1748 = vmatpush1.bf16.msra.mxu0 0
      %1749 = vmatprep.subr.bf16.mxu0 0
      %1750 = vmatpush1.bf16.msra.mxu0 0
      %1751 = vmatprep.subr.bf16.mxu0 0
      %1752 = vmatpush1.bf16.msra.mxu0 0
      %1753 = vmatprep.mubr.bf16.mxu0 0
      %1754 = vmatmul.mubr.bf16.gmra.mrb[0].mxu0 %v564
      %v1755 = vpop.f32.mrb[0].mxu0
      %v1756 = vadd.f32 %v1659, %v1755
      %v1757 = vpop.f32.mrb[0].mxu0
      %v1758 = vpop.f32.mrb[0].mxu0
      %v1759 = vadd.f32 %v1662, %v1758
      %v1760 = vpop.f32.mrb[0].mxu0
      %1761 = vmatprep.mubr.bf16.mxu0 0
      %1762 = vmatmul.mubr.bf16.gmra.mrb[0].mxu0 %v567
      %v1763 = vpop.f32.mrb[0].mxu0
      %v1764 = vadd.f32 %v1667, %v1763
      %v1765 = vpop.f32.mrb[0].mxu0
      %v1766 = vpop.f32.mrb[0].mxu0
      %v1767 = vadd.f32 %v1670, %v1766
      %v1768 = vpop.f32.mrb[0].mxu0
      %1769 = vmatprep.mubr.bf16.mxu0 0
      %1770 = vmatmul.mubr.bf16.gmra.mrb[0].mxu0 %v570
      %v1771 = vpop.f32.mrb[0].mxu0
      %v1772 = vadd.f32 %v1675, %v1771
      %v1773 = vpop.f32.mrb[0].mxu0
      %v1774 = vpop.f32.mrb[0].mxu0
      %v1775 = vadd.f32 %v1678, %v1774
      %v1776 = vpop.f32.mrb[0].mxu0
      %1777 = vmatprep.mubr.bf16.mxu0 0
      %1778 = vmatmul.mubr.bf16.gmra.mrb[0].mxu0 %v573
      %v1779 = vpop.f32.mrb[0].mxu0
      %v1780 = vadd.f32 %v1683, %v1779
      %v1781 = vpop.f32.mrb[0].mxu0
      %v1782 = vpop.f32.mrb[0].mxu0
      %v1783 = vadd.f32 %v1686, %v1782
      %v1784 = vpop.f32.mrb[0].mxu0
      %1785 = vmatprep.mubr.bf16.mxu0 0
      %1786 = vmatmul.mubr.bf16.gmra.mrb[0].mxu0 %v576
      %v1787 = vpop.f32.mrb[0].mxu0
      %v1788 = vadd.f32 %v1691, %v1787
      %v1789 = vpop.f32.mrb[0].mxu0
      %v1790 = vpop.f32.mrb[0].mxu0
      %v1791 = vadd.f32 %v1694, %v1790
      %v1792 = vpop.f32.mrb[0].mxu0
      %1793 = vmatprep.mubr.bf16.mxu0 0
      %1794 = vmatmul.mubr.bf16.gmra.mrb[0].mxu0 %v579
      %v1795 = vpop.f32.mrb[0].mxu0
      %v1796 = vadd.f32 %v1699, %v1795
      %v1797 = vpop.f32.mrb[0].mxu0
      %v1798 = vpop.f32.mrb[0].mxu0
      %v1799 = vadd.f32 %v1702, %v1798
      %v1800 = vpop.f32.mrb[0].mxu0
      %1801 = vmatprep.mubr.bf16.mxu0 0
      %1802 = vmatmul.mubr.bf16.gmra.mrb[0].mxu0 %v669
      %v1803 = vpop.f32.mrb[0].mxu0
      %v1804 = vadd.f32 %v1707, %v1803
      %v1805 = vpop.f32.mrb[0].mxu0
      %v1806 = vpop.f32.mrb[0].mxu0
      %v1807 = vadd.f32 %v1710, %v1806
      %v1808 = vpop.f32.mrb[0].mxu0
      %1809 = vmatprep.mubr.bf16.mxu0 0
      %1810 = vmatmul.mubr.bf16.gmra.mrb[0].mxu0 %v1429
      %v1811 = vpop.f32.mrb[0].mxu0
      %v1812 = vadd.f32 %v1715, %v1811
      %v1813 = vpop.f32.mrb[0].mxu0
      %v1814 = vpop.f32.mrb[0].mxu0
      %v1815 = vadd.f32 %v1718, %v1814
      %v1816 = vpop.f32.mrb[0].mxu0
      %1817 = vdwg.mxu0
      %v1818 = vadd.f32 %v1334, %v1756
      %v1819 = vadd.f32 %v1337, %v1759
      %v1820 = vadd.f32 %v1342, %v1764
      %v1821 = vadd.f32 %v1345, %v1767
      %v1822 = vadd.f32 %v1350, %v1772
      %v1823 = vadd.f32 %v1353, %v1775
      %v1824 = vadd.f32 %v1358, %v1780
      %v1825 = vadd.f32 %v1361, %v1783
      %v1826 = vadd.f32 %v1366, %v1788
      %v1827 = vadd.f32 %v1369, %v1791
      %v1828 = vadd.f32 %v1374, %v1796
      %v1829 = vadd.f32 %v1377, %v1799
      %v1830 = vadd.f32 %v1382, %v1804
      %v1831 = vadd.f32 %v1385, %v1807
      %v1832 = vadd.f32 %v1390, %v1812
      %v1833 = vadd.f32 %v1393, %v1815
      %v1834 = vld [vmem:[%s3] sm:$0x1]
      %v1836 = vlaneseq
      %v1837 = vshrl.u32 %v1836, 7
      %v1838 = vsub.s32 0, %v1837
      %v1839 = vrot.slane %v1834, %v1838
      %v1841 = vadd.f32 %v1818, %v1839
      %v1842 = vadd.f32 %v1819, %v1839
      %v1843 = vadd.f32 %v1820, %v1839
      %v1844 = vadd.f32 %v1821, %v1839
      %v1845 = vadd.f32 %v1822, %v1839
      %v1846 = vadd.f32 %v1823, %v1839
      %v1847 = vadd.f32 %v1824, %v1839
      %v1848 = vadd.f32 %v1825, %v1839
      %v1849 = vadd.f32 %v1826, %v1839
      %v1850 = vadd.f32 %v1827, %v1839
      %v1851 = vadd.f32 %v1828, %v1839
      %v1852 = vadd.f32 %v1829, %v1839
      %v1853 = vadd.f32 %v1830, %v1839
      %v1854 = vadd.f32 %v1831, %v1839
      %v1855 = vadd.f32 %v1832, %v1839
      %v1856 = vadd.f32 %v1833, %v1839
      %v1857 = vmax.f32 %v1841, 0.0
      %v1858 = vmax.f32 %v1842, 0.0
      %v1859 = vmax.f32 %v1843, 0.0
      %v1860 = vmax.f32 %v1844, 0.0
      %v1861 = vmax.f32 %v1845, 0.0
      %v1862 = vmax.f32 %v1846, 0.0
      %v1863 = vmax.f32 %v1847, 0.0
      %v1864 = vmax.f32 %v1848, 0.0
      %v1865 = vmax.f32 %v1849, 0.0
      %v1866 = vmax.f32 %v1850, 0.0
      %v1867 = vmax.f32 %v1851, 0.0
      %v1868 = vmax.f32 %v1852, 0.0
      %v1869 = vmax.f32 %v1853, 0.0
      %v1870 = vmax.f32 %v1854, 0.0
      %v1871 = vmax.f32 %v1855, 0.0
      %v1872 = vmax.f32 %v1856, 0.0
      %v1873 = vpack.c.bf16 %v1858, %v1857
      %v1874 = vpack.c.bf16 %v1860, %v1859
      %v1875 = vpack.c.bf16 %v1862, %v1861
      %v1876 = vpack.c.bf16 %v1864, %v1863
      %v1877 = vpack.c.bf16 %v1866, %v1865
      %v1878 = vpack.c.bf16 %v1868, %v1867
      %v1879 = vpack.c.bf16 %v1870, %v1869
      %v1880 = vpack.c.bf16 %v1872, %v1871
      %v1889 = vunpack.c.l.b16 %v1873
      %v1890 = vunpack.c.h.b16 %v1873
      %v1891 = vunpack.c.l.b16 %v1874
      %v1892 = vunpack.c.h.b16 %v1874
      %v1893 = vunpack.c.l.b16 %v1875
      %v1894 = vunpack.c.h.b16 %v1875
      %v1895 = vunpack.c.l.b16 %v1876
      %v1896 = vunpack.c.h.b16 %v1876
      %v1897 = vunpack.c.l.b16 %v1877
      %v1898 = vunpack.c.h.b16 %v1877
      %v1899 = vunpack.c.l.b16 %v1878
      %v1900 = vunpack.c.h.b16 %v1878
      %v1901 = vunpack.c.l.b16 %v1879
      %v1902 = vunpack.c.h.b16 %v1879
      %v1903 = vunpack.c.l.b16 %v1880
      %v1904 = vunpack.c.h.b16 %v1880
      %v1905 = vpack.c.b16 %v1889, %v1889
      %v1906 = vpack.c.b16 %v1890, %v1890
      %v1907 = vpack.c.b16 %v1891, %v1891
      %v1908 = vpack.c.b16 %v1892, %v1892
      %v1909 = vpack.c.b16 %v1893, %v1893
      %v1910 = vpack.c.b16 %v1894, %v1894
      %v1911 = vpack.c.b16 %v1895, %v1895
      %v1912 = vpack.c.b16 %v1896, %v1896
      %v1913 = vpack.c.b16 %v1897, %v1897
      %v1914 = vpack.c.b16 %v1898, %v1898
      %v1915 = vpack.c.b16 %v1899, %v1899
      %v1916 = vpack.c.b16 %v1900, %v1900
      %v1917 = vpack.c.b16 %v1901, %v1901
      %v1918 = vpack.c.b16 %v1902, %v1902
      %v1919 = vpack.c.b16 %v1903, %v1903
      %v1920 = vpack.c.b16 %v1904, %v1904
      %1937 = vst [vmem:[%s279] sm:$0xf] %v1905
      %1938 = vst [vmem:[%s279 + $0x4] sm:$0xf] %v1906
      %1939 = vst [vmem:[%s279 + $0x8] sm:$0xf] %v1907
      %1940 = vst [vmem:[%s279 + $0xc] sm:$0xf] %v1908
      %1941 = vst [vmem:[%s279 + $0x10] sm:$0xf] %v1909
      %1942 = vst [vmem:[%s279 + $0x14] sm:$0xf] %v1910
      %1943 = vst [vmem:[%s279 + $0x18] sm:$0xf] %v1911
      %1944 = vst [vmem:[%s279 + $0x1c] sm:$0xf] %v1912
      %1945 = vst [vmem:[%s279 + $0x20] sm:$0xf] %v1913
      %1946 = vst [vmem:[%s279 + $0x24] sm:$0xf] %v1914
      %1947 = vst [vmem:[%s279 + $0x28] sm:$0xf] %v1915
      %1948 = vst [vmem:[%s279 + $0x2c] sm:$0xf] %v1916
      %1949 = vst [vmem:[%s279 + $0x30] sm:$0xf] %v1917
      %1950 = vst [vmem:[%s279 + $0x34] sm:$0xf] %v1918
      %1951 = vst [vmem:[%s279 + $0x38] sm:$0xf] %v1919
      %1952 = vst [vmem:[%s279 + $0x3c] sm:$0xf] %v1920
      %s1953 = smul.u32 8, %s20
      %p1954 = scmp.lt.s32.totalorder %s19, 1
      %s1955 = scalar_select %p1954, %s19, 1
      %p1956 = scmp.lt.s32.totalorder %s1953, 15
      %s1957 = scalar_select %p1956, %s1953, 15
      %s1958 = smul.addr %s1957, 2
      %s1959 = smul.addr %s1955, 32
      %s1960 = sadd.s32 %s1958, %s1959
      %s1961 = smul.addr %s1960, 4
      %s1962 = scalar_lea.vmem %s4, %s1961
      // Predicated region
      $region37: #{_lambda_.4} parent=35 // pred_check
        %p1963 = pneg %p145
      $region38: #{_lambda_.4} parent=35 // pred_check_branch
        %1965 = sbr.rel (%p1963) target = $region40
      $region39: #{_lambda_.4} parent=35 // pred_region
        %s1966 = smul.u32 8, %s20
      $region40: #{_lambda_.4} parent=35 // pred_fallthru
        _
    $region36: #{_lambda_.4} parent=5 // pred_fallthru
      _
    %p1967 = scmp.le.s32.totalorder 2, %s10
    // Predicated region
    $region41: #{_lambda_.4} parent=5 // pred_check
      %p1968 = pneg %p1967
    $region42: #{_lambda_.4} parent=5 // pred_check_branch
      %1970 = sbr.rel (%p1968) target = $region44
    $region43: #{_lambda_.4} parent=5 // pred_region
      %s1971 = ssub.s32 %s10, 2
      // Predicated region
      $region45: #{_lambda_.4} parent=43 // pred_check
        %p1972 = pneg %p151
      $region46: #{_lambda_.4} parent=43 // pred_check_branch
        %1974 = sbr.rel (%p1972) target = $region48
      $region47: #{_lambda_.4} parent=43 // pred_region
        %s1975 = smul.u32 8, %s22
        %p1976 = scmp.lt.s32.totalorder %s21, 1
        %s1977 = scalar_select %p1976, %s21, 1
        %p1978 = scmp.lt.s32.totalorder %s1975, 15
        %s1979 = scalar_select %p1978, %s1975, 15
        %s1980 = smul.addr %s1979, 2
        %s1981 = smul.addr %s1977, 32
        %s1982 = sadd.s32 %s1980, %s1981
        %s1983 = smul.addr %s1982, 4
        %s1984 = scalar_lea.vmem %s4, %s1983
      $region48: #{_lambda_.4} parent=43 // pred_fallthru
        _
    $region44: #{_lambda_.4} parent=5 // pred_fallthru
      _
  $region6: #{_lambda_.4} parent=0 // loop_footer
    %s14 = sadd.s32 1, %s10
  $region7: #{_lambda_.4} parent=0 // loop_footer_branch
    %9 = sbr.rel target = $region3
  $region8: #{_lambda_.4} parent=0 // loop_exit
    _

</llo_original>
